<compile_context>
chip_gen: v7x
topology: tpu7x:2x2x1
jax: 0.10.0
libtpu: 0.0.40
codegen_flags: <defaults>
</compile_context>

<pallas_src>
import functools

import jax
import jax.numpy as jnp
from jax.experimental import pallas as pl
from jax.experimental.pallas import tpu as pltpu

BN_EPS = 1e-5
TM_MAX = 256                     # rows of N*Ho*Wo per tile (multiple of 8)
TK_MAX = 1024                    # max contraction tile (multiple of 128)
VMEM_LIMIT = 32 * 1024 * 1024    # explicit scoped-VMEM budget (safe on v7x)


def _round_up(v, m):
    return (v + m - 1) // m * m


def _plan_m(m):
    tm = min(TM_MAX, _round_up(m, 8))
    return tm, _round_up(m, tm)


def _plan_k(kc):
    kc128 = _round_up(kc, 128)
    if kc128 <= TK_MAX:
        return kc128, 1
    n_k = -(-kc128 // TK_MAX)                 # ceil
    tk = _round_up(-(-kc128 // n_k), 128)
    return tk, n_k


# ---------------------------------------------------------------------------
# Pallas kernel 1: conv as one tiled MXU matmul.
# grid = (M_tiles "parallel", Kc_tiles "arbitrary"); accumulate into the f32
# output block; fuse bias, optional tanh and optional BN partial stats.
# ---------------------------------------------------------------------------
def _conv_kernel(x_ref, w_ref, b_ref, y_ref, *stat_refs, activation, with_stats):
    k = pl.program_id(1)

    @pl.when(k == 0)
    def _():
        y_ref[...] = jnp.zeros_like(y_ref)

    # (TM, TK) bf16 @ (TK, Cout) bf16 -> f32, accumulated straight into the
    # resident output block (no scratch).
    y_ref[...] += jnp.dot(x_ref[...], w_ref[...],
                          preferred_element_type=jnp.float32)

    @pl.when(k == pl.num_programs(1) - 1)
    def _():
        y = y_ref[...] + b_ref[...]
        if activation == "tanh":
            y = jnp.tanh(y)
        y_ref[...] = y
        if with_stats:
            sum_ref, ssq_ref = stat_refs
            sum_ref[...] = jnp.sum(y, axis=0, keepdims=True).reshape(sum_ref.shape)
            ssq_ref[...] = jnp.sum(y * y, axis=0, keepdims=True).reshape(ssq_ref.shape)


def conv_matmul(x_cols, w_cols, bias, *, activation="none", with_stats=False):
    """Stride-1 conv as a tiled MXU matmul.

    x_cols : (M, Kc)   bf16, Kc = K*K*Cin (kh-major, kw, cin ordering)
    w_cols : (Kc, Cout) bf16
    bias   : (1, Cout)  f32
    Returns y_pad (M_pad, Cout) f32 and, if with_stats, per-M-tile channel
    sums / sums-of-squares of y_pad (each (n_m, 1, Cout) f32).
    """
    m, kc = x_cols.shape
    cout = w_cols.shape[-1]
    tm, m_pad = _plan_m(m)
    tk, n_k = _plan_k(kc)
    kc_pad = tk * n_k
    n_m = m_pad // tm

    x_cols = jnp.pad(x_cols, ((0, m_pad - m), (0, kc_pad - kc)))
    w_cols = jnp.pad(w_cols, ((0, kc_pad - kc), (0, 0)))

    kernel = functools.partial(_conv_kernel, activation=activation,
                               with_stats=with_stats)

    y_shape = jax.ShapeDtypeStruct((m_pad, cout), jnp.float32)
    y_spec = pl.BlockSpec((tm, cout), lambda i, k: (i, 0))
    if with_stats:
        st_shape = jax.ShapeDtypeStruct((n_m, 1, cout), jnp.float32)
        st_spec = pl.BlockSpec((1, 1, cout), lambda i, k: (i, 0, 0))
        out_shape = (y_shape, st_shape, st_shape)
        out_specs = (y_spec, st_spec, st_spec)
    else:
        out_shape = y_shape
        out_specs = y_spec

    return pl.pallas_call(
        kernel,
        out_shape=out_shape,
        grid_spec=pltpu.PrefetchScalarGridSpec(
            num_scalar_prefetch=0,
            grid=(n_m, n_k),
            in_specs=[
                pl.BlockSpec((tm, tk), lambda i, k: (i, k)),
                pl.BlockSpec((tk, cout), lambda i, k: (k, 0)),
                pl.BlockSpec((1, cout), lambda i, k: (0, 0)),
            ],
            out_specs=out_specs,
        ),
        compiler_params=pltpu.CompilerParams(
            dimension_semantics=("parallel", "arbitrary"),
            vmem_limit_bytes=VMEM_LIMIT),
    )(x_cols, w_cols, bias)


# ---------------------------------------------------------------------------
# Pallas kernel 2: apply BatchNorm scale/shift + ReLU, tiled over M, bf16 out.
# ---------------------------------------------------------------------------
def _bn_relu_kernel(y_ref, scale_ref, shift_ref, o_ref):
    y = y_ref[...] * scale_ref[...] + shift_ref[...]
    o_ref[...] = jnp.maximum(y, 0.0).astype(o_ref.dtype)


def bn_relu_apply(y_pad, scale, shift, out_dtype=jnp.bfloat16):
    m_pad, c = y_pad.shape
    tm = min(TM_MAX, m_pad)
    n_m = m_pad // tm
    return pl.pallas_call(
        _bn_relu_kernel,
        out_shape=jax.ShapeDtypeStruct((m_pad, c), out_dtype),
        grid_spec=pltpu.PrefetchScalarGridSpec(
            num_scalar_prefetch=0,
            grid=(n_m,),
            in_specs=[
                pl.BlockSpec((tm, c), lambda i: (i, 0)),
                pl.BlockSpec((1, c), lambda i: (0, 0)),
                pl.BlockSpec((1, c), lambda i: (0, 0)),
            ],
            out_specs=pl.BlockSpec((tm, c), lambda i: (i, 0)),
        ),
        compiler_params=pltpu.CompilerParams(
            dimension_semantics=("parallel",),
            vmem_limit_bytes=VMEM_LIMIT),
    )(y_pad, scale, shift)


def bn_scale_shift(sum_t, ssq_t, gamma, beta, bias, m_real, n_pad_rows):
    """Fold training-mode BatchNorm (biased variance) into per-channel
    scale/shift.  The per-tile partial sums include the zero-input padded rows,
    each of which equals `bias` exactly, so subtract their contribution."""
    s = jnp.sum(sum_t, axis=(0, 1)) - n_pad_rows * bias
    q = jnp.sum(ssq_t, axis=(0, 1)) - n_pad_rows * bias * bias
    mean = s / m_real
    var = q / m_real - mean * mean
    inv = jax.lax.rsqrt(var + BN_EPS)
    scale = gamma * inv
    shift = beta - mean * scale
    return scale.reshape(1, -1), shift.reshape(1, -1)


# ---------------------------------------------------------------------------
# JAX glue: dilation / padding / im2col / weight re-layout.
# ---------------------------------------------------------------------------
def dilate_and_pad(x, *, stride, k, pad, out_pad):
    """ConvTranspose2d(k, stride, pad, out_pad) == stride-1 conv (flipped w) on this."""
    n, h, w, c = x.shape
    hd, wd = (h - 1) * stride + 1, (w - 1) * stride + 1
    xd = jnp.zeros((n, hd, wd, c), x.dtype).at[:, ::stride, ::stride, :].set(x)
    lo = k - 1 - pad
    hi = k - 1 - pad + out_pad
    return jnp.pad(xd, ((0, 0), (lo, hi), (lo, hi), (0, 0)))


def im2col(xp, k):
    """Stride-1 im2col -> ((N*Ho*Wo, K*K*C), (N, Ho, Wo)); (kh, kw, c) order."""
    n, hp, wp, c = xp.shape
    ho, wo = hp - k + 1, wp - k + 1
    cols = [xp[:, kh:kh + ho, kw:kw + wo, :]
            for kh in range(k) for kw in range(k)]
    cols = jnp.concatenate(cols, axis=-1)
    return cols.reshape(n * ho * wo, k * k * c), (n, ho, wo)


def convt_weight_cols(wt):
    """ConvTranspose2d weight (Cin, Cout, K, K) -> (K*K*Cin, Cout) for the
    equivalent stride-1 conv (spatially flipped)."""
    w = wt[:, :, ::-1, ::-1]
    w = jnp.transpose(w, (2, 3, 0, 1))              # (K, K, Cin, Cout)
    kk, _, cin, cout = w.shape
    return w.reshape(kk * kk * cin, cout)


def conv_weight_cols(wc):
    """Conv2d weight (Cout, Cin, K, K) -> (K*K*Cin, Cout)."""
    w = jnp.transpose(wc, (2, 3, 1, 0))             # (K, K, Cin, Cout)
    kk, _, cin, cout = w.shape
    return w.reshape(kk * kk * cin, cout)


# ---------------------------------------------------------------------------
# Parameters (deterministic, matching the nn.Module's shapes).
# ---------------------------------------------------------------------------
def init_params(key):
    ks = jax.random.split(key, 8)

    def w(k, shape, fan_in):
        return jax.random.normal(k, shape, jnp.float32) / jnp.sqrt(float(fan_in))

    p = {}
    p["wt1"] = w(ks[0], (192, 128, 5, 5), 192 * 25)   # ConvTranspose2d layout
    p["b1"] = 0.01 * jax.random.normal(ks[1], (128,), jnp.float32)
    p["wt2"] = w(ks[2], (128, 64, 5, 5), 128 * 25)
    p["b2"] = 0.01 * jax.random.normal(ks[3], (64,), jnp.float32)
    p["wt3"] = w(ks[4], (64, 32, 3, 3), 64 * 9)
    p["b3"] = 0.01 * jax.random.normal(ks[5], (32,), jnp.float32)
    p["wc4"] = w(ks[6], (3, 32, 7, 7), 32 * 49)       # Conv2d layout
    p["b4"] = 0.01 * jax.random.normal(ks[7], (3,), jnp.float32)
    for i, c in zip((1, 2, 3), (128, 64, 32)):        # BatchNorm2d defaults
        p[f"g{i}"] = jnp.ones((c,), jnp.float32)
        p[f"be{i}"] = jnp.zeros((c,), jnp.float32)
    return p


# ---------------------------------------------------------------------------
# Forward pass (semantics of AlexNet_Reconstructor_shape.forward).
# ---------------------------------------------------------------------------
def _convt_bn_relu(x, wt, b, gamma, beta, *, stride, k, pad, out_pad):
    xp = dilate_and_pad(x, stride=stride, k=k, pad=pad, out_pad=out_pad)
    cols, (n, ho, wo) = im2col(xp, k)
    m = n * ho * wo
    w_cols = convt_weight_cols(wt).astype(jnp.bfloat16)
    cout = w_cols.shape[-1]
    bias = b.reshape(1, -1)
    y_pad, sum_t, ssq_t = conv_matmul(cols, w_cols, bias, with_stats=True)
    scale, shift = bn_scale_shift(sum_t, ssq_t, gamma, beta, b,
                                  m, y_pad.shape[0] - m)
    yn = bn_relu_apply(y_pad, scale, shift)           # bf16 activations
    return yn[:m].reshape(n, ho, wo, cout)


def forward(x_nchw, p):
    x = jnp.transpose(x_nchw, (0, 2, 3, 1)).astype(jnp.bfloat16)  # NCHW -> NHWC

    # convt1 (192->128, k5, s3, p1, op2) + BN + ReLU
    x = _convt_bn_relu(x, p["wt1"], p["b1"], p["g1"], p["be1"],
                       stride=3, k=5, pad=1, out_pad=2)
    # convt2 (128->64, k5, s3, p1, op2) + BN + ReLU
    x = _convt_bn_relu(x, p["wt2"], p["b2"], p["g2"], p["be2"],
                       stride=3, k=5, pad=1, out_pad=2)
    # convt3 (64->32, k3, s2, p1, op1) + BN + ReLU
    x = _convt_bn_relu(x, p["wt3"], p["b3"], p["g3"], p["be3"],
                       stride=2, k=3, pad=1, out_pad=1)

    # conv4 (32->3, k7, p0) + tanh, computed into a lane-dense 128-wide slab.
    cols, (n, ho, wo) = im2col(x, 7)
    m = n * ho * wo
    w4 = conv_weight_cols(p["wc4"])                               # (K*K*32, 3)
    w4 = jnp.pad(w4, ((0, 0), (0, 128 - w4.shape[-1]))).astype(jnp.bfloat16)
    b4 = jnp.pad(p["b4"], (0, 128 - p["b4"].shape[0])).reshape(1, -1)
    y_pad = conv_matmul(cols, w4, b4, activation="tanh", with_stats=False)
    out = y_pad[:m, :3].reshape(n, ho, wo, 3)
    return jnp.transpose(out, (0, 3, 1, 2))           # NHWC -> NCHW, f32


if __name__ == "__main__":
    root = jax.random.PRNGKey(0)
    k_in, k_par = jax.random.split(root)
    # Small but shape-consistent input: batch=2, channels=192 (required by
    # convt1), spatial=2.  Final output is (2, 3, 46, 46).
    x = jax.random.normal(k_in, (2, 192, 2, 2), dtype=jnp.float32)
    params = init_params(k_par)

    out = jax.jit(lambda inp: forward(inp, params))(x)
    out = jax.block_until_ready(out)
    assert out.shape == (2, 3, 46, 46), out.shape
    assert bool(jnp.all(jnp.isfinite(out)))
    print("KERNEL_OK")
</pallas_src>

<mosaic_0001>
module attributes {stable_mosaic.version = 11 : i64} {
  func.func @_conv_kernel(%arg0: i32, %arg1: i32, %arg2: memref<128x1024xbf16, #tpu.memory_space<vmem>>, %arg3: memref<1024x128xbf16, #tpu.memory_space<vmem>>, %arg4: memref<1x128xf32, #tpu.memory_space<vmem>>, %arg5: memref<128x128xf32, #tpu.memory_space<vmem>>, %arg6: memref<1x1x128xf32, #tpu.memory_space<vmem>>, %arg7: memref<1x1x128xf32, #tpu.memory_space<vmem>>) attributes {dimension_semantics = [#tpu.dimension_semantics<parallel>, #tpu.dimension_semantics<arbitrary>], iteration_bounds = array<i64: 1, 5>, scalar_prefetch = 0 : i64, scratch_operands = 0 : i64, tpu.core_type = #tpu.core_type<tc>, window_params = [{transform_indices = @transform_0, window_bounds = array<i64: 128, 1024>}, {transform_indices = @transform_1, window_bounds = array<i64: 1024, 128>}, {pipeline_mode = #tpu.pipeline_mode<synchronous>, transform_indices = @transform_2, window_bounds = array<i64: 1, 128>}, {transform_indices = @transform_3, window_bounds = array<i64: 128, 128>}, {transform_indices = @transform_4, window_bounds = array<i64: 1, 1, 128>}, {transform_indices = @transform_5, window_bounds = array<i64: 1, 1, 128>}]} {
    %c0_i32 = arith.constant 0 : i32
    %0 = arith.cmpi eq, %arg1, %c0_i32 : i32
    %1 = arith.extui %0 : i1 to i32
    %c0_i32_0 = arith.constant 0 : i32
    %2 = arith.cmpi ne, %1, %c0_i32_0 : i32
    scf.if %2 {
      %cst_9 = arith.constant 0.000000e+00 : f32
      %12 = vector.broadcast %cst_9 : f32 to vector<128x128xf32>
      %c0_10 = arith.constant 0 : index
      %c0_11 = arith.constant 0 : index
      %13 = vector.load %arg5[%c0_10, %c0_11] : memref<128x128xf32, #tpu.memory_space<vmem>>, vector<128x128xf32>
      tpu.vector_store %arg5[%c0_10, %c0_11], %12 {strides = array<i32>} : memref<128x128xf32, #tpu.memory_space<vmem>>, vector<128x128xf32>,
    } else {
    }
    %c0 = arith.constant 0 : index
    %c0_1 = arith.constant 0 : index
    %3 = vector.load %arg5[%c0, %c0_1] : memref<128x128xf32, #tpu.memory_space<vmem>>, vector<128x128xf32>
    %c0_2 = arith.constant 0 : index
    %c0_3 = arith.constant 0 : index
    %4 = vector.load %arg2[%c0_2, %c0_3] : memref<128x1024xbf16, #tpu.memory_space<vmem>>, vector<128x1024xbf16>
    %c0_4 = arith.constant 0 : index
    %c0_5 = arith.constant 0 : index
    %5 = vector.load %arg3[%c0_4, %c0_5] : memref<1024x128xbf16, #tpu.memory_space<vmem>>, vector<1024x128xbf16>
    %cst = arith.constant dense<0.000000e+00> : vector<128x128xf32>
    %6 = tpu.matmul %4, %5, %cst {dimension_numbers = #tpu.dot_dimension_numbers<[1], [0], [0], [1], [0, 0, 1, 1], [], []>} : vector<128x1024xbf16>, vector<1024x128xbf16>, vector<128x128xf32> -> vector<128x128xf32>
    %7 = arith.addf %3, %6 : vector<128x128xf32>
    %c0_6 = arith.constant 0 : index
    %c0_7 = arith.constant 0 : index
    %8 = vector.load %arg5[%c0_6, %c0_7] : memref<128x128xf32, #tpu.memory_space<vmem>>, vector<128x128xf32>
    tpu.vector_store %arg5[%c0_6, %c0_7], %7 {strides = array<i32>} : memref<128x128xf32, #tpu.memory_space<vmem>>, vector<128x128xf32>,
    %c4_i32 = arith.constant 4 : i32
    %9 = arith.cmpi eq, %arg1, %c4_i32 : i32
    %10 = arith.extui %9 : i1 to i32
    %c0_i32_8 = arith.constant 0 : i32
    %11 = arith.cmpi ne, %10, %c0_i32_8 : i32
    scf.if %11 {
      %c0_9 = arith.constant 0 : index
      %c0_10 = arith.constant 0 : index
      %12 = vector.load %arg5[%c0_9, %c0_10] : memref<128x128xf32, #tpu.memory_space<vmem>>, vector<128x128xf32>
      %c0_11 = arith.constant 0 : index
      %c0_12 = arith.constant 0 : index
      %13 = vector.load %arg4[%c0_11, %c0_12] : memref<1x128xf32, #tpu.memory_space<vmem>>, vector<1x128xf32>
      %14 = vector.broadcast %13 : vector<1x128xf32> to vector<128x128xf32>
      %15 = arith.addf %12, %14 : vector<128x128xf32>
      %c0_13 = arith.constant 0 : index
      %c0_14 = arith.constant 0 : index
      %16 = vector.load %arg5[%c0_13, %c0_14] : memref<128x128xf32, #tpu.memory_space<vmem>>, vector<128x128xf32>
      tpu.vector_store %arg5[%c0_13, %c0_14], %15 {strides = array<i32>} : memref<128x128xf32, #tpu.memory_space<vmem>>, vector<128x128xf32>,
      %cst_15 = arith.constant dense<0.000000e+00> : vector<128xf32>
      %17 = vector.multi_reduction <add>, %15, %cst_15 [0] : vector<128x128xf32> to vector<128xf32>
      %18 = vector.shape_cast %17 : vector<128xf32> to vector<1x128xf32>
      %19 = vector.shape_cast %18 : vector<1x128xf32> to vector<1x1x128xf32>
      %c0_16 = arith.constant 0 : index
      %c0_17 = arith.constant 0 : index
      %c0_18 = arith.constant 0 : index
      %20 = vector.load %arg6[%c0_16, %c0_17, %c0_18] : memref<1x1x128xf32, #tpu.memory_space<vmem>>, vector<1x1x128xf32>
      tpu.vector_store %arg6[%c0_16, %c0_17, %c0_18], %19 {strides = array<i32>} : memref<1x1x128xf32, #tpu.memory_space<vmem>>, vector<1x1x128xf32>,
      %21 = arith.mulf %15, %15 : vector<128x128xf32>
      %cst_19 = arith.constant dense<0.000000e+00> : vector<128xf32>
      %22 = vector.multi_reduction <add>, %21, %cst_19 [0] : vector<128x128xf32> to vector<128xf32>
      %23 = vector.shape_cast %22 : vector<128xf32> to vector<1x128xf32>
      %24 = vector.shape_cast %23 : vector<1x128xf32> to vector<1x1x128xf32>
      %c0_20 = arith.constant 0 : index
      %c0_21 = arith.constant 0 : index
      %c0_22 = arith.constant 0 : index
      %25 = vector.load %arg7[%c0_20, %c0_21, %c0_22] : memref<1x1x128xf32, #tpu.memory_space<vmem>>, vector<1x1x128xf32>
      tpu.vector_store %arg7[%c0_20, %c0_21, %c0_22], %24 {strides = array<i32>} : memref<1x1x128xf32, #tpu.memory_space<vmem>>, vector<1x1x128xf32>,
    } else {
    }
    return
  }
  func.func @transform_0(%arg0: i32, %arg1: i32) -> (i32, i32) {
    %c0_i32 = arith.constant 0 : i32
    return %arg0, %arg1 : i32, i32
  }
  func.func @transform_1(%arg0: i32, %arg1: i32) -> (i32, i32) {
    %c0_i32 = arith.constant 0 : i32
    %c0_i32_0 = arith.constant 0 : i32
    return %arg1, %c0_i32 : i32, i32
  }
  func.func @transform_2(%arg0: i32, %arg1: i32) -> (i32, i32) {
    %c0_i32 = arith.constant 0 : i32
    %c0_i32_0 = arith.constant 0 : i32
    %c0_i32_1 = arith.constant 0 : i32
    return %c0_i32, %c0_i32_0 : i32, i32
  }
  func.func @transform_3(%arg0: i32, %arg1: i32) -> (i32, i32) {
    %c0_i32 = arith.constant 0 : i32
    %c0_i32_0 = arith.constant 0 : i32
    return %arg0, %c0_i32 : i32, i32
  }
  func.func @transform_4(%arg0: i32, %arg1: i32) -> (i32, i32, i32) {
    %c0_i32 = arith.constant 0 : i32
    %c0_i32_0 = arith.constant 0 : i32
    %c0_i32_1 = arith.constant 0 : i32
    return %arg0, %c0_i32, %c0_i32_0 : i32, i32, i32
  }
  func.func @transform_5(%arg0: i32, %arg1: i32) -> (i32, i32, i32) {
    %c0_i32 = arith.constant 0 : i32
    %c0_i32_0 = arith.constant 0 : i32
    %c0_i32_1 = arith.constant 0 : i32
    return %arg0, %c0_i32, %c0_i32_0 : i32, i32, i32
  }
}

module attributes {stable_mosaic.version = 11 : i64} {
  func.func @_bn_relu_kernel(%arg0: i32, %arg1: memref<128x128xf32, #tpu.memory_space<vmem>>, %arg2: memref<1x128xf32, #tpu.memory_space<vmem>>, %arg3: memref<1x128xf32, #tpu.memory_space<vmem>>, %arg4: memref<128x128xbf16, #tpu.memory_space<vmem>>) attributes {dimension_semantics = [#tpu.dimension_semantics<parallel>], iteration_bounds = array<i64: 1>, scalar_prefetch = 0 : i64, scratch_operands = 0 : i64, tpu.core_type = #tpu.core_type<tc>, window_params = [{transform_indices = @transform_0, window_bounds = array<i64: 128, 128>}, {pipeline_mode = #tpu.pipeline_mode<synchronous>, transform_indices = @transform_1, window_bounds = array<i64: 1, 128>}, {pipeline_mode = #tpu.pipeline_mode<synchronous>, transform_indices = @transform_2, window_bounds = array<i64: 1, 128>}, {transform_indices = @transform_3, window_bounds = array<i64: 128, 128>}]} {
    %c0 = arith.constant 0 : index
    %c0_0 = arith.constant 0 : index
    %0 = vector.load %arg1[%c0, %c0_0] : memref<128x128xf32, #tpu.memory_space<vmem>>, vector<128x128xf32>
    %c0_1 = arith.constant 0 : index
    %c0_2 = arith.constant 0 : index
    %1 = vector.load %arg2[%c0_1, %c0_2] : memref<1x128xf32, #tpu.memory_space<vmem>>, vector<1x128xf32>
    %2 = vector.broadcast %1 : vector<1x128xf32> to vector<128x128xf32>
    %3 = arith.mulf %0, %2 : vector<128x128xf32>
    %c0_3 = arith.constant 0 : index
    %c0_4 = arith.constant 0 : index
    %4 = vector.load %arg3[%c0_3, %c0_4] : memref<1x128xf32, #tpu.memory_space<vmem>>, vector<1x128xf32>
    %5 = vector.broadcast %4 : vector<1x128xf32> to vector<128x128xf32>
    %6 = arith.addf %3, %5 : vector<128x128xf32>
    %cst = arith.constant 0.000000e+00 : f32
    %7 = vector.broadcast %cst : f32 to vector<128x128xf32>
    %8 = arith.maximumf %6, %7 : vector<128x128xf32>
    %9 = arith.truncf %8 : vector<128x128xf32> to vector<128x128xbf16>
    %c0_5 = arith.constant 0 : index
    %c0_6 = arith.constant 0 : index
    %10 = vector.load %arg4[%c0_5, %c0_6] : memref<128x128xbf16, #tpu.memory_space<vmem>>, vector<128x128xbf16>
    tpu.vector_store %arg4[%c0_5, %c0_6], %9 {strides = array<i32>} : memref<128x128xbf16, #tpu.memory_space<vmem>>, vector<128x128xbf16>,
    return
  }
  func.func @transform_0(%arg0: i32) -> (i32, i32) {
    %c0_i32 = arith.constant 0 : i32
    %c0_i32_0 = arith.constant 0 : i32
    return %arg0, %c0_i32 : i32, i32
  }
  func.func @transform_1(%arg0: i32) -> (i32, i32) {
    %c0_i32 = arith.constant 0 : i32
    %c0_i32_0 = arith.constant 0 : i32
    %c0_i32_1 = arith.constant 0 : i32
    return %c0_i32, %c0_i32_0 : i32, i32
  }
  func.func @transform_2(%arg0: i32) -> (i32, i32) {
    %c0_i32 = arith.constant 0 : i32
    %c0_i32_0 = arith.constant 0 : i32
    %c0_i32_1 = arith.constant 0 : i32
    return %c0_i32, %c0_i32_0 : i32, i32
  }
  func.func @transform_3(%arg0: i32) -> (i32, i32) {
    %c0_i32 = arith.constant 0 : i32
    %c0_i32_0 = arith.constant 0 : i32
    return %arg0, %c0_i32 : i32, i32
  }
}

module attributes {stable_mosaic.version = 11 : i64} {
  func.func @_conv_kernel(%arg0: i32, %arg1: i32, %arg2: memref<256x896xbf16, #tpu.memory_space<vmem>>, %arg3: memref<896x64xbf16, #tpu.memory_space<vmem>>, %arg4: memref<1x64xf32, #tpu.memory_space<vmem>>, %arg5: memref<256x64xf32, #tpu.memory_space<vmem>>, %arg6: memref<1x1x64xf32, #tpu.memory_space<vmem>>, %arg7: memref<1x1x64xf32, #tpu.memory_space<vmem>>) attributes {dimension_semantics = [#tpu.dimension_semantics<parallel>, #tpu.dimension_semantics<arbitrary>], iteration_bounds = array<i64: 6, 4>, scalar_prefetch = 0 : i64, scratch_operands = 0 : i64, tpu.core_type = #tpu.core_type<tc>, window_params = [{transform_indices = @transform_0, window_bounds = array<i64: 256, 896>}, {transform_indices = @transform_1, window_bounds = array<i64: 896, 64>}, {pipeline_mode = #tpu.pipeline_mode<synchronous>, transform_indices = @transform_2, window_bounds = array<i64: 1, 64>}, {transform_indices = @transform_3, window_bounds = array<i64: 256, 64>}, {transform_indices = @transform_4, window_bounds = array<i64: 1, 1, 64>}, {transform_indices = @transform_5, window_bounds = array<i64: 1, 1, 64>}]} {
    %c0_i32 = arith.constant 0 : i32
    %0 = arith.cmpi eq, %arg1, %c0_i32 : i32
    %1 = arith.extui %0 : i1 to i32
    %c0_i32_0 = arith.constant 0 : i32
    %2 = arith.cmpi ne, %1, %c0_i32_0 : i32
    scf.if %2 {
      %cst_9 = arith.constant 0.000000e+00 : f32
      %12 = vector.broadcast %cst_9 : f32 to vector<256x64xf32>
      %c0_10 = arith.constant 0 : index
      %c0_11 = arith.constant 0 : index
      %13 = vector.load %arg5[%c0_10, %c0_11] : memref<256x64xf32, #tpu.memory_space<vmem>>, vector<256x64xf32>
      tpu.vector_store %arg5[%c0_10, %c0_11], %12 {strides = array<i32>} : memref<256x64xf32, #tpu.memory_space<vmem>>, vector<256x64xf32>,
    } else {
    }
    %c0 = arith.constant 0 : index
    %c0_1 = arith.constant 0 : index
    %3 = vector.load %arg5[%c0, %c0_1] : memref<256x64xf32, #tpu.memory_space<vmem>>, vector<256x64xf32>
    %c0_2 = arith.constant 0 : index
    %c0_3 = arith.constant 0 : index
    %4 = vector.load %arg2[%c0_2, %c0_3] : memref<256x896xbf16, #tpu.memory_space<vmem>>, vector<256x896xbf16>
    %c0_4 = arith.constant 0 : index
    %c0_5 = arith.constant 0 : index
    %5 = vector.load %arg3[%c0_4, %c0_5] : memref<896x64xbf16, #tpu.memory_space<vmem>>, vector<896x64xbf16>
    %cst = arith.constant dense<0.000000e+00> : vector<256x64xf32>
    %6 = tpu.matmul %4, %5, %cst {dimension_numbers = #tpu.dot_dimension_numbers<[1], [0], [0], [1], [0, 0, 1, 1], [], []>} : vector<256x896xbf16>, vector<896x64xbf16>, vector<256x64xf32> -> vector<256x64xf32>
    %7 = arith.addf %3, %6 : vector<256x64xf32>
    %c0_6 = arith.constant 0 : index
    %c0_7 = arith.constant 0 : index
    %8 = vector.load %arg5[%c0_6, %c0_7] : memref<256x64xf32, #tpu.memory_space<vmem>>, vector<256x64xf32>
    tpu.vector_store %arg5[%c0_6, %c0_7], %7 {strides = array<i32>} : memref<256x64xf32, #tpu.memory_space<vmem>>, vector<256x64xf32>,
    %c3_i32 = arith.constant 3 : i32
    %9 = arith.cmpi eq, %arg1, %c3_i32 : i32
    %10 = arith.extui %9 : i1 to i32
    %c0_i32_8 = arith.constant 0 : i32
    %11 = arith.cmpi ne, %10, %c0_i32_8 : i32
    scf.if %11 {
      %c0_9 = arith.constant 0 : index
      %c0_10 = arith.constant 0 : index
      %12 = vector.load %arg5[%c0_9, %c0_10] : memref<256x64xf32, #tpu.memory_space<vmem>>, vector<256x64xf32>
      %c0_11 = arith.constant 0 : index
      %c0_12 = arith.constant 0 : index
      %13 = vector.load %arg4[%c0_11, %c0_12] : memref<1x64xf32, #tpu.memory_space<vmem>>, vector<1x64xf32>
      %14 = vector.broadcast %13 : vector<1x64xf32> to vector<256x64xf32>
      %15 = arith.addf %12, %14 : vector<256x64xf32>
      %c0_13 = arith.constant 0 : index
      %c0_14 = arith.constant 0 : index
      %16 = vector.load %arg5[%c0_13, %c0_14] : memref<256x64xf32, #tpu.memory_space<vmem>>, vector<256x64xf32>
      tpu.vector_store %arg5[%c0_13, %c0_14], %15 {strides = array<i32>} : memref<256x64xf32, #tpu.memory_space<vmem>>, vector<256x64xf32>,
      %cst_15 = arith.constant dense<0.000000e+00> : vector<64xf32>
      %17 = vector.multi_reduction <add>, %15, %cst_15 [0] : vector<256x64xf32> to vector<64xf32>
      %18 = vector.shape_cast %17 : vector<64xf32> to vector<1x64xf32>
      %19 = vector.shape_cast %18 : vector<1x64xf32> to vector<1x1x64xf32>
      %c0_16 = arith.constant 0 : index
      %c0_17 = arith.constant 0 : index
      %c0_18 = arith.constant 0 : index
      %20 = vector.load %arg6[%c0_16, %c0_17, %c0_18] : memref<1x1x64xf32, #tpu.memory_space<vmem>>, vector<1x1x64xf32>
      tpu.vector_store %arg6[%c0_16, %c0_17, %c0_18], %19 {strides = array<i32>} : memref<1x1x64xf32, #tpu.memory_space<vmem>>, vector<1x1x64xf32>,
      %21 = arith.mulf %15, %15 : vector<256x64xf32>
      %cst_19 = arith.constant dense<0.000000e+00> : vector<64xf32>
      %22 = vector.multi_reduction <add>, %21, %cst_19 [0] : vector<256x64xf32> to vector<64xf32>
      %23 = vector.shape_cast %22 : vector<64xf32> to vector<1x64xf32>
      %24 = vector.shape_cast %23 : vector<1x64xf32> to vector<1x1x64xf32>
      %c0_20 = arith.constant 0 : index
      %c0_21 = arith.constant 0 : index
      %c0_22 = arith.constant 0 : index
      %25 = vector.load %arg7[%c0_20, %c0_21, %c0_22] : memref<1x1x64xf32, #tpu.memory_space<vmem>>, vector<1x1x64xf32>
      tpu.vector_store %arg7[%c0_20, %c0_21, %c0_22], %24 {strides = array<i32>} : memref<1x1x64xf32, #tpu.memory_space<vmem>>, vector<1x1x64xf32>,
    } else {
    }
    return
  }
  func.func @transform_0(%arg0: i32, %arg1: i32) -> (i32, i32) {
    %c0_i32 = arith.constant 0 : i32
    return %arg0, %arg1 : i32, i32
  }
  func.func @transform_1(%arg0: i32, %arg1: i32) -> (i32, i32) {
    %c0_i32 = arith.constant 0 : i32
    %c0_i32_0 = arith.constant 0 : i32
    return %arg1, %c0_i32 : i32, i32
  }
  func.func @transform_2(%arg0: i32, %arg1: i32) -> (i32, i32) {
    %c0_i32 = arith.constant 0 : i32
    %c0_i32_0 = arith.constant 0 : i32
    %c0_i32_1 = arith.constant 0 : i32
    return %c0_i32, %c0_i32_0 : i32, i32
  }
  func.func @transform_3(%arg0: i32, %arg1: i32) -> (i32, i32) {
    %c0_i32 = arith.constant 0 : i32
    %c0_i32_0 = arith.constant 0 : i32
    return %arg0, %c0_i32 : i32, i32
  }
  func.func @transform_4(%arg0: i32, %arg1: i32) -> (i32, i32, i32) {
    %c0_i32 = arith.constant 0 : i32
    %c0_i32_0 = arith.constant 0 : i32
    %c0_i32_1 = arith.constant 0 : i32
    return %arg0, %c0_i32, %c0_i32_0 : i32, i32, i32
  }
  func.func @transform_5(%arg0: i32, %arg1: i32) -> (i32, i32, i32) {
    %c0_i32 = arith.constant 0 : i32
    %c0_i32_0 = arith.constant 0 : i32
    %c0_i32_1 = arith.constant 0 : i32
    return %arg0, %c0_i32, %c0_i32_0 : i32, i32, i32
  }
}

module attributes {stable_mosaic.version = 11 : i64} {
  func.func @_bn_relu_kernel(%arg0: i32, %arg1: memref<256x64xf32, #tpu.memory_space<vmem>>, %arg2: memref<1x64xf32, #tpu.memory_space<vmem>>, %arg3: memref<1x64xf32, #tpu.memory_space<vmem>>, %arg4: memref<256x64xbf16, #tpu.memory_space<vmem>>) attributes {dimension_semantics = [#tpu.dimension_semantics<parallel>], iteration_bounds = array<i64: 6>, scalar_prefetch = 0 : i64, scratch_operands = 0 : i64, tpu.core_type = #tpu.core_type<tc>, window_params = [{transform_indices = @transform_0, window_bounds = array<i64: 256, 64>}, {pipeline_mode = #tpu.pipeline_mode<synchronous>, transform_indices = @transform_1, window_bounds = array<i64: 1, 64>}, {pipeline_mode = #tpu.pipeline_mode<synchronous>, transform_indices = @transform_2, window_bounds = array<i64: 1, 64>}, {transform_indices = @transform_3, window_bounds = array<i64: 256, 64>}]} {
    %c0 = arith.constant 0 : index
    %c0_0 = arith.constant 0 : index
    %0 = vector.load %arg1[%c0, %c0_0] : memref<256x64xf32, #tpu.memory_space<vmem>>, vector<256x64xf32>
    %c0_1 = arith.constant 0 : index
    %c0_2 = arith.constant 0 : index
    %1 = vector.load %arg2[%c0_1, %c0_2] : memref<1x64xf32, #tpu.memory_space<vmem>>, vector<1x64xf32>
    %2 = vector.broadcast %1 : vector<1x64xf32> to vector<256x64xf32>
    %3 = arith.mulf %0, %2 : vector<256x64xf32>
    %c0_3 = arith.constant 0 : index
    %c0_4 = arith.constant 0 : index
    %4 = vector.load %arg3[%c0_3, %c0_4] : memref<1x64xf32, #tpu.memory_space<vmem>>, vector<1x64xf32>
    %5 = vector.broadcast %4 : vector<1x64xf32> to vector<256x64xf32>
    %6 = arith.addf %3, %5 : vector<256x64xf32>
    %cst = arith.constant 0.000000e+00 : f32
    %7 = vector.broadcast %cst : f32 to vector<256x64xf32>
    %8 = arith.maximumf %6, %7 : vector<256x64xf32>
    %9 = arith.truncf %8 : vector<256x64xf32> to vector<256x64xbf16>
    %c0_5 = arith.constant 0 : index
    %c0_6 = arith.constant 0 : index
    %10 = vector.load %arg4[%c0_5, %c0_6] : memref<256x64xbf16, #tpu.memory_space<vmem>>, vector<256x64xbf16>
    tpu.vector_store %arg4[%c0_5, %c0_6], %9 {strides = array<i32>} : memref<256x64xbf16, #tpu.memory_space<vmem>>, vector<256x64xbf16>,
    return
  }
  func.func @transform_0(%arg0: i32) -> (i32, i32) {
    %c0_i32 = arith.constant 0 : i32
    %c0_i32_0 = arith.constant 0 : i32
    return %arg0, %c0_i32 : i32, i32
  }
  func.func @transform_1(%arg0: i32) -> (i32, i32) {
    %c0_i32 = arith.constant 0 : i32
    %c0_i32_0 = arith.constant 0 : i32
    %c0_i32_1 = arith.constant 0 : i32
    return %c0_i32, %c0_i32_0 : i32, i32
  }
  func.func @transform_2(%arg0: i32) -> (i32, i32) {
    %c0_i32 = arith.constant 0 : i32
    %c0_i32_0 = arith.constant 0 : i32
    %c0_i32_1 = arith.constant 0 : i32
    return %c0_i32, %c0_i32_0 : i32, i32
  }
  func.func @transform_3(%arg0: i32) -> (i32, i32) {
    %c0_i32 = arith.constant 0 : i32
    %c0_i32_0 = arith.constant 0 : i32
    return %arg0, %c0_i32 : i32, i32
  }
}

module attributes {stable_mosaic.version = 11 : i64} {
  func.func @_conv_kernel(%arg0: i32, %arg1: i32, %arg2: memref<256x640xbf16, #tpu.memory_space<vmem>>, %arg3: memref<640x32xbf16, #tpu.memory_space<vmem>>, %arg4: memref<1x32xf32, #tpu.memory_space<vmem>>, %arg5: memref<256x32xf32, #tpu.memory_space<vmem>>, %arg6: memref<1x1x32xf32, #tpu.memory_space<vmem>>, %arg7: memref<1x1x32xf32, #tpu.memory_space<vmem>>) attributes {dimension_semantics = [#tpu.dimension_semantics<parallel>, #tpu.dimension_semantics<arbitrary>], iteration_bounds = array<i64: 22, 1>, scalar_prefetch = 0 : i64, scratch_operands = 0 : i64, tpu.core_type = #tpu.core_type<tc>, window_params = [{transform_indices = @transform_0, window_bounds = array<i64: 256, 640>}, {transform_indices = @transform_1, window_bounds = array<i64: 640, 32>}, {pipeline_mode = #tpu.pipeline_mode<synchronous>, transform_indices = @transform_2, window_bounds = array<i64: 1, 32>}, {transform_indices = @transform_3, window_bounds = array<i64: 256, 32>}, {transform_indices = @transform_4, window_bounds = array<i64: 1, 1, 32>}, {transform_indices = @transform_5, window_bounds = array<i64: 1, 1, 32>}]} {
    %c0_i32 = arith.constant 0 : i32
    %0 = arith.cmpi eq, %arg1, %c0_i32 : i32
    %1 = arith.extui %0 : i1 to i32
    %c0_i32_0 = arith.constant 0 : i32
    %2 = arith.cmpi ne, %1, %c0_i32_0 : i32
    scf.if %2 {
      %cst_10 = arith.constant 0.000000e+00 : f32
      %12 = vector.broadcast %cst_10 : f32 to vector<256x32xf32>
      %c0_11 = arith.constant 0 : index
      %c0_12 = arith.constant 0 : index
      %13 = vector.load %arg5[%c0_11, %c0_12] : memref<256x32xf32, #tpu.memory_space<vmem>>, vector<256x32xf32>
      tpu.vector_store %arg5[%c0_11, %c0_12], %12 {strides = array<i32>} : memref<256x32xf32, #tpu.memory_space<vmem>>, vector<256x32xf32>,
    } else {
    }
    %c0 = arith.constant 0 : index
    %c0_1 = arith.constant 0 : index
    %3 = vector.load %arg5[%c0, %c0_1] : memref<256x32xf32, #tpu.memory_space<vmem>>, vector<256x32xf32>
    %c0_2 = arith.constant 0 : index
    %c0_3 = arith.constant 0 : index
    %4 = vector.load %arg2[%c0_2, %c0_3] : memref<256x640xbf16, #tpu.memory_space<vmem>>, vector<256x640xbf16>
    %c0_4 = arith.constant 0 : index
    %c0_5 = arith.constant 0 : index
    %5 = vector.load %arg3[%c0_4, %c0_5] : memref<640x32xbf16, #tpu.memory_space<vmem>>, vector<640x32xbf16>
    %cst = arith.constant dense<0.000000e+00> : vector<256x32xf32>
    %6 = tpu.matmul %4, %5, %cst {dimension_numbers = #tpu.dot_dimension_numbers<[1], [0], [0], [1], [0, 0, 1, 1], [], []>} : vector<256x640xbf16>, vector<640x32xbf16>, vector<256x32xf32> -> vector<256x32xf32>
    %7 = arith.addf %3, %6 : vector<256x32xf32>
    %c0_6 = arith.constant 0 : index
    %c0_7 = arith.constant 0 : index
    %8 = vector.load %arg5[%c0_6, %c0_7] : memref<256x32xf32, #tpu.memory_space<vmem>>, vector<256x32xf32>
    tpu.vector_store %arg5[%c0_6, %c0_7], %7 {strides = array<i32>} : memref<256x32xf32, #tpu.memory_space<vmem>>, vector<256x32xf32>,
    %c0_i32_8 = arith.constant 0 : i32
    %9 = arith.cmpi eq, %arg1, %c0_i32_8 : i32
    %10 = arith.extui %9 : i1 to i32
    %c0_i32_9 = arith.constant 0 : i32
    %11 = arith.cmpi ne, %10, %c0_i32_9 : i32
    scf.if %11 {
      %c0_10 = arith.constant 0 : index
      %c0_11 = arith.constant 0 : index
      %12 = vector.load %arg5[%c0_10, %c0_11] : memref<256x32xf32, #tpu.memory_space<vmem>>, vector<256x32xf32>
      %c0_12 = arith.constant 0 : index
      %c0_13 = arith.constant 0 : index
      %13 = vector.load %arg4[%c0_12, %c0_13] : memref<1x32xf32, #tpu.memory_space<vmem>>, vector<1x32xf32>
      %14 = vector.broadcast %13 : vector<1x32xf32> to vector<256x32xf32>
      %15 = arith.addf %12, %14 : vector<256x32xf32>
      %c0_14 = arith.constant 0 : index
      %c0_15 = arith.constant 0 : index
      %16 = vector.load %arg5[%c0_14, %c0_15] : memref<256x32xf32, #tpu.memory_space<vmem>>, vector<256x32xf32>
      tpu.vector_store %arg5[%c0_14, %c0_15], %15 {strides = array<i32>} : memref<256x32xf32, #tpu.memory_space<vmem>>, vector<256x32xf32>,
      %cst_16 = arith.constant dense<0.000000e+00> : vector<32xf32>
      %17 = vector.multi_reduction <add>, %15, %cst_16 [0] : vector<256x32xf32> to vector<32xf32>
      %18 = vector.shape_cast %17 : vector<32xf32> to vector<1x32xf32>
      %19 = vector.shape_cast %18 : vector<1x32xf32> to vector<1x1x32xf32>
      %c0_17 = arith.constant 0 : index
      %c0_18 = arith.constant 0 : index
      %c0_19 = arith.constant 0 : index
      %20 = vector.load %arg6[%c0_17, %c0_18, %c0_19] : memref<1x1x32xf32, #tpu.memory_space<vmem>>, vector<1x1x32xf32>
      tpu.vector_store %arg6[%c0_17, %c0_18, %c0_19], %19 {strides = array<i32>} : memref<1x1x32xf32, #tpu.memory_space<vmem>>, vector<1x1x32xf32>,
      %21 = arith.mulf %15, %15 : vector<256x32xf32>
      %cst_20 = arith.constant dense<0.000000e+00> : vector<32xf32>
      %22 = vector.multi_reduction <add>, %21, %cst_20 [0] : vector<256x32xf32> to vector<32xf32>
      %23 = vector.shape_cast %22 : vector<32xf32> to vector<1x32xf32>
      %24 = vector.shape_cast %23 : vector<1x32xf32> to vector<1x1x32xf32>
      %c0_21 = arith.constant 0 : index
      %c0_22 = arith.constant 0 : index
      %c0_23 = arith.constant 0 : index
      %25 = vector.load %arg7[%c0_21, %c0_22, %c0_23] : memref<1x1x32xf32, #tpu.memory_space<vmem>>, vector<1x1x32xf32>
      tpu.vector_store %arg7[%c0_21, %c0_22, %c0_23], %24 {strides = array<i32>} : memref<1x1x32xf32, #tpu.memory_space<vmem>>, vector<1x1x32xf32>,
    } else {
    }
    return
  }
  func.func @transform_0(%arg0: i32, %arg1: i32) -> (i32, i32) {
    %c0_i32 = arith.constant 0 : i32
    return %arg0, %arg1 : i32, i32
  }
  func.func @transform_1(%arg0: i32, %arg1: i32) -> (i32, i32) {
    %c0_i32 = arith.constant 0 : i32
    %c0_i32_0 = arith.constant 0 : i32
    return %arg1, %c0_i32 : i32, i32
  }
  func.func @transform_2(%arg0: i32, %arg1: i32) -> (i32, i32) {
    %c0_i32 = arith.constant 0 : i32
    %c0_i32_0 = arith.constant 0 : i32
    %c0_i32_1 = arith.constant 0 : i32
    return %c0_i32, %c0_i32_0 : i32, i32
  }
  func.func @transform_3(%arg0: i32, %arg1: i32) -> (i32, i32) {
    %c0_i32 = arith.constant 0 : i32
    %c0_i32_0 = arith.constant 0 : i32
    return %arg0, %c0_i32 : i32, i32
  }
  func.func @transform_4(%arg0: i32, %arg1: i32) -> (i32, i32, i32) {
    %c0_i32 = arith.constant 0 : i32
    %c0_i32_0 = arith.constant 0 : i32
    %c0_i32_1 = arith.constant 0 : i32
    return %arg0, %c0_i32, %c0_i32_0 : i32, i32, i32
  }
  func.func @transform_5(%arg0: i32, %arg1: i32) -> (i32, i32, i32) {
    %c0_i32 = arith.constant 0 : i32
    %c0_i32_0 = arith.constant 0 : i32
    %c0_i32_1 = arith.constant 0 : i32
    return %arg0, %c0_i32, %c0_i32_0 : i32, i32, i32
  }
}

module attributes {stable_mosaic.version = 11 : i64} {
  func.func @_bn_relu_kernel(%arg0: i32, %arg1: memref<256x32xf32, #tpu.memory_space<vmem>>, %arg2: memref<1x32xf32, #tpu.memory_space<vmem>>, %arg3: memref<1x32xf32, #tpu.memory_space<vmem>>, %arg4: memref<256x32xbf16, #tpu.memory_space<vmem>>) attributes {dimension_semantics = [#tpu.dimension_semantics<parallel>], iteration_bounds = array<i64: 22>, scalar_prefetch = 0 : i64, scratch_operands = 0 : i64, tpu.core_type = #tpu.core_type<tc>, window_params = [{transform_indices = @transform_0, window_bounds = array<i64: 256, 32>}, {pipeline_mode = #tpu.pipeline_mode<synchronous>, transform_indices = @transform_1, window_bounds = array<i64: 1, 32>}, {pipeline_mode = #tpu.pipeline_mode<synchronous>, transform_indices = @transform_2, window_bounds = array<i64: 1, 32>}, {transform_indices = @transform_3, window_bounds = array<i64: 256, 32>}]} {
    %c0 = arith.constant 0 : index
    %c0_0 = arith.constant 0 : index
    %0 = vector.load %arg1[%c0, %c0_0] : memref<256x32xf32, #tpu.memory_space<vmem>>, vector<256x32xf32>
    %c0_1 = arith.constant 0 : index
    %c0_2 = arith.constant 0 : index
    %1 = vector.load %arg2[%c0_1, %c0_2] : memref<1x32xf32, #tpu.memory_space<vmem>>, vector<1x32xf32>
    %2 = vector.broadcast %1 : vector<1x32xf32> to vector<256x32xf32>
    %3 = arith.mulf %0, %2 : vector<256x32xf32>
    %c0_3 = arith.constant 0 : index
    %c0_4 = arith.constant 0 : index
    %4 = vector.load %arg3[%c0_3, %c0_4] : memref<1x32xf32, #tpu.memory_space<vmem>>, vector<1x32xf32>
    %5 = vector.broadcast %4 : vector<1x32xf32> to vector<256x32xf32>
    %6 = arith.addf %3, %5 : vector<256x32xf32>
    %cst = arith.constant 0.000000e+00 : f32
    %7 = vector.broadcast %cst : f32 to vector<256x32xf32>
    %8 = arith.maximumf %6, %7 : vector<256x32xf32>
    %9 = arith.truncf %8 : vector<256x32xf32> to vector<256x32xbf16>
    %c0_5 = arith.constant 0 : index
    %c0_6 = arith.constant 0 : index
    %10 = vector.load %arg4[%c0_5, %c0_6] : memref<256x32xbf16, #tpu.memory_space<vmem>>, vector<256x32xbf16>
    tpu.vector_store %arg4[%c0_5, %c0_6], %9 {strides = array<i32>} : memref<256x32xbf16, #tpu.memory_space<vmem>>, vector<256x32xbf16>,
    return
  }
  func.func @transform_0(%arg0: i32) -> (i32, i32) {
    %c0_i32 = arith.constant 0 : i32
    %c0_i32_0 = arith.constant 0 : i32
    return %arg0, %c0_i32 : i32, i32
  }
  func.func @transform_1(%arg0: i32) -> (i32, i32) {
    %c0_i32 = arith.constant 0 : i32
    %c0_i32_0 = arith.constant 0 : i32
    %c0_i32_1 = arith.constant 0 : i32
    return %c0_i32, %c0_i32_0 : i32, i32
  }
  func.func @transform_2(%arg0: i32) -> (i32, i32) {
    %c0_i32 = arith.constant 0 : i32
    %c0_i32_0 = arith.constant 0 : i32
    %c0_i32_1 = arith.constant 0 : i32
    return %c0_i32, %c0_i32_0 : i32, i32
  }
  func.func @transform_3(%arg0: i32) -> (i32, i32) {
    %c0_i32 = arith.constant 0 : i32
    %c0_i32_0 = arith.constant 0 : i32
    return %arg0, %c0_i32 : i32, i32
  }
}

module attributes {stable_mosaic.version = 11 : i64} {
  func.func @_conv_kernel(%arg0: i32, %arg1: i32, %arg2: memref<256x896xbf16, #tpu.memory_space<vmem>>, %arg3: memref<896x128xbf16, #tpu.memory_space<vmem>>, %arg4: memref<1x128xf32, #tpu.memory_space<vmem>>, %arg5: memref<256x128xf32, #tpu.memory_space<vmem>>) attributes {dimension_semantics = [#tpu.dimension_semantics<parallel>, #tpu.dimension_semantics<arbitrary>], iteration_bounds = array<i64: 17, 2>, scalar_prefetch = 0 : i64, scratch_operands = 0 : i64, tpu.core_type = #tpu.core_type<tc>, window_params = [{transform_indices = @transform_0, window_bounds = array<i64: 256, 896>}, {transform_indices = @transform_1, window_bounds = array<i64: 896, 128>}, {pipeline_mode = #tpu.pipeline_mode<synchronous>, transform_indices = @transform_2, window_bounds = array<i64: 1, 128>}, {transform_indices = @transform_3, window_bounds = array<i64: 256, 128>}]} {
    %c0_i32 = arith.constant 0 : i32
    %0 = arith.cmpi eq, %arg1, %c0_i32 : i32
    %1 = arith.extui %0 : i1 to i32
    %c0_i32_0 = arith.constant 0 : i32
    %2 = arith.cmpi ne, %1, %c0_i32_0 : i32
    scf.if %2 {
      %cst_9 = arith.constant 0.000000e+00 : f32
      %12 = vector.broadcast %cst_9 : f32 to vector<256x128xf32>
      %c0_10 = arith.constant 0 : index
      %c0_11 = arith.constant 0 : index
      %13 = vector.load %arg5[%c0_10, %c0_11] : memref<256x128xf32, #tpu.memory_space<vmem>>, vector<256x128xf32>
      tpu.vector_store %arg5[%c0_10, %c0_11], %12 {strides = array<i32>} : memref<256x128xf32, #tpu.memory_space<vmem>>, vector<256x128xf32>,
    } else {
    }
    %c0 = arith.constant 0 : index
    %c0_1 = arith.constant 0 : index
    %3 = vector.load %arg5[%c0, %c0_1] : memref<256x128xf32, #tpu.memory_space<vmem>>, vector<256x128xf32>
    %c0_2 = arith.constant 0 : index
    %c0_3 = arith.constant 0 : index
    %4 = vector.load %arg2[%c0_2, %c0_3] : memref<256x896xbf16, #tpu.memory_space<vmem>>, vector<256x896xbf16>
    %c0_4 = arith.constant 0 : index
    %c0_5 = arith.constant 0 : index
    %5 = vector.load %arg3[%c0_4, %c0_5] : memref<896x128xbf16, #tpu.memory_space<vmem>>, vector<896x128xbf16>
    %cst = arith.constant dense<0.000000e+00> : vector<256x128xf32>
    %6 = tpu.matmul %4, %5, %cst {dimension_numbers = #tpu.dot_dimension_numbers<[1], [0], [0], [1], [0, 0, 1, 1], [], []>} : vector<256x896xbf16>, vector<896x128xbf16>, vector<256x128xf32> -> vector<256x128xf32>
    %7 = arith.addf %3, %6 : vector<256x128xf32>
    %c0_6 = arith.constant 0 : index
    %c0_7 = arith.constant 0 : index
    %8 = vector.load %arg5[%c0_6, %c0_7] : memref<256x128xf32, #tpu.memory_space<vmem>>, vector<256x128xf32>
    tpu.vector_store %arg5[%c0_6, %c0_7], %7 {strides = array<i32>} : memref<256x128xf32, #tpu.memory_space<vmem>>, vector<256x128xf32>,
    %c1_i32 = arith.constant 1 : i32
    %9 = arith.cmpi eq, %arg1, %c1_i32 : i32
    %10 = arith.extui %9 : i1 to i32
    %c0_i32_8 = arith.constant 0 : i32
    %11 = arith.cmpi ne, %10, %c0_i32_8 : i32
    scf.if %11 {
      %c0_9 = arith.constant 0 : index
      %c0_10 = arith.constant 0 : index
      %12 = vector.load %arg5[%c0_9, %c0_10] : memref<256x128xf32, #tpu.memory_space<vmem>>, vector<256x128xf32>
      %c0_11 = arith.constant 0 : index
      %c0_12 = arith.constant 0 : index
      %13 = vector.load %arg4[%c0_11, %c0_12] : memref<1x128xf32, #tpu.memory_space<vmem>>, vector<1x128xf32>
      %14 = vector.broadcast %13 : vector<1x128xf32> to vector<256x128xf32>
      %15 = arith.addf %12, %14 : vector<256x128xf32>
      %16 = math.tanh %15 : vector<256x128xf32>
      %c0_13 = arith.constant 0 : index
      %c0_14 = arith.constant 0 : index
      %17 = vector.load %arg5[%c0_13, %c0_14] : memref<256x128xf32, #tpu.memory_space<vmem>>, vector<256x128xf32>
      tpu.vector_store %arg5[%c0_13, %c0_14], %16 {strides = array<i32>} : memref<256x128xf32, #tpu.memory_space<vmem>>, vector<256x128xf32>,
    } else {
    }
    return
  }
  func.func @transform_0(%arg0: i32, %arg1: i32) -> (i32, i32) {
    %c0_i32 = arith.constant 0 : i32
    return %arg0, %arg1 : i32, i32
  }
  func.func @transform_1(%arg0: i32, %arg1: i32) -> (i32, i32) {
    %c0_i32 = arith.constant 0 : i32
    %c0_i32_0 = arith.constant 0 : i32
    return %arg1, %c0_i32 : i32, i32
  }
  func.func @transform_2(%arg0: i32, %arg1: i32) -> (i32, i32) {
    %c0_i32 = arith.constant 0 : i32
    %c0_i32_0 = arith.constant 0 : i32
    %c0_i32_1 = arith.constant 0 : i32
    return %c0_i32, %c0_i32_0 : i32, i32
  }
  func.func @transform_3(%arg0: i32, %arg1: i32) -> (i32, i32) {
    %c0_i32 = arith.constant 0 : i32
    %c0_i32_0 = arith.constant 0 : i32
    return %arg0, %c0_i32 : i32, i32
  }
}

</mosaic_0001>

<llo_original>
// kernel: _lambda_.8
$region0: #{_lambda_.8}
  #allocation0 [shape = 'u32[]', space=smem, size = 0x4, offset = 0x4, fixed_abs, tag = 'smem constant byte address 0x4 - core index']
  #allocation1 [shape = 'u32[144,128]{1,0:T(1,128)}', space=vmem, size = 0x12000, scoped, tag = 'internal scratch']
  %s0 = inlined_call_operand.vmem [shape: f32[128,128], index: 0, kind: input, shape index: {}]
  %s1 = inlined_call_operand.vmem [shape: f32[1,128], index: 1, kind: input, shape index: {}]
  %s2 = inlined_call_operand.vmem [shape: f32[1,128], index: 2, kind: input, shape index: {}]
  %s3 = inlined_call_operand.vmem [shape: bf16[128,128], index: 3, kind: output, shape index: {}]
  %s4 = sld [smem:[#allocation0]]
  $region22: #{_lambda_.8} parent=0
    _
  %s6 = ssub.s32 1, %s4
  %s7 = scalar_select 0, %s6, %s4
  // Predicated region
  $region2: #{_lambda_.8} parent=0 // pred_check
    _
  $region3: #{_lambda_.8} parent=0 // pred_check_branch
    %9 = sbr.rel (0) target = $region5
  $region4: #{_lambda_.8} parent=0 // pred_region
    _
  $region5: #{_lambda_.8} parent=0 // pred_fallthru
    _
  // Predicated region
  $region6: #{_lambda_.8} parent=0 // pred_check
    _
  $region7: #{_lambda_.8} parent=0 // pred_check_branch
    %11 = sbr.rel (0) target = $region9
  $region8: #{_lambda_.8} parent=0 // pred_region
    _
  $region9: #{_lambda_.8} parent=0 // pred_fallthru
    _
  // Predicated region
  $region10: #{_lambda_.8} parent=0 // pred_check
    _
  $region11: #{_lambda_.8} parent=0 // pred_check_branch
    %13 = sbr.rel (0) target = $region13
  $region12: #{_lambda_.8} parent=0 // pred_region
    _
  $region13: #{_lambda_.8} parent=0 // pred_fallthru
    _
  %v14 = vld [vmem:[%s0] sm:$0xff]
  %v15 = vld [vmem:[%s0 + $0x8] sm:$0xff]
  %v16 = vld [vmem:[%s0 + $0x10] sm:$0xff]
  %v17 = vld [vmem:[%s0 + $0x18] sm:$0xff]
  %v18 = vld [vmem:[%s0 + $0x20] sm:$0xff]
  %v19 = vld [vmem:[%s0 + $0x28] sm:$0xff]
  %v20 = vld [vmem:[%s0 + $0x30] sm:$0xff]
  %v21 = vld [vmem:[%s0 + $0x38] sm:$0xff]
  %v22 = vld [vmem:[%s0 + $0x40] sm:$0xff]
  %v23 = vld [vmem:[%s0 + $0x48] sm:$0xff]
  %v24 = vld [vmem:[%s0 + $0x50] sm:$0xff]
  %v25 = vld [vmem:[%s0 + $0x58] sm:$0xff]
  %v26 = vld [vmem:[%s0 + $0x60] sm:$0xff]
  %v27 = vld [vmem:[%s0 + $0x68] sm:$0xff]
  %v28 = vld [vmem:[%s0 + $0x70] sm:$0xff]
  %v29 = vld [vmem:[%s0 + $0x78] sm:$0xff]
  %v30 = vld [vmem:[%s1] sm:$0x1]
  %v32 = vlaneseq
  %v33 = vshrl.u32 %v32, 7
  %v34 = vsub.s32 0, %v33
  %v35 = vrot.slane %v30, %v34
  %v37 = vmul.f32 %v14, %v35
  %v38 = vmul.f32 %v15, %v35
  %v39 = vmul.f32 %v16, %v35
  %v40 = vmul.f32 %v17, %v35
  %v41 = vmul.f32 %v18, %v35
  %v42 = vmul.f32 %v19, %v35
  %v43 = vmul.f32 %v20, %v35
  %v44 = vmul.f32 %v21, %v35
  %v45 = vmul.f32 %v22, %v35
  %v46 = vmul.f32 %v23, %v35
  %v47 = vmul.f32 %v24, %v35
  %v48 = vmul.f32 %v25, %v35
  %v49 = vmul.f32 %v26, %v35
  %v50 = vmul.f32 %v27, %v35
  %v51 = vmul.f32 %v28, %v35
  %v52 = vmul.f32 %v29, %v35
  %v53 = vld [vmem:[%s2] sm:$0x1]
  %v55 = vlaneseq
  %v56 = vshrl.u32 %v55, 7
  %v57 = vsub.s32 0, %v56
  %v58 = vrot.slane %v53, %v57
  %v60 = vadd.f32 %v37, %v58
  %v61 = vadd.f32 %v38, %v58
  %v62 = vadd.f32 %v39, %v58
  %v63 = vadd.f32 %v40, %v58
  %v64 = vadd.f32 %v41, %v58
  %v65 = vadd.f32 %v42, %v58
  %v66 = vadd.f32 %v43, %v58
  %v67 = vadd.f32 %v44, %v58
  %v68 = vadd.f32 %v45, %v58
  %v69 = vadd.f32 %v46, %v58
  %v70 = vadd.f32 %v47, %v58
  %v71 = vadd.f32 %v48, %v58
  %v72 = vadd.f32 %v49, %v58
  %v73 = vadd.f32 %v50, %v58
  %v74 = vadd.f32 %v51, %v58
  %v75 = vadd.f32 %v52, %v58
  %v76 = vmax.f32 %v60, 0.0
  %v77 = vmax.f32 %v61, 0.0
  %v78 = vmax.f32 %v62, 0.0
  %v79 = vmax.f32 %v63, 0.0
  %v80 = vmax.f32 %v64, 0.0
  %v81 = vmax.f32 %v65, 0.0
  %v82 = vmax.f32 %v66, 0.0
  %v83 = vmax.f32 %v67, 0.0
  %v84 = vmax.f32 %v68, 0.0
  %v85 = vmax.f32 %v69, 0.0
  %v86 = vmax.f32 %v70, 0.0
  %v87 = vmax.f32 %v71, 0.0
  %v88 = vmax.f32 %v72, 0.0
  %v89 = vmax.f32 %v73, 0.0
  %v90 = vmax.f32 %v74, 0.0
  %v91 = vmax.f32 %v75, 0.0
  %v92 = vpack.c.bf16 %v77, %v76
  %v93 = vpack.c.bf16 %v79, %v78
  %v94 = vpack.c.bf16 %v81, %v80
  %v95 = vpack.c.bf16 %v83, %v82
  %v96 = vpack.c.bf16 %v85, %v84
  %v97 = vpack.c.bf16 %v87, %v86
  %v98 = vpack.c.bf16 %v89, %v88
  %v99 = vpack.c.bf16 %v91, %v90
  %v108 = vunpack.c.l.b16 %v92
  %v109 = vunpack.c.h.b16 %v92
  %v110 = vunpack.c.l.b16 %v93
  %v111 = vunpack.c.h.b16 %v93
  %v112 = vunpack.c.l.b16 %v94
  %v113 = vunpack.c.h.b16 %v94
  %v114 = vunpack.c.l.b16 %v95
  %v115 = vunpack.c.h.b16 %v95
  %v116 = vunpack.c.l.b16 %v96
  %v117 = vunpack.c.h.b16 %v96
  %v118 = vunpack.c.l.b16 %v97
  %v119 = vunpack.c.h.b16 %v97
  %v120 = vunpack.c.l.b16 %v98
  %v121 = vunpack.c.h.b16 %v98
  %v122 = vunpack.c.l.b16 %v99
  %v123 = vunpack.c.h.b16 %v99
  %v124 = vpack.c.b16 %v108, %v108
  %v125 = vpack.c.b16 %v109, %v109
  %v126 = vpack.c.b16 %v110, %v110
  %v127 = vpack.c.b16 %v111, %v111
  %v128 = vpack.c.b16 %v112, %v112
  %v129 = vpack.c.b16 %v113, %v113
  %v130 = vpack.c.b16 %v114, %v114
  %v131 = vpack.c.b16 %v115, %v115
  %v132 = vpack.c.b16 %v116, %v116
  %v133 = vpack.c.b16 %v117, %v117
  %v134 = vpack.c.b16 %v118, %v118
  %v135 = vpack.c.b16 %v119, %v119
  %v136 = vpack.c.b16 %v120, %v120
  %v137 = vpack.c.b16 %v121, %v121
  %v138 = vpack.c.b16 %v122, %v122
  %v139 = vpack.c.b16 %v123, %v123
  %156 = vst [vmem:[%s3] sm:$0xf] %v124
  %157 = vst [vmem:[%s3 + $0x4] sm:$0xf] %v125
  %158 = vst [vmem:[%s3 + $0x8] sm:$0xf] %v126
  %159 = vst [vmem:[%s3 + $0xc] sm:$0xf] %v127
  %160 = vst [vmem:[%s3 + $0x10] sm:$0xf] %v128
  %161 = vst [vmem:[%s3 + $0x14] sm:$0xf] %v129
  %162 = vst [vmem:[%s3 + $0x18] sm:$0xf] %v130
  %163 = vst [vmem:[%s3 + $0x1c] sm:$0xf] %v131
  %164 = vst [vmem:[%s3 + $0x20] sm:$0xf] %v132
  %165 = vst [vmem:[%s3 + $0x24] sm:$0xf] %v133
  %166 = vst [vmem:[%s3 + $0x28] sm:$0xf] %v134
  %167 = vst [vmem:[%s3 + $0x2c] sm:$0xf] %v135
  %168 = vst [vmem:[%s3 + $0x30] sm:$0xf] %v136
  %169 = vst [vmem:[%s3 + $0x34] sm:$0xf] %v137
  %170 = vst [vmem:[%s3 + $0x38] sm:$0xf] %v138
  %171 = vst [vmem:[%s3 + $0x3c] sm:$0xf] %v139
  // Predicated region
  $region14: #{_lambda_.8} parent=0 // pred_check
    _
  $region15: #{_lambda_.8} parent=0 // pred_check_branch
    %173 = sbr.rel (0) target = $region17
  $region16: #{_lambda_.8} parent=0 // pred_region
    _
  $region17: #{_lambda_.8} parent=0 // pred_fallthru
    _
  // Predicated region
  $region18: #{_lambda_.8} parent=0 // pred_check
    _
  $region19: #{_lambda_.8} parent=0 // pred_check_branch
    %175 = sbr.rel (0) target = $region21
  $region20: #{_lambda_.8} parent=0 // pred_region
    _
  $region21: #{_lambda_.8} parent=0 // pred_fallthru
    _

// kernel: _lambda_.7
$region0: #{_lambda_.7}
  #allocation0 [shape = 'u32[]', space=smem, size = 0x4, offset = 0x4, fixed_abs, tag = 'smem constant byte address 0x4 - core index']
  #allocation1 [shape = 'u32[144,128]{1,0:T(1,128)}', space=vmem, size = 0x12000, scoped, tag = 'internal scratch']
  %s0 = inlined_call_operand.vmem [shape: bf16[128,5120], index: 0, kind: input, shape index: {}]
  %s1 = inlined_call_operand.hbm [shape: bf16[5120,128], index: 1, kind: input, shape index: {}]
  %s2 = inlined_call_operand.hbm [shape: f32[1,128], index: 2, kind: input, shape index: {}]
  %s3 = inlined_call_operand.vmem [shape: f32[128,128], index: 3, kind: output, shape index: {0}]
  %s4 = inlined_call_operand.vmem [shape: f32[1,1,128], index: 4, kind: output, shape index: {1}]
  %s5 = inlined_call_operand.vmem [shape: f32[1,1,128], index: 5, kind: output, shape index: {2}]
  %6 = xla_tuple %s3, %s4, %s5
  %s7 = sld [smem:[#allocation0]]
  $region100: #{_lambda_.7} parent=0
    _
  %s9 = ssub.s32 1, %s7
  %s10 = scalar_select 0, %s9, %s7
  $region1: #{_lambda_.7} parent=0
    #allocation2 [shape = 'u8[524288]{0}', space=vmem, size = 0x80000, scoped, tag = 'input window, operand 0']
    #allocation3 [shape = 'u8[524288]{0}', space=vmem, size = 0x80000, scoped, tag = 'input window, operand 1']
    #allocation4 [shape = 's32[2]{0}', space=sflag, size = 0x8, scoped, tag = 'scoped memory for _lambda_.7']
    #allocation5 [shape = 'u8[512]{0}', space=vmem, size = 0x400, scoped, tag = 'input window, operand 2, single buffered']
    #allocation6 [shape = 's32[1]{0}', space=sflag, size = 0x4, scoped, tag = 'scoped memory for _lambda_.7']
    %11 = vsyncpa [#allocation4], 0
    %s12 = scalar_lea.sflag [#allocation4], 1
    %13 = vsyncpa %s12, 0
    %14 = vsyncpa [#allocation6], 0
    loop: start=0, step=1, limit=7
    $region2: #{_lambda_.7} parent=1 // loop_pre_header
      _
    $region3: #{_lambda_.7} parent=1 // loop_header
      %s16 = sphi 0, %s20
      %p17 = scmp.ge.s32.totalorder %s16, 7
      %s23 = sphi 0, %s35
      %s24 = sphi 0, %s31
      %s25 = sphi 0, %s23
      %s26 = sphi 0, %s24
      %s27 = sphi 0, %s25
      %s28 = sphi 0, %s26
      %s40 = sphi 0, %s42
      %s43 = sphi 0, %s40
      %s44 = sphi 0, %s43
      %s60 = sphi 0, %s44
      %s66 = sphi 0, %s68
      %s69 = sphi 0, %s66
      %s70 = sphi 0, %s69
      %s86 = sphi 0, %s70
      %s90 = sphi 0, %s90
      %s92 = sphi 0, %s90
      %s93 = sphi 0, %s92
      %s107 = sphi 0, %s93
      %s113 = sphi 0, %s115
      %s116 = sphi 0, %s113
      %s117 = sphi 0, %s116
      %s133 = sphi 0, %s117
      %s139 = sphi 0, %s141
      %s142 = sphi 0, %s139
      %s143 = sphi 0, %s142
      %s159 = sphi 0, %s143
      %s165 = sphi 0, %s167
      %s168 = sphi 0, %s165
      %s169 = sphi 0, %s168
      %s185 = sphi 0, %s169
    $region4: #{_lambda_.7} parent=1 // loop_header_branch
      %19 = sbr.rel (%p17) target = $region8
    $region5: #{_lambda_.7} parent=1 // loop_body
      %s21 = ssub.s32 %s16, 1
      %s22 = ssub.s32 %s16, 2
      %s29 = sadd.s32 1, %s24
      %p30 = scmp.ge.s32.totalorder %s29, 5
      %s31 = scalar_select %p30, 0, %s29
      %s32 = sadd.s32 1, %s23
      %s33 = scalar_select %p30, %s32, %s23
      %p34 = scmp.ge.s32.totalorder %s33, 1
      %s35 = scalar_select %p34, 0, %s33
      %s36 = ssub.s32 %s23, %s35
      %s37 = ssub.s32 %s24, %s31
      %s38 = sor.u32 %s36, %s37
      %p39 = scmp.eq.s32.totalorder %s38, 0
      %s41 = sadd.s32 %s40, 1
      %s42 = scalar_select %p39, %s40, %s41
      %p45 = pneg %p39
      %p46 = scmp.eq.s32.totalorder %s16, 4
      %p47 = por %p45, %p46
      %p48 = scmp.ne.s32.totalorder %s40, %s43
      %p49 = scmp.eq.s32.totalorder %s16, 0
      %p50 = por %p48, %p49
      %p51 = scmp.ne.s32.totalorder %s40, %s43
      %p52 = scmp.eq.s32.totalorder %s21, 4
      %p53 = por %p51, %p52
      %p54 = scmp.ne.s32.totalorder %s43, %s44
      %p55 = scmp.eq.s32.totalorder %s21, 0
      %p56 = por %p54, %p55
      %p57 = scmp.ne.s32.totalorder %s43, %s44
      %p58 = scmp.eq.s32.totalorder %s22, 4
      %p59 = por %p57, %p58
      %p61 = scmp.ne.s32.totalorder %s44, %s60
      %p62 = scmp.eq.s32.totalorder %s22, 0
      %p63 = por %p61, %p62
      %s64 = ssub.s32 %s24, %s31
      %p65 = scmp.eq.s32.totalorder %s64, 0
      %s67 = sadd.s32 %s66, 1
      %s68 = scalar_select %p65, %s66, %s67
      %p71 = pneg %p65
      %p72 = scmp.eq.s32.totalorder %s16, 4
      %p73 = por %p71, %p72
      %p74 = scmp.ne.s32.totalorder %s66, %s69
      %p75 = scmp.eq.s32.totalorder %s16, 0
      %p76 = por %p74, %p75
      %p77 = scmp.ne.s32.totalorder %s66, %s69
      %p78 = scmp.eq.s32.totalorder %s21, 4
      %p79 = por %p77, %p78
      %p80 = scmp.ne.s32.totalorder %s69, %s70
      %p81 = scmp.eq.s32.totalorder %s21, 0
      %p82 = por %p80, %p81
      %p83 = scmp.ne.s32.totalorder %s69, %s70
      %p84 = scmp.eq.s32.totalorder %s22, 4
      %p85 = por %p83, %p84
      %p87 = scmp.ne.s32.totalorder %s70, %s86
      %p88 = scmp.eq.s32.totalorder %s22, 0
      %p89 = por %p87, %p88
      %s91 = sadd.s32 %s90, 1
      %p94 = scmp.eq.s32.totalorder %s16, 4
      %p95 = scmp.ne.s32.totalorder %s90, %s92
      %p96 = scmp.eq.s32.totalorder %s16, 0
      %p97 = por %p95, %p96
      %p98 = scmp.ne.s32.totalorder %s90, %s92
      %p99 = scmp.eq.s32.totalorder %s21, 4
      %p100 = por %p98, %p99
      %p101 = scmp.ne.s32.totalorder %s92, %s93
      %p102 = scmp.eq.s32.totalorder %s21, 0
      %p103 = por %p101, %p102
      %p104 = scmp.ne.s32.totalorder %s92, %s93
      %p105 = scmp.eq.s32.totalorder %s22, 4
      %p106 = por %p104, %p105
      %p108 = scmp.ne.s32.totalorder %s93, %s107
      %p109 = scmp.eq.s32.totalorder %s22, 0
      %p110 = por %p108, %p109
      %s111 = ssub.s32 %s23, %s35
      %p112 = scmp.eq.s32.totalorder %s111, 0
      %s114 = sadd.s32 %s113, 1
      %s115 = scalar_select %p112, %s113, %s114
      %p118 = pneg %p112
      %p119 = scmp.eq.s32.totalorder %s16, 4
      %p120 = por %p118, %p119
      %p121 = scmp.ne.s32.totalorder %s113, %s116
      %p122 = scmp.eq.s32.totalorder %s16, 0
      %p123 = por %p121, %p122
      %p124 = scmp.ne.s32.totalorder %s113, %s116
      %p125 = scmp.eq.s32.totalorder %s21, 4
      %p126 = por %p124, %p125
      %p127 = scmp.ne.s32.totalorder %s116, %s117
      %p128 = scmp.eq.s32.totalorder %s21, 0
      %p129 = por %p127, %p128
      %p130 = scmp.ne.s32.totalorder %s116, %s117
      %p131 = scmp.eq.s32.totalorder %s22, 4
      %p132 = por %p130, %p131
      %p134 = scmp.ne.s32.totalorder %s117, %s133
      %p135 = scmp.eq.s32.totalorder %s22, 0
      %p136 = por %p134, %p135
      %s137 = ssub.s32 %s23, %s35
      %p138 = scmp.eq.s32.totalorder %s137, 0
      %s140 = sadd.s32 %s139, 1
      %s141 = scalar_select %p138, %s139, %s140
      %p144 = pneg %p138
      %p145 = scmp.eq.s32.totalorder %s16, 4
      %p146 = por %p144, %p145
      %p147 = scmp.ne.s32.totalorder %s139, %s142
      %p148 = scmp.eq.s32.totalorder %s16, 0
      %p149 = por %p147, %p148
      %p150 = scmp.ne.s32.totalorder %s139, %s142
      %p151 = scmp.eq.s32.totalorder %s21, 4
      %p152 = por %p150, %p151
      %p153 = scmp.ne.s32.totalorder %s142, %s143
      %p154 = scmp.eq.s32.totalorder %s21, 0
      %p155 = por %p153, %p154
      %p156 = scmp.ne.s32.totalorder %s142, %s143
      %p157 = scmp.eq.s32.totalorder %s22, 4
      %p158 = por %p156, %p157
      %p160 = scmp.ne.s32.totalorder %s143, %s159
      %p161 = scmp.eq.s32.totalorder %s22, 0
      %p162 = por %p160, %p161
      %s163 = ssub.s32 %s23, %s35
      %p164 = scmp.eq.s32.totalorder %s163, 0
      %s166 = sadd.s32 %s165, 1
      %s167 = scalar_select %p164, %s165, %s166
      %p170 = pneg %p164
      %p171 = scmp.eq.s32.totalorder %s16, 4
      %p172 = por %p170, %p171
      %p173 = scmp.ne.s32.totalorder %s165, %s168
      %p174 = scmp.eq.s32.totalorder %s16, 0
      %p175 = por %p173, %p174
      %p176 = scmp.ne.s32.totalorder %s165, %s168
      %p177 = scmp.eq.s32.totalorder %s21, 4
      %p178 = por %p176, %p177
      %p179 = scmp.ne.s32.totalorder %s168, %s169
      %p180 = scmp.eq.s32.totalorder %s21, 0
      %p181 = por %p179, %p180
      %p182 = scmp.ne.s32.totalorder %s168, %s169
      %p183 = scmp.eq.s32.totalorder %s22, 4
      %p184 = por %p182, %p183
      %p186 = scmp.ne.s32.totalorder %s169, %s185
      %p187 = scmp.eq.s32.totalorder %s22, 0
      %p188 = por %p186, %p187
      %p189 = scmp.le.s32.totalorder 1, %s16
      %p190 = scmp.lt.s32.totalorder %s16, 6
      %p191 = pnand %p189, %p190
      %p192 = pneg %p191
      // Predicated region
      $region9: #{_lambda_.7} parent=5 // pred_check
        _
      $region10: #{_lambda_.7} parent=5 // pred_check_branch
        %194 = sbr.rel (%p191) target = $region12
      $region11: #{_lambda_.7} parent=5 // pred_region
        %s195 = ssub.s32 %s16, 1
        // Predicated region
        $region13: #{_lambda_.7} parent=11 // pred_check
          %p196 = pneg %p103
        $region14: #{_lambda_.7} parent=11 // pred_check_branch
          %198 = sbr.rel (%p196) target = $region16
        $region15: #{_lambda_.7} parent=11 // pred_region
          %s200 = ssub.s32 16, 16
          %201 = vsyncadd [#allocation6], %s200
          %s203 = sshll.u32 [#allocation5], 4
          %s204 = int_to_ptr.vmem [resolvable:$true] %s203
          %206 = dma.hbm_to_vmem [thread:$0]  %s2, 16, %s204, [#allocation6]
        $region16: #{_lambda_.7} parent=11 // pred_fallthru
          _
      $region12: #{_lambda_.7} parent=5 // pred_fallthru
        _
      %p207 = scmp.lt.s32.totalorder %s16, 5
      // Predicated region
      $region17: #{_lambda_.7} parent=5 // pred_check
        %p208 = pneg %p207
      $region18: #{_lambda_.7} parent=5 // pred_check_branch
        %210 = sbr.rel (%p208) target = $region20
      $region19: #{_lambda_.7} parent=5 // pred_region
        // Predicated region
        $region21: #{_lambda_.7} parent=19 // pred_check
          %p211 = pneg %p50
        $region22: #{_lambda_.7} parent=19 // pred_check_branch
          %213 = sbr.rel (%p211) target = $region24
        $region23: #{_lambda_.7} parent=19 // pred_region
          %s214 = sand.u32 %s40, 1
          %s215 = sand.u32 %s40, 1
          %s216 = smul.addr %s215, 512
          %s217 = scalar_lea.vmem [#allocation2], %s216
          %s218 = smul.u32 16, %s23
          %s219 = smul.u32 8, %s24
          %s220 = smul.addr %s218, 40
          %s221 = sadd.s32 %s219, %s220
          %s222 = smul.addr %s221, 4
          %s223 = scalar_lea.vmem %s0, %s222
          // Predicated region
          $region25: #{_lambda_.7} parent=23 // pred_check
            _
          $region26: #{_lambda_.7} parent=23 // pred_check_branch
            %225 = sbr.rel (0) target = $region28
          $region27: #{_lambda_.7} parent=23 // pred_region
            // Predicated region
            $region29: #{_lambda_.7} parent=27 // pred_check
              _
            $region30: #{_lambda_.7} parent=27 // pred_check_branch
              %227 = sbr.rel (0) target = $region32
            $region31: #{_lambda_.7} parent=27 // pred_region
              loop: start=0, step=1, limit=1
              $region33: #{_lambda_.7} parent=31 // loop_pre_header
                _
              $region34: #{_lambda_.7} parent=31 // loop_header
                %s229 = sphi 0, %s233
                %p230 = scmp.ge.s32.totalorder %s229, 1
                %s234 = sphi %s223, %s223
                %s235 = sphi %s217, %s217
              $region35: #{_lambda_.7} parent=31 // loop_header_branch
                %232 = sbr.rel (%p230) target = $region39
              $region36: #{_lambda_.7} parent=31 // loop_body
                %v236 = vld [vmem:[%s234] sm:$0xff]
                %237 = vst [vmem:[%s235] sm:$0xff] %v236
                %v238 = vld [vmem:[%s234 + $0x8] sm:$0xff]
                %239 = vst [vmem:[%s235 + $0x8] sm:$0xff] %v238
                %v240 = vld [vmem:[%s234 + $0x10] sm:$0xff]
                %241 = vst [vmem:[%s235 + $0x10] sm:$0xff] %v240
                %v242 = vld [vmem:[%s234 + $0x18] sm:$0xff]
                %243 = vst [vmem:[%s235 + $0x18] sm:$0xff] %v242
                %v244 = vld [vmem:[%s234 + $0xa0] sm:$0xff]
                %245 = vst [vmem:[%s235 + $0x20] sm:$0xff] %v244
                %v246 = vld [vmem:[%s234 + $0xa8] sm:$0xff]
                %247 = vst [vmem:[%s235 + $0x28] sm:$0xff] %v246
                %v248 = vld [vmem:[%s234 + $0xb0] sm:$0xff]
                %249 = vst [vmem:[%s235 + $0x30] sm:$0xff] %v248
                %v250 = vld [vmem:[%s234 + $0xb8] sm:$0xff]
                %251 = vst [vmem:[%s235 + $0x38] sm:$0xff] %v250
                %v252 = vld [vmem:[%s234 + $0x140] sm:$0xff]
                %253 = vst [vmem:[%s235 + $0x40] sm:$0xff] %v252
                %v254 = vld [vmem:[%s234 + $0x148] sm:$0xff]
                %255 = vst [vmem:[%s235 + $0x48] sm:$0xff] %v254
                %v256 = vld [vmem:[%s234 + $0x150] sm:$0xff]
                %257 = vst [vmem:[%s235 + $0x50] sm:$0xff] %v256
                %v258 = vld [vmem:[%s234 + $0x158] sm:$0xff]
                %259 = vst [vmem:[%s235 + $0x58] sm:$0xff] %v258
                %v260 = vld [vmem:[%s234 + $0x1e0] sm:$0xff]
                %261 = vst [vmem:[%s235 + $0x60] sm:$0xff] %v260
                %v262 = vld [vmem:[%s234 + $0x1e8] sm:$0xff]
                %263 = vst [vmem:[%s235 + $0x68] sm:$0xff] %v262
                %v264 = vld [vmem:[%s234 + $0x1f0] sm:$0xff]
                %265 = vst [vmem:[%s235 + $0x70] sm:$0xff] %v264
                %v266 = vld [vmem:[%s234 + $0x1f8] sm:$0xff]
                %267 = vst [vmem:[%s235 + $0x78] sm:$0xff] %v266
                %v268 = vld [vmem:[%s234 + $0x280] sm:$0xff]
                %269 = vst [vmem:[%s235 + $0x80] sm:$0xff] %v268
                %v270 = vld [vmem:[%s234 + $0x288] sm:$0xff]
                %271 = vst [vmem:[%s235 + $0x88] sm:$0xff] %v270
                %v272 = vld [vmem:[%s234 + $0x290] sm:$0xff]
                %273 = vst [vmem:[%s235 + $0x90] sm:$0xff] %v272
                %v274 = vld [vmem:[%s234 + $0x298] sm:$0xff]
                %275 = vst [vmem:[%s235 + $0x98] sm:$0xff] %v274
                %v276 = vld [vmem:[%s234 + $0x320] sm:$0xff]
                %277 = vst [vmem:[%s235 + $0xa0] sm:$0xff] %v276
                %v278 = vld [vmem:[%s234 + $0x328] sm:$0xff]
                %279 = vst [vmem:[%s235 + $0xa8] sm:$0xff] %v278
                %v280 = vld [vmem:[%s234 + $0x330] sm:$0xff]
                %281 = vst [vmem:[%s235 + $0xb0] sm:$0xff] %v280
                %v282 = vld [vmem:[%s234 + $0x338] sm:$0xff]
                %283 = vst [vmem:[%s235 + $0xb8] sm:$0xff] %v282
                %v284 = vld [vmem:[%s234 + $0x3c0] sm:$0xff]
                %285 = vst [vmem:[%s235 + $0xc0] sm:$0xff] %v284
                %v286 = vld [vmem:[%s234 + $0x3c8] sm:$0xff]
                %287 = vst [vmem:[%s235 + $0xc8] sm:$0xff] %v286
                %v288 = vld [vmem:[%s234 + $0x3d0] sm:$0xff]
                %289 = vst [vmem:[%s235 + $0xd0] sm:$0xff] %v288
                %v290 = vld [vmem:[%s234 + $0x3d8] sm:$0xff]
                %291 = vst [vmem:[%s235 + $0xd8] sm:$0xff] %v290
                %v292 = vld [vmem:[%s234 + $0x460] sm:$0xff]
                %293 = vst [vmem:[%s235 + $0xe0] sm:$0xff] %v292
                %v294 = vld [vmem:[%s234 + $0x468] sm:$0xff]
                %295 = vst [vmem:[%s235 + $0xe8] sm:$0xff] %v294
                %v296 = vld [vmem:[%s234 + $0x470] sm:$0xff]
                %297 = vst [vmem:[%s235 + $0xf0] sm:$0xff] %v296
                %v298 = vld [vmem:[%s234 + $0x478] sm:$0xff]
                %299 = vst [vmem:[%s235 + $0xf8] sm:$0xff] %v298
                %v300 = vld [vmem:[%s234 + $0x500] sm:$0xff]
                %301 = vst [vmem:[%s235 + $0x100] sm:$0xff] %v300
                %v302 = vld [vmem:[%s234 + $0x508] sm:$0xff]
                %303 = vst [vmem:[%s235 + $0x108] sm:$0xff] %v302
                %v304 = vld [vmem:[%s234 + $0x510] sm:$0xff]
                %305 = vst [vmem:[%s235 + $0x110] sm:$0xff] %v304
                %v306 = vld [vmem:[%s234 + $0x518] sm:$0xff]
                %307 = vst [vmem:[%s235 + $0x118] sm:$0xff] %v306
                %v308 = vld [vmem:[%s234 + $0x5a0] sm:$0xff]
                %309 = vst [vmem:[%s235 + $0x120] sm:$0xff] %v308
                %v310 = vld [vmem:[%s234 + $0x5a8] sm:$0xff]
                %311 = vst [vmem:[%s235 + $0x128] sm:$0xff] %v310
                %v312 = vld [vmem:[%s234 + $0x5b0] sm:$0xff]
                %313 = vst [vmem:[%s235 + $0x130] sm:$0xff] %v312
                %v314 = vld [vmem:[%s234 + $0x5b8] sm:$0xff]
                %315 = vst [vmem:[%s235 + $0x138] sm:$0xff] %v314
                %v316 = vld [vmem:[%s234 + $0x640] sm:$0xff]
                %317 = vst [vmem:[%s235 + $0x140] sm:$0xff] %v316
                %v318 = vld [vmem:[%s234 + $0x648] sm:$0xff]
                %319 = vst [vmem:[%s235 + $0x148] sm:$0xff] %v318
                %v320 = vld [vmem:[%s234 + $0x650] sm:$0xff]
                %321 = vst [vmem:[%s235 + $0x150] sm:$0xff] %v320
                %v322 = vld [vmem:[%s234 + $0x658] sm:$0xff]
                %323 = vst [vmem:[%s235 + $0x158] sm:$0xff] %v322
                %v324 = vld [vmem:[%s234 + $0x6e0] sm:$0xff]
                %325 = vst [vmem:[%s235 + $0x160] sm:$0xff] %v324
                %v326 = vld [vmem:[%s234 + $0x6e8] sm:$0xff]
                %327 = vst [vmem:[%s235 + $0x168] sm:$0xff] %v326
                %v328 = vld [vmem:[%s234 + $0x6f0] sm:$0xff]
                %329 = vst [vmem:[%s235 + $0x170] sm:$0xff] %v328
                %v330 = vld [vmem:[%s234 + $0x6f8] sm:$0xff]
                %331 = vst [vmem:[%s235 + $0x178] sm:$0xff] %v330
                %v332 = vld [vmem:[%s234 + $0x780] sm:$0xff]
                %333 = vst [vmem:[%s235 + $0x180] sm:$0xff] %v332
                %v334 = vld [vmem:[%s234 + $0x788] sm:$0xff]
                %335 = vst [vmem:[%s235 + $0x188] sm:$0xff] %v334
                %v336 = vld [vmem:[%s234 + $0x790] sm:$0xff]
                %337 = vst [vmem:[%s235 + $0x190] sm:$0xff] %v336
                %v338 = vld [vmem:[%s234 + $0x798] sm:$0xff]
                %339 = vst [vmem:[%s235 + $0x198] sm:$0xff] %v338
                %v340 = vld [vmem:[%s234 + $0x820] sm:$0xff]
                %341 = vst [vmem:[%s235 + $0x1a0] sm:$0xff] %v340
                %v342 = vld [vmem:[%s234 + $0x828] sm:$0xff]
                %343 = vst [vmem:[%s235 + $0x1a8] sm:$0xff] %v342
                %v344 = vld [vmem:[%s234 + $0x830] sm:$0xff]
                %345 = vst [vmem:[%s235 + $0x1b0] sm:$0xff] %v344
                %v346 = vld [vmem:[%s234 + $0x838] sm:$0xff]
                %347 = vst [vmem:[%s235 + $0x1b8] sm:$0xff] %v346
                %v348 = vld [vmem:[%s234 + $0x8c0] sm:$0xff]
                %349 = vst [vmem:[%s235 + $0x1c0] sm:$0xff] %v348
                %v350 = vld [vmem:[%s234 + $0x8c8] sm:$0xff]
                %351 = vst [vmem:[%s235 + $0x1c8] sm:$0xff] %v350
                %v352 = vld [vmem:[%s234 + $0x8d0] sm:$0xff]
                %353 = vst [vmem:[%s235 + $0x1d0] sm:$0xff] %v352
                %v354 = vld [vmem:[%s234 + $0x8d8] sm:$0xff]
                %355 = vst [vmem:[%s235 + $0x1d8] sm:$0xff] %v354
                %v356 = vld [vmem:[%s234 + $0x960] sm:$0xff]
                %357 = vst [vmem:[%s235 + $0x1e0] sm:$0xff] %v356
                %v358 = vld [vmem:[%s234 + $0x968] sm:$0xff]
                %359 = vst [vmem:[%s235 + $0x1e8] sm:$0xff] %v358
                %v360 = vld [vmem:[%s234 + $0x970] sm:$0xff]
                %361 = vst [vmem:[%s235 + $0x1f0] sm:$0xff] %v360
                %v362 = vld [vmem:[%s234 + $0x978] sm:$0xff]
                %363 = vst [vmem:[%s235 + $0x1f8] sm:$0xff] %v362
              $region37: #{_lambda_.7} parent=31 // loop_footer
                %s233 = sadd.s32 1, %s229
              $region38: #{_lambda_.7} parent=31 // loop_footer_branch
                %228 = sbr.rel target = $region34
              $region39: #{_lambda_.7} parent=31 // loop_exit
                _
            $region32: #{_lambda_.7} parent=27 // pred_fallthru
              _
            // Predicated region
            $region40: #{_lambda_.7} parent=27 // pred_check
              _
            $region41: #{_lambda_.7} parent=27 // pred_check_branch
              %365 = sbr.rel target = $region43
            $region42: #{_lambda_.7} parent=27 // pred_region
              _
            $region43: #{_lambda_.7} parent=27 // pred_fallthru
              _
          $region28: #{_lambda_.7} parent=23 // pred_fallthru
            _
          %366 = vnop
        $region24: #{_lambda_.7} parent=19 // pred_fallthru
          _
        // Predicated region
        $region44: #{_lambda_.7} parent=19 // pred_check
          %p367 = pneg %p76
        $region45: #{_lambda_.7} parent=19 // pred_check_branch
          %369 = sbr.rel (%p367) target = $region47
        $region46: #{_lambda_.7} parent=19 // pred_region
          %s370 = sand.u32 %s66, 1
          %s371 = scalar_lea.sflag [#allocation4], %s370
          %s372 = sand.u32 %s66, 1
          %s373 = smul.addr %s372, 512
          %s374 = scalar_lea.vmem [#allocation3], %s373
          %s375 = smul.u32 128, %s24
          %s377 = ssub.s32 8192, 8192
          %378 = vsyncadd %s371, %s377
          %s379 = smul.addr %s375, 64
          %s380 = scalar_lea.hbm %s1, %s379
          %s381 = sshll.u32 %s374, 4
          %s382 = int_to_ptr.vmem [resolvable:$true] %s381
          %387 = dma.hbm_to_vmem [thread:$0]  %s380, 8192, %s382, %s371, 64, 64, 4
        $region47: #{_lambda_.7} parent=19 // pred_fallthru
          _
      $region20: #{_lambda_.7} parent=5 // pred_fallthru
        _
      %p388 = scmp.le.s32.totalorder 1, %s16
      %p389 = scmp.lt.s32.totalorder %s16, 6
      %p390 = pnand %p388, %p389
      %p391 = pneg %p390
      // Predicated region
      $region48: #{_lambda_.7} parent=5 // pred_check
        _
      $region49: #{_lambda_.7} parent=5 // pred_check_branch
        %393 = sbr.rel (%p390) target = $region51
      $region50: #{_lambda_.7} parent=5 // pred_region
        %s394 = ssub.s32 %s16, 1
        %s395 = sand.u32 %s43, 1
        %s396 = sand.u32 %s43, 1
        %s397 = smul.addr %s396, 512
        %s398 = scalar_lea.vmem [#allocation2], %s397
        // Predicated region
        $region52: #{_lambda_.7} parent=50 // pred_check
          %p399 = pneg %p56
        $region53: #{_lambda_.7} parent=50 // pred_check_branch
          %401 = sbr.rel (%p399) target = $region55
        $region54: #{_lambda_.7} parent=50 // pred_region
          _
        $region55: #{_lambda_.7} parent=50 // pred_fallthru
          _
        %s402 = sand.u32 %s69, 1
        %s403 = scalar_lea.sflag [#allocation4], %s402
        %s404 = sand.u32 %s69, 1
        %s405 = smul.addr %s404, 512
        %s406 = scalar_lea.vmem [#allocation3], %s405
        // Predicated region
        $region56: #{_lambda_.7} parent=50 // pred_check
          %p407 = pneg %p82
        $region57: #{_lambda_.7} parent=50 // pred_check_branch
          %409 = sbr.rel (%p407) target = $region59
        $region58: #{_lambda_.7} parent=50 // pred_region
          %410 = dma.done %s403, 8192
        $region59: #{_lambda_.7} parent=50 // pred_fallthru
          _
        // Predicated region
        $region60: #{_lambda_.7} parent=50 // pred_check
          %p411 = pneg %p103
        $region61: #{_lambda_.7} parent=50 // pred_check_branch
          %413 = sbr.rel (%p411) target = $region63
        $region62: #{_lambda_.7} parent=50 // pred_region
          %414 = dma.done [#allocation6], 16
        $region63: #{_lambda_.7} parent=50 // pred_fallthru
          _
        %s415 = sand.u32 %s43, 1
        %s416 = sand.u32 %s43, 1
        %s417 = smul.addr %s416, 512
        %s418 = scalar_lea.vmem [#allocation2], %s417
        %p419 = pneg %p56
        %p420 = pneg %p53
        %s421 = sand.u32 %s69, 1
        %s422 = scalar_lea.sflag [#allocation4], %s421
        %s423 = sand.u32 %s69, 1
        %s424 = smul.addr %s423, 512
        %s425 = scalar_lea.vmem [#allocation3], %s424
        %p426 = pneg %p82
        %p427 = pneg %p79
        %p428 = pneg %p103
        %p429 = pneg %p100
        %p430 = pneg %p129
        %p431 = pneg %p126
        %s432 = smul.u32 16, %s25
        %p433 = scmp.lt.s32.totalorder %s432, 15
        %s434 = scalar_select %p433, %s432, 15
        %s435 = smul.addr %s434, 8
        %s436 = scalar_lea.vmem %s3, %s435
        %p437 = pneg %p155
        %p438 = pneg %p152
        %p439 = scmp.lt.s32.totalorder %s25, 0
        %s440 = scalar_select %p439, %s25, 0
        %s441 = scalar_lea.vmem %s4, %s440
        %p442 = pneg %p181
        %p443 = pneg %p178
        %p444 = scmp.lt.s32.totalorder %s25, 0
        %s445 = scalar_select %p444, %s25, 0
        %s446 = scalar_lea.vmem %s5, %s445
        %s447 = smul.u32 16, %s25
        %s448 = smul.u32 8, %s26
        %s449 = smul.u32 128, %s26
        %s450 = smul.u32 16, %s25
        %p451 = scmp.lt.s32.totalorder %s450, 15
        %s452 = scalar_select %p451, %s450, 15
        %s453 = smul.addr %s452, 8
        %s454 = scalar_lea.vmem %s3, %s453
        %s455 = smul.u32 16, %s25
        %p456 = scmp.lt.s32.totalorder %s25, 0
        %s457 = scalar_select %p456, %s25, 0
        %s458 = scalar_lea.vmem %s4, %s457
        %p459 = scmp.lt.s32.totalorder %s25, 0
        %s460 = scalar_select %p459, %s25, 0
        %s461 = scalar_lea.vmem %s5, %s460
        %p463 = scmp.eq.s32.totalorder %s26, 0
        // Predicated region
        $region64: #{_lambda_.7} parent=50 // pred_check
          %p464 = pneg %p463
        $region65: #{_lambda_.7} parent=50 // pred_check_branch
          %466 = sbr.rel (%p464) target = $region67
        $region66: #{_lambda_.7} parent=50 // pred_region
          %467 = vst [vmem:[%s454] sm:$0xff] 0.0
          %468 = vst [vmem:[%s454 + $0x8] sm:$0xff] 0.0
          %469 = vst [vmem:[%s454 + $0x10] sm:$0xff] 0.0
          %470 = vst [vmem:[%s454 + $0x18] sm:$0xff] 0.0
          %471 = vst [vmem:[%s454 + $0x20] sm:$0xff] 0.0
          %472 = vst [vmem:[%s454 + $0x28] sm:$0xff] 0.0
          %473 = vst [vmem:[%s454 + $0x30] sm:$0xff] 0.0
          %474 = vst [vmem:[%s454 + $0x38] sm:$0xff] 0.0
          %475 = vst [vmem:[%s454 + $0x40] sm:$0xff] 0.0
          %476 = vst [vmem:[%s454 + $0x48] sm:$0xff] 0.0
          %477 = vst [vmem:[%s454 + $0x50] sm:$0xff] 0.0
          %478 = vst [vmem:[%s454 + $0x58] sm:$0xff] 0.0
          %479 = vst [vmem:[%s454 + $0x60] sm:$0xff] 0.0
          %480 = vst [vmem:[%s454 + $0x68] sm:$0xff] 0.0
          %481 = vst [vmem:[%s454 + $0x70] sm:$0xff] 0.0
          %482 = vst [vmem:[%s454 + $0x78] sm:$0xff] 0.0
        $region67: #{_lambda_.7} parent=50 // pred_fallthru
          _
        %v483 = vld [vmem:[%s454] sm:$0xff]
        %v484 = vld [vmem:[%s454 + $0x8] sm:$0xff]
        %v485 = vld [vmem:[%s454 + $0x10] sm:$0xff]
        %v486 = vld [vmem:[%s454 + $0x18] sm:$0xff]
        %v487 = vld [vmem:[%s454 + $0x20] sm:$0xff]
        %v488 = vld [vmem:[%s454 + $0x28] sm:$0xff]
        %v489 = vld [vmem:[%s454 + $0x30] sm:$0xff]
        %v490 = vld [vmem:[%s454 + $0x38] sm:$0xff]
        %v491 = vld [vmem:[%s454 + $0x40] sm:$0xff]
        %v492 = vld [vmem:[%s454 + $0x48] sm:$0xff]
        %v493 = vld [vmem:[%s454 + $0x50] sm:$0xff]
        %v494 = vld [vmem:[%s454 + $0x58] sm:$0xff]
        %v495 = vld [vmem:[%s454 + $0x60] sm:$0xff]
        %v496 = vld [vmem:[%s454 + $0x68] sm:$0xff]
        %v497 = vld [vmem:[%s454 + $0x70] sm:$0xff]
        %v498 = vld [vmem:[%s454 + $0x78] sm:$0xff]
        %v499 = vld [vmem:[%s398] sm:$0xff]
        %v500 = vld [vmem:[%s398 + $0x8] sm:$0xff]
        %v501 = vld [vmem:[%s398 + $0x10] sm:$0xff]
        %v502 = vld [vmem:[%s398 + $0x18] sm:$0xff]
        %v503 = vld [vmem:[%s398 + $0x20] sm:$0xff]
        %v504 = vld [vmem:[%s398 + $0x28] sm:$0xff]
        %v505 = vld [vmem:[%s398 + $0x30] sm:$0xff]
        %v506 = vld [vmem:[%s398 + $0x38] sm:$0xff]
        %v507 = vld [vmem:[%s398 + $0x40] sm:$0xff]
        %v508 = vld [vmem:[%s398 + $0x48] sm:$0xff]
        %v509 = vld [vmem:[%s398 + $0x50] sm:$0xff]
        %v510 = vld [vmem:[%s398 + $0x58] sm:$0xff]
        %v511 = vld [vmem:[%s398 + $0x60] sm:$0xff]
        %v512 = vld [vmem:[%s398 + $0x68] sm:$0xff]
        %v513 = vld [vmem:[%s398 + $0x70] sm:$0xff]
        %v514 = vld [vmem:[%s398 + $0x78] sm:$0xff]
        %v515 = vld [vmem:[%s398 + $0x80] sm:$0xff]
        %v516 = vld [vmem:[%s398 + $0x88] sm:$0xff]
        %v517 = vld [vmem:[%s398 + $0x90] sm:$0xff]
        %v518 = vld [vmem:[%s398 + $0x98] sm:$0xff]
        %v519 = vld [vmem:[%s398 + $0xa0] sm:$0xff]
        %v520 = vld [vmem:[%s398 + $0xa8] sm:$0xff]
        %v521 = vld [vmem:[%s398 + $0xb0] sm:$0xff]
        %v522 = vld [vmem:[%s398 + $0xb8] sm:$0xff]
        %v523 = vld [vmem:[%s398 + $0xc0] sm:$0xff]
        %v524 = vld [vmem:[%s398 + $0xc8] sm:$0xff]
        %v525 = vld [vmem:[%s398 + $0xd0] sm:$0xff]
        %v526 = vld [vmem:[%s398 + $0xd8] sm:$0xff]
        %v527 = vld [vmem:[%s398 + $0xe0] sm:$0xff]
        %v528 = vld [vmem:[%s398 + $0xe8] sm:$0xff]
        %v529 = vld [vmem:[%s398 + $0xf0] sm:$0xff]
        %v530 = vld [vmem:[%s398 + $0xf8] sm:$0xff]
        %v531 = vld [vmem:[%s398 + $0x100] sm:$0xff]
        %v532 = vld [vmem:[%s398 + $0x108] sm:$0xff]
        %v533 = vld [vmem:[%s398 + $0x110] sm:$0xff]
        %v534 = vld [vmem:[%s398 + $0x118] sm:$0xff]
        %v535 = vld [vmem:[%s398 + $0x120] sm:$0xff]
        %v536 = vld [vmem:[%s398 + $0x128] sm:$0xff]
        %v537 = vld [vmem:[%s398 + $0x130] sm:$0xff]
        %v538 = vld [vmem:[%s398 + $0x138] sm:$0xff]
        %v539 = vld [vmem:[%s398 + $0x140] sm:$0xff]
        %v540 = vld [vmem:[%s398 + $0x148] sm:$0xff]
        %v541 = vld [vmem:[%s398 + $0x150] sm:$0xff]
        %v542 = vld [vmem:[%s398 + $0x158] sm:$0xff]
        %v543 = vld [vmem:[%s398 + $0x160] sm:$0xff]
        %v544 = vld [vmem:[%s398 + $0x168] sm:$0xff]
        %v545 = vld [vmem:[%s398 + $0x170] sm:$0xff]
        %v546 = vld [vmem:[%s398 + $0x178] sm:$0xff]
        %v547 = vld [vmem:[%s398 + $0x180] sm:$0xff]
        %v548 = vld [vmem:[%s398 + $0x188] sm:$0xff]
        %v549 = vld [vmem:[%s398 + $0x190] sm:$0xff]
        %v550 = vld [vmem:[%s398 + $0x198] sm:$0xff]
        %v551 = vld [vmem:[%s398 + $0x1a0] sm:$0xff]
        %v552 = vld [vmem:[%s398 + $0x1a8] sm:$0xff]
        %v553 = vld [vmem:[%s398 + $0x1b0] sm:$0xff]
        %v554 = vld [vmem:[%s398 + $0x1b8] sm:$0xff]
        %v555 = vld [vmem:[%s398 + $0x1c0] sm:$0xff]
        %v556 = vld [vmem:[%s398 + $0x1c8] sm:$0xff]
        %v557 = vld [vmem:[%s398 + $0x1d0] sm:$0xff]
        %v558 = vld [vmem:[%s398 + $0x1d8] sm:$0xff]
        %v559 = vld [vmem:[%s398 + $0x1e0] sm:$0xff]
        %v560 = vld [vmem:[%s398 + $0x1e8] sm:$0xff]
        %v561 = vld [vmem:[%s398 + $0x1f0] sm:$0xff]
        %v562 = vld [vmem:[%s398 + $0x1f8] sm:$0xff]
        %v563 = vld [vmem:[%s406] sm:$0xf]
        %v564 = vld [vmem:[%s406 + $0x4] sm:$0xf]
        %v565 = vld [vmem:[%s406 + $0x8] sm:$0xf]
        %v566 = vld [vmem:[%s406 + $0xc] sm:$0xf]
        %v567 = vld [vmem:[%s406 + $0x10] sm:$0xf]
        %v568 = vld [vmem:[%s406 + $0x14] sm:$0xf]
        %v569 = vld [vmem:[%s406 + $0x18] sm:$0xf]
        %v570 = vld [vmem:[%s406 + $0x1c] sm:$0xf]
        %v571 = vld [vmem:[%s406 + $0x20] sm:$0xf]
        %v572 = vld [vmem:[%s406 + $0x24] sm:$0xf]
        %v573 = vld [vmem:[%s406 + $0x28] sm:$0xf]
        %v574 = vld [vmem:[%s406 + $0x2c] sm:$0xf]
        %v575 = vld [vmem:[%s406 + $0x30] sm:$0xf]
        %v576 = vld [vmem:[%s406 + $0x34] sm:$0xf]
        %v577 = vld [vmem:[%s406 + $0x38] sm:$0xf]
        %v578 = vld [vmem:[%s406 + $0x3c] sm:$0xf]
        %v579 = vld [vmem:[%s406 + $0x40] sm:$0xf]
        %v580 = vld [vmem:[%s406 + $0x44] sm:$0xf]
        %v581 = vld [vmem:[%s406 + $0x48] sm:$0xf]
        %v582 = vld [vmem:[%s406 + $0x4c] sm:$0xf]
        %v583 = vld [vmem:[%s406 + $0x50] sm:$0xf]
        %v584 = vld [vmem:[%s406 + $0x54] sm:$0xf]
        %v585 = vld [vmem:[%s406 + $0x58] sm:$0xf]
        %v586 = vld [vmem:[%s406 + $0x5c] sm:$0xf]
        %v587 = vld [vmem:[%s406 + $0x60] sm:$0xf]
        %v588 = vld [vmem:[%s406 + $0x64] sm:$0xf]
        %v589 = vld [vmem:[%s406 + $0x68] sm:$0xf]
        %v590 = vld [vmem:[%s406 + $0x6c] sm:$0xf]
        %v591 = vld [vmem:[%s406 + $0x70] sm:$0xf]
        %v592 = vld [vmem:[%s406 + $0x74] sm:$0xf]
        %v593 = vld [vmem:[%s406 + $0x78] sm:$0xf]
        %v594 = vld [vmem:[%s406 + $0x7c] sm:$0xf]
        %v595 = vld [vmem:[%s406 + $0x80] sm:$0xf]
        %v596 = vld [vmem:[%s406 + $0x84] sm:$0xf]
        %v597 = vld [vmem:[%s406 + $0x88] sm:$0xf]
        %v598 = vld [vmem:[%s406 + $0x8c] sm:$0xf]
        %v599 = vld [vmem:[%s406 + $0x90] sm:$0xf]
        %v600 = vld [vmem:[%s406 + $0x94] sm:$0xf]
        %v601 = vld [vmem:[%s406 + $0x98] sm:$0xf]
        %v602 = vld [vmem:[%s406 + $0x9c] sm:$0xf]
        %v603 = vld [vmem:[%s406 + $0xa0] sm:$0xf]
        %v604 = vld [vmem:[%s406 + $0xa4] sm:$0xf]
        %v605 = vld [vmem:[%s406 + $0xa8] sm:$0xf]
        %v606 = vld [vmem:[%s406 + $0xac] sm:$0xf]
        %v607 = vld [vmem:[%s406 + $0xb0] sm:$0xf]
        %v608 = vld [vmem:[%s406 + $0xb4] sm:$0xf]
        %v609 = vld [vmem:[%s406 + $0xb8] sm:$0xf]
        %v610 = vld [vmem:[%s406 + $0xbc] sm:$0xf]
        %v611 = vld [vmem:[%s406 + $0xc0] sm:$0xf]
        %v612 = vld [vmem:[%s406 + $0xc4] sm:$0xf]
        %v613 = vld [vmem:[%s406 + $0xc8] sm:$0xf]
        %v614 = vld [vmem:[%s406 + $0xcc] sm:$0xf]
        %v615 = vld [vmem:[%s406 + $0xd0] sm:$0xf]
        %v616 = vld [vmem:[%s406 + $0xd4] sm:$0xf]
        %v617 = vld [vmem:[%s406 + $0xd8] sm:$0xf]
        %v618 = vld [vmem:[%s406 + $0xdc] sm:$0xf]
        %v619 = vld [vmem:[%s406 + $0xe0] sm:$0xf]
        %v620 = vld [vmem:[%s406 + $0xe4] sm:$0xf]
        %v621 = vld [vmem:[%s406 + $0xe8] sm:$0xf]
        %v622 = vld [vmem:[%s406 + $0xec] sm:$0xf]
        %v623 = vld [vmem:[%s406 + $0xf0] sm:$0xf]
        %v624 = vld [vmem:[%s406 + $0xf4] sm:$0xf]
        %v625 = vld [vmem:[%s406 + $0xf8] sm:$0xf]
        %v626 = vld [vmem:[%s406 + $0xfc] sm:$0xf]
        %v627 = vld [vmem:[%s406 + $0x100] sm:$0xf]
        %v628 = vld [vmem:[%s406 + $0x104] sm:$0xf]
        %v629 = vld [vmem:[%s406 + $0x108] sm:$0xf]
        %v630 = vld [vmem:[%s406 + $0x10c] sm:$0xf]
        %v631 = vld [vmem:[%s406 + $0x110] sm:$0xf]
        %v632 = vld [vmem:[%s406 + $0x114] sm:$0xf]
        %v633 = vld [vmem:[%s406 + $0x118] sm:$0xf]
        %v634 = vld [vmem:[%s406 + $0x11c] sm:$0xf]
        %v635 = vld [vmem:[%s406 + $0x120] sm:$0xf]
        %v636 = vld [vmem:[%s406 + $0x124] sm:$0xf]
        %v637 = vld [vmem:[%s406 + $0x128] sm:$0xf]
        %v638 = vld [vmem:[%s406 + $0x12c] sm:$0xf]
        %v639 = vld [vmem:[%s406 + $0x130] sm:$0xf]
        %v640 = vld [vmem:[%s406 + $0x134] sm:$0xf]
        %v641 = vld [vmem:[%s406 + $0x138] sm:$0xf]
        %v642 = vld [vmem:[%s406 + $0x13c] sm:$0xf]
        %v643 = vld [vmem:[%s406 + $0x140] sm:$0xf]
        %v644 = vld [vmem:[%s406 + $0x144] sm:$0xf]
        %v645 = vld [vmem:[%s406 + $0x148] sm:$0xf]
        %v646 = vld [vmem:[%s406 + $0x14c] sm:$0xf]
        %v647 = vld [vmem:[%s406 + $0x150] sm:$0xf]
        %v648 = vld [vmem:[%s406 + $0x154] sm:$0xf]
        %v649 = vld [vmem:[%s406 + $0x158] sm:$0xf]
        %v650 = vld [vmem:[%s406 + $0x15c] sm:$0xf]
        %v651 = vld [vmem:[%s406 + $0x160] sm:$0xf]
        %v652 = vld [vmem:[%s406 + $0x164] sm:$0xf]
        %v653 = vld [vmem:[%s406 + $0x168] sm:$0xf]
        %v654 = vld [vmem:[%s406 + $0x16c] sm:$0xf]
        %v655 = vld [vmem:[%s406 + $0x170] sm:$0xf]
        %v656 = vld [vmem:[%s406 + $0x174] sm:$0xf]
        %v657 = vld [vmem:[%s406 + $0x178] sm:$0xf]
        %v658 = vld [vmem:[%s406 + $0x17c] sm:$0xf]
        %v659 = vld [vmem:[%s406 + $0x180] sm:$0xf]
        %v660 = vld [vmem:[%s406 + $0x184] sm:$0xf]
        %v661 = vld [vmem:[%s406 + $0x188] sm:$0xf]
        %v662 = vld [vmem:[%s406 + $0x18c] sm:$0xf]
        %v663 = vld [vmem:[%s406 + $0x190] sm:$0xf]
        %v664 = vld [vmem:[%s406 + $0x194] sm:$0xf]
        %v665 = vld [vmem:[%s406 + $0x198] sm:$0xf]
        %v666 = vld [vmem:[%s406 + $0x19c] sm:$0xf]
        %v667 = vld [vmem:[%s406 + $0x1a0] sm:$0xf]
        %v668 = vld [vmem:[%s406 + $0x1a4] sm:$0xf]
        %v669 = vld [vmem:[%s406 + $0x1a8] sm:$0xf]
        %v670 = vld [vmem:[%s406 + $0x1ac] sm:$0xf]
        %v671 = vld [vmem:[%s406 + $0x1b0] sm:$0xf]
        %v672 = vld [vmem:[%s406 + $0x1b4] sm:$0xf]
        %v673 = vld [vmem:[%s406 + $0x1b8] sm:$0xf]
        %v674 = vld [vmem:[%s406 + $0x1bc] sm:$0xf]
        %v675 = vld [vmem:[%s406 + $0x1c0] sm:$0xf]
        %v676 = vld [vmem:[%s406 + $0x1c4] sm:$0xf]
        %v677 = vld [vmem:[%s406 + $0x1c8] sm:$0xf]
        %v678 = vld [vmem:[%s406 + $0x1cc] sm:$0xf]
        %v679 = vld [vmem:[%s406 + $0x1d0] sm:$0xf]
        %v680 = vld [vmem:[%s406 + $0x1d4] sm:$0xf]
        %v681 = vld [vmem:[%s406 + $0x1d8] sm:$0xf]
        %v682 = vld [vmem:[%s406 + $0x1dc] sm:$0xf]
        %v683 = vld [vmem:[%s406 + $0x1e0] sm:$0xf]
        %v684 = vld [vmem:[%s406 + $0x1e4] sm:$0xf]
        %v685 = vld [vmem:[%s406 + $0x1e8] sm:$0xf]
        %v686 = vld [vmem:[%s406 + $0x1ec] sm:$0xf]
        %v687 = vld [vmem:[%s406 + $0x1f0] sm:$0xf]
        %v688 = vld [vmem:[%s406 + $0x1f4] sm:$0xf]
        %v689 = vld [vmem:[%s406 + $0x1f8] sm:$0xf]
        %v690 = vld [vmem:[%s406 + $0x1fc] sm:$0xf]
        %v755 = vunpack.c.l.b16 %v499
        %v756 = vunpack.c.h.b16 %v499
        %v757 = vunpack.c.l.b16 %v500
        %v758 = vunpack.c.h.b16 %v500
        %v759 = vunpack.c.l.b16 %v501
        %v760 = vunpack.c.h.b16 %v501
        %v761 = vunpack.c.l.b16 %v502
        %v762 = vunpack.c.h.b16 %v502
        %v763 = vunpack.c.l.b16 %v503
        %v764 = vunpack.c.h.b16 %v503
        %v765 = vunpack.c.l.b16 %v504
        %v766 = vunpack.c.h.b16 %v504
        %v767 = vunpack.c.l.b16 %v505
        %v768 = vunpack.c.h.b16 %v505
        %v769 = vunpack.c.l.b16 %v506
        %v770 = vunpack.c.h.b16 %v506
        %v771 = vunpack.c.l.b16 %v507
        %v772 = vunpack.c.h.b16 %v507
        %v773 = vunpack.c.l.b16 %v508
        %v774 = vunpack.c.h.b16 %v508
        %v775 = vunpack.c.l.b16 %v509
        %v776 = vunpack.c.h.b16 %v509
        %v777 = vunpack.c.l.b16 %v510
        %v778 = vunpack.c.h.b16 %v510
        %v779 = vunpack.c.l.b16 %v511
        %v780 = vunpack.c.h.b16 %v511
        %v781 = vunpack.c.l.b16 %v512
        %v782 = vunpack.c.h.b16 %v512
        %v783 = vunpack.c.l.b16 %v513
        %v784 = vunpack.c.h.b16 %v513
        %v785 = vunpack.c.l.b16 %v514
        %v786 = vunpack.c.h.b16 %v514
        %v787 = vunpack.c.l.b16 %v515
        %v788 = vunpack.c.h.b16 %v515
        %v789 = vunpack.c.l.b16 %v516
        %v790 = vunpack.c.h.b16 %v516
        %v791 = vunpack.c.l.b16 %v517
        %v792 = vunpack.c.h.b16 %v517
        %v793 = vunpack.c.l.b16 %v518
        %v794 = vunpack.c.h.b16 %v518
        %v795 = vunpack.c.l.b16 %v519
        %v796 = vunpack.c.h.b16 %v519
        %v797 = vunpack.c.l.b16 %v520
        %v798 = vunpack.c.h.b16 %v520
        %v799 = vunpack.c.l.b16 %v521
        %v800 = vunpack.c.h.b16 %v521
        %v801 = vunpack.c.l.b16 %v522
        %v802 = vunpack.c.h.b16 %v522
        %v803 = vunpack.c.l.b16 %v523
        %v804 = vunpack.c.h.b16 %v523
        %v805 = vunpack.c.l.b16 %v524
        %v806 = vunpack.c.h.b16 %v524
        %v807 = vunpack.c.l.b16 %v525
        %v808 = vunpack.c.h.b16 %v525
        %v809 = vunpack.c.l.b16 %v526
        %v810 = vunpack.c.h.b16 %v526
        %v811 = vunpack.c.l.b16 %v527
        %v812 = vunpack.c.h.b16 %v527
        %v813 = vunpack.c.l.b16 %v528
        %v814 = vunpack.c.h.b16 %v528
        %v815 = vunpack.c.l.b16 %v529
        %v816 = vunpack.c.h.b16 %v529
        %v817 = vunpack.c.l.b16 %v530
        %v818 = vunpack.c.h.b16 %v530
        %v819 = vunpack.c.l.b16 %v531
        %v820 = vunpack.c.h.b16 %v531
        %v821 = vunpack.c.l.b16 %v532
        %v822 = vunpack.c.h.b16 %v532
        %v823 = vunpack.c.l.b16 %v533
        %v824 = vunpack.c.h.b16 %v533
        %v825 = vunpack.c.l.b16 %v534
        %v826 = vunpack.c.h.b16 %v534
        %v827 = vunpack.c.l.b16 %v535
        %v828 = vunpack.c.h.b16 %v535
        %v829 = vunpack.c.l.b16 %v536
        %v830 = vunpack.c.h.b16 %v536
        %v831 = vunpack.c.l.b16 %v537
        %v832 = vunpack.c.h.b16 %v537
        %v833 = vunpack.c.l.b16 %v538
        %v834 = vunpack.c.h.b16 %v538
        %v835 = vunpack.c.l.b16 %v539
        %v836 = vunpack.c.h.b16 %v539
        %v837 = vunpack.c.l.b16 %v540
        %v838 = vunpack.c.h.b16 %v540
        %v839 = vunpack.c.l.b16 %v541
        %v840 = vunpack.c.h.b16 %v541
        %v841 = vunpack.c.l.b16 %v542
        %v842 = vunpack.c.h.b16 %v542
        %v843 = vunpack.c.l.b16 %v543
        %v844 = vunpack.c.h.b16 %v543
        %v845 = vunpack.c.l.b16 %v544
        %v846 = vunpack.c.h.b16 %v544
        %v847 = vunpack.c.l.b16 %v545
        %v848 = vunpack.c.h.b16 %v545
        %v849 = vunpack.c.l.b16 %v546
        %v850 = vunpack.c.h.b16 %v546
        %v851 = vunpack.c.l.b16 %v547
        %v852 = vunpack.c.h.b16 %v547
        %v853 = vunpack.c.l.b16 %v548
        %v854 = vunpack.c.h.b16 %v548
        %v855 = vunpack.c.l.b16 %v549
        %v856 = vunpack.c.h.b16 %v549
        %v857 = vunpack.c.l.b16 %v550
        %v858 = vunpack.c.h.b16 %v550
        %v859 = vunpack.c.l.b16 %v551
        %v860 = vunpack.c.h.b16 %v551
        %v861 = vunpack.c.l.b16 %v552
        %v862 = vunpack.c.h.b16 %v552
        %v863 = vunpack.c.l.b16 %v553
        %v864 = vunpack.c.h.b16 %v553
        %v865 = vunpack.c.l.b16 %v554
        %v866 = vunpack.c.h.b16 %v554
        %v867 = vunpack.c.l.b16 %v555
        %v868 = vunpack.c.h.b16 %v555
        %v869 = vunpack.c.l.b16 %v556
        %v870 = vunpack.c.h.b16 %v556
        %v871 = vunpack.c.l.b16 %v557
        %v872 = vunpack.c.h.b16 %v557
        %v873 = vunpack.c.l.b16 %v558
        %v874 = vunpack.c.h.b16 %v558
        %v875 = vunpack.c.l.b16 %v559
        %v876 = vunpack.c.h.b16 %v559
        %v877 = vunpack.c.l.b16 %v560
        %v878 = vunpack.c.h.b16 %v560
        %v879 = vunpack.c.l.b16 %v561
        %v880 = vunpack.c.h.b16 %v561
        %v881 = vunpack.c.l.b16 %v562
        %v882 = vunpack.c.h.b16 %v562
        %v883 = vpack.c.b16 %v763, %v755
        %v884 = vpack.c.b16 %v764, %v756
        %v885 = vpack.c.b16 %v765, %v757
        %v886 = vpack.c.b16 %v766, %v758
        %v887 = vpack.c.b16 %v767, %v759
        %v888 = vpack.c.b16 %v768, %v760
        %v889 = vpack.c.b16 %v769, %v761
        %v890 = vpack.c.b16 %v770, %v762
        %v891 = vpack.c.b16 %v779, %v771
        %v892 = vpack.c.b16 %v780, %v772
        %v893 = vpack.c.b16 %v781, %v773
        %v894 = vpack.c.b16 %v782, %v774
        %v895 = vpack.c.b16 %v783, %v775
        %v896 = vpack.c.b16 %v784, %v776
        %v897 = vpack.c.b16 %v785, %v777
        %v898 = vpack.c.b16 %v786, %v778
        %v899 = vpack.c.b16 %v795, %v787
        %v900 = vpack.c.b16 %v796, %v788
        %v901 = vpack.c.b16 %v797, %v789
        %v902 = vpack.c.b16 %v798, %v790
        %v903 = vpack.c.b16 %v799, %v791
        %v904 = vpack.c.b16 %v800, %v792
        %v905 = vpack.c.b16 %v801, %v793
        %v906 = vpack.c.b16 %v802, %v794
        %v907 = vpack.c.b16 %v811, %v803
        %v908 = vpack.c.b16 %v812, %v804
        %v909 = vpack.c.b16 %v813, %v805
        %v910 = vpack.c.b16 %v814, %v806
        %v911 = vpack.c.b16 %v815, %v807
        %v912 = vpack.c.b16 %v816, %v808
        %v913 = vpack.c.b16 %v817, %v809
        %v914 = vpack.c.b16 %v818, %v810
        %v915 = vpack.c.b16 %v827, %v819
        %v916 = vpack.c.b16 %v828, %v820
        %v917 = vpack.c.b16 %v829, %v821
        %v918 = vpack.c.b16 %v830, %v822
        %v919 = vpack.c.b16 %v831, %v823
        %v920 = vpack.c.b16 %v832, %v824
        %v921 = vpack.c.b16 %v833, %v825
        %v922 = vpack.c.b16 %v834, %v826
        %v923 = vpack.c.b16 %v843, %v835
        %v924 = vpack.c.b16 %v844, %v836
        %v925 = vpack.c.b16 %v845, %v837
        %v926 = vpack.c.b16 %v846, %v838
        %v927 = vpack.c.b16 %v847, %v839
        %v928 = vpack.c.b16 %v848, %v840
        %v929 = vpack.c.b16 %v849, %v841
        %v930 = vpack.c.b16 %v850, %v842
        %v931 = vpack.c.b16 %v859, %v851
        %v932 = vpack.c.b16 %v860, %v852
        %v933 = vpack.c.b16 %v861, %v853
        %v934 = vpack.c.b16 %v862, %v854
        %v935 = vpack.c.b16 %v863, %v855
        %v936 = vpack.c.b16 %v864, %v856
        %v937 = vpack.c.b16 %v865, %v857
        %v938 = vpack.c.b16 %v866, %v858
        %v939 = vpack.c.b16 %v875, %v867
        %v940 = vpack.c.b16 %v876, %v868
        %v941 = vpack.c.b16 %v877, %v869
        %v942 = vpack.c.b16 %v878, %v870
        %v943 = vpack.c.b16 %v879, %v871
        %v944 = vpack.c.b16 %v880, %v872
        %v945 = vpack.c.b16 %v881, %v873
        %v946 = vpack.c.b16 %v882, %v874
        %v1139 = vunpack.c.l.b16 %v563
        %v1140 = vunpack.c.l.b16 %v564
        %v1141 = vunpack.c.l.b16 %v565
        %v1142 = vunpack.c.l.b16 %v566
        %v1143 = vunpack.c.l.b16 %v567
        %v1144 = vunpack.c.l.b16 %v568
        %v1145 = vunpack.c.l.b16 %v569
        %v1146 = vunpack.c.l.b16 %v570
        %v1147 = vunpack.c.l.b16 %v571
        %v1148 = vunpack.c.l.b16 %v572
        %v1149 = vunpack.c.l.b16 %v573
        %v1150 = vunpack.c.l.b16 %v574
        %v1151 = vunpack.c.l.b16 %v575
        %v1152 = vunpack.c.l.b16 %v576
        %v1153 = vunpack.c.l.b16 %v577
        %v1154 = vunpack.c.l.b16 %v578
        %v1155 = vunpack.c.l.b16 %v579
        %v1156 = vunpack.c.l.b16 %v580
        %v1157 = vunpack.c.l.b16 %v581
        %v1158 = vunpack.c.l.b16 %v582
        %v1159 = vunpack.c.l.b16 %v583
        %v1160 = vunpack.c.l.b16 %v584
        %v1161 = vunpack.c.l.b16 %v585
        %v1162 = vunpack.c.l.b16 %v586
        %v1163 = vunpack.c.l.b16 %v587
        %v1164 = vunpack.c.l.b16 %v588
        %v1165 = vunpack.c.l.b16 %v589
        %v1166 = vunpack.c.l.b16 %v590
        %v1167 = vunpack.c.l.b16 %v591
        %v1168 = vunpack.c.l.b16 %v592
        %v1169 = vunpack.c.l.b16 %v593
        %v1170 = vunpack.c.l.b16 %v594
        %v1171 = vunpack.c.l.b16 %v595
        %v1172 = vunpack.c.l.b16 %v596
        %v1173 = vunpack.c.l.b16 %v597
        %v1174 = vunpack.c.l.b16 %v598
        %v1175 = vunpack.c.l.b16 %v599
        %v1176 = vunpack.c.l.b16 %v600
        %v1177 = vunpack.c.l.b16 %v601
        %v1178 = vunpack.c.l.b16 %v602
        %v1179 = vunpack.c.l.b16 %v603
        %v1180 = vunpack.c.l.b16 %v604
        %v1181 = vunpack.c.l.b16 %v605
        %v1182 = vunpack.c.l.b16 %v606
        %v1183 = vunpack.c.l.b16 %v607
        %v1184 = vunpack.c.l.b16 %v608
        %v1185 = vunpack.c.l.b16 %v609
        %v1186 = vunpack.c.l.b16 %v610
        %v1187 = vunpack.c.l.b16 %v611
        %v1188 = vunpack.c.l.b16 %v612
        %v1189 = vunpack.c.l.b16 %v613
        %v1190 = vunpack.c.l.b16 %v614
        %v1191 = vunpack.c.l.b16 %v615
        %v1192 = vunpack.c.l.b16 %v616
        %v1193 = vunpack.c.l.b16 %v617
        %v1194 = vunpack.c.l.b16 %v618
        %v1195 = vunpack.c.l.b16 %v619
        %v1196 = vunpack.c.l.b16 %v620
        %v1197 = vunpack.c.l.b16 %v621
        %v1198 = vunpack.c.l.b16 %v622
        %v1199 = vunpack.c.l.b16 %v623
        %v1200 = vunpack.c.l.b16 %v624
        %v1201 = vunpack.c.l.b16 %v625
        %v1202 = vunpack.c.l.b16 %v626
        %v1203 = vunpack.c.l.b16 %v627
        %v1204 = vunpack.c.l.b16 %v628
        %v1205 = vunpack.c.l.b16 %v629
        %v1206 = vunpack.c.l.b16 %v630
        %v1207 = vunpack.c.l.b16 %v631
        %v1208 = vunpack.c.l.b16 %v632
        %v1209 = vunpack.c.l.b16 %v633
        %v1210 = vunpack.c.l.b16 %v634
        %v1211 = vunpack.c.l.b16 %v635
        %v1212 = vunpack.c.l.b16 %v636
        %v1213 = vunpack.c.l.b16 %v637
        %v1214 = vunpack.c.l.b16 %v638
        %v1215 = vunpack.c.l.b16 %v639
        %v1216 = vunpack.c.l.b16 %v640
        %v1217 = vunpack.c.l.b16 %v641
        %v1218 = vunpack.c.l.b16 %v642
        %v1219 = vunpack.c.l.b16 %v643
        %v1220 = vunpack.c.l.b16 %v644
        %v1221 = vunpack.c.l.b16 %v645
        %v1222 = vunpack.c.l.b16 %v646
        %v1223 = vunpack.c.l.b16 %v647
        %v1224 = vunpack.c.l.b16 %v648
        %v1225 = vunpack.c.l.b16 %v649
        %v1226 = vunpack.c.l.b16 %v650
        %v1227 = vunpack.c.l.b16 %v651
        %v1228 = vunpack.c.l.b16 %v652
        %v1229 = vunpack.c.l.b16 %v653
        %v1230 = vunpack.c.l.b16 %v654
        %v1231 = vunpack.c.l.b16 %v655
        %v1232 = vunpack.c.l.b16 %v656
        %v1233 = vunpack.c.l.b16 %v657
        %v1234 = vunpack.c.l.b16 %v658
        %v1235 = vunpack.c.l.b16 %v659
        %v1236 = vunpack.c.l.b16 %v660
        %v1237 = vunpack.c.l.b16 %v661
        %v1238 = vunpack.c.l.b16 %v662
        %v1239 = vunpack.c.l.b16 %v663
        %v1240 = vunpack.c.l.b16 %v664
        %v1241 = vunpack.c.l.b16 %v665
        %v1242 = vunpack.c.l.b16 %v666
        %v1243 = vunpack.c.l.b16 %v667
        %v1244 = vunpack.c.l.b16 %v668
        %v1245 = vunpack.c.l.b16 %v669
        %v1246 = vunpack.c.l.b16 %v670
        %v1247 = vunpack.c.l.b16 %v671
        %v1248 = vunpack.c.l.b16 %v672
        %v1249 = vunpack.c.l.b16 %v673
        %v1250 = vunpack.c.l.b16 %v674
        %v1251 = vunpack.c.l.b16 %v675
        %v1252 = vunpack.c.l.b16 %v676
        %v1253 = vunpack.c.l.b16 %v677
        %v1254 = vunpack.c.l.b16 %v678
        %v1255 = vunpack.c.l.b16 %v679
        %v1256 = vunpack.c.l.b16 %v680
        %v1257 = vunpack.c.l.b16 %v681
        %v1258 = vunpack.c.l.b16 %v682
        %v1259 = vunpack.c.l.b16 %v683
        %v1260 = vunpack.c.l.b16 %v684
        %v1261 = vunpack.c.l.b16 %v685
        %v1262 = vunpack.c.l.b16 %v686
        %v1263 = vunpack.c.l.b16 %v687
        %v1264 = vunpack.c.l.b16 %v688
        %v1265 = vunpack.c.l.b16 %v689
        %v1266 = vunpack.c.l.b16 %v690
        %v1267 = vpack.c.b16 %v1140, %v1139
        %v1268 = vpack.c.b16 %v1142, %v1141
        %v1269 = vpack.c.b16 %v1144, %v1143
        %v1270 = vpack.c.b16 %v1146, %v1145
        %v1271 = vpack.c.b16 %v1148, %v1147
        %v1272 = vpack.c.b16 %v1150, %v1149
        %v1273 = vpack.c.b16 %v1152, %v1151
        %v1274 = vpack.c.b16 %v1154, %v1153
        %v1275 = vpack.c.b16 %v1156, %v1155
        %v1276 = vpack.c.b16 %v1158, %v1157
        %v1277 = vpack.c.b16 %v1160, %v1159
        %v1278 = vpack.c.b16 %v1162, %v1161
        %v1279 = vpack.c.b16 %v1164, %v1163
        %v1280 = vpack.c.b16 %v1166, %v1165
        %v1281 = vpack.c.b16 %v1168, %v1167
        %v1282 = vpack.c.b16 %v1170, %v1169
        %v1283 = vpack.c.b16 %v1172, %v1171
        %v1284 = vpack.c.b16 %v1174, %v1173
        %v1285 = vpack.c.b16 %v1176, %v1175
        %v1286 = vpack.c.b16 %v1178, %v1177
        %v1287 = vpack.c.b16 %v1180, %v1179
        %v1288 = vpack.c.b16 %v1182, %v1181
        %v1289 = vpack.c.b16 %v1184, %v1183
        %v1290 = vpack.c.b16 %v1186, %v1185
        %v1291 = vpack.c.b16 %v1188, %v1187
        %v1292 = vpack.c.b16 %v1190, %v1189
        %v1293 = vpack.c.b16 %v1192, %v1191
        %v1294 = vpack.c.b16 %v1194, %v1193
        %v1295 = vpack.c.b16 %v1196, %v1195
        %v1296 = vpack.c.b16 %v1198, %v1197
        %v1297 = vpack.c.b16 %v1200, %v1199
        %v1298 = vpack.c.b16 %v1202, %v1201
        %v1299 = vpack.c.b16 %v1204, %v1203
        %v1300 = vpack.c.b16 %v1206, %v1205
        %v1301 = vpack.c.b16 %v1208, %v1207
        %v1302 = vpack.c.b16 %v1210, %v1209
        %v1303 = vpack.c.b16 %v1212, %v1211
        %v1304 = vpack.c.b16 %v1214, %v1213
        %v1305 = vpack.c.b16 %v1216, %v1215
        %v1306 = vpack.c.b16 %v1218, %v1217
        %v1307 = vpack.c.b16 %v1220, %v1219
        %v1308 = vpack.c.b16 %v1222, %v1221
        %v1309 = vpack.c.b16 %v1224, %v1223
        %v1310 = vpack.c.b16 %v1226, %v1225
        %v1311 = vpack.c.b16 %v1228, %v1227
        %v1312 = vpack.c.b16 %v1230, %v1229
        %v1313 = vpack.c.b16 %v1232, %v1231
        %v1314 = vpack.c.b16 %v1234, %v1233
        %v1315 = vpack.c.b16 %v1236, %v1235
        %v1316 = vpack.c.b16 %v1238, %v1237
        %v1317 = vpack.c.b16 %v1240, %v1239
        %v1318 = vpack.c.b16 %v1242, %v1241
        %v1319 = vpack.c.b16 %v1244, %v1243
        %v1320 = vpack.c.b16 %v1246, %v1245
        %v1321 = vpack.c.b16 %v1248, %v1247
        %v1322 = vpack.c.b16 %v1250, %v1249
        %v1323 = vpack.c.b16 %v1252, %v1251
        %v1324 = vpack.c.b16 %v1254, %v1253
        %v1325 = vpack.c.b16 %v1256, %v1255
        %v1326 = vpack.c.b16 %v1258, %v1257
        %v1327 = vpack.c.b16 %v1260, %v1259
        %v1328 = vpack.c.b16 %v1262, %v1261
        %v1329 = vpack.c.b16 %v1264, %v1263
        %v1330 = vpack.c.b16 %v1266, %v1265
        %1395 = vmatprep.subr.bf16.mxu0 0
        %1396 = vmatpush1.bf16.msra.mxu0 %v1267
        %1397 = vmatprep.subr.bf16.mxu0 0
        %1398 = vmatpush1.bf16.msra.mxu0 %v1268
        %1399 = vmatprep.subr.bf16.mxu0 0
        %1400 = vmatpush1.bf16.msra.mxu0 %v1269
        %1401 = vmatprep.subr.bf16.mxu0 0
        %1402 = vmatpush1.bf16.msra.mxu0 %v1270
        %1403 = vmatprep.subr.bf16.mxu0 0
        %1404 = vmatpush1.bf16.msra.mxu0 %v1271
        %1405 = vmatprep.subr.bf16.mxu0 0
        %1406 = vmatpush1.bf16.msra.mxu0 %v1272
        %1407 = vmatprep.subr.bf16.mxu0 0
        %1408 = vmatpush1.bf16.msra.mxu0 %v1273
        %1409 = vmatprep.subr.bf16.mxu0 0
        %1410 = vmatpush1.bf16.msra.mxu0 %v1274
        %1411 = vmatprep.subr.bf16.mxu0 0
        %1412 = vmatpush1.bf16.msra.mxu0 %v1275
        %1413 = vmatprep.subr.bf16.mxu0 0
        %1414 = vmatpush1.bf16.msra.mxu0 %v1276
        %1415 = vmatprep.subr.bf16.mxu0 0
        %1416 = vmatpush1.bf16.msra.mxu0 %v1277
        %1417 = vmatprep.subr.bf16.mxu0 0
        %1418 = vmatpush1.bf16.msra.mxu0 %v1278
        %1419 = vmatprep.subr.bf16.mxu0 0
        %1420 = vmatpush1.bf16.msra.mxu0 %v1279
        %1421 = vmatprep.subr.bf16.mxu0 0
        %1422 = vmatpush1.bf16.msra.mxu0 %v1280
        %1423 = vmatprep.subr.bf16.mxu0 0
        %1424 = vmatpush1.bf16.msra.mxu0 %v1281
        %1425 = vmatprep.subr.bf16.mxu0 0
        %1426 = vmatpush1.bf16.msra.mxu0 %v1282
        %1427 = vmatprep.mubr.bf16.mxu0 %v884
        %1428 = vmatmul.mubr.bf16.gmra.mrb[0].mxu0 %v883
        %v1429 = vpop.f32.mrb[0].mxu0
        %v1430 = vadd.f32 0.0, %v1429
        %v1431 = vpop.f32.mrb[0].mxu0
        %v1432 = vpop.f32.mrb[0].mxu0
        %v1433 = vadd.f32 0.0, %v1432
        %v1434 = vpop.f32.mrb[0].mxu0
        %1435 = vmatprep.mubr.bf16.mxu0 %v892
        %1436 = vmatmul.mubr.bf16.gmra.mrb[0].mxu0 %v891
        %v1437 = vpop.f32.mrb[0].mxu0
        %v1438 = vadd.f32 0.0, %v1437
        %v1439 = vpop.f32.mrb[0].mxu0
        %v1440 = vpop.f32.mrb[0].mxu0
        %v1441 = vadd.f32 0.0, %v1440
        %v1442 = vpop.f32.mrb[0].mxu0
        %1443 = vmatprep.mubr.bf16.mxu0 %v900
        %1444 = vmatmul.mubr.bf16.gmra.mrb[0].mxu0 %v899
        %v1445 = vpop.f32.mrb[0].mxu0
        %v1446 = vadd.f32 0.0, %v1445
        %v1447 = vpop.f32.mrb[0].mxu0
        %v1448 = vpop.f32.mrb[0].mxu0
        %v1449 = vadd.f32 0.0, %v1448
        %v1450 = vpop.f32.mrb[0].mxu0
        %1451 = vmatprep.mubr.bf16.mxu0 %v908
        %1452 = vmatmul.mubr.bf16.gmra.mrb[0].mxu0 %v907
        %v1453 = vpop.f32.mrb[0].mxu0
        %v1454 = vadd.f32 0.0, %v1453
        %v1455 = vpop.f32.mrb[0].mxu0
        %v1456 = vpop.f32.mrb[0].mxu0
        %v1457 = vadd.f32 0.0, %v1456
        %v1458 = vpop.f32.mrb[0].mxu0
        %1459 = vmatprep.mubr.bf16.mxu0 %v916
        %1460 = vmatmul.mubr.bf16.gmra.mrb[0].mxu0 %v915
        %v1461 = vpop.f32.mrb[0].mxu0
        %v1462 = vadd.f32 0.0, %v1461
        %v1463 = vpop.f32.mrb[0].mxu0
        %v1464 = vpop.f32.mrb[0].mxu0
        %v1465 = vadd.f32 0.0, %v1464
        %v1466 = vpop.f32.mrb[0].mxu0
        %1467 = vmatprep.mubr.bf16.mxu0 %v924
        %1468 = vmatmul.mubr.bf16.gmra.mrb[0].mxu0 %v923
        %v1469 = vpop.f32.mrb[0].mxu0
        %v1470 = vadd.f32 0.0, %v1469
        %v1471 = vpop.f32.mrb[0].mxu0
        %v1472 = vpop.f32.mrb[0].mxu0
        %v1473 = vadd.f32 0.0, %v1472
        %v1474 = vpop.f32.mrb[0].mxu0
        %1475 = vmatprep.mubr.bf16.mxu0 %v932
        %1476 = vmatmul.mubr.bf16.gmra.mrb[0].mxu0 %v931
        %v1477 = vpop.f32.mrb[0].mxu0
        %v1478 = vadd.f32 0.0, %v1477
        %v1479 = vpop.f32.mrb[0].mxu0
        %v1480 = vpop.f32.mrb[0].mxu0
        %v1481 = vadd.f32 0.0, %v1480
        %v1482 = vpop.f32.mrb[0].mxu0
        %1483 = vmatprep.mubr.bf16.mxu0 %v940
        %1484 = vmatmul.mubr.bf16.gmra.mrb[0].mxu0 %v939
        %v1485 = vpop.f32.mrb[0].mxu0
        %v1486 = vadd.f32 0.0, %v1485
        %v1487 = vpop.f32.mrb[0].mxu0
        %v1488 = vpop.f32.mrb[0].mxu0
        %v1489 = vadd.f32 0.0, %v1488
        %v1490 = vpop.f32.mrb[0].mxu0
        %1491 = vdwg.mxu0
        %1492 = vmatprep.subr.bf16.mxu0 0
        %1493 = vmatpush1.bf16.msra.mxu0 %v1283
        %1494 = vmatprep.subr.bf16.mxu0 0
        %1495 = vmatpush1.bf16.msra.mxu0 %v1284
        %1496 = vmatprep.subr.bf16.mxu0 0
        %1497 = vmatpush1.bf16.msra.mxu0 %v1285
        %1498 = vmatprep.subr.bf16.mxu0 0
        %1499 = vmatpush1.bf16.msra.mxu0 %v1286
        %1500 = vmatprep.subr.bf16.mxu0 0
        %1501 = vmatpush1.bf16.msra.mxu0 %v1287
        %1502 = vmatprep.subr.bf16.mxu0 0
        %1503 = vmatpush1.bf16.msra.mxu0 %v1288
        %1504 = vmatprep.subr.bf16.mxu0 0
        %1505 = vmatpush1.bf16.msra.mxu0 %v1289
        %1506 = vmatprep.subr.bf16.mxu0 0
        %1507 = vmatpush1.bf16.msra.mxu0 %v1290
        %1508 = vmatprep.subr.bf16.mxu0 0
        %1509 = vmatpush1.bf16.msra.mxu0 %v1291
        %1510 = vmatprep.subr.bf16.mxu0 0
        %1511 = vmatpush1.bf16.msra.mxu0 %v1292
        %1512 = vmatprep.subr.bf16.mxu0 0
        %1513 = vmatpush1.bf16.msra.mxu0 %v1293
        %1514 = vmatprep.subr.bf16.mxu0 0
        %1515 = vmatpush1.bf16.msra.mxu0 %v1294
        %1516 = vmatprep.subr.bf16.mxu0 0
        %1517 = vmatpush1.bf16.msra.mxu0 %v1295
        %1518 = vmatprep.subr.bf16.mxu0 0
        %1519 = vmatpush1.bf16.msra.mxu0 %v1296
        %1520 = vmatprep.subr.bf16.mxu0 0
        %1521 = vmatpush1.bf16.msra.mxu0 %v1297
        %1522 = vmatprep.subr.bf16.mxu0 0
        %1523 = vmatpush1.bf16.msra.mxu0 %v1298
        %1524 = vmatprep.mubr.bf16.mxu0 %v886
        %1525 = vmatmul.mubr.bf16.gmra.mrb[0].mxu0 %v885
        %v1526 = vpop.f32.mrb[0].mxu0
        %v1527 = vadd.f32 %v1430, %v1526
        %v1528 = vpop.f32.mrb[0].mxu0
        %v1529 = vpop.f32.mrb[0].mxu0
        %v1530 = vadd.f32 %v1433, %v1529
        %v1531 = vpop.f32.mrb[0].mxu0
        %1532 = vmatprep.mubr.bf16.mxu0 %v894
        %1533 = vmatmul.mubr.bf16.gmra.mrb[0].mxu0 %v893
        %v1534 = vpop.f32.mrb[0].mxu0
        %v1535 = vadd.f32 %v1438, %v1534
        %v1536 = vpop.f32.mrb[0].mxu0
        %v1537 = vpop.f32.mrb[0].mxu0
        %v1538 = vadd.f32 %v1441, %v1537
        %v1539 = vpop.f32.mrb[0].mxu0
        %1540 = vmatprep.mubr.bf16.mxu0 %v902
        %1541 = vmatmul.mubr.bf16.gmra.mrb[0].mxu0 %v901
        %v1542 = vpop.f32.mrb[0].mxu0
        %v1543 = vadd.f32 %v1446, %v1542
        %v1544 = vpop.f32.mrb[0].mxu0
        %v1545 = vpop.f32.mrb[0].mxu0
        %v1546 = vadd.f32 %v1449, %v1545
        %v1547 = vpop.f32.mrb[0].mxu0
        %1548 = vmatprep.mubr.bf16.mxu0 %v910
        %1549 = vmatmul.mubr.bf16.gmra.mrb[0].mxu0 %v909
        %v1550 = vpop.f32.mrb[0].mxu0
        %v1551 = vadd.f32 %v1454, %v1550
        %v1552 = vpop.f32.mrb[0].mxu0
        %v1553 = vpop.f32.mrb[0].mxu0
        %v1554 = vadd.f32 %v1457, %v1553
        %v1555 = vpop.f32.mrb[0].mxu0
        %1556 = vmatprep.mubr.bf16.mxu0 %v918
        %1557 = vmatmul.mubr.bf16.gmra.mrb[0].mxu0 %v917
        %v1558 = vpop.f32.mrb[0].mxu0
        %v1559 = vadd.f32 %v1462, %v1558
        %v1560 = vpop.f32.mrb[0].mxu0
        %v1561 = vpop.f32.mrb[0].mxu0
        %v1562 = vadd.f32 %v1465, %v1561
        %v1563 = vpop.f32.mrb[0].mxu0
        %1564 = vmatprep.mubr.bf16.mxu0 %v926
        %1565 = vmatmul.mubr.bf16.gmra.mrb[0].mxu0 %v925
        %v1566 = vpop.f32.mrb[0].mxu0
        %v1567 = vadd.f32 %v1470, %v1566
        %v1568 = vpop.f32.mrb[0].mxu0
        %v1569 = vpop.f32.mrb[0].mxu0
        %v1570 = vadd.f32 %v1473, %v1569
        %v1571 = vpop.f32.mrb[0].mxu0
        %1572 = vmatprep.mubr.bf16.mxu0 %v934
        %1573 = vmatmul.mubr.bf16.gmra.mrb[0].mxu0 %v933
        %v1574 = vpop.f32.mrb[0].mxu0
        %v1575 = vadd.f32 %v1478, %v1574
        %v1576 = vpop.f32.mrb[0].mxu0
        %v1577 = vpop.f32.mrb[0].mxu0
        %v1578 = vadd.f32 %v1481, %v1577
        %v1579 = vpop.f32.mrb[0].mxu0
        %1580 = vmatprep.mubr.bf16.mxu0 %v942
        %1581 = vmatmul.mubr.bf16.gmra.mrb[0].mxu0 %v941
        %v1582 = vpop.f32.mrb[0].mxu0
        %v1583 = vadd.f32 %v1486, %v1582
        %v1584 = vpop.f32.mrb[0].mxu0
        %v1585 = vpop.f32.mrb[0].mxu0
        %v1586 = vadd.f32 %v1489, %v1585
        %v1587 = vpop.f32.mrb[0].mxu0
        %1588 = vdwg.mxu0
        %1589 = vmatprep.subr.bf16.mxu0 0
        %1590 = vmatpush1.bf16.msra.mxu0 %v1299
        %1591 = vmatprep.subr.bf16.mxu0 0
        %1592 = vmatpush1.bf16.msra.mxu0 %v1300
        %1593 = vmatprep.subr.bf16.mxu0 0
        %1594 = vmatpush1.bf16.msra.mxu0 %v1301
        %1595 = vmatprep.subr.bf16.mxu0 0
        %1596 = vmatpush1.bf16.msra.mxu0 %v1302
        %1597 = vmatprep.subr.bf16.mxu0 0
        %1598 = vmatpush1.bf16.msra.mxu0 %v1303
        %1599 = vmatprep.subr.bf16.mxu0 0
        %1600 = vmatpush1.bf16.msra.mxu0 %v1304
        %1601 = vmatprep.subr.bf16.mxu0 0
        %1602 = vmatpush1.bf16.msra.mxu0 %v1305
        %1603 = vmatprep.subr.bf16.mxu0 0
        %1604 = vmatpush1.bf16.msra.mxu0 %v1306
        %1605 = vmatprep.subr.bf16.mxu0 0
        %1606 = vmatpush1.bf16.msra.mxu0 %v1307
        %1607 = vmatprep.subr.bf16.mxu0 0
        %1608 = vmatpush1.bf16.msra.mxu0 %v1308
        %1609 = vmatprep.subr.bf16.mxu0 0
        %1610 = vmatpush1.bf16.msra.mxu0 %v1309
        %1611 = vmatprep.subr.bf16.mxu0 0
        %1612 = vmatpush1.bf16.msra.mxu0 %v1310
        %1613 = vmatprep.subr.bf16.mxu0 0
        %1614 = vmatpush1.bf16.msra.mxu0 %v1311
        %1615 = vmatprep.subr.bf16.mxu0 0
        %1616 = vmatpush1.bf16.msra.mxu0 %v1312
        %1617 = vmatprep.subr.bf16.mxu0 0
        %1618 = vmatpush1.bf16.msra.mxu0 %v1313
        %1619 = vmatprep.subr.bf16.mxu0 0
        %1620 = vmatpush1.bf16.msra.mxu0 %v1314
        %1621 = vmatprep.mubr.bf16.mxu0 %v888
        %1622 = vmatmul.mubr.bf16.gmra.mrb[0].mxu0 %v887
        %v1623 = vpop.f32.mrb[0].mxu0
        %v1624 = vadd.f32 %v1527, %v1623
        %v1625 = vpop.f32.mrb[0].mxu0
        %v1626 = vpop.f32.mrb[0].mxu0
        %v1627 = vadd.f32 %v1530, %v1626
        %v1628 = vpop.f32.mrb[0].mxu0
        %1629 = vmatprep.mubr.bf16.mxu0 %v896
        %1630 = vmatmul.mubr.bf16.gmra.mrb[0].mxu0 %v895
        %v1631 = vpop.f32.mrb[0].mxu0
        %v1632 = vadd.f32 %v1535, %v1631
        %v1633 = vpop.f32.mrb[0].mxu0
        %v1634 = vpop.f32.mrb[0].mxu0
        %v1635 = vadd.f32 %v1538, %v1634
        %v1636 = vpop.f32.mrb[0].mxu0
        %1637 = vmatprep.mubr.bf16.mxu0 %v904
        %1638 = vmatmul.mubr.bf16.gmra.mrb[0].mxu0 %v903
        %v1639 = vpop.f32.mrb[0].mxu0
        %v1640 = vadd.f32 %v1543, %v1639
        %v1641 = vpop.f32.mrb[0].mxu0
        %v1642 = vpop.f32.mrb[0].mxu0
        %v1643 = vadd.f32 %v1546, %v1642
        %v1644 = vpop.f32.mrb[0].mxu0
        %1645 = vmatprep.mubr.bf16.mxu0 %v912
        %1646 = vmatmul.mubr.bf16.gmra.mrb[0].mxu0 %v911
        %v1647 = vpop.f32.mrb[0].mxu0
        %v1648 = vadd.f32 %v1551, %v1647
        %v1649 = vpop.f32.mrb[0].mxu0
        %v1650 = vpop.f32.mrb[0].mxu0
        %v1651 = vadd.f32 %v1554, %v1650
        %v1652 = vpop.f32.mrb[0].mxu0
        %1653 = vmatprep.mubr.bf16.mxu0 %v920
        %1654 = vmatmul.mubr.bf16.gmra.mrb[0].mxu0 %v919
        %v1655 = vpop.f32.mrb[0].mxu0
        %v1656 = vadd.f32 %v1559, %v1655
        %v1657 = vpop.f32.mrb[0].mxu0
        %v1658 = vpop.f32.mrb[0].mxu0
        %v1659 = vadd.f32 %v1562, %v1658
        %v1660 = vpop.f32.mrb[0].mxu0
        %1661 = vmatprep.mubr.bf16.mxu0 %v928
        %1662 = vmatmul.mubr.bf16.gmra.mrb[0].mxu0 %v927
        %v1663 = vpop.f32.mrb[0].mxu0
        %v1664 = vadd.f32 %v1567, %v1663
        %v1665 = vpop.f32.mrb[0].mxu0
        %v1666 = vpop.f32.mrb[0].mxu0
        %v1667 = vadd.f32 %v1570, %v1666
        %v1668 = vpop.f32.mrb[0].mxu0
        %1669 = vmatprep.mubr.bf16.mxu0 %v936
        %1670 = vmatmul.mubr.bf16.gmra.mrb[0].mxu0 %v935
        %v1671 = vpop.f32.mrb[0].mxu0
        %v1672 = vadd.f32 %v1575, %v1671
        %v1673 = vpop.f32.mrb[0].mxu0
        %v1674 = vpop.f32.mrb[0].mxu0
        %v1675 = vadd.f32 %v1578, %v1674
        %v1676 = vpop.f32.mrb[0].mxu0
        %1677 = vmatprep.mubr.bf16.mxu0 %v944
        %1678 = vmatmul.mubr.bf16.gmra.mrb[0].mxu0 %v943
        %v1679 = vpop.f32.mrb[0].mxu0
        %v1680 = vadd.f32 %v1583, %v1679
        %v1681 = vpop.f32.mrb[0].mxu0
        %v1682 = vpop.f32.mrb[0].mxu0
        %v1683 = vadd.f32 %v1586, %v1682
        %v1684 = vpop.f32.mrb[0].mxu0
        %1685 = vdwg.mxu0
        %1686 = vmatprep.subr.bf16.mxu0 0
        %1687 = vmatpush1.bf16.msra.mxu0 %v1315
        %1688 = vmatprep.subr.bf16.mxu0 0
        %1689 = vmatpush1.bf16.msra.mxu0 %v1316
        %1690 = vmatprep.subr.bf16.mxu0 0
        %1691 = vmatpush1.bf16.msra.mxu0 %v1317
        %1692 = vmatprep.subr.bf16.mxu0 0
        %1693 = vmatpush1.bf16.msra.mxu0 %v1318
        %1694 = vmatprep.subr.bf16.mxu0 0
        %1695 = vmatpush1.bf16.msra.mxu0 %v1319
        %1696 = vmatprep.subr.bf16.mxu0 0
        %1697 = vmatpush1.bf16.msra.mxu0 %v1320
        %1698 = vmatprep.subr.bf16.mxu0 0
        %1699 = vmatpush1.bf16.msra.mxu0 %v1321
        %1700 = vmatprep.subr.bf16.mxu0 0
        %1701 = vmatpush1.bf16.msra.mxu0 %v1322
        %1702 = vmatprep.subr.bf16.mxu0 0
        %1703 = vmatpush1.bf16.msra.mxu0 %v1323
        %1704 = vmatprep.subr.bf16.mxu0 0
        %1705 = vmatpush1.bf16.msra.mxu0 %v1324
        %1706 = vmatprep.subr.bf16.mxu0 0
        %1707 = vmatpush1.bf16.msra.mxu0 %v1325
        %1708 = vmatprep.subr.bf16.mxu0 0
        %1709 = vmatpush1.bf16.msra.mxu0 %v1326
        %1710 = vmatprep.subr.bf16.mxu0 0
        %1711 = vmatpush1.bf16.msra.mxu0 %v1327
        %1712 = vmatprep.subr.bf16.mxu0 0
        %1713 = vmatpush1.bf16.msra.mxu0 %v1328
        %1714 = vmatprep.subr.bf16.mxu0 0
        %1715 = vmatpush1.bf16.msra.mxu0 %v1329
        %1716 = vmatprep.subr.bf16.mxu0 0
        %1717 = vmatpush1.bf16.msra.mxu0 %v1330
        %1718 = vmatprep.mubr.bf16.mxu0 %v890
        %1719 = vmatmul.mubr.bf16.gmra.mrb[0].mxu0 %v889
        %v1720 = vpop.f32.mrb[0].mxu0
        %v1721 = vadd.f32 %v1624, %v1720
        %v1722 = vpop.f32.mrb[0].mxu0
        %v1723 = vpop.f32.mrb[0].mxu0
        %v1724 = vadd.f32 %v1627, %v1723
        %v1725 = vpop.f32.mrb[0].mxu0
        %1726 = vmatprep.mubr.bf16.mxu0 %v898
        %1727 = vmatmul.mubr.bf16.gmra.mrb[0].mxu0 %v897
        %v1728 = vpop.f32.mrb[0].mxu0
        %v1729 = vadd.f32 %v1632, %v1728
        %v1730 = vpop.f32.mrb[0].mxu0
        %v1731 = vpop.f32.mrb[0].mxu0
        %v1732 = vadd.f32 %v1635, %v1731
        %v1733 = vpop.f32.mrb[0].mxu0
        %1734 = vmatprep.mubr.bf16.mxu0 %v906
        %1735 = vmatmul.mubr.bf16.gmra.mrb[0].mxu0 %v905
        %v1736 = vpop.f32.mrb[0].mxu0
        %v1737 = vadd.f32 %v1640, %v1736
        %v1738 = vpop.f32.mrb[0].mxu0
        %v1739 = vpop.f32.mrb[0].mxu0
        %v1740 = vadd.f32 %v1643, %v1739
        %v1741 = vpop.f32.mrb[0].mxu0
        %1742 = vmatprep.mubr.bf16.mxu0 %v914
        %1743 = vmatmul.mubr.bf16.gmra.mrb[0].mxu0 %v913
        %v1744 = vpop.f32.mrb[0].mxu0
        %v1745 = vadd.f32 %v1648, %v1744
        %v1746 = vpop.f32.mrb[0].mxu0
        %v1747 = vpop.f32.mrb[0].mxu0
        %v1748 = vadd.f32 %v1651, %v1747
        %v1749 = vpop.f32.mrb[0].mxu0
        %1750 = vmatprep.mubr.bf16.mxu0 %v922
        %1751 = vmatmul.mubr.bf16.gmra.mrb[0].mxu0 %v921
        %v1752 = vpop.f32.mrb[0].mxu0
        %v1753 = vadd.f32 %v1656, %v1752
        %v1754 = vpop.f32.mrb[0].mxu0
        %v1755 = vpop.f32.mrb[0].mxu0
        %v1756 = vadd.f32 %v1659, %v1755
        %v1757 = vpop.f32.mrb[0].mxu0
        %1758 = vmatprep.mubr.bf16.mxu0 %v930
        %1759 = vmatmul.mubr.bf16.gmra.mrb[0].mxu0 %v929
        %v1760 = vpop.f32.mrb[0].mxu0
        %v1761 = vadd.f32 %v1664, %v1760
        %v1762 = vpop.f32.mrb[0].mxu0
        %v1763 = vpop.f32.mrb[0].mxu0
        %v1764 = vadd.f32 %v1667, %v1763
        %v1765 = vpop.f32.mrb[0].mxu0
        %1766 = vmatprep.mubr.bf16.mxu0 %v938
        %1767 = vmatmul.mubr.bf16.gmra.mrb[0].mxu0 %v937
        %v1768 = vpop.f32.mrb[0].mxu0
        %v1769 = vadd.f32 %v1672, %v1768
        %v1770 = vpop.f32.mrb[0].mxu0
        %v1771 = vpop.f32.mrb[0].mxu0
        %v1772 = vadd.f32 %v1675, %v1771
        %v1773 = vpop.f32.mrb[0].mxu0
        %1774 = vmatprep.mubr.bf16.mxu0 %v946
        %1775 = vmatmul.mubr.bf16.gmra.mrb[0].mxu0 %v945
        %v1776 = vpop.f32.mrb[0].mxu0
        %v1777 = vadd.f32 %v1680, %v1776
        %v1778 = vpop.f32.mrb[0].mxu0
        %v1779 = vpop.f32.mrb[0].mxu0
        %v1780 = vadd.f32 %v1683, %v1779
        %v1781 = vpop.f32.mrb[0].mxu0
        %1782 = vdwg.mxu0
        %v1783 = vadd.f32 %v483, %v1721
        %v1784 = vadd.f32 %v484, %v1724
        %v1785 = vadd.f32 %v485, %v1729
        %v1786 = vadd.f32 %v486, %v1732
        %v1787 = vadd.f32 %v487, %v1737
        %v1788 = vadd.f32 %v488, %v1740
        %v1789 = vadd.f32 %v489, %v1745
        %v1790 = vadd.f32 %v490, %v1748
        %v1791 = vadd.f32 %v491, %v1753
        %v1792 = vadd.f32 %v492, %v1756
        %v1793 = vadd.f32 %v493, %v1761
        %v1794 = vadd.f32 %v494, %v1764
        %v1795 = vadd.f32 %v495, %v1769
        %v1796 = vadd.f32 %v496, %v1772
        %v1797 = vadd.f32 %v497, %v1777
        %v1798 = vadd.f32 %v498, %v1780
        %1799 = vst [vmem:[%s454] sm:$0xff] %v1783
        %1800 = vst [vmem:[%s454 + $0x8] sm:$0xff] %v1784
        %1801 = vst [vmem:[%s454 + $0x10] sm:$0xff] %v1785
        %1802 = vst [vmem:[%s454 + $0x18] sm:$0xff] %v1786
        %1803 = vst [vmem:[%s454 + $0x20] sm:$0xff] %v1787
        %1804 = vst [vmem:[%s454 + $0x28] sm:$0xff] %v1788
        %1805 = vst [vmem:[%s454 + $0x30] sm:$0xff] %v1789
        %1806 = vst [vmem:[%s454 + $0x38] sm:$0xff] %v1790
        %1807 = vst [vmem:[%s454 + $0x40] sm:$0xff] %v1791
        %1808 = vst [vmem:[%s454 + $0x48] sm:$0xff] %v1792
        %1809 = vst [vmem:[%s454 + $0x50] sm:$0xff] %v1793
        %1810 = vst [vmem:[%s454 + $0x58] sm:$0xff] %v1794
        %1811 = vst [vmem:[%s454 + $0x60] sm:$0xff] %v1795
        %1812 = vst [vmem:[%s454 + $0x68] sm:$0xff] %v1796
        %1813 = vst [vmem:[%s454 + $0x70] sm:$0xff] %v1797
        %1814 = vst [vmem:[%s454 + $0x78] sm:$0xff] %v1798
        %p1815 = scmp.eq.s32.totalorder %s26, 4
        // Predicated region
        $region68: #{_lambda_.7} parent=50 // pred_check
          %p1816 = pneg %p1815
        $region69: #{_lambda_.7} parent=50 // pred_check_branch
          %1818 = sbr.rel (%p1816) target = $region71
        $region70: #{_lambda_.7} parent=50 // pred_region
          %v1819 = vld [vmem:[%s454] sm:$0xff]
          %v1820 = vld [vmem:[%s454 + $0x8] sm:$0xff]
          %v1821 = vld [vmem:[%s454 + $0x10] sm:$0xff]
          %v1822 = vld [vmem:[%s454 + $0x18] sm:$0xff]
          %v1823 = vld [vmem:[%s454 + $0x20] sm:$0xff]
          %v1824 = vld [vmem:[%s454 + $0x28] sm:$0xff]
          %v1825 = vld [vmem:[%s454 + $0x30] sm:$0xff]
          %v1826 = vld [vmem:[%s454 + $0x38] sm:$0xff]
          %v1827 = vld [vmem:[%s454 + $0x40] sm:$0xff]
          %v1828 = vld [vmem:[%s454 + $0x48] sm:$0xff]
          %v1829 = vld [vmem:[%s454 + $0x50] sm:$0xff]
          %v1830 = vld [vmem:[%s454 + $0x58] sm:$0xff]
          %v1831 = vld [vmem:[%s454 + $0x60] sm:$0xff]
          %v1832 = vld [vmem:[%s454 + $0x68] sm:$0xff]
          %v1833 = vld [vmem:[%s454 + $0x70] sm:$0xff]
          %v1834 = vld [vmem:[%s454 + $0x78] sm:$0xff]
          %v1835 = vld [vmem:[#allocation5] sm:$0x1]
          %v1837 = vlaneseq
          %v1838 = vshrl.u32 %v1837, 7
          %v1839 = vsub.s32 0, %v1838
          %v1840 = vrot.slane %v1835, %v1839
          %v1842 = vadd.f32 %v1819, %v1840
          %v1843 = vadd.f32 %v1820, %v1840
          %v1844 = vadd.f32 %v1821, %v1840
          %v1845 = vadd.f32 %v1822, %v1840
          %v1846 = vadd.f32 %v1823, %v1840
          %v1847 = vadd.f32 %v1824, %v1840
          %v1848 = vadd.f32 %v1825, %v1840
          %v1849 = vadd.f32 %v1826, %v1840
          %v1850 = vadd.f32 %v1827, %v1840
          %v1851 = vadd.f32 %v1828, %v1840
          %v1852 = vadd.f32 %v1829, %v1840
          %v1853 = vadd.f32 %v1830, %v1840
          %v1854 = vadd.f32 %v1831, %v1840
          %v1855 = vadd.f32 %v1832, %v1840
          %v1856 = vadd.f32 %v1833, %v1840
          %v1857 = vadd.f32 %v1834, %v1840
          %1858 = vst [vmem:[%s454] sm:$0xff] %v1842
          %1859 = vst [vmem:[%s454 + $0x8] sm:$0xff] %v1843
          %1860 = vst [vmem:[%s454 + $0x10] sm:$0xff] %v1844
          %1861 = vst [vmem:[%s454 + $0x18] sm:$0xff] %v1845
          %1862 = vst [vmem:[%s454 + $0x20] sm:$0xff] %v1846
          %1863 = vst [vmem:[%s454 + $0x28] sm:$0xff] %v1847
          %1864 = vst [vmem:[%s454 + $0x30] sm:$0xff] %v1848
          %1865 = vst [vmem:[%s454 + $0x38] sm:$0xff] %v1849
          %1866 = vst [vmem:[%s454 + $0x40] sm:$0xff] %v1850
          %1867 = vst [vmem:[%s454 + $0x48] sm:$0xff] %v1851
          %1868 = vst [vmem:[%s454 + $0x50] sm:$0xff] %v1852
          %1869 = vst [vmem:[%s454 + $0x58] sm:$0xff] %v1853
          %1870 = vst [vmem:[%s454 + $0x60] sm:$0xff] %v1854
          %1871 = vst [vmem:[%s454 + $0x68] sm:$0xff] %v1855
          %1872 = vst [vmem:[%s454 + $0x70] sm:$0xff] %v1856
          %1873 = vst [vmem:[%s454 + $0x78] sm:$0xff] %v1857
          %v1874 = vadd.f32 %v1842, %v1843
          %v1875 = vadd.f32 %v1874, %v1844
          %v1876 = vadd.f32 %v1875, %v1845
          %v1877 = vadd.f32 %v1876, %v1846
          %v1878 = vadd.f32 %v1877, %v1847
          %v1879 = vadd.f32 %v1878, %v1848
          %v1880 = vadd.f32 %v1879, %v1849
          %v1881 = vadd.f32 %v1880, %v1850
          %v1882 = vadd.f32 %v1881, %v1851
          %v1883 = vadd.f32 %v1882, %v1852
          %v1884 = vadd.f32 %v1883, %v1853
          %v1885 = vadd.f32 %v1884, %v1854
          %v1886 = vadd.f32 %v1885, %v1855
          %v1887 = vadd.f32 %v1886, %v1856
          %v1888 = vadd.f32 %v1887, %v1857
          %v1889 = vrot.slane %v1888, 4
          %v1890 = vadd.f32 %v1888, %v1889
          %v1891 = vrot.slane %v1890, 2
          %v1892 = vadd.f32 %v1890, %v1891
          %v1893 = vrot.slane %v1892, 1
          %v1894 = vadd.f32 %v1892, %v1893
          %1895 = vst [vmem:[%s458] sm:$0x1] %v1894
          %v1896 = vmul.f32 %v1842, %v1842
          %v1897 = vmul.f32 %v1843, %v1843
          %v1898 = vmul.f32 %v1844, %v1844
          %v1899 = vmul.f32 %v1845, %v1845
          %v1900 = vmul.f32 %v1846, %v1846
          %v1901 = vmul.f32 %v1847, %v1847
          %v1902 = vmul.f32 %v1848, %v1848
          %v1903 = vmul.f32 %v1849, %v1849
          %v1904 = vmul.f32 %v1850, %v1850
          %v1905 = vmul.f32 %v1851, %v1851
          %v1906 = vmul.f32 %v1852, %v1852
          %v1907 = vmul.f32 %v1853, %v1853
          %v1908 = vmul.f32 %v1854, %v1854
          %v1909 = vmul.f32 %v1855, %v1855
          %v1910 = vmul.f32 %v1856, %v1856
          %v1911 = vmul.f32 %v1857, %v1857
          %v1912 = vadd.f32 %v1896, %v1897
          %v1913 = vadd.f32 %v1912, %v1898
          %v1914 = vadd.f32 %v1913, %v1899
          %v1915 = vadd.f32 %v1914, %v1900
          %v1916 = vadd.f32 %v1915, %v1901
          %v1917 = vadd.f32 %v1916, %v1902
          %v1918 = vadd.f32 %v1917, %v1903
          %v1919 = vadd.f32 %v1918, %v1904
          %v1920 = vadd.f32 %v1919, %v1905
          %v1921 = vadd.f32 %v1920, %v1906
          %v1922 = vadd.f32 %v1921, %v1907
          %v1923 = vadd.f32 %v1922, %v1908
          %v1924 = vadd.f32 %v1923, %v1909
          %v1925 = vadd.f32 %v1924, %v1910
          %v1926 = vadd.f32 %v1925, %v1911
          %v1927 = vrot.slane %v1926, 4
          %v1928 = vadd.f32 %v1926, %v1927
          %v1929 = vrot.slane %v1928, 2
          %v1930 = vadd.f32 %v1928, %v1929
          %v1931 = vrot.slane %v1930, 1
          %v1932 = vadd.f32 %v1930, %v1931
          %1933 = vst [vmem:[%s461] sm:$0x1] %v1932
        $region71: #{_lambda_.7} parent=50 // pred_fallthru
          _
        %s1934 = smul.u32 16, %s25
        %p1935 = scmp.lt.s32.totalorder %s1934, 15
        %s1936 = scalar_select %p1935, %s1934, 15
        %s1937 = smul.addr %s1936, 8
        %s1938 = scalar_lea.vmem %s3, %s1937
        %p1939 = scmp.lt.s32.totalorder %s25, 0
        %s1940 = scalar_select %p1939, %s25, 0
        %s1941 = scalar_lea.vmem %s4, %s1940
        %p1942 = scmp.lt.s32.totalorder %s25, 0
        %s1943 = scalar_select %p1942, %s25, 0
        %s1944 = scalar_lea.vmem %s5, %s1943
        // Predicated region
        $region72: #{_lambda_.7} parent=50 // pred_check
          %p1945 = pneg %p126
        $region73: #{_lambda_.7} parent=50 // pred_check_branch
          %1947 = sbr.rel (%p1945) target = $region75
        $region74: #{_lambda_.7} parent=50 // pred_region
          %s1948 = smul.u32 16, %s25
        $region75: #{_lambda_.7} parent=50 // pred_fallthru
          _
        // Predicated region
        $region76: #{_lambda_.7} parent=50 // pred_check
          %p1949 = pneg %p152
        $region77: #{_lambda_.7} parent=50 // pred_check_branch
          %1951 = sbr.rel (%p1949) target = $region79
        $region78: #{_lambda_.7} parent=50 // pred_region
          _
        $region79: #{_lambda_.7} parent=50 // pred_fallthru
          _
        // Predicated region
        $region80: #{_lambda_.7} parent=50 // pred_check
          %p1952 = pneg %p178
        $region81: #{_lambda_.7} parent=50 // pred_check_branch
          %1954 = sbr.rel (%p1952) target = $region83
        $region82: #{_lambda_.7} parent=50 // pred_region
          _
        $region83: #{_lambda_.7} parent=50 // pred_fallthru
          _
        // Predicated region
        $region84: #{_lambda_.7} parent=50 // pred_check
          %p1955 = pneg %p126
        $region85: #{_lambda_.7} parent=50 // pred_check_branch
          %1957 = sbr.rel (%p1955) target = $region87
        $region86: #{_lambda_.7} parent=50 // pred_region
          %s1958 = smul.u32 16, %s25
          %p1959 = scmp.lt.s32.totalorder %s1958, 15
          %s1960 = scalar_select %p1959, %s1958, 15
          %s1961 = smul.addr %s1960, 8
          %s1962 = scalar_lea.vmem %s3, %s1961
        $region87: #{_lambda_.7} parent=50 // pred_fallthru
          _
        // Predicated region
        $region88: #{_lambda_.7} parent=50 // pred_check
          %p1963 = pneg %p152
        $region89: #{_lambda_.7} parent=50 // pred_check_branch
          %1965 = sbr.rel (%p1963) target = $region91
        $region90: #{_lambda_.7} parent=50 // pred_region
          %p1966 = scmp.lt.s32.totalorder %s25, 0
          %s1967 = scalar_select %p1966, %s25, 0
          %s1968 = scalar_lea.vmem %s4, %s1967
        $region91: #{_lambda_.7} parent=50 // pred_fallthru
          _
        // Predicated region
        $region92: #{_lambda_.7} parent=50 // pred_check
          %p1969 = pneg %p178
        $region93: #{_lambda_.7} parent=50 // pred_check_branch
          %1971 = sbr.rel (%p1969) target = $region95
        $region94: #{_lambda_.7} parent=50 // pred_region
          %p1972 = scmp.lt.s32.totalorder %s25, 0
          %s1973 = scalar_select %p1972, %s25, 0
          %s1974 = scalar_lea.vmem %s5, %s1973
        $region95: #{_lambda_.7} parent=50 // pred_fallthru
          _
      $region51: #{_lambda_.7} parent=5 // pred_fallthru
        _
      %p1975 = scmp.le.s32.totalorder 2, %s16
      // Predicated region
      $region96: #{_lambda_.7} parent=5 // pred_check
        %p1976 = pneg %p1975
      $region97: #{_lambda_.7} parent=5 // pred_check_branch
        %1978 = sbr.rel (%p1976) target = $region99
      $region98: #{_lambda_.7} parent=5 // pred_region
        %s1979 = ssub.s32 %s16, 2
      $region99: #{_lambda_.7} parent=5 // pred_fallthru
        _
    $region6: #{_lambda_.7} parent=1 // loop_footer
      %s20 = sadd.s32 1, %s16
    $region7: #{_lambda_.7} parent=1 // loop_footer_branch
      %15 = sbr.rel target = $region3
    $region8: #{_lambda_.7} parent=1 // loop_exit
      _
    %1980 = vsyncpa [#allocation4], 1
    %s1981 = scalar_lea.sflag [#allocation4], 1
    %1982 = vsyncpa %s1981, 1
    %1983 = vsyncpa [#allocation6], 1

// kernel: _lambda_.9
$region0: #{_lambda_.9}
  #allocation0 [shape = 'u32[]', space=smem, size = 0x4, offset = 0x4, fixed_abs, tag = 'smem constant byte address 0x4 - core index']
  #allocation1 [shape = 'u32[144,128]{1,0:T(1,128)}', space=vmem, size = 0x12000, scoped, tag = 'internal scratch']
  %s0 = inlined_call_operand.vmem [shape: bf16[1536,3584], index: 0, kind: input, shape index: {}]
  %s1 = inlined_call_operand.vmem [shape: bf16[3584,64], index: 1, kind: input, shape index: {}]
  %s2 = inlined_call_operand.vmem [shape: f32[1,64], index: 2, kind: input, shape index: {}]
  %s3 = inlined_call_operand.vmem [shape: f32[1536,64], index: 3, kind: output, shape index: {0}]
  %s4 = inlined_call_operand.vmem [shape: f32[6,1,64], index: 4, kind: output, shape index: {1}]
  %s5 = inlined_call_operand.vmem [shape: f32[6,1,64], index: 5, kind: output, shape index: {2}]
  %6 = xla_tuple %s3, %s4, %s5
  %s7 = sld [smem:[#allocation0]]
  $region95: #{_lambda_.9} parent=0
    _
  %s9 = ssub.s32 1, %s7
  %s10 = scalar_select 0, %s9, %s7
  $region1: #{_lambda_.9} parent=0
    #allocation2 [shape = 'u8[917504]{0}', space=vmem, size = 0xe0000, scoped, tag = 'input window, operand 0']
    loop: start=0, step=1, limit=26
    $region2: #{_lambda_.9} parent=1 // loop_pre_header
      _
    $region3: #{_lambda_.9} parent=1 // loop_header
      %s12 = sphi 0, %s16
      %p13 = scmp.ge.s32.totalorder %s12, 26
      %s19 = sphi 0, %s31
      %s20 = sphi 0, %s27
      %s21 = sphi 0, %s19
      %s22 = sphi 0, %s20
      %s23 = sphi 0, %s21
      %s24 = sphi 0, %s22
      %s36 = sphi 0, %s38
      %s39 = sphi 0, %s36
      %s40 = sphi 0, %s39
      %s56 = sphi 0, %s40
      %s62 = sphi 0, %s64
      %s65 = sphi 0, %s62
      %s66 = sphi 0, %s65
      %s82 = sphi 0, %s66
      %s86 = sphi 0, %s86
      %s88 = sphi 0, %s86
      %s89 = sphi 0, %s88
      %s103 = sphi 0, %s89
      %s109 = sphi 0, %s111
      %s112 = sphi 0, %s109
      %s113 = sphi 0, %s112
      %s129 = sphi 0, %s113
      %s135 = sphi 0, %s137
      %s138 = sphi 0, %s135
      %s139 = sphi 0, %s138
      %s155 = sphi 0, %s139
      %s161 = sphi 0, %s163
      %s164 = sphi 0, %s161
      %s165 = sphi 0, %s164
      %s181 = sphi 0, %s165
    $region4: #{_lambda_.9} parent=1 // loop_header_branch
      %15 = sbr.rel (%p13) target = $region8
    $region5: #{_lambda_.9} parent=1 // loop_body
      %s17 = ssub.s32 %s12, 1
      %s18 = ssub.s32 %s12, 2
      %s25 = sadd.s32 1, %s20
      %p26 = scmp.ge.s32.totalorder %s25, 4
      %s27 = scalar_select %p26, 0, %s25
      %s28 = sadd.s32 1, %s19
      %s29 = scalar_select %p26, %s28, %s19
      %p30 = scmp.ge.s32.totalorder %s29, 6
      %s31 = scalar_select %p30, 0, %s29
      %s32 = ssub.s32 %s19, %s31
      %s33 = ssub.s32 %s20, %s27
      %s34 = sor.u32 %s32, %s33
      %p35 = scmp.eq.s32.totalorder %s34, 0
      %s37 = sadd.s32 %s36, 1
      %s38 = scalar_select %p35, %s36, %s37
      %p41 = pneg %p35
      %p42 = scmp.eq.s32.totalorder %s12, 23
      %p43 = por %p41, %p42
      %p44 = scmp.ne.s32.totalorder %s36, %s39
      %p45 = scmp.eq.s32.totalorder %s12, 0
      %p46 = por %p44, %p45
      %p47 = scmp.ne.s32.totalorder %s36, %s39
      %p48 = scmp.eq.s32.totalorder %s17, 23
      %p49 = por %p47, %p48
      %p50 = scmp.ne.s32.totalorder %s39, %s40
      %p51 = scmp.eq.s32.totalorder %s17, 0
      %p52 = por %p50, %p51
      %p53 = scmp.ne.s32.totalorder %s39, %s40
      %p54 = scmp.eq.s32.totalorder %s18, 23
      %p55 = por %p53, %p54
      %p57 = scmp.ne.s32.totalorder %s40, %s56
      %p58 = scmp.eq.s32.totalorder %s18, 0
      %p59 = por %p57, %p58
      %s60 = ssub.s32 %s20, %s27
      %p61 = scmp.eq.s32.totalorder %s60, 0
      %s63 = sadd.s32 %s62, 1
      %s64 = scalar_select %p61, %s62, %s63
      %p67 = pneg %p61
      %p68 = scmp.eq.s32.totalorder %s12, 23
      %p69 = por %p67, %p68
      %p70 = scmp.ne.s32.totalorder %s62, %s65
      %p71 = scmp.eq.s32.totalorder %s12, 0
      %p72 = por %p70, %p71
      %p73 = scmp.ne.s32.totalorder %s62, %s65
      %p74 = scmp.eq.s32.totalorder %s17, 23
      %p75 = por %p73, %p74
      %p76 = scmp.ne.s32.totalorder %s65, %s66
      %p77 = scmp.eq.s32.totalorder %s17, 0
      %p78 = por %p76, %p77
      %p79 = scmp.ne.s32.totalorder %s65, %s66
      %p80 = scmp.eq.s32.totalorder %s18, 23
      %p81 = por %p79, %p80
      %p83 = scmp.ne.s32.totalorder %s66, %s82
      %p84 = scmp.eq.s32.totalorder %s18, 0
      %p85 = por %p83, %p84
      %s87 = sadd.s32 %s86, 1
      %p90 = scmp.eq.s32.totalorder %s12, 23
      %p91 = scmp.ne.s32.totalorder %s86, %s88
      %p92 = scmp.eq.s32.totalorder %s12, 0
      %p93 = por %p91, %p92
      %p94 = scmp.ne.s32.totalorder %s86, %s88
      %p95 = scmp.eq.s32.totalorder %s17, 23
      %p96 = por %p94, %p95
      %p97 = scmp.ne.s32.totalorder %s88, %s89
      %p98 = scmp.eq.s32.totalorder %s17, 0
      %p99 = por %p97, %p98
      %p100 = scmp.ne.s32.totalorder %s88, %s89
      %p101 = scmp.eq.s32.totalorder %s18, 23
      %p102 = por %p100, %p101
      %p104 = scmp.ne.s32.totalorder %s89, %s103
      %p105 = scmp.eq.s32.totalorder %s18, 0
      %p106 = por %p104, %p105
      %s107 = ssub.s32 %s19, %s31
      %p108 = scmp.eq.s32.totalorder %s107, 0
      %s110 = sadd.s32 %s109, 1
      %s111 = scalar_select %p108, %s109, %s110
      %p114 = pneg %p108
      %p115 = scmp.eq.s32.totalorder %s12, 23
      %p116 = por %p114, %p115
      %p117 = scmp.ne.s32.totalorder %s109, %s112
      %p118 = scmp.eq.s32.totalorder %s12, 0
      %p119 = por %p117, %p118
      %p120 = scmp.ne.s32.totalorder %s109, %s112
      %p121 = scmp.eq.s32.totalorder %s17, 23
      %p122 = por %p120, %p121
      %p123 = scmp.ne.s32.totalorder %s112, %s113
      %p124 = scmp.eq.s32.totalorder %s17, 0
      %p125 = por %p123, %p124
      %p126 = scmp.ne.s32.totalorder %s112, %s113
      %p127 = scmp.eq.s32.totalorder %s18, 23
      %p128 = por %p126, %p127
      %p130 = scmp.ne.s32.totalorder %s113, %s129
      %p131 = scmp.eq.s32.totalorder %s18, 0
      %p132 = por %p130, %p131
      %s133 = ssub.s32 %s19, %s31
      %p134 = scmp.eq.s32.totalorder %s133, 0
      %s136 = sadd.s32 %s135, 1
      %s137 = scalar_select %p134, %s135, %s136
      %p140 = pneg %p134
      %p141 = scmp.eq.s32.totalorder %s12, 23
      %p142 = por %p140, %p141
      %p143 = scmp.ne.s32.totalorder %s135, %s138
      %p144 = scmp.eq.s32.totalorder %s12, 0
      %p145 = por %p143, %p144
      %p146 = scmp.ne.s32.totalorder %s135, %s138
      %p147 = scmp.eq.s32.totalorder %s17, 23
      %p148 = por %p146, %p147
      %p149 = scmp.ne.s32.totalorder %s138, %s139
      %p150 = scmp.eq.s32.totalorder %s17, 0
      %p151 = por %p149, %p150
      %p152 = scmp.ne.s32.totalorder %s138, %s139
      %p153 = scmp.eq.s32.totalorder %s18, 23
      %p154 = por %p152, %p153
      %p156 = scmp.ne.s32.totalorder %s139, %s155
      %p157 = scmp.eq.s32.totalorder %s18, 0
      %p158 = por %p156, %p157
      %s159 = ssub.s32 %s19, %s31
      %p160 = scmp.eq.s32.totalorder %s159, 0
      %s162 = sadd.s32 %s161, 1
      %s163 = scalar_select %p160, %s161, %s162
      %p166 = pneg %p160
      %p167 = scmp.eq.s32.totalorder %s12, 23
      %p168 = por %p166, %p167
      %p169 = scmp.ne.s32.totalorder %s161, %s164
      %p170 = scmp.eq.s32.totalorder %s12, 0
      %p171 = por %p169, %p170
      %p172 = scmp.ne.s32.totalorder %s161, %s164
      %p173 = scmp.eq.s32.totalorder %s17, 23
      %p174 = por %p172, %p173
      %p175 = scmp.ne.s32.totalorder %s164, %s165
      %p176 = scmp.eq.s32.totalorder %s17, 0
      %p177 = por %p175, %p176
      %p178 = scmp.ne.s32.totalorder %s164, %s165
      %p179 = scmp.eq.s32.totalorder %s18, 23
      %p180 = por %p178, %p179
      %p182 = scmp.ne.s32.totalorder %s165, %s181
      %p183 = scmp.eq.s32.totalorder %s18, 0
      %p184 = por %p182, %p183
      %p185 = scmp.le.s32.totalorder 1, %s12
      %p186 = scmp.lt.s32.totalorder %s12, 25
      %p187 = pnand %p185, %p186
      %p188 = pneg %p187
      // Predicated region
      $region9: #{_lambda_.9} parent=5 // pred_check
        _
      $region10: #{_lambda_.9} parent=5 // pred_check_branch
        %190 = sbr.rel (%p187) target = $region12
      $region11: #{_lambda_.9} parent=5 // pred_region
        %s191 = ssub.s32 %s12, 1
        // Predicated region
        $region13: #{_lambda_.9} parent=11 // pred_check
          %p192 = pneg %p99
        $region14: #{_lambda_.9} parent=11 // pred_check_branch
          %194 = sbr.rel (%p192) target = $region16
        $region15: #{_lambda_.9} parent=11 // pred_region
          _
        $region16: #{_lambda_.9} parent=11 // pred_fallthru
          _
      $region12: #{_lambda_.9} parent=5 // pred_fallthru
        _
      %p195 = scmp.lt.s32.totalorder %s12, 24
      // Predicated region
      $region17: #{_lambda_.9} parent=5 // pred_check
        %p196 = pneg %p195
      $region18: #{_lambda_.9} parent=5 // pred_check_branch
        %198 = sbr.rel (%p196) target = $region20
      $region19: #{_lambda_.9} parent=5 // pred_region
        // Predicated region
        $region21: #{_lambda_.9} parent=19 // pred_check
          %p199 = pneg %p46
        $region22: #{_lambda_.9} parent=19 // pred_check_branch
          %201 = sbr.rel (%p199) target = $region24
        $region23: #{_lambda_.9} parent=19 // pred_region
          %s202 = sand.u32 %s36, 1
          %s203 = sand.u32 %s36, 1
          %s204 = smul.addr %s203, 896
          %s205 = scalar_lea.vmem [#allocation2], %s204
          %s206 = smul.u32 32, %s19
          %s207 = smul.u32 7, %s20
          %s208 = smul.addr %s206, 28
          %s209 = sadd.s32 %s207, %s208
          %s210 = smul.addr %s209, 4
          %s211 = scalar_lea.vmem %s0, %s210
          // Predicated region
          $region25: #{_lambda_.9} parent=23 // pred_check
            _
          $region26: #{_lambda_.9} parent=23 // pred_check_branch
            %213 = sbr.rel (0) target = $region28
          $region27: #{_lambda_.9} parent=23 // pred_region
            // Predicated region
            $region29: #{_lambda_.9} parent=27 // pred_check
              _
            $region30: #{_lambda_.9} parent=27 // pred_check_branch
              %215 = sbr.rel (0) target = $region32
            $region31: #{_lambda_.9} parent=27 // pred_region
              %s216 = scalar_lea.vmem %s211, 24
              %s217 = scalar_lea.vmem %s205, 24 [#allocation2]
              loop: start=0, step=1, limit=1
              $region33: #{_lambda_.9} parent=31 // loop_pre_header
                _
              $region34: #{_lambda_.9} parent=31 // loop_header
                %s219 = sphi 0, %s223
                %p220 = scmp.ge.s32.totalorder %s219, 1
                %s224 = sphi %s211, %s211
                %s225 = sphi %s205, %s205
              $region35: #{_lambda_.9} parent=31 // loop_header_branch
                %222 = sbr.rel (%p220) target = $region39
              $region36: #{_lambda_.9} parent=31 // loop_body
                %v226 = vld [vmem:[%s224] sm:$0xff]
                %227 = vst [vmem:[%s225] sm:$0xff] %v226
                %v228 = vld [vmem:[%s224 + $0x8] sm:$0xff]
                %229 = vst [vmem:[%s225 + $0x8] sm:$0xff] %v228
                %v230 = vld [vmem:[%s224 + $0x10] sm:$0xff]
                %231 = vst [vmem:[%s225 + $0x10] sm:$0xff] %v230
                %v232 = vld [vmem:[%s224 + $0x70] sm:$0xff]
                %233 = vst [vmem:[%s225 + $0x1c] sm:$0xff] %v232
                %v234 = vld [vmem:[%s224 + $0x78] sm:$0xff]
                %235 = vst [vmem:[%s225 + $0x24] sm:$0xff] %v234
                %v236 = vld [vmem:[%s224 + $0x80] sm:$0xff]
                %237 = vst [vmem:[%s225 + $0x2c] sm:$0xff] %v236
                %v238 = vld [vmem:[%s224 + $0xe0] sm:$0xff]
                %239 = vst [vmem:[%s225 + $0x38] sm:$0xff] %v238
                %v240 = vld [vmem:[%s224 + $0xe8] sm:$0xff]
                %241 = vst [vmem:[%s225 + $0x40] sm:$0xff] %v240
                %v242 = vld [vmem:[%s224 + $0xf0] sm:$0xff]
                %243 = vst [vmem:[%s225 + $0x48] sm:$0xff] %v242
                %v244 = vld [vmem:[%s224 + $0x150] sm:$0xff]
                %245 = vst [vmem:[%s225 + $0x54] sm:$0xff] %v244
                %v246 = vld [vmem:[%s224 + $0x158] sm:$0xff]
                %247 = vst [vmem:[%s225 + $0x5c] sm:$0xff] %v246
                %v248 = vld [vmem:[%s224 + $0x160] sm:$0xff]
                %249 = vst [vmem:[%s225 + $0x64] sm:$0xff] %v248
                %v250 = vld [vmem:[%s224 + $0x1c0] sm:$0xff]
                %251 = vst [vmem:[%s225 + $0x70] sm:$0xff] %v250
                %v252 = vld [vmem:[%s224 + $0x1c8] sm:$0xff]
                %253 = vst [vmem:[%s225 + $0x78] sm:$0xff] %v252
                %v254 = vld [vmem:[%s224 + $0x1d0] sm:$0xff]
                %255 = vst [vmem:[%s225 + $0x80] sm:$0xff] %v254
                %v256 = vld [vmem:[%s224 + $0x230] sm:$0xff]
                %257 = vst [vmem:[%s225 + $0x8c] sm:$0xff] %v256
                %v258 = vld [vmem:[%s224 + $0x238] sm:$0xff]
                %259 = vst [vmem:[%s225 + $0x94] sm:$0xff] %v258
                %v260 = vld [vmem:[%s224 + $0x240] sm:$0xff]
                %261 = vst [vmem:[%s225 + $0x9c] sm:$0xff] %v260
                %v262 = vld [vmem:[%s224 + $0x2a0] sm:$0xff]
                %263 = vst [vmem:[%s225 + $0xa8] sm:$0xff] %v262
                %v264 = vld [vmem:[%s224 + $0x2a8] sm:$0xff]
                %265 = vst [vmem:[%s225 + $0xb0] sm:$0xff] %v264
                %v266 = vld [vmem:[%s224 + $0x2b0] sm:$0xff]
                %267 = vst [vmem:[%s225 + $0xb8] sm:$0xff] %v266
                %v268 = vld [vmem:[%s224 + $0x310] sm:$0xff]
                %269 = vst [vmem:[%s225 + $0xc4] sm:$0xff] %v268
                %v270 = vld [vmem:[%s224 + $0x318] sm:$0xff]
                %271 = vst [vmem:[%s225 + $0xcc] sm:$0xff] %v270
                %v272 = vld [vmem:[%s224 + $0x320] sm:$0xff]
                %273 = vst [vmem:[%s225 + $0xd4] sm:$0xff] %v272
                %v274 = vld [vmem:[%s224 + $0x380] sm:$0xff]
                %275 = vst [vmem:[%s225 + $0xe0] sm:$0xff] %v274
                %v276 = vld [vmem:[%s224 + $0x388] sm:$0xff]
                %277 = vst [vmem:[%s225 + $0xe8] sm:$0xff] %v276
                %v278 = vld [vmem:[%s224 + $0x390] sm:$0xff]
                %279 = vst [vmem:[%s225 + $0xf0] sm:$0xff] %v278
                %v280 = vld [vmem:[%s224 + $0x3f0] sm:$0xff]
                %281 = vst [vmem:[%s225 + $0xfc] sm:$0xff] %v280
                %v282 = vld [vmem:[%s224 + $0x3f8] sm:$0xff]
                %283 = vst [vmem:[%s225 + $0x104] sm:$0xff] %v282
                %v284 = vld [vmem:[%s224 + $0x400] sm:$0xff]
                %285 = vst [vmem:[%s225 + $0x10c] sm:$0xff] %v284
                %v286 = vld [vmem:[%s224 + $0x460] sm:$0xff]
                %287 = vst [vmem:[%s225 + $0x118] sm:$0xff] %v286
                %v288 = vld [vmem:[%s224 + $0x468] sm:$0xff]
                %289 = vst [vmem:[%s225 + $0x120] sm:$0xff] %v288
                %v290 = vld [vmem:[%s224 + $0x470] sm:$0xff]
                %291 = vst [vmem:[%s225 + $0x128] sm:$0xff] %v290
                %v292 = vld [vmem:[%s224 + $0x4d0] sm:$0xff]
                %293 = vst [vmem:[%s225 + $0x134] sm:$0xff] %v292
                %v294 = vld [vmem:[%s224 + $0x4d8] sm:$0xff]
                %295 = vst [vmem:[%s225 + $0x13c] sm:$0xff] %v294
                %v296 = vld [vmem:[%s224 + $0x4e0] sm:$0xff]
                %297 = vst [vmem:[%s225 + $0x144] sm:$0xff] %v296
                %v298 = vld [vmem:[%s224 + $0x540] sm:$0xff]
                %299 = vst [vmem:[%s225 + $0x150] sm:$0xff] %v298
                %v300 = vld [vmem:[%s224 + $0x548] sm:$0xff]
                %301 = vst [vmem:[%s225 + $0x158] sm:$0xff] %v300
                %v302 = vld [vmem:[%s224 + $0x550] sm:$0xff]
                %303 = vst [vmem:[%s225 + $0x160] sm:$0xff] %v302
                %v304 = vld [vmem:[%s224 + $0x5b0] sm:$0xff]
                %305 = vst [vmem:[%s225 + $0x16c] sm:$0xff] %v304
                %v306 = vld [vmem:[%s224 + $0x5b8] sm:$0xff]
                %307 = vst [vmem:[%s225 + $0x174] sm:$0xff] %v306
                %v308 = vld [vmem:[%s224 + $0x5c0] sm:$0xff]
                %309 = vst [vmem:[%s225 + $0x17c] sm:$0xff] %v308
                %v310 = vld [vmem:[%s224 + $0x620] sm:$0xff]
                %311 = vst [vmem:[%s225 + $0x188] sm:$0xff] %v310
                %v312 = vld [vmem:[%s224 + $0x628] sm:$0xff]
                %313 = vst [vmem:[%s225 + $0x190] sm:$0xff] %v312
                %v314 = vld [vmem:[%s224 + $0x630] sm:$0xff]
                %315 = vst [vmem:[%s225 + $0x198] sm:$0xff] %v314
                %v316 = vld [vmem:[%s224 + $0x690] sm:$0xff]
                %317 = vst [vmem:[%s225 + $0x1a4] sm:$0xff] %v316
                %v318 = vld [vmem:[%s224 + $0x698] sm:$0xff]
                %319 = vst [vmem:[%s225 + $0x1ac] sm:$0xff] %v318
                %v320 = vld [vmem:[%s224 + $0x6a0] sm:$0xff]
                %321 = vst [vmem:[%s225 + $0x1b4] sm:$0xff] %v320
                %v322 = vld [vmem:[%s224 + $0x700] sm:$0xff]
                %323 = vst [vmem:[%s225 + $0x1c0] sm:$0xff] %v322
                %v324 = vld [vmem:[%s224 + $0x708] sm:$0xff]
                %325 = vst [vmem:[%s225 + $0x1c8] sm:$0xff] %v324
                %v326 = vld [vmem:[%s224 + $0x710] sm:$0xff]
                %327 = vst [vmem:[%s225 + $0x1d0] sm:$0xff] %v326
                %v328 = vld [vmem:[%s224 + $0x770] sm:$0xff]
                %329 = vst [vmem:[%s225 + $0x1dc] sm:$0xff] %v328
                %v330 = vld [vmem:[%s224 + $0x778] sm:$0xff]
                %331 = vst [vmem:[%s225 + $0x1e4] sm:$0xff] %v330
                %v332 = vld [vmem:[%s224 + $0x780] sm:$0xff]
                %333 = vst [vmem:[%s225 + $0x1ec] sm:$0xff] %v332
                %v334 = vld [vmem:[%s224 + $0x7e0] sm:$0xff]
                %335 = vst [vmem:[%s225 + $0x1f8] sm:$0xff] %v334
                %v336 = vld [vmem:[%s224 + $0x7e8] sm:$0xff]
                %337 = vst [vmem:[%s225 + $0x200] sm:$0xff] %v336
                %v338 = vld [vmem:[%s224 + $0x7f0] sm:$0xff]
                %339 = vst [vmem:[%s225 + $0x208] sm:$0xff] %v338
                %v340 = vld [vmem:[%s224 + $0x850] sm:$0xff]
                %341 = vst [vmem:[%s225 + $0x214] sm:$0xff] %v340
                %v342 = vld [vmem:[%s224 + $0x858] sm:$0xff]
                %343 = vst [vmem:[%s225 + $0x21c] sm:$0xff] %v342
                %v344 = vld [vmem:[%s224 + $0x860] sm:$0xff]
                %345 = vst [vmem:[%s225 + $0x224] sm:$0xff] %v344
                %v346 = vld [vmem:[%s224 + $0x8c0] sm:$0xff]
                %347 = vst [vmem:[%s225 + $0x230] sm:$0xff] %v346
                %v348 = vld [vmem:[%s224 + $0x8c8] sm:$0xff]
                %349 = vst [vmem:[%s225 + $0x238] sm:$0xff] %v348
                %v350 = vld [vmem:[%s224 + $0x8d0] sm:$0xff]
                %351 = vst [vmem:[%s225 + $0x240] sm:$0xff] %v350
                %v352 = vld [vmem:[%s224 + $0x930] sm:$0xff]
                %353 = vst [vmem:[%s225 + $0x24c] sm:$0xff] %v352
                %v354 = vld [vmem:[%s224 + $0x938] sm:$0xff]
                %355 = vst [vmem:[%s225 + $0x254] sm:$0xff] %v354
                %v356 = vld [vmem:[%s224 + $0x940] sm:$0xff]
                %357 = vst [vmem:[%s225 + $0x25c] sm:$0xff] %v356
                %v358 = vld [vmem:[%s224 + $0x9a0] sm:$0xff]
                %359 = vst [vmem:[%s225 + $0x268] sm:$0xff] %v358
                %v360 = vld [vmem:[%s224 + $0x9a8] sm:$0xff]
                %361 = vst [vmem:[%s225 + $0x270] sm:$0xff] %v360
                %v362 = vld [vmem:[%s224 + $0x9b0] sm:$0xff]
                %363 = vst [vmem:[%s225 + $0x278] sm:$0xff] %v362
                %v364 = vld [vmem:[%s224 + $0xa10] sm:$0xff]
                %365 = vst [vmem:[%s225 + $0x284] sm:$0xff] %v364
                %v366 = vld [vmem:[%s224 + $0xa18] sm:$0xff]
                %367 = vst [vmem:[%s225 + $0x28c] sm:$0xff] %v366
                %v368 = vld [vmem:[%s224 + $0xa20] sm:$0xff]
                %369 = vst [vmem:[%s225 + $0x294] sm:$0xff] %v368
                %v370 = vld [vmem:[%s224 + $0xa80] sm:$0xff]
                %371 = vst [vmem:[%s225 + $0x2a0] sm:$0xff] %v370
                %v372 = vld [vmem:[%s224 + $0xa88] sm:$0xff]
                %373 = vst [vmem:[%s225 + $0x2a8] sm:$0xff] %v372
                %v374 = vld [vmem:[%s224 + $0xa90] sm:$0xff]
                %375 = vst [vmem:[%s225 + $0x2b0] sm:$0xff] %v374
                %v376 = vld [vmem:[%s224 + $0xaf0] sm:$0xff]
                %377 = vst [vmem:[%s225 + $0x2bc] sm:$0xff] %v376
                %v378 = vld [vmem:[%s224 + $0xaf8] sm:$0xff]
                %379 = vst [vmem:[%s225 + $0x2c4] sm:$0xff] %v378
                %v380 = vld [vmem:[%s224 + $0xb00] sm:$0xff]
                %381 = vst [vmem:[%s225 + $0x2cc] sm:$0xff] %v380
                %v382 = vld [vmem:[%s224 + $0xb60] sm:$0xff]
                %383 = vst [vmem:[%s225 + $0x2d8] sm:$0xff] %v382
                %v384 = vld [vmem:[%s224 + $0xb68] sm:$0xff]
                %385 = vst [vmem:[%s225 + $0x2e0] sm:$0xff] %v384
                %v386 = vld [vmem:[%s224 + $0xb70] sm:$0xff]
                %387 = vst [vmem:[%s225 + $0x2e8] sm:$0xff] %v386
                %v388 = vld [vmem:[%s224 + $0xbd0] sm:$0xff]
                %389 = vst [vmem:[%s225 + $0x2f4] sm:$0xff] %v388
                %v390 = vld [vmem:[%s224 + $0xbd8] sm:$0xff]
                %391 = vst [vmem:[%s225 + $0x2fc] sm:$0xff] %v390
                %v392 = vld [vmem:[%s224 + $0xbe0] sm:$0xff]
                %393 = vst [vmem:[%s225 + $0x304] sm:$0xff] %v392
                %v394 = vld [vmem:[%s224 + $0xc40] sm:$0xff]
                %395 = vst [vmem:[%s225 + $0x310] sm:$0xff] %v394
                %v396 = vld [vmem:[%s224 + $0xc48] sm:$0xff]
                %397 = vst [vmem:[%s225 + $0x318] sm:$0xff] %v396
                %v398 = vld [vmem:[%s224 + $0xc50] sm:$0xff]
                %399 = vst [vmem:[%s225 + $0x320] sm:$0xff] %v398
                %v400 = vld [vmem:[%s224 + $0xcb0] sm:$0xff]
                %401 = vst [vmem:[%s225 + $0x32c] sm:$0xff] %v400
                %v402 = vld [vmem:[%s224 + $0xcb8] sm:$0xff]
                %403 = vst [vmem:[%s225 + $0x334] sm:$0xff] %v402
                %v404 = vld [vmem:[%s224 + $0xcc0] sm:$0xff]
                %405 = vst [vmem:[%s225 + $0x33c] sm:$0xff] %v404
                %v406 = vld [vmem:[%s224 + $0xd20] sm:$0xff]
                %407 = vst [vmem:[%s225 + $0x348] sm:$0xff] %v406
                %v408 = vld [vmem:[%s224 + $0xd28] sm:$0xff]
                %409 = vst [vmem:[%s225 + $0x350] sm:$0xff] %v408
                %v410 = vld [vmem:[%s224 + $0xd30] sm:$0xff]
                %411 = vst [vmem:[%s225 + $0x358] sm:$0xff] %v410
                %v412 = vld [vmem:[%s224 + $0xd90] sm:$0xff]
                %413 = vst [vmem:[%s225 + $0x364] sm:$0xff] %v412
                %v414 = vld [vmem:[%s224 + $0xd98] sm:$0xff]
                %415 = vst [vmem:[%s225 + $0x36c] sm:$0xff] %v414
                %v416 = vld [vmem:[%s224 + $0xda0] sm:$0xff]
                %417 = vst [vmem:[%s225 + $0x374] sm:$0xff] %v416
              $region37: #{_lambda_.9} parent=31 // loop_footer
                %s223 = sadd.s32 1, %s219
              $region38: #{_lambda_.9} parent=31 // loop_footer_branch
                %218 = sbr.rel target = $region34
              $region39: #{_lambda_.9} parent=31 // loop_exit
                _
              loop: start=0, step=1, limit=1
              $region40: #{_lambda_.9} parent=31 // loop_pre_header
                _
              $region41: #{_lambda_.9} parent=31 // loop_header
                %s420 = sphi 0, %s424
                %p421 = scmp.ge.s32.totalorder %s420, 1
                %s425 = sphi %s216, %s216
                %s426 = sphi %s217, %s217
              $region42: #{_lambda_.9} parent=31 // loop_header_branch
                %423 = sbr.rel (%p421) target = $region46
              $region43: #{_lambda_.9} parent=31 // loop_body
                %v427 = vld [vmem:[%s425] sm:$0xf]
                %428 = vst [vmem:[%s426] sm:$0xf] %v427
                %v429 = vld [vmem:[%s425 + $0x70] sm:$0xf]
                %430 = vst [vmem:[%s426 + $0x1c] sm:$0xf] %v429
                %v431 = vld [vmem:[%s425 + $0xe0] sm:$0xf]
                %432 = vst [vmem:[%s426 + $0x38] sm:$0xf] %v431
                %v433 = vld [vmem:[%s425 + $0x150] sm:$0xf]
                %434 = vst [vmem:[%s426 + $0x54] sm:$0xf] %v433
                %v435 = vld [vmem:[%s425 + $0x1c0] sm:$0xf]
                %436 = vst [vmem:[%s426 + $0x70] sm:$0xf] %v435
                %v437 = vld [vmem:[%s425 + $0x230] sm:$0xf]
                %438 = vst [vmem:[%s426 + $0x8c] sm:$0xf] %v437
                %v439 = vld [vmem:[%s425 + $0x2a0] sm:$0xf]
                %440 = vst [vmem:[%s426 + $0xa8] sm:$0xf] %v439
                %v441 = vld [vmem:[%s425 + $0x310] sm:$0xf]
                %442 = vst [vmem:[%s426 + $0xc4] sm:$0xf] %v441
                %v443 = vld [vmem:[%s425 + $0x380] sm:$0xf]
                %444 = vst [vmem:[%s426 + $0xe0] sm:$0xf] %v443
                %v445 = vld [vmem:[%s425 + $0x3f0] sm:$0xf]
                %446 = vst [vmem:[%s426 + $0xfc] sm:$0xf] %v445
                %v447 = vld [vmem:[%s425 + $0x460] sm:$0xf]
                %448 = vst [vmem:[%s426 + $0x118] sm:$0xf] %v447
                %v449 = vld [vmem:[%s425 + $0x4d0] sm:$0xf]
                %450 = vst [vmem:[%s426 + $0x134] sm:$0xf] %v449
                %v451 = vld [vmem:[%s425 + $0x540] sm:$0xf]
                %452 = vst [vmem:[%s426 + $0x150] sm:$0xf] %v451
                %v453 = vld [vmem:[%s425 + $0x5b0] sm:$0xf]
                %454 = vst [vmem:[%s426 + $0x16c] sm:$0xf] %v453
                %v455 = vld [vmem:[%s425 + $0x620] sm:$0xf]
                %456 = vst [vmem:[%s426 + $0x188] sm:$0xf] %v455
                %v457 = vld [vmem:[%s425 + $0x690] sm:$0xf]
                %458 = vst [vmem:[%s426 + $0x1a4] sm:$0xf] %v457
                %v459 = vld [vmem:[%s425 + $0x700] sm:$0xf]
                %460 = vst [vmem:[%s426 + $0x1c0] sm:$0xf] %v459
                %v461 = vld [vmem:[%s425 + $0x770] sm:$0xf]
                %462 = vst [vmem:[%s426 + $0x1dc] sm:$0xf] %v461
                %v463 = vld [vmem:[%s425 + $0x7e0] sm:$0xf]
                %464 = vst [vmem:[%s426 + $0x1f8] sm:$0xf] %v463
                %v465 = vld [vmem:[%s425 + $0x850] sm:$0xf]
                %466 = vst [vmem:[%s426 + $0x214] sm:$0xf] %v465
                %v467 = vld [vmem:[%s425 + $0x8c0] sm:$0xf]
                %468 = vst [vmem:[%s426 + $0x230] sm:$0xf] %v467
                %v469 = vld [vmem:[%s425 + $0x930] sm:$0xf]
                %470 = vst [vmem:[%s426 + $0x24c] sm:$0xf] %v469
                %v471 = vld [vmem:[%s425 + $0x9a0] sm:$0xf]
                %472 = vst [vmem:[%s426 + $0x268] sm:$0xf] %v471
                %v473 = vld [vmem:[%s425 + $0xa10] sm:$0xf]
                %474 = vst [vmem:[%s426 + $0x284] sm:$0xf] %v473
                %v475 = vld [vmem:[%s425 + $0xa80] sm:$0xf]
                %476 = vst [vmem:[%s426 + $0x2a0] sm:$0xf] %v475
                %v477 = vld [vmem:[%s425 + $0xaf0] sm:$0xf]
                %478 = vst [vmem:[%s426 + $0x2bc] sm:$0xf] %v477
                %v479 = vld [vmem:[%s425 + $0xb60] sm:$0xf]
                %480 = vst [vmem:[%s426 + $0x2d8] sm:$0xf] %v479
                %v481 = vld [vmem:[%s425 + $0xbd0] sm:$0xf]
                %482 = vst [vmem:[%s426 + $0x2f4] sm:$0xf] %v481
                %v483 = vld [vmem:[%s425 + $0xc40] sm:$0xf]
                %484 = vst [vmem:[%s426 + $0x310] sm:$0xf] %v483
                %v485 = vld [vmem:[%s425 + $0xcb0] sm:$0xf]
                %486 = vst [vmem:[%s426 + $0x32c] sm:$0xf] %v485
                %v487 = vld [vmem:[%s425 + $0xd20] sm:$0xf]
                %488 = vst [vmem:[%s426 + $0x348] sm:$0xf] %v487
                %v489 = vld [vmem:[%s425 + $0xd90] sm:$0xf]
                %490 = vst [vmem:[%s426 + $0x364] sm:$0xf] %v489
              $region44: #{_lambda_.9} parent=31 // loop_footer
                %s424 = sadd.s32 1, %s420
              $region45: #{_lambda_.9} parent=31 // loop_footer_branch
                %419 = sbr.rel target = $region41
              $region46: #{_lambda_.9} parent=31 // loop_exit
                _
            $region32: #{_lambda_.9} parent=27 // pred_fallthru
              _
          $region28: #{_lambda_.9} parent=23 // pred_fallthru
            _
          %491 = vnop
        $region24: #{_lambda_.9} parent=19 // pred_fallthru
          _
        // Predicated region
        $region47: #{_lambda_.9} parent=19 // pred_check
          %p492 = pneg %p72
        $region48: #{_lambda_.9} parent=19 // pred_check_branch
          %494 = sbr.rel (%p492) target = $region50
        $region49: #{_lambda_.9} parent=19 // pred_region
          %s495 = smul.u32 112, %s20
          %p496 = scmp.lt.s32.totalorder %s495, 447
          %s497 = scalar_select %p496, %s495, 447
          %s498 = smul.addr %s497, 4
          %s499 = scalar_lea.vmem %s1, %s498
          %s500 = smul.u32 112, %s20
        $region50: #{_lambda_.9} parent=19 // pred_fallthru
          _
      $region20: #{_lambda_.9} parent=5 // pred_fallthru
        _
      %p501 = scmp.le.s32.totalorder 1, %s12
      %p502 = scmp.lt.s32.totalorder %s12, 25
      %p503 = pnand %p501, %p502
      %p504 = pneg %p503
      // Predicated region
      $region51: #{_lambda_.9} parent=5 // pred_check
        _
      $region52: #{_lambda_.9} parent=5 // pred_check_branch
        %506 = sbr.rel (%p503) target = $region54
      $region53: #{_lambda_.9} parent=5 // pred_region
        %s507 = ssub.s32 %s12, 1
        %s508 = sand.u32 %s39, 1
        %s509 = sand.u32 %s39, 1
        %s510 = smul.addr %s509, 896
        %s511 = scalar_lea.vmem [#allocation2], %s510
        // Predicated region
        $region55: #{_lambda_.9} parent=53 // pred_check
          %p512 = pneg %p52
        $region56: #{_lambda_.9} parent=53 // pred_check_branch
          %514 = sbr.rel (%p512) target = $region58
        $region57: #{_lambda_.9} parent=53 // pred_region
          _
        $region58: #{_lambda_.9} parent=53 // pred_fallthru
          _
        %s515 = sand.u32 %s39, 1
        %s516 = sand.u32 %s39, 1
        %s517 = smul.addr %s516, 896
        %s518 = scalar_lea.vmem [#allocation2], %s517
        %p519 = pneg %p52
        %p520 = pneg %p49
        %s521 = smul.u32 112, %s22
        %p522 = scmp.lt.s32.totalorder %s521, 447
        %s523 = scalar_select %p522, %s521, 447
        %s524 = smul.addr %s523, 4
        %s525 = scalar_lea.vmem %s1, %s524
        %p526 = pneg %p78
        %p527 = pneg %p75
        %p528 = pneg %p99
        %p529 = pneg %p96
        %p530 = pneg %p125
        %p531 = pneg %p122
        %s532 = smul.u32 32, %s21
        %p533 = scmp.lt.s32.totalorder %s532, 191
        %s534 = scalar_select %p533, %s532, 191
        %s535 = smul.addr %s534, 8
        %s536 = scalar_lea.vmem %s3, %s535
        %p537 = pneg %p151
        %p538 = pneg %p148
        %p539 = scmp.lt.s32.totalorder %s21, 5
        %s540 = scalar_select %p539, %s21, 5
        %s541 = scalar_lea.vmem %s4, %s540
        %p542 = pneg %p177
        %p543 = pneg %p174
        %p544 = scmp.lt.s32.totalorder %s21, 5
        %s545 = scalar_select %p544, %s21, 5
        %s546 = scalar_lea.vmem %s5, %s545
        %s547 = smul.u32 32, %s21
        %s548 = smul.u32 7, %s22
        %s549 = smul.u32 112, %s22
        %p550 = scmp.lt.s32.totalorder %s549, 447
        %s551 = scalar_select %p550, %s549, 447
        %s552 = smul.addr %s551, 4
        %s553 = scalar_lea.vmem %s1, %s552
        %s554 = smul.u32 112, %s22
        %s555 = smul.u32 32, %s21
        %p556 = scmp.lt.s32.totalorder %s555, 191
        %s557 = scalar_select %p556, %s555, 191
        %s558 = smul.addr %s557, 8
        %s559 = scalar_lea.vmem %s3, %s558
        %s560 = smul.u32 32, %s21
        %p561 = scmp.lt.s32.totalorder %s21, 5
        %s562 = scalar_select %p561, %s21, 5
        %s563 = scalar_lea.vmem %s4, %s562
        %p564 = scmp.lt.s32.totalorder %s21, 5
        %s565 = scalar_select %p564, %s21, 5
        %s566 = scalar_lea.vmem %s5, %s565
        %p568 = scmp.eq.s32.totalorder %s22, 0
        // Predicated region
        $region59: #{_lambda_.9} parent=53 // pred_check
          %p569 = pneg %p568
        $region60: #{_lambda_.9} parent=53 // pred_check_branch
          %571 = sbr.rel (%p569) target = $region62
        $region61: #{_lambda_.9} parent=53 // pred_region
          %vm572 = vcmask 523264
          %573 = vst.msk [vmem:[%s559] sm:$0xff] %vm572, 0.0
          %574 = vst.msk [vmem:[%s559 + $0x8] sm:$0xff] %vm572, 0.0
          %575 = vst.msk [vmem:[%s559 + $0x10] sm:$0xff] %vm572, 0.0
          %576 = vst.msk [vmem:[%s559 + $0x18] sm:$0xff] %vm572, 0.0
          %577 = vst.msk [vmem:[%s559 + $0x20] sm:$0xff] %vm572, 0.0
          %578 = vst.msk [vmem:[%s559 + $0x28] sm:$0xff] %vm572, 0.0
          %579 = vst.msk [vmem:[%s559 + $0x30] sm:$0xff] %vm572, 0.0
          %580 = vst.msk [vmem:[%s559 + $0x38] sm:$0xff] %vm572, 0.0
          %581 = vst.msk [vmem:[%s559 + $0x40] sm:$0xff] %vm572, 0.0
          %582 = vst.msk [vmem:[%s559 + $0x48] sm:$0xff] %vm572, 0.0
          %583 = vst.msk [vmem:[%s559 + $0x50] sm:$0xff] %vm572, 0.0
          %584 = vst.msk [vmem:[%s559 + $0x58] sm:$0xff] %vm572, 0.0
          %585 = vst.msk [vmem:[%s559 + $0x60] sm:$0xff] %vm572, 0.0
          %586 = vst.msk [vmem:[%s559 + $0x68] sm:$0xff] %vm572, 0.0
          %587 = vst.msk [vmem:[%s559 + $0x70] sm:$0xff] %vm572, 0.0
          %588 = vst.msk [vmem:[%s559 + $0x78] sm:$0xff] %vm572, 0.0
          %589 = vst.msk [vmem:[%s559 + $0x80] sm:$0xff] %vm572, 0.0
          %590 = vst.msk [vmem:[%s559 + $0x88] sm:$0xff] %vm572, 0.0
          %591 = vst.msk [vmem:[%s559 + $0x90] sm:$0xff] %vm572, 0.0
          %592 = vst.msk [vmem:[%s559 + $0x98] sm:$0xff] %vm572, 0.0
          %593 = vst.msk [vmem:[%s559 + $0xa0] sm:$0xff] %vm572, 0.0
          %594 = vst.msk [vmem:[%s559 + $0xa8] sm:$0xff] %vm572, 0.0
          %595 = vst.msk [vmem:[%s559 + $0xb0] sm:$0xff] %vm572, 0.0
          %596 = vst.msk [vmem:[%s559 + $0xb8] sm:$0xff] %vm572, 0.0
          %597 = vst.msk [vmem:[%s559 + $0xc0] sm:$0xff] %vm572, 0.0
          %598 = vst.msk [vmem:[%s559 + $0xc8] sm:$0xff] %vm572, 0.0
          %599 = vst.msk [vmem:[%s559 + $0xd0] sm:$0xff] %vm572, 0.0
          %600 = vst.msk [vmem:[%s559 + $0xd8] sm:$0xff] %vm572, 0.0
          %601 = vst.msk [vmem:[%s559 + $0xe0] sm:$0xff] %vm572, 0.0
          %602 = vst.msk [vmem:[%s559 + $0xe8] sm:$0xff] %vm572, 0.0
          %603 = vst.msk [vmem:[%s559 + $0xf0] sm:$0xff] %vm572, 0.0
          %604 = vst.msk [vmem:[%s559 + $0xf8] sm:$0xff] %vm572, 0.0
        $region62: #{_lambda_.9} parent=53 // pred_fallthru
          _
        %v605 = vld [vmem:[%s559] sm:$0xff]
        %v606 = vld [vmem:[%s559 + $0x8] sm:$0xff]
        %v607 = vld [vmem:[%s559 + $0x10] sm:$0xff]
        %v608 = vld [vmem:[%s559 + $0x18] sm:$0xff]
        %v609 = vld [vmem:[%s559 + $0x20] sm:$0xff]
        %v610 = vld [vmem:[%s559 + $0x28] sm:$0xff]
        %v611 = vld [vmem:[%s559 + $0x30] sm:$0xff]
        %v612 = vld [vmem:[%s559 + $0x38] sm:$0xff]
        %v613 = vld [vmem:[%s559 + $0x40] sm:$0xff]
        %v614 = vld [vmem:[%s559 + $0x48] sm:$0xff]
        %v615 = vld [vmem:[%s559 + $0x50] sm:$0xff]
        %v616 = vld [vmem:[%s559 + $0x58] sm:$0xff]
        %v617 = vld [vmem:[%s559 + $0x60] sm:$0xff]
        %v618 = vld [vmem:[%s559 + $0x68] sm:$0xff]
        %v619 = vld [vmem:[%s559 + $0x70] sm:$0xff]
        %v620 = vld [vmem:[%s559 + $0x78] sm:$0xff]
        %v621 = vld [vmem:[%s559 + $0x80] sm:$0xff]
        %v622 = vld [vmem:[%s559 + $0x88] sm:$0xff]
        %v623 = vld [vmem:[%s559 + $0x90] sm:$0xff]
        %v624 = vld [vmem:[%s559 + $0x98] sm:$0xff]
        %v625 = vld [vmem:[%s559 + $0xa0] sm:$0xff]
        %v626 = vld [vmem:[%s559 + $0xa8] sm:$0xff]
        %v627 = vld [vmem:[%s559 + $0xb0] sm:$0xff]
        %v628 = vld [vmem:[%s559 + $0xb8] sm:$0xff]
        %v629 = vld [vmem:[%s559 + $0xc0] sm:$0xff]
        %v630 = vld [vmem:[%s559 + $0xc8] sm:$0xff]
        %v631 = vld [vmem:[%s559 + $0xd0] sm:$0xff]
        %v632 = vld [vmem:[%s559 + $0xd8] sm:$0xff]
        %v633 = vld [vmem:[%s559 + $0xe0] sm:$0xff]
        %v634 = vld [vmem:[%s559 + $0xe8] sm:$0xff]
        %v635 = vld [vmem:[%s559 + $0xf0] sm:$0xff]
        %v636 = vld [vmem:[%s559 + $0xf8] sm:$0xff]
        %v637 = vld [vmem:[%s511] sm:$0xff]
        %v638 = vld [vmem:[%s511 + $0x8] sm:$0xff]
        %v639 = vld [vmem:[%s511 + $0x10] sm:$0xff]
        %v640 = vld [vmem:[%s511 + $0x18] sm:$0xf]
        %v641 = vld [vmem:[%s511 + $0x1c] sm:$0xff]
        %v642 = vld [vmem:[%s511 + $0x24] sm:$0xff]
        %v643 = vld [vmem:[%s511 + $0x2c] sm:$0xff]
        %v644 = vld [vmem:[%s511 + $0x34] sm:$0xf]
        %v645 = vld [vmem:[%s511 + $0x38] sm:$0xff]
        %v646 = vld [vmem:[%s511 + $0x40] sm:$0xff]
        %v647 = vld [vmem:[%s511 + $0x48] sm:$0xff]
        %v648 = vld [vmem:[%s511 + $0x50] sm:$0xf]
        %v649 = vld [vmem:[%s511 + $0x54] sm:$0xff]
        %v650 = vld [vmem:[%s511 + $0x5c] sm:$0xff]
        %v651 = vld [vmem:[%s511 + $0x64] sm:$0xff]
        %v652 = vld [vmem:[%s511 + $0x6c] sm:$0xf]
        %v653 = vld [vmem:[%s511 + $0x70] sm:$0xff]
        %v654 = vld [vmem:[%s511 + $0x78] sm:$0xff]
        %v655 = vld [vmem:[%s511 + $0x80] sm:$0xff]
        %v656 = vld [vmem:[%s511 + $0x88] sm:$0xf]
        %v657 = vld [vmem:[%s511 + $0x8c] sm:$0xff]
        %v658 = vld [vmem:[%s511 + $0x94] sm:$0xff]
        %v659 = vld [vmem:[%s511 + $0x9c] sm:$0xff]
        %v660 = vld [vmem:[%s511 + $0xa4] sm:$0xf]
        %v661 = vld [vmem:[%s511 + $0xa8] sm:$0xff]
        %v662 = vld [vmem:[%s511 + $0xb0] sm:$0xff]
        %v663 = vld [vmem:[%s511 + $0xb8] sm:$0xff]
        %v664 = vld [vmem:[%s511 + $0xc0] sm:$0xf]
        %v665 = vld [vmem:[%s511 + $0xc4] sm:$0xff]
        %v666 = vld [vmem:[%s511 + $0xcc] sm:$0xff]
        %v667 = vld [vmem:[%s511 + $0xd4] sm:$0xff]
        %v668 = vld [vmem:[%s511 + $0xdc] sm:$0xf]
        %v669 = vld [vmem:[%s511 + $0xe0] sm:$0xff]
        %v670 = vld [vmem:[%s511 + $0xe8] sm:$0xff]
        %v671 = vld [vmem:[%s511 + $0xf0] sm:$0xff]
        %v672 = vld [vmem:[%s511 + $0xf8] sm:$0xf]
        %v673 = vld [vmem:[%s511 + $0xfc] sm:$0xff]
        %v674 = vld [vmem:[%s511 + $0x104] sm:$0xff]
        %v675 = vld [vmem:[%s511 + $0x10c] sm:$0xff]
        %v676 = vld [vmem:[%s511 + $0x114] sm:$0xf]
        %v677 = vld [vmem:[%s511 + $0x118] sm:$0xff]
        %v678 = vld [vmem:[%s511 + $0x120] sm:$0xff]
        %v679 = vld [vmem:[%s511 + $0x128] sm:$0xff]
        %v680 = vld [vmem:[%s511 + $0x130] sm:$0xf]
        %v681 = vld [vmem:[%s511 + $0x134] sm:$0xff]
        %v682 = vld [vmem:[%s511 + $0x13c] sm:$0xff]
        %v683 = vld [vmem:[%s511 + $0x144] sm:$0xff]
        %v684 = vld [vmem:[%s511 + $0x14c] sm:$0xf]
        %v685 = vld [vmem:[%s511 + $0x150] sm:$0xff]
        %v686 = vld [vmem:[%s511 + $0x158] sm:$0xff]
        %v687 = vld [vmem:[%s511 + $0x160] sm:$0xff]
        %v688 = vld [vmem:[%s511 + $0x168] sm:$0xf]
        %v689 = vld [vmem:[%s511 + $0x16c] sm:$0xff]
        %v690 = vld [vmem:[%s511 + $0x174] sm:$0xff]
        %v691 = vld [vmem:[%s511 + $0x17c] sm:$0xff]
        %v692 = vld [vmem:[%s511 + $0x184] sm:$0xf]
        %v693 = vld [vmem:[%s511 + $0x188] sm:$0xff]
        %v694 = vld [vmem:[%s511 + $0x190] sm:$0xff]
        %v695 = vld [vmem:[%s511 + $0x198] sm:$0xff]
        %v696 = vld [vmem:[%s511 + $0x1a0] sm:$0xf]
        %v697 = vld [vmem:[%s511 + $0x1a4] sm:$0xff]
        %v698 = vld [vmem:[%s511 + $0x1ac] sm:$0xff]
        %v699 = vld [vmem:[%s511 + $0x1b4] sm:$0xff]
        %v700 = vld [vmem:[%s511 + $0x1bc] sm:$0xf]
        %v701 = vld [vmem:[%s511 + $0x1c0] sm:$0xff]
        %v702 = vld [vmem:[%s511 + $0x1c8] sm:$0xff]
        %v703 = vld [vmem:[%s511 + $0x1d0] sm:$0xff]
        %v704 = vld [vmem:[%s511 + $0x1d8] sm:$0xf]
        %v705 = vld [vmem:[%s511 + $0x1dc] sm:$0xff]
        %v706 = vld [vmem:[%s511 + $0x1e4] sm:$0xff]
        %v707 = vld [vmem:[%s511 + $0x1ec] sm:$0xff]
        %v708 = vld [vmem:[%s511 + $0x1f4] sm:$0xf]
        %v709 = vld [vmem:[%s511 + $0x1f8] sm:$0xff]
        %v710 = vld [vmem:[%s511 + $0x200] sm:$0xff]
        %v711 = vld [vmem:[%s511 + $0x208] sm:$0xff]
        %v712 = vld [vmem:[%s511 + $0x210] sm:$0xf]
        %v713 = vld [vmem:[%s511 + $0x214] sm:$0xff]
        %v714 = vld [vmem:[%s511 + $0x21c] sm:$0xff]
        %v715 = vld [vmem:[%s511 + $0x224] sm:$0xff]
        %v716 = vld [vmem:[%s511 + $0x22c] sm:$0xf]
        %v717 = vld [vmem:[%s511 + $0x230] sm:$0xff]
        %v718 = vld [vmem:[%s511 + $0x238] sm:$0xff]
        %v719 = vld [vmem:[%s511 + $0x240] sm:$0xff]
        %v720 = vld [vmem:[%s511 + $0x248] sm:$0xf]
        %v721 = vld [vmem:[%s511 + $0x24c] sm:$0xff]
        %v722 = vld [vmem:[%s511 + $0x254] sm:$0xff]
        %v723 = vld [vmem:[%s511 + $0x25c] sm:$0xff]
        %v724 = vld [vmem:[%s511 + $0x264] sm:$0xf]
        %v725 = vld [vmem:[%s511 + $0x268] sm:$0xff]
        %v726 = vld [vmem:[%s511 + $0x270] sm:$0xff]
        %v727 = vld [vmem:[%s511 + $0x278] sm:$0xff]
        %v728 = vld [vmem:[%s511 + $0x280] sm:$0xf]
        %v729 = vld [vmem:[%s511 + $0x284] sm:$0xff]
        %v730 = vld [vmem:[%s511 + $0x28c] sm:$0xff]
        %v731 = vld [vmem:[%s511 + $0x294] sm:$0xff]
        %v732 = vld [vmem:[%s511 + $0x29c] sm:$0xf]
        %v733 = vld [vmem:[%s511 + $0x2a0] sm:$0xff]
        %v734 = vld [vmem:[%s511 + $0x2a8] sm:$0xff]
        %v735 = vld [vmem:[%s511 + $0x2b0] sm:$0xff]
        %v736 = vld [vmem:[%s511 + $0x2b8] sm:$0xf]
        %v737 = vld [vmem:[%s511 + $0x2bc] sm:$0xff]
        %v738 = vld [vmem:[%s511 + $0x2c4] sm:$0xff]
        %v739 = vld [vmem:[%s511 + $0x2cc] sm:$0xff]
        %v740 = vld [vmem:[%s511 + $0x2d4] sm:$0xf]
        %v741 = vld [vmem:[%s511 + $0x2d8] sm:$0xff]
        %v742 = vld [vmem:[%s511 + $0x2e0] sm:$0xff]
        %v743 = vld [vmem:[%s511 + $0x2e8] sm:$0xff]
        %v744 = vld [vmem:[%s511 + $0x2f0] sm:$0xf]
        %v745 = vld [vmem:[%s511 + $0x2f4] sm:$0xff]
        %v746 = vld [vmem:[%s511 + $0x2fc] sm:$0xff]
        %v747 = vld [vmem:[%s511 + $0x304] sm:$0xff]
        %v748 = vld [vmem:[%s511 + $0x30c] sm:$0xf]
        %v749 = vld [vmem:[%s511 + $0x310] sm:$0xff]
        %v750 = vld [vmem:[%s511 + $0x318] sm:$0xff]
        %v751 = vld [vmem:[%s511 + $0x320] sm:$0xff]
        %v752 = vld [vmem:[%s511 + $0x328] sm:$0xf]
        %v753 = vld [vmem:[%s511 + $0x32c] sm:$0xff]
        %v754 = vld [vmem:[%s511 + $0x334] sm:$0xff]
        %v755 = vld [vmem:[%s511 + $0x33c] sm:$0xff]
        %v756 = vld [vmem:[%s511 + $0x344] sm:$0xf]
        %v757 = vld [vmem:[%s511 + $0x348] sm:$0xff]
        %v758 = vld [vmem:[%s511 + $0x350] sm:$0xff]
        %v759 = vld [vmem:[%s511 + $0x358] sm:$0xff]
        %v760 = vld [vmem:[%s511 + $0x360] sm:$0xf]
        %v761 = vld [vmem:[%s511 + $0x364] sm:$0xff]
        %v762 = vld [vmem:[%s511 + $0x36c] sm:$0xff]
        %v763 = vld [vmem:[%s511 + $0x374] sm:$0xff]
        %v764 = vld [vmem:[%s511 + $0x37c] sm:$0xf]
        %v765 = vld [vmem:[%s553] sm:$0xf]
        %v766 = vld [vmem:[%s553 + $0x4] sm:$0xf]
        %v767 = vld [vmem:[%s553 + $0x8] sm:$0xf]
        %v768 = vld [vmem:[%s553 + $0xc] sm:$0xf]
        %v769 = vld [vmem:[%s553 + $0x10] sm:$0xf]
        %v770 = vld [vmem:[%s553 + $0x14] sm:$0xf]
        %v771 = vld [vmem:[%s553 + $0x18] sm:$0xf]
        %v772 = vld [vmem:[%s553 + $0x1c] sm:$0xf]
        %v773 = vld [vmem:[%s553 + $0x20] sm:$0xf]
        %v774 = vld [vmem:[%s553 + $0x24] sm:$0xf]
        %v775 = vld [vmem:[%s553 + $0x28] sm:$0xf]
        %v776 = vld [vmem:[%s553 + $0x2c] sm:$0xf]
        %v777 = vld [vmem:[%s553 + $0x30] sm:$0xf]
        %v778 = vld [vmem:[%s553 + $0x34] sm:$0xf]
        %v779 = vld [vmem:[%s553 + $0x38] sm:$0xf]
        %v780 = vld [vmem:[%s553 + $0x3c] sm:$0xf]
        %v781 = vld [vmem:[%s553 + $0x40] sm:$0xf]
        %v782 = vld [vmem:[%s553 + $0x44] sm:$0xf]
        %v783 = vld [vmem:[%s553 + $0x48] sm:$0xf]
        %v784 = vld [vmem:[%s553 + $0x4c] sm:$0xf]
        %v785 = vld [vmem:[%s553 + $0x50] sm:$0xf]
        %v786 = vld [vmem:[%s553 + $0x54] sm:$0xf]
        %v787 = vld [vmem:[%s553 + $0x58] sm:$0xf]
        %v788 = vld [vmem:[%s553 + $0x5c] sm:$0xf]
        %v789 = vld [vmem:[%s553 + $0x60] sm:$0xf]
        %v790 = vld [vmem:[%s553 + $0x64] sm:$0xf]
        %v791 = vld [vmem:[%s553 + $0x68] sm:$0xf]
        %v792 = vld [vmem:[%s553 + $0x6c] sm:$0xf]
        %v793 = vld [vmem:[%s553 + $0x70] sm:$0xf]
        %v794 = vld [vmem:[%s553 + $0x74] sm:$0xf]
        %v795 = vld [vmem:[%s553 + $0x78] sm:$0xf]
        %v796 = vld [vmem:[%s553 + $0x7c] sm:$0xf]
        %v797 = vld [vmem:[%s553 + $0x80] sm:$0xf]
        %v798 = vld [vmem:[%s553 + $0x84] sm:$0xf]
        %v799 = vld [vmem:[%s553 + $0x88] sm:$0xf]
        %v800 = vld [vmem:[%s553 + $0x8c] sm:$0xf]
        %v801 = vld [vmem:[%s553 + $0x90] sm:$0xf]
        %v802 = vld [vmem:[%s553 + $0x94] sm:$0xf]
        %v803 = vld [vmem:[%s553 + $0x98] sm:$0xf]
        %v804 = vld [vmem:[%s553 + $0x9c] sm:$0xf]
        %v805 = vld [vmem:[%s553 + $0xa0] sm:$0xf]
        %v806 = vld [vmem:[%s553 + $0xa4] sm:$0xf]
        %v807 = vld [vmem:[%s553 + $0xa8] sm:$0xf]
        %v808 = vld [vmem:[%s553 + $0xac] sm:$0xf]
        %v809 = vld [vmem:[%s553 + $0xb0] sm:$0xf]
        %v810 = vld [vmem:[%s553 + $0xb4] sm:$0xf]
        %v811 = vld [vmem:[%s553 + $0xb8] sm:$0xf]
        %v812 = vld [vmem:[%s553 + $0xbc] sm:$0xf]
        %v813 = vld [vmem:[%s553 + $0xc0] sm:$0xf]
        %v814 = vld [vmem:[%s553 + $0xc4] sm:$0xf]
        %v815 = vld [vmem:[%s553 + $0xc8] sm:$0xf]
        %v816 = vld [vmem:[%s553 + $0xcc] sm:$0xf]
        %v817 = vld [vmem:[%s553 + $0xd0] sm:$0xf]
        %v818 = vld [vmem:[%s553 + $0xd4] sm:$0xf]
        %v819 = vld [vmem:[%s553 + $0xd8] sm:$0xf]
        %v820 = vld [vmem:[%s553 + $0xdc] sm:$0xf]
        %v821 = vld [vmem:[%s553 + $0xe0] sm:$0xf]
        %v822 = vld [vmem:[%s553 + $0xe4] sm:$0xf]
        %v823 = vld [vmem:[%s553 + $0xe8] sm:$0xf]
        %v824 = vld [vmem:[%s553 + $0xec] sm:$0xf]
        %v825 = vld [vmem:[%s553 + $0xf0] sm:$0xf]
        %v826 = vld [vmem:[%s553 + $0xf4] sm:$0xf]
        %v827 = vld [vmem:[%s553 + $0xf8] sm:$0xf]
        %v828 = vld [vmem:[%s553 + $0xfc] sm:$0xf]
        %v829 = vld [vmem:[%s553 + $0x100] sm:$0xf]
        %v830 = vld [vmem:[%s553 + $0x104] sm:$0xf]
        %v831 = vld [vmem:[%s553 + $0x108] sm:$0xf]
        %v832 = vld [vmem:[%s553 + $0x10c] sm:$0xf]
        %v833 = vld [vmem:[%s553 + $0x110] sm:$0xf]
        %v834 = vld [vmem:[%s553 + $0x114] sm:$0xf]
        %v835 = vld [vmem:[%s553 + $0x118] sm:$0xf]
        %v836 = vld [vmem:[%s553 + $0x11c] sm:$0xf]
        %v837 = vld [vmem:[%s553 + $0x120] sm:$0xf]
        %v838 = vld [vmem:[%s553 + $0x124] sm:$0xf]
        %v839 = vld [vmem:[%s553 + $0x128] sm:$0xf]
        %v840 = vld [vmem:[%s553 + $0x12c] sm:$0xf]
        %v841 = vld [vmem:[%s553 + $0x130] sm:$0xf]
        %v842 = vld [vmem:[%s553 + $0x134] sm:$0xf]
        %v843 = vld [vmem:[%s553 + $0x138] sm:$0xf]
        %v844 = vld [vmem:[%s553 + $0x13c] sm:$0xf]
        %v845 = vld [vmem:[%s553 + $0x140] sm:$0xf]
        %v846 = vld [vmem:[%s553 + $0x144] sm:$0xf]
        %v847 = vld [vmem:[%s553 + $0x148] sm:$0xf]
        %v848 = vld [vmem:[%s553 + $0x14c] sm:$0xf]
        %v849 = vld [vmem:[%s553 + $0x150] sm:$0xf]
        %v850 = vld [vmem:[%s553 + $0x154] sm:$0xf]
        %v851 = vld [vmem:[%s553 + $0x158] sm:$0xf]
        %v852 = vld [vmem:[%s553 + $0x15c] sm:$0xf]
        %v853 = vld [vmem:[%s553 + $0x160] sm:$0xf]
        %v854 = vld [vmem:[%s553 + $0x164] sm:$0xf]
        %v855 = vld [vmem:[%s553 + $0x168] sm:$0xf]
        %v856 = vld [vmem:[%s553 + $0x16c] sm:$0xf]
        %v857 = vld [vmem:[%s553 + $0x170] sm:$0xf]
        %v858 = vld [vmem:[%s553 + $0x174] sm:$0xf]
        %v859 = vld [vmem:[%s553 + $0x178] sm:$0xf]
        %v860 = vld [vmem:[%s553 + $0x17c] sm:$0xf]
        %v861 = vld [vmem:[%s553 + $0x180] sm:$0xf]
        %v862 = vld [vmem:[%s553 + $0x184] sm:$0xf]
        %v863 = vld [vmem:[%s553 + $0x188] sm:$0xf]
        %v864 = vld [vmem:[%s553 + $0x18c] sm:$0xf]
        %v865 = vld [vmem:[%s553 + $0x190] sm:$0xf]
        %v866 = vld [vmem:[%s553 + $0x194] sm:$0xf]
        %v867 = vld [vmem:[%s553 + $0x198] sm:$0xf]
        %v868 = vld [vmem:[%s553 + $0x19c] sm:$0xf]
        %v869 = vld [vmem:[%s553 + $0x1a0] sm:$0xf]
        %v870 = vld [vmem:[%s553 + $0x1a4] sm:$0xf]
        %v871 = vld [vmem:[%s553 + $0x1a8] sm:$0xf]
        %v872 = vld [vmem:[%s553 + $0x1ac] sm:$0xf]
        %v873 = vld [vmem:[%s553 + $0x1b0] sm:$0xf]
        %v874 = vld [vmem:[%s553 + $0x1b4] sm:$0xf]
        %v875 = vld [vmem:[%s553 + $0x1b8] sm:$0xf]
        %v876 = vld [vmem:[%s553 + $0x1bc] sm:$0xf]
        %v1005 = vunpack.c.l.b16 %v637
        %v1006 = vunpack.c.h.b16 %v637
        %v1007 = vunpack.c.l.b16 %v638
        %v1008 = vunpack.c.h.b16 %v638
        %v1009 = vunpack.c.l.b16 %v639
        %v1010 = vunpack.c.h.b16 %v639
        %v1011 = vunpack.c.l.b16 %v640
        %v1012 = vunpack.c.l.b16 %v641
        %v1013 = vunpack.c.h.b16 %v641
        %v1014 = vunpack.c.l.b16 %v642
        %v1015 = vunpack.c.h.b16 %v642
        %v1016 = vunpack.c.l.b16 %v643
        %v1017 = vunpack.c.h.b16 %v643
        %v1018 = vunpack.c.l.b16 %v644
        %v1019 = vunpack.c.l.b16 %v645
        %v1020 = vunpack.c.h.b16 %v645
        %v1021 = vunpack.c.l.b16 %v646
        %v1022 = vunpack.c.h.b16 %v646
        %v1023 = vunpack.c.l.b16 %v647
        %v1024 = vunpack.c.h.b16 %v647
        %v1025 = vunpack.c.l.b16 %v648
        %v1026 = vunpack.c.l.b16 %v649
        %v1027 = vunpack.c.h.b16 %v649
        %v1028 = vunpack.c.l.b16 %v650
        %v1029 = vunpack.c.h.b16 %v650
        %v1030 = vunpack.c.l.b16 %v651
        %v1031 = vunpack.c.h.b16 %v651
        %v1032 = vunpack.c.l.b16 %v652
        %v1033 = vunpack.c.l.b16 %v653
        %v1034 = vunpack.c.h.b16 %v653
        %v1035 = vunpack.c.l.b16 %v654
        %v1036 = vunpack.c.h.b16 %v654
        %v1037 = vunpack.c.l.b16 %v655
        %v1038 = vunpack.c.h.b16 %v655
        %v1039 = vunpack.c.l.b16 %v656
        %v1040 = vunpack.c.l.b16 %v657
        %v1041 = vunpack.c.h.b16 %v657
        %v1042 = vunpack.c.l.b16 %v658
        %v1043 = vunpack.c.h.b16 %v658
        %v1044 = vunpack.c.l.b16 %v659
        %v1045 = vunpack.c.h.b16 %v659
        %v1046 = vunpack.c.l.b16 %v660
        %v1047 = vunpack.c.l.b16 %v661
        %v1048 = vunpack.c.h.b16 %v661
        %v1049 = vunpack.c.l.b16 %v662
        %v1050 = vunpack.c.h.b16 %v662
        %v1051 = vunpack.c.l.b16 %v663
        %v1052 = vunpack.c.h.b16 %v663
        %v1053 = vunpack.c.l.b16 %v664
        %v1054 = vunpack.c.l.b16 %v665
        %v1055 = vunpack.c.h.b16 %v665
        %v1056 = vunpack.c.l.b16 %v666
        %v1057 = vunpack.c.h.b16 %v666
        %v1058 = vunpack.c.l.b16 %v667
        %v1059 = vunpack.c.h.b16 %v667
        %v1060 = vunpack.c.l.b16 %v668
        %v1061 = vunpack.c.l.b16 %v669
        %v1062 = vunpack.c.h.b16 %v669
        %v1063 = vunpack.c.l.b16 %v670
        %v1064 = vunpack.c.h.b16 %v670
        %v1065 = vunpack.c.l.b16 %v671
        %v1066 = vunpack.c.h.b16 %v671
        %v1067 = vunpack.c.l.b16 %v672
        %v1068 = vunpack.c.l.b16 %v673
        %v1069 = vunpack.c.h.b16 %v673
        %v1070 = vunpack.c.l.b16 %v674
        %v1071 = vunpack.c.h.b16 %v674
        %v1072 = vunpack.c.l.b16 %v675
        %v1073 = vunpack.c.h.b16 %v675
        %v1074 = vunpack.c.l.b16 %v676
        %v1075 = vunpack.c.l.b16 %v677
        %v1076 = vunpack.c.h.b16 %v677
        %v1077 = vunpack.c.l.b16 %v678
        %v1078 = vunpack.c.h.b16 %v678
        %v1079 = vunpack.c.l.b16 %v679
        %v1080 = vunpack.c.h.b16 %v679
        %v1081 = vunpack.c.l.b16 %v680
        %v1082 = vunpack.c.l.b16 %v681
        %v1083 = vunpack.c.h.b16 %v681
        %v1084 = vunpack.c.l.b16 %v682
        %v1085 = vunpack.c.h.b16 %v682
        %v1086 = vunpack.c.l.b16 %v683
        %v1087 = vunpack.c.h.b16 %v683
        %v1088 = vunpack.c.l.b16 %v684
        %v1089 = vunpack.c.l.b16 %v685
        %v1090 = vunpack.c.h.b16 %v685
        %v1091 = vunpack.c.l.b16 %v686
        %v1092 = vunpack.c.h.b16 %v686
        %v1093 = vunpack.c.l.b16 %v687
        %v1094 = vunpack.c.h.b16 %v687
        %v1095 = vunpack.c.l.b16 %v688
        %v1096 = vunpack.c.l.b16 %v689
        %v1097 = vunpack.c.h.b16 %v689
        %v1098 = vunpack.c.l.b16 %v690
        %v1099 = vunpack.c.h.b16 %v690
        %v1100 = vunpack.c.l.b16 %v691
        %v1101 = vunpack.c.h.b16 %v691
        %v1102 = vunpack.c.l.b16 %v692
        %v1103 = vunpack.c.l.b16 %v693
        %v1104 = vunpack.c.h.b16 %v693
        %v1105 = vunpack.c.l.b16 %v694
        %v1106 = vunpack.c.h.b16 %v694
        %v1107 = vunpack.c.l.b16 %v695
        %v1108 = vunpack.c.h.b16 %v695
        %v1109 = vunpack.c.l.b16 %v696
        %v1110 = vunpack.c.l.b16 %v697
        %v1111 = vunpack.c.h.b16 %v697
        %v1112 = vunpack.c.l.b16 %v698
        %v1113 = vunpack.c.h.b16 %v698
        %v1114 = vunpack.c.l.b16 %v699
        %v1115 = vunpack.c.h.b16 %v699
        %v1116 = vunpack.c.l.b16 %v700
        %v1117 = vunpack.c.l.b16 %v701
        %v1118 = vunpack.c.h.b16 %v701
        %v1119 = vunpack.c.l.b16 %v702
        %v1120 = vunpack.c.h.b16 %v702
        %v1121 = vunpack.c.l.b16 %v703
        %v1122 = vunpack.c.h.b16 %v703
        %v1123 = vunpack.c.l.b16 %v704
        %v1124 = vunpack.c.l.b16 %v705
        %v1125 = vunpack.c.h.b16 %v705
        %v1126 = vunpack.c.l.b16 %v706
        %v1127 = vunpack.c.h.b16 %v706
        %v1128 = vunpack.c.l.b16 %v707
        %v1129 = vunpack.c.h.b16 %v707
        %v1130 = vunpack.c.l.b16 %v708
        %v1131 = vunpack.c.l.b16 %v709
        %v1132 = vunpack.c.h.b16 %v709
        %v1133 = vunpack.c.l.b16 %v710
        %v1134 = vunpack.c.h.b16 %v710
        %v1135 = vunpack.c.l.b16 %v711
        %v1136 = vunpack.c.h.b16 %v711
        %v1137 = vunpack.c.l.b16 %v712
        %v1138 = vunpack.c.l.b16 %v713
        %v1139 = vunpack.c.h.b16 %v713
        %v1140 = vunpack.c.l.b16 %v714
        %v1141 = vunpack.c.h.b16 %v714
        %v1142 = vunpack.c.l.b16 %v715
        %v1143 = vunpack.c.h.b16 %v715
        %v1144 = vunpack.c.l.b16 %v716
        %v1145 = vunpack.c.l.b16 %v717
        %v1146 = vunpack.c.h.b16 %v717
        %v1147 = vunpack.c.l.b16 %v718
        %v1148 = vunpack.c.h.b16 %v718
        %v1149 = vunpack.c.l.b16 %v719
        %v1150 = vunpack.c.h.b16 %v719
        %v1151 = vunpack.c.l.b16 %v720
        %v1152 = vunpack.c.l.b16 %v721
        %v1153 = vunpack.c.h.b16 %v721
        %v1154 = vunpack.c.l.b16 %v722
        %v1155 = vunpack.c.h.b16 %v722
        %v1156 = vunpack.c.l.b16 %v723
        %v1157 = vunpack.c.h.b16 %v723
        %v1158 = vunpack.c.l.b16 %v724
        %v1159 = vunpack.c.l.b16 %v725
        %v1160 = vunpack.c.h.b16 %v725
        %v1161 = vunpack.c.l.b16 %v726
        %v1162 = vunpack.c.h.b16 %v726
        %v1163 = vunpack.c.l.b16 %v727
        %v1164 = vunpack.c.h.b16 %v727
        %v1165 = vunpack.c.l.b16 %v728
        %v1166 = vunpack.c.l.b16 %v729
        %v1167 = vunpack.c.h.b16 %v729
        %v1168 = vunpack.c.l.b16 %v730
        %v1169 = vunpack.c.h.b16 %v730
        %v1170 = vunpack.c.l.b16 %v731
        %v1171 = vunpack.c.h.b16 %v731
        %v1172 = vunpack.c.l.b16 %v732
        %v1173 = vunpack.c.l.b16 %v733
        %v1174 = vunpack.c.h.b16 %v733
        %v1175 = vunpack.c.l.b16 %v734
        %v1176 = vunpack.c.h.b16 %v734
        %v1177 = vunpack.c.l.b16 %v735
        %v1178 = vunpack.c.h.b16 %v735
        %v1179 = vunpack.c.l.b16 %v736
        %v1180 = vunpack.c.l.b16 %v737
        %v1181 = vunpack.c.h.b16 %v737
        %v1182 = vunpack.c.l.b16 %v738
        %v1183 = vunpack.c.h.b16 %v738
        %v1184 = vunpack.c.l.b16 %v739
        %v1185 = vunpack.c.h.b16 %v739
        %v1186 = vunpack.c.l.b16 %v740
        %v1187 = vunpack.c.l.b16 %v741
        %v1188 = vunpack.c.h.b16 %v741
        %v1189 = vunpack.c.l.b16 %v742
        %v1190 = vunpack.c.h.b16 %v742
        %v1191 = vunpack.c.l.b16 %v743
        %v1192 = vunpack.c.h.b16 %v743
        %v1193 = vunpack.c.l.b16 %v744
        %v1194 = vunpack.c.l.b16 %v745
        %v1195 = vunpack.c.h.b16 %v745
        %v1196 = vunpack.c.l.b16 %v746
        %v1197 = vunpack.c.h.b16 %v746
        %v1198 = vunpack.c.l.b16 %v747
        %v1199 = vunpack.c.h.b16 %v747
        %v1200 = vunpack.c.l.b16 %v748
        %v1201 = vunpack.c.l.b16 %v749
        %v1202 = vunpack.c.h.b16 %v749
        %v1203 = vunpack.c.l.b16 %v750
        %v1204 = vunpack.c.h.b16 %v750
        %v1205 = vunpack.c.l.b16 %v751
        %v1206 = vunpack.c.h.b16 %v751
        %v1207 = vunpack.c.l.b16 %v752
        %v1208 = vunpack.c.l.b16 %v753
        %v1209 = vunpack.c.h.b16 %v753
        %v1210 = vunpack.c.l.b16 %v754
        %v1211 = vunpack.c.h.b16 %v754
        %v1212 = vunpack.c.l.b16 %v755
        %v1213 = vunpack.c.h.b16 %v755
        %v1214 = vunpack.c.l.b16 %v756
        %v1215 = vunpack.c.l.b16 %v757
        %v1216 = vunpack.c.h.b16 %v757
        %v1217 = vunpack.c.l.b16 %v758
        %v1218 = vunpack.c.h.b16 %v758
        %v1219 = vunpack.c.l.b16 %v759
        %v1220 = vunpack.c.h.b16 %v759
        %v1221 = vunpack.c.l.b16 %v760
        %v1222 = vunpack.c.l.b16 %v761
        %v1223 = vunpack.c.h.b16 %v761
        %v1224 = vunpack.c.l.b16 %v762
        %v1225 = vunpack.c.h.b16 %v762
        %v1226 = vunpack.c.l.b16 %v763
        %v1227 = vunpack.c.h.b16 %v763
        %v1228 = vunpack.c.l.b16 %v764
        %v1229 = vpack.c.b16 %v1012, %v1005
        %v1230 = vpack.c.b16 %v1013, %v1006
        %v1231 = vpack.c.b16 %v1014, %v1007
        %v1232 = vpack.c.b16 %v1015, %v1008
        %v1233 = vpack.c.b16 %v1016, %v1009
        %v1234 = vpack.c.b16 %v1017, %v1010
        %v1235 = vpack.c.b16 %v1018, %v1011
        %v1236 = vpack.c.b16 %v1026, %v1019
        %v1237 = vpack.c.b16 %v1027, %v1020
        %v1238 = vpack.c.b16 %v1028, %v1021
        %v1239 = vpack.c.b16 %v1029, %v1022
        %v1240 = vpack.c.b16 %v1030, %v1023
        %v1241 = vpack.c.b16 %v1031, %v1024
        %v1242 = vpack.c.b16 %v1032, %v1025
        %v1243 = vpack.c.b16 %v1040, %v1033
        %v1244 = vpack.c.b16 %v1041, %v1034
        %v1245 = vpack.c.b16 %v1042, %v1035
        %v1246 = vpack.c.b16 %v1043, %v1036
        %v1247 = vpack.c.b16 %v1044, %v1037
        %v1248 = vpack.c.b16 %v1045, %v1038
        %v1249 = vpack.c.b16 %v1046, %v1039
        %v1250 = vpack.c.b16 %v1054, %v1047
        %v1251 = vpack.c.b16 %v1055, %v1048
        %v1252 = vpack.c.b16 %v1056, %v1049
        %v1253 = vpack.c.b16 %v1057, %v1050
        %v1254 = vpack.c.b16 %v1058, %v1051
        %v1255 = vpack.c.b16 %v1059, %v1052
        %v1256 = vpack.c.b16 %v1060, %v1053
        %v1257 = vpack.c.b16 %v1068, %v1061
        %v1258 = vpack.c.b16 %v1069, %v1062
        %v1259 = vpack.c.b16 %v1070, %v1063
        %v1260 = vpack.c.b16 %v1071, %v1064
        %v1261 = vpack.c.b16 %v1072, %v1065
        %v1262 = vpack.c.b16 %v1073, %v1066
        %v1263 = vpack.c.b16 %v1074, %v1067
        %v1264 = vpack.c.b16 %v1082, %v1075
        %v1265 = vpack.c.b16 %v1083, %v1076
        %v1266 = vpack.c.b16 %v1084, %v1077
        %v1267 = vpack.c.b16 %v1085, %v1078
        %v1268 = vpack.c.b16 %v1086, %v1079
        %v1269 = vpack.c.b16 %v1087, %v1080
        %v1270 = vpack.c.b16 %v1088, %v1081
        %v1271 = vpack.c.b16 %v1096, %v1089
        %v1272 = vpack.c.b16 %v1097, %v1090
        %v1273 = vpack.c.b16 %v1098, %v1091
        %v1274 = vpack.c.b16 %v1099, %v1092
        %v1275 = vpack.c.b16 %v1100, %v1093
        %v1276 = vpack.c.b16 %v1101, %v1094
        %v1277 = vpack.c.b16 %v1102, %v1095
        %v1278 = vpack.c.b16 %v1110, %v1103
        %v1279 = vpack.c.b16 %v1111, %v1104
        %v1280 = vpack.c.b16 %v1112, %v1105
        %v1281 = vpack.c.b16 %v1113, %v1106
        %v1282 = vpack.c.b16 %v1114, %v1107
        %v1283 = vpack.c.b16 %v1115, %v1108
        %v1284 = vpack.c.b16 %v1116, %v1109
        %v1285 = vpack.c.b16 %v1124, %v1117
        %v1286 = vpack.c.b16 %v1125, %v1118
        %v1287 = vpack.c.b16 %v1126, %v1119
        %v1288 = vpack.c.b16 %v1127, %v1120
        %v1289 = vpack.c.b16 %v1128, %v1121
        %v1290 = vpack.c.b16 %v1129, %v1122
        %v1291 = vpack.c.b16 %v1130, %v1123
        %v1292 = vpack.c.b16 %v1138, %v1131
        %v1293 = vpack.c.b16 %v1139, %v1132
        %v1294 = vpack.c.b16 %v1140, %v1133
        %v1295 = vpack.c.b16 %v1141, %v1134
        %v1296 = vpack.c.b16 %v1142, %v1135
        %v1297 = vpack.c.b16 %v1143, %v1136
        %v1298 = vpack.c.b16 %v1144, %v1137
        %v1299 = vpack.c.b16 %v1152, %v1145
        %v1300 = vpack.c.b16 %v1153, %v1146
        %v1301 = vpack.c.b16 %v1154, %v1147
        %v1302 = vpack.c.b16 %v1155, %v1148
        %v1303 = vpack.c.b16 %v1156, %v1149
        %v1304 = vpack.c.b16 %v1157, %v1150
        %v1305 = vpack.c.b16 %v1158, %v1151
        %v1306 = vpack.c.b16 %v1166, %v1159
        %v1307 = vpack.c.b16 %v1167, %v1160
        %v1308 = vpack.c.b16 %v1168, %v1161
        %v1309 = vpack.c.b16 %v1169, %v1162
        %v1310 = vpack.c.b16 %v1170, %v1163
        %v1311 = vpack.c.b16 %v1171, %v1164
        %v1312 = vpack.c.b16 %v1172, %v1165
        %v1313 = vpack.c.b16 %v1180, %v1173
        %v1314 = vpack.c.b16 %v1181, %v1174
        %v1315 = vpack.c.b16 %v1182, %v1175
        %v1316 = vpack.c.b16 %v1183, %v1176
        %v1317 = vpack.c.b16 %v1184, %v1177
        %v1318 = vpack.c.b16 %v1185, %v1178
        %v1319 = vpack.c.b16 %v1186, %v1179
        %v1320 = vpack.c.b16 %v1194, %v1187
        %v1321 = vpack.c.b16 %v1195, %v1188
        %v1322 = vpack.c.b16 %v1196, %v1189
        %v1323 = vpack.c.b16 %v1197, %v1190
        %v1324 = vpack.c.b16 %v1198, %v1191
        %v1325 = vpack.c.b16 %v1199, %v1192
        %v1326 = vpack.c.b16 %v1200, %v1193
        %v1327 = vpack.c.b16 %v1208, %v1201
        %v1328 = vpack.c.b16 %v1209, %v1202
        %v1329 = vpack.c.b16 %v1210, %v1203
        %v1330 = vpack.c.b16 %v1211, %v1204
        %v1331 = vpack.c.b16 %v1212, %v1205
        %v1332 = vpack.c.b16 %v1213, %v1206
        %v1333 = vpack.c.b16 %v1214, %v1207
        %v1334 = vpack.c.b16 %v1222, %v1215
        %v1335 = vpack.c.b16 %v1223, %v1216
        %v1336 = vpack.c.b16 %v1224, %v1217
        %v1337 = vpack.c.b16 %v1225, %v1218
        %v1338 = vpack.c.b16 %v1226, %v1219
        %v1339 = vpack.c.b16 %v1227, %v1220
        %v1340 = vpack.c.b16 %v1228, %v1221
        %v1565 = vunpack.c.l.b16 %v765
        %v1566 = vunpack.c.l.b16 %v766
        %v1567 = vunpack.c.l.b16 %v767
        %v1568 = vunpack.c.l.b16 %v768
        %v1569 = vunpack.c.l.b16 %v769
        %v1570 = vunpack.c.l.b16 %v770
        %v1571 = vunpack.c.l.b16 %v771
        %v1572 = vunpack.c.l.b16 %v772
        %v1573 = vunpack.c.l.b16 %v773
        %v1574 = vunpack.c.l.b16 %v774
        %v1575 = vunpack.c.l.b16 %v775
        %v1576 = vunpack.c.l.b16 %v776
        %v1577 = vunpack.c.l.b16 %v777
        %v1578 = vunpack.c.l.b16 %v778
        %v1579 = vunpack.c.l.b16 %v779
        %v1580 = vunpack.c.l.b16 %v780
        %v1581 = vunpack.c.l.b16 %v781
        %v1582 = vunpack.c.l.b16 %v782
        %v1583 = vunpack.c.l.b16 %v783
        %v1584 = vunpack.c.l.b16 %v784
        %v1585 = vunpack.c.l.b16 %v785
        %v1586 = vunpack.c.l.b16 %v786
        %v1587 = vunpack.c.l.b16 %v787
        %v1588 = vunpack.c.l.b16 %v788
        %v1589 = vunpack.c.l.b16 %v789
        %v1590 = vunpack.c.l.b16 %v790
        %v1591 = vunpack.c.l.b16 %v791
        %v1592 = vunpack.c.l.b16 %v792
        %v1593 = vunpack.c.l.b16 %v793
        %v1594 = vunpack.c.l.b16 %v794
        %v1595 = vunpack.c.l.b16 %v795
        %v1596 = vunpack.c.l.b16 %v796
        %v1597 = vunpack.c.l.b16 %v797
        %v1598 = vunpack.c.l.b16 %v798
        %v1599 = vunpack.c.l.b16 %v799
        %v1600 = vunpack.c.l.b16 %v800
        %v1601 = vunpack.c.l.b16 %v801
        %v1602 = vunpack.c.l.b16 %v802
        %v1603 = vunpack.c.l.b16 %v803
        %v1604 = vunpack.c.l.b16 %v804
        %v1605 = vunpack.c.l.b16 %v805
        %v1606 = vunpack.c.l.b16 %v806
        %v1607 = vunpack.c.l.b16 %v807
        %v1608 = vunpack.c.l.b16 %v808
        %v1609 = vunpack.c.l.b16 %v809
        %v1610 = vunpack.c.l.b16 %v810
        %v1611 = vunpack.c.l.b16 %v811
        %v1612 = vunpack.c.l.b16 %v812
        %v1613 = vunpack.c.l.b16 %v813
        %v1614 = vunpack.c.l.b16 %v814
        %v1615 = vunpack.c.l.b16 %v815
        %v1616 = vunpack.c.l.b16 %v816
        %v1617 = vunpack.c.l.b16 %v817
        %v1618 = vunpack.c.l.b16 %v818
        %v1619 = vunpack.c.l.b16 %v819
        %v1620 = vunpack.c.l.b16 %v820
        %v1621 = vunpack.c.l.b16 %v821
        %v1622 = vunpack.c.l.b16 %v822
        %v1623 = vunpack.c.l.b16 %v823
        %v1624 = vunpack.c.l.b16 %v824
        %v1625 = vunpack.c.l.b16 %v825
        %v1626 = vunpack.c.l.b16 %v826
        %v1627 = vunpack.c.l.b16 %v827
        %v1628 = vunpack.c.l.b16 %v828
        %v1629 = vunpack.c.l.b16 %v829
        %v1630 = vunpack.c.l.b16 %v830
        %v1631 = vunpack.c.l.b16 %v831
        %v1632 = vunpack.c.l.b16 %v832
        %v1633 = vunpack.c.l.b16 %v833
        %v1634 = vunpack.c.l.b16 %v834
        %v1635 = vunpack.c.l.b16 %v835
        %v1636 = vunpack.c.l.b16 %v836
        %v1637 = vunpack.c.l.b16 %v837
        %v1638 = vunpack.c.l.b16 %v838
        %v1639 = vunpack.c.l.b16 %v839
        %v1640 = vunpack.c.l.b16 %v840
        %v1641 = vunpack.c.l.b16 %v841
        %v1642 = vunpack.c.l.b16 %v842
        %v1643 = vunpack.c.l.b16 %v843
        %v1644 = vunpack.c.l.b16 %v844
        %v1645 = vunpack.c.l.b16 %v845
        %v1646 = vunpack.c.l.b16 %v846
        %v1647 = vunpack.c.l.b16 %v847
        %v1648 = vunpack.c.l.b16 %v848
        %v1649 = vunpack.c.l.b16 %v849
        %v1650 = vunpack.c.l.b16 %v850
        %v1651 = vunpack.c.l.b16 %v851
        %v1652 = vunpack.c.l.b16 %v852
        %v1653 = vunpack.c.l.b16 %v853
        %v1654 = vunpack.c.l.b16 %v854
        %v1655 = vunpack.c.l.b16 %v855
        %v1656 = vunpack.c.l.b16 %v856
        %v1657 = vunpack.c.l.b16 %v857
        %v1658 = vunpack.c.l.b16 %v858
        %v1659 = vunpack.c.l.b16 %v859
        %v1660 = vunpack.c.l.b16 %v860
        %v1661 = vunpack.c.l.b16 %v861
        %v1662 = vunpack.c.l.b16 %v862
        %v1663 = vunpack.c.l.b16 %v863
        %v1664 = vunpack.c.l.b16 %v864
        %v1665 = vunpack.c.l.b16 %v865
        %v1666 = vunpack.c.l.b16 %v866
        %v1667 = vunpack.c.l.b16 %v867
        %v1668 = vunpack.c.l.b16 %v868
        %v1669 = vunpack.c.l.b16 %v869
        %v1670 = vunpack.c.l.b16 %v870
        %v1671 = vunpack.c.l.b16 %v871
        %v1672 = vunpack.c.l.b16 %v872
        %v1673 = vunpack.c.l.b16 %v873
        %v1674 = vunpack.c.l.b16 %v874
        %v1675 = vunpack.c.l.b16 %v875
        %v1676 = vunpack.c.l.b16 %v876
        %v1677 = vpack.c.b16 %v1566, %v1565
        %v1678 = vpack.c.b16 %v1568, %v1567
        %v1679 = vpack.c.b16 %v1570, %v1569
        %v1680 = vpack.c.b16 %v1572, %v1571
        %v1681 = vpack.c.b16 %v1574, %v1573
        %v1682 = vpack.c.b16 %v1576, %v1575
        %v1683 = vpack.c.b16 %v1578, %v1577
        %v1684 = vpack.c.b16 %v1580, %v1579
        %v1685 = vpack.c.b16 %v1582, %v1581
        %v1686 = vpack.c.b16 %v1584, %v1583
        %v1687 = vpack.c.b16 %v1586, %v1585
        %v1688 = vpack.c.b16 %v1588, %v1587
        %v1689 = vpack.c.b16 %v1590, %v1589
        %v1690 = vpack.c.b16 %v1592, %v1591
        %v1691 = vpack.c.b16 %v1594, %v1593
        %v1692 = vpack.c.b16 %v1596, %v1595
        %v1693 = vpack.c.b16 %v1598, %v1597
        %v1694 = vpack.c.b16 %v1600, %v1599
        %v1695 = vpack.c.b16 %v1602, %v1601
        %v1696 = vpack.c.b16 %v1604, %v1603
        %v1697 = vpack.c.b16 %v1606, %v1605
        %v1698 = vpack.c.b16 %v1608, %v1607
        %v1699 = vpack.c.b16 %v1610, %v1609
        %v1700 = vpack.c.b16 %v1612, %v1611
        %v1701 = vpack.c.b16 %v1614, %v1613
        %v1702 = vpack.c.b16 %v1616, %v1615
        %v1703 = vpack.c.b16 %v1618, %v1617
        %v1704 = vpack.c.b16 %v1620, %v1619
        %v1705 = vpack.c.b16 %v1622, %v1621
        %v1706 = vpack.c.b16 %v1624, %v1623
        %v1707 = vpack.c.b16 %v1626, %v1625
        %v1708 = vpack.c.b16 %v1628, %v1627
        %v1709 = vpack.c.b16 %v1630, %v1629
        %v1710 = vpack.c.b16 %v1632, %v1631
        %v1711 = vpack.c.b16 %v1634, %v1633
        %v1712 = vpack.c.b16 %v1636, %v1635
        %v1713 = vpack.c.b16 %v1638, %v1637
        %v1714 = vpack.c.b16 %v1640, %v1639
        %v1715 = vpack.c.b16 %v1642, %v1641
        %v1716 = vpack.c.b16 %v1644, %v1643
        %v1717 = vpack.c.b16 %v1646, %v1645
        %v1718 = vpack.c.b16 %v1648, %v1647
        %v1719 = vpack.c.b16 %v1650, %v1649
        %v1720 = vpack.c.b16 %v1652, %v1651
        %v1721 = vpack.c.b16 %v1654, %v1653
        %v1722 = vpack.c.b16 %v1656, %v1655
        %v1723 = vpack.c.b16 %v1658, %v1657
        %v1724 = vpack.c.b16 %v1660, %v1659
        %v1725 = vpack.c.b16 %v1662, %v1661
        %v1726 = vpack.c.b16 %v1664, %v1663
        %v1727 = vpack.c.b16 %v1666, %v1665
        %v1728 = vpack.c.b16 %v1668, %v1667
        %v1729 = vpack.c.b16 %v1670, %v1669
        %v1730 = vpack.c.b16 %v1672, %v1671
        %v1731 = vpack.c.b16 %v1674, %v1673
        %v1732 = vpack.c.b16 %v1676, %v1675
        %1789 = vmatprep.subr.bf16.mxu0 0
        %1790 = vmatpush1.bf16.msra.mxu0 %v1677
        %1791 = vmatprep.subr.bf16.mxu0 0
        %1792 = vmatpush1.bf16.msra.mxu0 %v1678
        %1793 = vmatprep.subr.bf16.mxu0 0
        %1794 = vmatpush1.bf16.msra.mxu0 %v1679
        %1795 = vmatprep.subr.bf16.mxu0 0
        %1796 = vmatpush1.bf16.msra.mxu0 %v1680
        %1797 = vmatprep.subr.bf16.mxu0 0
        %1798 = vmatpush1.bf16.msra.mxu0 %v1681
        %1799 = vmatprep.subr.bf16.mxu0 0
        %1800 = vmatpush1.bf16.msra.mxu0 %v1682
        %1801 = vmatprep.subr.bf16.mxu0 0
        %1802 = vmatpush1.bf16.msra.mxu0 %v1683
        %1803 = vmatprep.subr.bf16.mxu0 0
        %1804 = vmatpush1.bf16.msra.mxu0 %v1684
        %1805 = vmatprep.subr.bf16.mxu0 0
        %1806 = vmatpush1.bf16.msra.mxu0 %v1685
        %1807 = vmatprep.subr.bf16.mxu0 0
        %1808 = vmatpush1.bf16.msra.mxu0 %v1686
        %1809 = vmatprep.subr.bf16.mxu0 0
        %1810 = vmatpush1.bf16.msra.mxu0 %v1687
        %1811 = vmatprep.subr.bf16.mxu0 0
        %1812 = vmatpush1.bf16.msra.mxu0 %v1688
        %1813 = vmatprep.subr.bf16.mxu0 0
        %1814 = vmatpush1.bf16.msra.mxu0 %v1689
        %1815 = vmatprep.subr.bf16.mxu0 0
        %1816 = vmatpush1.bf16.msra.mxu0 %v1690
        %1817 = vmatprep.subr.bf16.mxu0 0
        %1818 = vmatpush1.bf16.msra.mxu0 %v1691
        %1819 = vmatprep.subr.bf16.mxu0 0
        %1820 = vmatpush1.bf16.msra.mxu0 %v1692
        %1821 = vmatprep.mubr.bf16.mxu0 %v1230
        %1822 = vmatmul.mubr.bf16.gmra.mrb[0].mxu0 %v1229
        %v1823 = vpop.f32.mrb[0].mxu0
        %v1824 = vadd.f32 0.0, %v1823
        %v1825 = vpop.f32.mrb[0].mxu0
        %v1826 = vpop.f32.mrb[0].mxu0
        %v1827 = vadd.f32 0.0, %v1826
        %v1828 = vpop.f32.mrb[0].mxu0
        %1829 = vmatprep.mubr.bf16.mxu0 %v1237
        %1830 = vmatmul.mubr.bf16.gmra.mrb[0].mxu0 %v1236
        %v1831 = vpop.f32.mrb[0].mxu0
        %v1832 = vadd.f32 0.0, %v1831
        %v1833 = vpop.f32.mrb[0].mxu0
        %v1834 = vpop.f32.mrb[0].mxu0
        %v1835 = vadd.f32 0.0, %v1834
        %v1836 = vpop.f32.mrb[0].mxu0
        %1837 = vmatprep.mubr.bf16.mxu0 %v1244
        %1838 = vmatmul.mubr.bf16.gmra.mrb[0].mxu0 %v1243
        %v1839 = vpop.f32.mrb[0].mxu0
        %v1840 = vadd.f32 0.0, %v1839
        %v1841 = vpop.f32.mrb[0].mxu0
        %v1842 = vpop.f32.mrb[0].mxu0
        %v1843 = vadd.f32 0.0, %v1842
        %v1844 = vpop.f32.mrb[0].mxu0
        %1845 = vmatprep.mubr.bf16.mxu0 %v1251
        %1846 = vmatmul.mubr.bf16.gmra.mrb[0].mxu0 %v1250
        %v1847 = vpop.f32.mrb[0].mxu0
        %v1848 = vadd.f32 0.0, %v1847
        %v1849 = vpop.f32.mrb[0].mxu0
        %v1850 = vpop.f32.mrb[0].mxu0
        %v1851 = vadd.f32 0.0, %v1850
        %v1852 = vpop.f32.mrb[0].mxu0
        %1853 = vmatprep.mubr.bf16.mxu0 %v1258
        %1854 = vmatmul.mubr.bf16.gmra.mrb[0].mxu0 %v1257
        %v1855 = vpop.f32.mrb[0].mxu0
        %v1856 = vadd.f32 0.0, %v1855
        %v1857 = vpop.f32.mrb[0].mxu0
        %v1858 = vpop.f32.mrb[0].mxu0
        %v1859 = vadd.f32 0.0, %v1858
        %v1860 = vpop.f32.mrb[0].mxu0
        %1861 = vmatprep.mubr.bf16.mxu0 %v1265
        %1862 = vmatmul.mubr.bf16.gmra.mrb[0].mxu0 %v1264
        %v1863 = vpop.f32.mrb[0].mxu0
        %v1864 = vadd.f32 0.0, %v1863
        %v1865 = vpop.f32.mrb[0].mxu0
        %v1866 = vpop.f32.mrb[0].mxu0
        %v1867 = vadd.f32 0.0, %v1866
        %v1868 = vpop.f32.mrb[0].mxu0
        %1869 = vmatprep.mubr.bf16.mxu0 %v1272
        %1870 = vmatmul.mubr.bf16.gmra.mrb[0].mxu0 %v1271
        %v1871 = vpop.f32.mrb[0].mxu0
        %v1872 = vadd.f32 0.0, %v1871
        %v1873 = vpop.f32.mrb[0].mxu0
        %v1874 = vpop.f32.mrb[0].mxu0
        %v1875 = vadd.f32 0.0, %v1874
        %v1876 = vpop.f32.mrb[0].mxu0
        %1877 = vmatprep.mubr.bf16.mxu0 %v1279
        %1878 = vmatmul.mubr.bf16.gmra.mrb[0].mxu0 %v1278
        %v1879 = vpop.f32.mrb[0].mxu0
        %v1880 = vadd.f32 0.0, %v1879
        %v1881 = vpop.f32.mrb[0].mxu0
        %v1882 = vpop.f32.mrb[0].mxu0
        %v1883 = vadd.f32 0.0, %v1882
        %v1884 = vpop.f32.mrb[0].mxu0
        %1885 = vmatprep.mubr.bf16.mxu0 %v1286
        %1886 = vmatmul.mubr.bf16.gmra.mrb[0].mxu0 %v1285
        %v1887 = vpop.f32.mrb[0].mxu0
        %v1888 = vadd.f32 0.0, %v1887
        %v1889 = vpop.f32.mrb[0].mxu0
        %v1890 = vpop.f32.mrb[0].mxu0
        %v1891 = vadd.f32 0.0, %v1890
        %v1892 = vpop.f32.mrb[0].mxu0
        %1893 = vmatprep.mubr.bf16.mxu0 %v1293
        %1894 = vmatmul.mubr.bf16.gmra.mrb[0].mxu0 %v1292
        %v1895 = vpop.f32.mrb[0].mxu0
        %v1896 = vadd.f32 0.0, %v1895
        %v1897 = vpop.f32.mrb[0].mxu0
        %v1898 = vpop.f32.mrb[0].mxu0
        %v1899 = vadd.f32 0.0, %v1898
        %v1900 = vpop.f32.mrb[0].mxu0
        %1901 = vmatprep.mubr.bf16.mxu0 %v1300
        %1902 = vmatmul.mubr.bf16.gmra.mrb[0].mxu0 %v1299
        %v1903 = vpop.f32.mrb[0].mxu0
        %v1904 = vadd.f32 0.0, %v1903
        %v1905 = vpop.f32.mrb[0].mxu0
        %v1906 = vpop.f32.mrb[0].mxu0
        %v1907 = vadd.f32 0.0, %v1906
        %v1908 = vpop.f32.mrb[0].mxu0
        %1909 = vmatprep.mubr.bf16.mxu0 %v1307
        %1910 = vmatmul.mubr.bf16.gmra.mrb[0].mxu0 %v1306
        %v1911 = vpop.f32.mrb[0].mxu0
        %v1912 = vadd.f32 0.0, %v1911
        %v1913 = vpop.f32.mrb[0].mxu0
        %v1914 = vpop.f32.mrb[0].mxu0
        %v1915 = vadd.f32 0.0, %v1914
        %v1916 = vpop.f32.mrb[0].mxu0
        %1917 = vmatprep.mubr.bf16.mxu0 %v1314
        %1918 = vmatmul.mubr.bf16.gmra.mrb[0].mxu0 %v1313
        %v1919 = vpop.f32.mrb[0].mxu0
        %v1920 = vadd.f32 0.0, %v1919
        %v1921 = vpop.f32.mrb[0].mxu0
        %v1922 = vpop.f32.mrb[0].mxu0
        %v1923 = vadd.f32 0.0, %v1922
        %v1924 = vpop.f32.mrb[0].mxu0
        %1925 = vmatprep.mubr.bf16.mxu0 %v1321
        %1926 = vmatmul.mubr.bf16.gmra.mrb[0].mxu0 %v1320
        %v1927 = vpop.f32.mrb[0].mxu0
        %v1928 = vadd.f32 0.0, %v1927
        %v1929 = vpop.f32.mrb[0].mxu0
        %v1930 = vpop.f32.mrb[0].mxu0
        %v1931 = vadd.f32 0.0, %v1930
        %v1932 = vpop.f32.mrb[0].mxu0
        %1933 = vmatprep.mubr.bf16.mxu0 %v1328
        %1934 = vmatmul.mubr.bf16.gmra.mrb[0].mxu0 %v1327
        %v1935 = vpop.f32.mrb[0].mxu0
        %v1936 = vadd.f32 0.0, %v1935
        %v1937 = vpop.f32.mrb[0].mxu0
        %v1938 = vpop.f32.mrb[0].mxu0
        %v1939 = vadd.f32 0.0, %v1938
        %v1940 = vpop.f32.mrb[0].mxu0
        %1941 = vmatprep.mubr.bf16.mxu0 %v1335
        %1942 = vmatmul.mubr.bf16.gmra.mrb[0].mxu0 %v1334
        %v1943 = vpop.f32.mrb[0].mxu0
        %v1944 = vadd.f32 0.0, %v1943
        %v1945 = vpop.f32.mrb[0].mxu0
        %v1946 = vpop.f32.mrb[0].mxu0
        %v1947 = vadd.f32 0.0, %v1946
        %v1948 = vpop.f32.mrb[0].mxu0
        %1949 = vdwg.mxu0
        %1950 = vmatprep.subr.bf16.mxu0 0
        %1951 = vmatpush1.bf16.msra.mxu0 %v1693
        %1952 = vmatprep.subr.bf16.mxu0 0
        %1953 = vmatpush1.bf16.msra.mxu0 %v1694
        %1954 = vmatprep.subr.bf16.mxu0 0
        %1955 = vmatpush1.bf16.msra.mxu0 %v1695
        %1956 = vmatprep.subr.bf16.mxu0 0
        %1957 = vmatpush1.bf16.msra.mxu0 %v1696
        %1958 = vmatprep.subr.bf16.mxu0 0
        %1959 = vmatpush1.bf16.msra.mxu0 %v1697
        %1960 = vmatprep.subr.bf16.mxu0 0
        %1961 = vmatpush1.bf16.msra.mxu0 %v1698
        %1962 = vmatprep.subr.bf16.mxu0 0
        %1963 = vmatpush1.bf16.msra.mxu0 %v1699
        %1964 = vmatprep.subr.bf16.mxu0 0
        %1965 = vmatpush1.bf16.msra.mxu0 %v1700
        %1966 = vmatprep.subr.bf16.mxu0 0
        %1967 = vmatpush1.bf16.msra.mxu0 %v1701
        %1968 = vmatprep.subr.bf16.mxu0 0
        %1969 = vmatpush1.bf16.msra.mxu0 %v1702
        %1970 = vmatprep.subr.bf16.mxu0 0
        %1971 = vmatpush1.bf16.msra.mxu0 %v1703
        %1972 = vmatprep.subr.bf16.mxu0 0
        %1973 = vmatpush1.bf16.msra.mxu0 %v1704
        %1974 = vmatprep.subr.bf16.mxu0 0
        %1975 = vmatpush1.bf16.msra.mxu0 %v1705
        %1976 = vmatprep.subr.bf16.mxu0 0
        %1977 = vmatpush1.bf16.msra.mxu0 %v1706
        %1978 = vmatprep.subr.bf16.mxu0 0
        %1979 = vmatpush1.bf16.msra.mxu0 %v1707
        %1980 = vmatprep.subr.bf16.mxu0 0
        %1981 = vmatpush1.bf16.msra.mxu0 %v1708
        %1982 = vmatprep.mubr.bf16.mxu0 %v1232
        %1983 = vmatmul.mubr.bf16.gmra.mrb[0].mxu0 %v1231
        %v1984 = vpop.f32.mrb[0].mxu0
        %v1985 = vadd.f32 %v1824, %v1984
        %v1986 = vpop.f32.mrb[0].mxu0
        %v1987 = vpop.f32.mrb[0].mxu0
        %v1988 = vadd.f32 %v1827, %v1987
        %v1989 = vpop.f32.mrb[0].mxu0
        %1990 = vmatprep.mubr.bf16.mxu0 %v1239
        %1991 = vmatmul.mubr.bf16.gmra.mrb[0].mxu0 %v1238
        %v1992 = vpop.f32.mrb[0].mxu0
        %v1993 = vadd.f32 %v1832, %v1992
        %v1994 = vpop.f32.mrb[0].mxu0
        %v1995 = vpop.f32.mrb[0].mxu0
        %v1996 = vadd.f32 %v1835, %v1995
        %v1997 = vpop.f32.mrb[0].mxu0
        %1998 = vmatprep.mubr.bf16.mxu0 %v1246
        %1999 = vmatmul.mubr.bf16.gmra.mrb[0].mxu0 %v1245
        %v2000 = vpop.f32.mrb[0].mxu0
        %v2001 = vadd.f32 %v1840, %v2000
        %v2002 = vpop.f32.mrb[0].mxu0
        %v2003 = vpop.f32.mrb[0].mxu0
        %v2004 = vadd.f32 %v1843, %v2003
        %v2005 = vpop.f32.mrb[0].mxu0
        %2006 = vmatprep.mubr.bf16.mxu0 %v1253
        %2007 = vmatmul.mubr.bf16.gmra.mrb[0].mxu0 %v1252
        %v2008 = vpop.f32.mrb[0].mxu0
        %v2009 = vadd.f32 %v1848, %v2008
        %v2010 = vpop.f32.mrb[0].mxu0
        %v2011 = vpop.f32.mrb[0].mxu0
        %v2012 = vadd.f32 %v1851, %v2011
        %v2013 = vpop.f32.mrb[0].mxu0
        %2014 = vmatprep.mubr.bf16.mxu0 %v1260
        %2015 = vmatmul.mubr.bf16.gmra.mrb[0].mxu0 %v1259
        %v2016 = vpop.f32.mrb[0].mxu0
        %v2017 = vadd.f32 %v1856, %v2016
        %v2018 = vpop.f32.mrb[0].mxu0
        %v2019 = vpop.f32.mrb[0].mxu0
        %v2020 = vadd.f32 %v1859, %v2019
        %v2021 = vpop.f32.mrb[0].mxu0
        %2022 = vmatprep.mubr.bf16.mxu0 %v1267
        %2023 = vmatmul.mubr.bf16.gmra.mrb[0].mxu0 %v1266
        %v2024 = vpop.f32.mrb[0].mxu0
        %v2025 = vadd.f32 %v1864, %v2024
        %v2026 = vpop.f32.mrb[0].mxu0
        %v2027 = vpop.f32.mrb[0].mxu0
        %v2028 = vadd.f32 %v1867, %v2027
        %v2029 = vpop.f32.mrb[0].mxu0
        %2030 = vmatprep.mubr.bf16.mxu0 %v1274
        %2031 = vmatmul.mubr.bf16.gmra.mrb[0].mxu0 %v1273
        %v2032 = vpop.f32.mrb[0].mxu0
        %v2033 = vadd.f32 %v1872, %v2032
        %v2034 = vpop.f32.mrb[0].mxu0
        %v2035 = vpop.f32.mrb[0].mxu0
        %v2036 = vadd.f32 %v1875, %v2035
        %v2037 = vpop.f32.mrb[0].mxu0
        %2038 = vmatprep.mubr.bf16.mxu0 %v1281
        %2039 = vmatmul.mubr.bf16.gmra.mrb[0].mxu0 %v1280
        %v2040 = vpop.f32.mrb[0].mxu0
        %v2041 = vadd.f32 %v1880, %v2040
        %v2042 = vpop.f32.mrb[0].mxu0
        %v2043 = vpop.f32.mrb[0].mxu0
        %v2044 = vadd.f32 %v1883, %v2043
        %v2045 = vpop.f32.mrb[0].mxu0
        %2046 = vmatprep.mubr.bf16.mxu0 %v1288
        %2047 = vmatmul.mubr.bf16.gmra.mrb[0].mxu0 %v1287
        %v2048 = vpop.f32.mrb[0].mxu0
        %v2049 = vadd.f32 %v1888, %v2048
        %v2050 = vpop.f32.mrb[0].mxu0
        %v2051 = vpop.f32.mrb[0].mxu0
        %v2052 = vadd.f32 %v1891, %v2051
        %v2053 = vpop.f32.mrb[0].mxu0
        %2054 = vmatprep.mubr.bf16.mxu0 %v1295
        %2055 = vmatmul.mubr.bf16.gmra.mrb[0].mxu0 %v1294
        %v2056 = vpop.f32.mrb[0].mxu0
        %v2057 = vadd.f32 %v1896, %v2056
        %v2058 = vpop.f32.mrb[0].mxu0
        %v2059 = vpop.f32.mrb[0].mxu0
        %v2060 = vadd.f32 %v1899, %v2059
        %v2061 = vpop.f32.mrb[0].mxu0
        %2062 = vmatprep.mubr.bf16.mxu0 %v1302
        %2063 = vmatmul.mubr.bf16.gmra.mrb[0].mxu0 %v1301
        %v2064 = vpop.f32.mrb[0].mxu0
        %v2065 = vadd.f32 %v1904, %v2064
        %v2066 = vpop.f32.mrb[0].mxu0
        %v2067 = vpop.f32.mrb[0].mxu0
        %v2068 = vadd.f32 %v1907, %v2067
        %v2069 = vpop.f32.mrb[0].mxu0
        %2070 = vmatprep.mubr.bf16.mxu0 %v1309
        %2071 = vmatmul.mubr.bf16.gmra.mrb[0].mxu0 %v1308
        %v2072 = vpop.f32.mrb[0].mxu0
        %v2073 = vadd.f32 %v1912, %v2072
        %v2074 = vpop.f32.mrb[0].mxu0
        %v2075 = vpop.f32.mrb[0].mxu0
        %v2076 = vadd.f32 %v1915, %v2075
        %v2077 = vpop.f32.mrb[0].mxu0
        %2078 = vmatprep.mubr.bf16.mxu0 %v1316
        %2079 = vmatmul.mubr.bf16.gmra.mrb[0].mxu0 %v1315
        %v2080 = vpop.f32.mrb[0].mxu0
        %v2081 = vadd.f32 %v1920, %v2080
        %v2082 = vpop.f32.mrb[0].mxu0
        %v2083 = vpop.f32.mrb[0].mxu0
        %v2084 = vadd.f32 %v1923, %v2083
        %v2085 = vpop.f32.mrb[0].mxu0
        %2086 = vmatprep.mubr.bf16.mxu0 %v1323
        %2087 = vmatmul.mubr.bf16.gmra.mrb[0].mxu0 %v1322
        %v2088 = vpop.f32.mrb[0].mxu0
        %v2089 = vadd.f32 %v1928, %v2088
        %v2090 = vpop.f32.mrb[0].mxu0
        %v2091 = vpop.f32.mrb[0].mxu0
        %v2092 = vadd.f32 %v1931, %v2091
        %v2093 = vpop.f32.mrb[0].mxu0
        %2094 = vmatprep.mubr.bf16.mxu0 %v1330
        %2095 = vmatmul.mubr.bf16.gmra.mrb[0].mxu0 %v1329
        %v2096 = vpop.f32.mrb[0].mxu0
        %v2097 = vadd.f32 %v1936, %v2096
        %v2098 = vpop.f32.mrb[0].mxu0
        %v2099 = vpop.f32.mrb[0].mxu0
        %v2100 = vadd.f32 %v1939, %v2099
        %v2101 = vpop.f32.mrb[0].mxu0
        %2102 = vmatprep.mubr.bf16.mxu0 %v1337
        %2103 = vmatmul.mubr.bf16.gmra.mrb[0].mxu0 %v1336
        %v2104 = vpop.f32.mrb[0].mxu0
        %v2105 = vadd.f32 %v1944, %v2104
        %v2106 = vpop.f32.mrb[0].mxu0
        %v2107 = vpop.f32.mrb[0].mxu0
        %v2108 = vadd.f32 %v1947, %v2107
        %v2109 = vpop.f32.mrb[0].mxu0
        %2110 = vdwg.mxu0
        %2111 = vmatprep.subr.bf16.mxu0 0
        %2112 = vmatpush1.bf16.msra.mxu0 %v1709
        %2113 = vmatprep.subr.bf16.mxu0 0
        %2114 = vmatpush1.bf16.msra.mxu0 %v1710
        %2115 = vmatprep.subr.bf16.mxu0 0
        %2116 = vmatpush1.bf16.msra.mxu0 %v1711
        %2117 = vmatprep.subr.bf16.mxu0 0
        %2118 = vmatpush1.bf16.msra.mxu0 %v1712
        %2119 = vmatprep.subr.bf16.mxu0 0
        %2120 = vmatpush1.bf16.msra.mxu0 %v1713
        %2121 = vmatprep.subr.bf16.mxu0 0
        %2122 = vmatpush1.bf16.msra.mxu0 %v1714
        %2123 = vmatprep.subr.bf16.mxu0 0
        %2124 = vmatpush1.bf16.msra.mxu0 %v1715
        %2125 = vmatprep.subr.bf16.mxu0 0
        %2126 = vmatpush1.bf16.msra.mxu0 %v1716
        %2127 = vmatprep.subr.bf16.mxu0 0
        %2128 = vmatpush1.bf16.msra.mxu0 %v1717
        %2129 = vmatprep.subr.bf16.mxu0 0
        %2130 = vmatpush1.bf16.msra.mxu0 %v1718
        %2131 = vmatprep.subr.bf16.mxu0 0
        %2132 = vmatpush1.bf16.msra.mxu0 %v1719
        %2133 = vmatprep.subr.bf16.mxu0 0
        %2134 = vmatpush1.bf16.msra.mxu0 %v1720
        %2135 = vmatprep.subr.bf16.mxu0 0
        %2136 = vmatpush1.bf16.msra.mxu0 %v1721
        %2137 = vmatprep.subr.bf16.mxu0 0
        %2138 = vmatpush1.bf16.msra.mxu0 %v1722
        %2139 = vmatprep.subr.bf16.mxu0 0
        %2140 = vmatpush1.bf16.msra.mxu0 %v1723
        %2141 = vmatprep.subr.bf16.mxu0 0
        %2142 = vmatpush1.bf16.msra.mxu0 %v1724
        %2143 = vmatprep.mubr.bf16.mxu0 %v1234
        %2144 = vmatmul.mubr.bf16.gmra.mrb[0].mxu0 %v1233
        %v2145 = vpop.f32.mrb[0].mxu0
        %v2146 = vadd.f32 %v1985, %v2145
        %v2147 = vpop.f32.mrb[0].mxu0
        %v2148 = vpop.f32.mrb[0].mxu0
        %v2149 = vadd.f32 %v1988, %v2148
        %v2150 = vpop.f32.mrb[0].mxu0
        %2151 = vmatprep.mubr.bf16.mxu0 %v1241
        %2152 = vmatmul.mubr.bf16.gmra.mrb[0].mxu0 %v1240
        %v2153 = vpop.f32.mrb[0].mxu0
        %v2154 = vadd.f32 %v1993, %v2153
        %v2155 = vpop.f32.mrb[0].mxu0
        %v2156 = vpop.f32.mrb[0].mxu0
        %v2157 = vadd.f32 %v1996, %v2156
        %v2158 = vpop.f32.mrb[0].mxu0
        %2159 = vmatprep.mubr.bf16.mxu0 %v1248
        %2160 = vmatmul.mubr.bf16.gmra.mrb[0].mxu0 %v1247
        %v2161 = vpop.f32.mrb[0].mxu0
        %v2162 = vadd.f32 %v2001, %v2161
        %v2163 = vpop.f32.mrb[0].mxu0
        %v2164 = vpop.f32.mrb[0].mxu0
        %v2165 = vadd.f32 %v2004, %v2164
        %v2166 = vpop.f32.mrb[0].mxu0
        %2167 = vmatprep.mubr.bf16.mxu0 %v1255
        %2168 = vmatmul.mubr.bf16.gmra.mrb[0].mxu0 %v1254
        %v2169 = vpop.f32.mrb[0].mxu0
        %v2170 = vadd.f32 %v2009, %v2169
        %v2171 = vpop.f32.mrb[0].mxu0
        %v2172 = vpop.f32.mrb[0].mxu0
        %v2173 = vadd.f32 %v2012, %v2172
        %v2174 = vpop.f32.mrb[0].mxu0
        %2175 = vmatprep.mubr.bf16.mxu0 %v1262
        %2176 = vmatmul.mubr.bf16.gmra.mrb[0].mxu0 %v1261
        %v2177 = vpop.f32.mrb[0].mxu0
        %v2178 = vadd.f32 %v2017, %v2177
        %v2179 = vpop.f32.mrb[0].mxu0
        %v2180 = vpop.f32.mrb[0].mxu0
        %v2181 = vadd.f32 %v2020, %v2180
        %v2182 = vpop.f32.mrb[0].mxu0
        %2183 = vmatprep.mubr.bf16.mxu0 %v1269
        %2184 = vmatmul.mubr.bf16.gmra.mrb[0].mxu0 %v1268
        %v2185 = vpop.f32.mrb[0].mxu0
        %v2186 = vadd.f32 %v2025, %v2185
        %v2187 = vpop.f32.mrb[0].mxu0
        %v2188 = vpop.f32.mrb[0].mxu0
        %v2189 = vadd.f32 %v2028, %v2188
        %v2190 = vpop.f32.mrb[0].mxu0
        %2191 = vmatprep.mubr.bf16.mxu0 %v1276
        %2192 = vmatmul.mubr.bf16.gmra.mrb[0].mxu0 %v1275
        %v2193 = vpop.f32.mrb[0].mxu0
        %v2194 = vadd.f32 %v2033, %v2193
        %v2195 = vpop.f32.mrb[0].mxu0
        %v2196 = vpop.f32.mrb[0].mxu0
        %v2197 = vadd.f32 %v2036, %v2196
        %v2198 = vpop.f32.mrb[0].mxu0
        %2199 = vmatprep.mubr.bf16.mxu0 %v1283
        %2200 = vmatmul.mubr.bf16.gmra.mrb[0].mxu0 %v1282
        %v2201 = vpop.f32.mrb[0].mxu0
        %v2202 = vadd.f32 %v2041, %v2201
        %v2203 = vpop.f32.mrb[0].mxu0
        %v2204 = vpop.f32.mrb[0].mxu0
        %v2205 = vadd.f32 %v2044, %v2204
        %v2206 = vpop.f32.mrb[0].mxu0
        %2207 = vmatprep.mubr.bf16.mxu0 %v1290
        %2208 = vmatmul.mubr.bf16.gmra.mrb[0].mxu0 %v1289
        %v2209 = vpop.f32.mrb[0].mxu0
        %v2210 = vadd.f32 %v2049, %v2209
        %v2211 = vpop.f32.mrb[0].mxu0
        %v2212 = vpop.f32.mrb[0].mxu0
        %v2213 = vadd.f32 %v2052, %v2212
        %v2214 = vpop.f32.mrb[0].mxu0
        %2215 = vmatprep.mubr.bf16.mxu0 %v1297
        %2216 = vmatmul.mubr.bf16.gmra.mrb[0].mxu0 %v1296
        %v2217 = vpop.f32.mrb[0].mxu0
        %v2218 = vadd.f32 %v2057, %v2217
        %v2219 = vpop.f32.mrb[0].mxu0
        %v2220 = vpop.f32.mrb[0].mxu0
        %v2221 = vadd.f32 %v2060, %v2220
        %v2222 = vpop.f32.mrb[0].mxu0
        %2223 = vmatprep.mubr.bf16.mxu0 %v1304
        %2224 = vmatmul.mubr.bf16.gmra.mrb[0].mxu0 %v1303
        %v2225 = vpop.f32.mrb[0].mxu0
        %v2226 = vadd.f32 %v2065, %v2225
        %v2227 = vpop.f32.mrb[0].mxu0
        %v2228 = vpop.f32.mrb[0].mxu0
        %v2229 = vadd.f32 %v2068, %v2228
        %v2230 = vpop.f32.mrb[0].mxu0
        %2231 = vmatprep.mubr.bf16.mxu0 %v1311
        %2232 = vmatmul.mubr.bf16.gmra.mrb[0].mxu0 %v1310
        %v2233 = vpop.f32.mrb[0].mxu0
        %v2234 = vadd.f32 %v2073, %v2233
        %v2235 = vpop.f32.mrb[0].mxu0
        %v2236 = vpop.f32.mrb[0].mxu0
        %v2237 = vadd.f32 %v2076, %v2236
        %v2238 = vpop.f32.mrb[0].mxu0
        %2239 = vmatprep.mubr.bf16.mxu0 %v1318
        %2240 = vmatmul.mubr.bf16.gmra.mrb[0].mxu0 %v1317
        %v2241 = vpop.f32.mrb[0].mxu0
        %v2242 = vadd.f32 %v2081, %v2241
        %v2243 = vpop.f32.mrb[0].mxu0
        %v2244 = vpop.f32.mrb[0].mxu0
        %v2245 = vadd.f32 %v2084, %v2244
        %v2246 = vpop.f32.mrb[0].mxu0
        %2247 = vmatprep.mubr.bf16.mxu0 %v1325
        %2248 = vmatmul.mubr.bf16.gmra.mrb[0].mxu0 %v1324
        %v2249 = vpop.f32.mrb[0].mxu0
        %v2250 = vadd.f32 %v2089, %v2249
        %v2251 = vpop.f32.mrb[0].mxu0
        %v2252 = vpop.f32.mrb[0].mxu0
        %v2253 = vadd.f32 %v2092, %v2252
        %v2254 = vpop.f32.mrb[0].mxu0
        %2255 = vmatprep.mubr.bf16.mxu0 %v1332
        %2256 = vmatmul.mubr.bf16.gmra.mrb[0].mxu0 %v1331
        %v2257 = vpop.f32.mrb[0].mxu0
        %v2258 = vadd.f32 %v2097, %v2257
        %v2259 = vpop.f32.mrb[0].mxu0
        %v2260 = vpop.f32.mrb[0].mxu0
        %v2261 = vadd.f32 %v2100, %v2260
        %v2262 = vpop.f32.mrb[0].mxu0
        %2263 = vmatprep.mubr.bf16.mxu0 %v1339
        %2264 = vmatmul.mubr.bf16.gmra.mrb[0].mxu0 %v1338
        %v2265 = vpop.f32.mrb[0].mxu0
        %v2266 = vadd.f32 %v2105, %v2265
        %v2267 = vpop.f32.mrb[0].mxu0
        %v2268 = vpop.f32.mrb[0].mxu0
        %v2269 = vadd.f32 %v2108, %v2268
        %v2270 = vpop.f32.mrb[0].mxu0
        %2271 = vdwg.mxu0
        %2272 = vmatprep.subr.bf16.mxu0 0
        %2273 = vmatpush1.bf16.msra.mxu0 %v1725
        %2274 = vmatprep.subr.bf16.mxu0 0
        %2275 = vmatpush1.bf16.msra.mxu0 %v1726
        %2276 = vmatprep.subr.bf16.mxu0 0
        %2277 = vmatpush1.bf16.msra.mxu0 %v1727
        %2278 = vmatprep.subr.bf16.mxu0 0
        %2279 = vmatpush1.bf16.msra.mxu0 %v1728
        %2280 = vmatprep.subr.bf16.mxu0 0
        %2281 = vmatpush1.bf16.msra.mxu0 %v1729
        %2282 = vmatprep.subr.bf16.mxu0 0
        %2283 = vmatpush1.bf16.msra.mxu0 %v1730
        %2284 = vmatprep.subr.bf16.mxu0 0
        %2285 = vmatpush1.bf16.msra.mxu0 %v1731
        %2286 = vmatprep.subr.bf16.mxu0 0
        %2287 = vmatpush1.bf16.msra.mxu0 %v1732
        %2288 = vmatprep.subr.bf16.mxu0 0
        %2289 = vmatpush1.bf16.msra.mxu0 0
        %2290 = vmatprep.subr.bf16.mxu0 0
        %2291 = vmatpush1.bf16.msra.mxu0 0
        %2292 = vmatprep.subr.bf16.mxu0 0
        %2293 = vmatpush1.bf16.msra.mxu0 0
        %2294 = vmatprep.subr.bf16.mxu0 0
        %2295 = vmatpush1.bf16.msra.mxu0 0
        %2296 = vmatprep.subr.bf16.mxu0 0
        %2297 = vmatpush1.bf16.msra.mxu0 0
        %2298 = vmatprep.subr.bf16.mxu0 0
        %2299 = vmatpush1.bf16.msra.mxu0 0
        %2300 = vmatprep.subr.bf16.mxu0 0
        %2301 = vmatpush1.bf16.msra.mxu0 0
        %2302 = vmatprep.subr.bf16.mxu0 0
        %2303 = vmatpush1.bf16.msra.mxu0 0
        %2304 = vmatprep.mubr.bf16.mxu0 0
        %2305 = vmatmul.mubr.bf16.gmra.mrb[0].mxu0 %v1235
        %v2306 = vpop.f32.mrb[0].mxu0
        %v2307 = vadd.f32 %v2146, %v2306
        %v2308 = vpop.f32.mrb[0].mxu0
        %v2309 = vpop.f32.mrb[0].mxu0
        %v2310 = vadd.f32 %v2149, %v2309
        %v2311 = vpop.f32.mrb[0].mxu0
        %2312 = vmatprep.mubr.bf16.mxu0 0
        %2313 = vmatmul.mubr.bf16.gmra.mrb[0].mxu0 %v1242
        %v2314 = vpop.f32.mrb[0].mxu0
        %v2315 = vadd.f32 %v2154, %v2314
        %v2316 = vpop.f32.mrb[0].mxu0
        %v2317 = vpop.f32.mrb[0].mxu0
        %v2318 = vadd.f32 %v2157, %v2317
        %v2319 = vpop.f32.mrb[0].mxu0
        %2320 = vmatprep.mubr.bf16.mxu0 0
        %2321 = vmatmul.mubr.bf16.gmra.mrb[0].mxu0 %v1249
        %v2322 = vpop.f32.mrb[0].mxu0
        %v2323 = vadd.f32 %v2162, %v2322
        %v2324 = vpop.f32.mrb[0].mxu0
        %v2325 = vpop.f32.mrb[0].mxu0
        %v2326 = vadd.f32 %v2165, %v2325
        %v2327 = vpop.f32.mrb[0].mxu0
        %2328 = vmatprep.mubr.bf16.mxu0 0
        %2329 = vmatmul.mubr.bf16.gmra.mrb[0].mxu0 %v1256
        %v2330 = vpop.f32.mrb[0].mxu0
        %v2331 = vadd.f32 %v2170, %v2330
        %v2332 = vpop.f32.mrb[0].mxu0
        %v2333 = vpop.f32.mrb[0].mxu0
        %v2334 = vadd.f32 %v2173, %v2333
        %v2335 = vpop.f32.mrb[0].mxu0
        %2336 = vmatprep.mubr.bf16.mxu0 0
        %2337 = vmatmul.mubr.bf16.gmra.mrb[0].mxu0 %v1263
        %v2338 = vpop.f32.mrb[0].mxu0
        %v2339 = vadd.f32 %v2178, %v2338
        %v2340 = vpop.f32.mrb[0].mxu0
        %v2341 = vpop.f32.mrb[0].mxu0
        %v2342 = vadd.f32 %v2181, %v2341
        %v2343 = vpop.f32.mrb[0].mxu0
        %2344 = vmatprep.mubr.bf16.mxu0 0
        %2345 = vmatmul.mubr.bf16.gmra.mrb[0].mxu0 %v1270
        %v2346 = vpop.f32.mrb[0].mxu0
        %v2347 = vadd.f32 %v2186, %v2346
        %v2348 = vpop.f32.mrb[0].mxu0
        %v2349 = vpop.f32.mrb[0].mxu0
        %v2350 = vadd.f32 %v2189, %v2349
        %v2351 = vpop.f32.mrb[0].mxu0
        %2352 = vmatprep.mubr.bf16.mxu0 0
        %2353 = vmatmul.mubr.bf16.gmra.mrb[0].mxu0 %v1277
        %v2354 = vpop.f32.mrb[0].mxu0
        %v2355 = vadd.f32 %v2194, %v2354
        %v2356 = vpop.f32.mrb[0].mxu0
        %v2357 = vpop.f32.mrb[0].mxu0
        %v2358 = vadd.f32 %v2197, %v2357
        %v2359 = vpop.f32.mrb[0].mxu0
        %2360 = vmatprep.mubr.bf16.mxu0 0
        %2361 = vmatmul.mubr.bf16.gmra.mrb[0].mxu0 %v1284
        %v2362 = vpop.f32.mrb[0].mxu0
        %v2363 = vadd.f32 %v2202, %v2362
        %v2364 = vpop.f32.mrb[0].mxu0
        %v2365 = vpop.f32.mrb[0].mxu0
        %v2366 = vadd.f32 %v2205, %v2365
        %v2367 = vpop.f32.mrb[0].mxu0
        %2368 = vmatprep.mubr.bf16.mxu0 0
        %2369 = vmatmul.mubr.bf16.gmra.mrb[0].mxu0 %v1291
        %v2370 = vpop.f32.mrb[0].mxu0
        %v2371 = vadd.f32 %v2210, %v2370
        %v2372 = vpop.f32.mrb[0].mxu0
        %v2373 = vpop.f32.mrb[0].mxu0
        %v2374 = vadd.f32 %v2213, %v2373
        %v2375 = vpop.f32.mrb[0].mxu0
        %2376 = vmatprep.mubr.bf16.mxu0 0
        %2377 = vmatmul.mubr.bf16.gmra.mrb[0].mxu0 %v1298
        %v2378 = vpop.f32.mrb[0].mxu0
        %v2379 = vadd.f32 %v2218, %v2378
        %v2380 = vpop.f32.mrb[0].mxu0
        %v2381 = vpop.f32.mrb[0].mxu0
        %v2382 = vadd.f32 %v2221, %v2381
        %v2383 = vpop.f32.mrb[0].mxu0
        %2384 = vmatprep.mubr.bf16.mxu0 0
        %2385 = vmatmul.mubr.bf16.gmra.mrb[0].mxu0 %v1305
        %v2386 = vpop.f32.mrb[0].mxu0
        %v2387 = vadd.f32 %v2226, %v2386
        %v2388 = vpop.f32.mrb[0].mxu0
        %v2389 = vpop.f32.mrb[0].mxu0
        %v2390 = vadd.f32 %v2229, %v2389
        %v2391 = vpop.f32.mrb[0].mxu0
        %2392 = vmatprep.mubr.bf16.mxu0 0
        %2393 = vmatmul.mubr.bf16.gmra.mrb[0].mxu0 %v1312
        %v2394 = vpop.f32.mrb[0].mxu0
        %v2395 = vadd.f32 %v2234, %v2394
        %v2396 = vpop.f32.mrb[0].mxu0
        %v2397 = vpop.f32.mrb[0].mxu0
        %v2398 = vadd.f32 %v2237, %v2397
        %v2399 = vpop.f32.mrb[0].mxu0
        %2400 = vmatprep.mubr.bf16.mxu0 0
        %2401 = vmatmul.mubr.bf16.gmra.mrb[0].mxu0 %v1319
        %v2402 = vpop.f32.mrb[0].mxu0
        %v2403 = vadd.f32 %v2242, %v2402
        %v2404 = vpop.f32.mrb[0].mxu0
        %v2405 = vpop.f32.mrb[0].mxu0
        %v2406 = vadd.f32 %v2245, %v2405
        %v2407 = vpop.f32.mrb[0].mxu0
        %2408 = vmatprep.mubr.bf16.mxu0 0
        %2409 = vmatmul.mubr.bf16.gmra.mrb[0].mxu0 %v1326
        %v2410 = vpop.f32.mrb[0].mxu0
        %v2411 = vadd.f32 %v2250, %v2410
        %v2412 = vpop.f32.mrb[0].mxu0
        %v2413 = vpop.f32.mrb[0].mxu0
        %v2414 = vadd.f32 %v2253, %v2413
        %v2415 = vpop.f32.mrb[0].mxu0
        %2416 = vmatprep.mubr.bf16.mxu0 0
        %2417 = vmatmul.mubr.bf16.gmra.mrb[0].mxu0 %v1333
        %v2418 = vpop.f32.mrb[0].mxu0
        %v2419 = vadd.f32 %v2258, %v2418
        %v2420 = vpop.f32.mrb[0].mxu0
        %v2421 = vpop.f32.mrb[0].mxu0
        %v2422 = vadd.f32 %v2261, %v2421
        %v2423 = vpop.f32.mrb[0].mxu0
        %2424 = vmatprep.mubr.bf16.mxu0 0
        %2425 = vmatmul.mubr.bf16.gmra.mrb[0].mxu0 %v1340
        %v2426 = vpop.f32.mrb[0].mxu0
        %v2427 = vadd.f32 %v2266, %v2426
        %v2428 = vpop.f32.mrb[0].mxu0
        %v2429 = vpop.f32.mrb[0].mxu0
        %v2430 = vadd.f32 %v2269, %v2429
        %v2431 = vpop.f32.mrb[0].mxu0
        %2432 = vdwg.mxu0
        %v2433 = vadd.f32 %v605, %v2307
        %v2434 = vadd.f32 %v606, %v2310
        %v2435 = vadd.f32 %v607, %v2315
        %v2436 = vadd.f32 %v608, %v2318
        %v2437 = vadd.f32 %v609, %v2323
        %v2438 = vadd.f32 %v610, %v2326
        %v2439 = vadd.f32 %v611, %v2331
        %v2440 = vadd.f32 %v612, %v2334
        %v2441 = vadd.f32 %v613, %v2339
        %v2442 = vadd.f32 %v614, %v2342
        %v2443 = vadd.f32 %v615, %v2347
        %v2444 = vadd.f32 %v616, %v2350
        %v2445 = vadd.f32 %v617, %v2355
        %v2446 = vadd.f32 %v618, %v2358
        %v2447 = vadd.f32 %v619, %v2363
        %v2448 = vadd.f32 %v620, %v2366
        %v2449 = vadd.f32 %v621, %v2371
        %v2450 = vadd.f32 %v622, %v2374
        %v2451 = vadd.f32 %v623, %v2379
        %v2452 = vadd.f32 %v624, %v2382
        %v2453 = vadd.f32 %v625, %v2387
        %v2454 = vadd.f32 %v626, %v2390
        %v2455 = vadd.f32 %v627, %v2395
        %v2456 = vadd.f32 %v628, %v2398
        %v2457 = vadd.f32 %v629, %v2403
        %v2458 = vadd.f32 %v630, %v2406
        %v2459 = vadd.f32 %v631, %v2411
        %v2460 = vadd.f32 %v632, %v2414
        %v2461 = vadd.f32 %v633, %v2419
        %v2462 = vadd.f32 %v634, %v2422
        %v2463 = vadd.f32 %v635, %v2427
        %v2464 = vadd.f32 %v636, %v2430
        %vm2465 = vcmask 523264
        %2466 = vst.msk [vmem:[%s559] sm:$0xff] %vm2465, %v2433
        %2467 = vst.msk [vmem:[%s559 + $0x8] sm:$0xff] %vm2465, %v2434
        %2468 = vst.msk [vmem:[%s559 + $0x10] sm:$0xff] %vm2465, %v2435
        %2469 = vst.msk [vmem:[%s559 + $0x18] sm:$0xff] %vm2465, %v2436
        %2470 = vst.msk [vmem:[%s559 + $0x20] sm:$0xff] %vm2465, %v2437
        %2471 = vst.msk [vmem:[%s559 + $0x28] sm:$0xff] %vm2465, %v2438
        %2472 = vst.msk [vmem:[%s559 + $0x30] sm:$0xff] %vm2465, %v2439
        %2473 = vst.msk [vmem:[%s559 + $0x38] sm:$0xff] %vm2465, %v2440
        %2474 = vst.msk [vmem:[%s559 + $0x40] sm:$0xff] %vm2465, %v2441
        %2475 = vst.msk [vmem:[%s559 + $0x48] sm:$0xff] %vm2465, %v2442
        %2476 = vst.msk [vmem:[%s559 + $0x50] sm:$0xff] %vm2465, %v2443
        %2477 = vst.msk [vmem:[%s559 + $0x58] sm:$0xff] %vm2465, %v2444
        %2478 = vst.msk [vmem:[%s559 + $0x60] sm:$0xff] %vm2465, %v2445
        %2479 = vst.msk [vmem:[%s559 + $0x68] sm:$0xff] %vm2465, %v2446
        %2480 = vst.msk [vmem:[%s559 + $0x70] sm:$0xff] %vm2465, %v2447
        %2481 = vst.msk [vmem:[%s559 + $0x78] sm:$0xff] %vm2465, %v2448
        %2482 = vst.msk [vmem:[%s559 + $0x80] sm:$0xff] %vm2465, %v2449
        %2483 = vst.msk [vmem:[%s559 + $0x88] sm:$0xff] %vm2465, %v2450
        %2484 = vst.msk [vmem:[%s559 + $0x90] sm:$0xff] %vm2465, %v2451
        %2485 = vst.msk [vmem:[%s559 + $0x98] sm:$0xff] %vm2465, %v2452
        %2486 = vst.msk [vmem:[%s559 + $0xa0] sm:$0xff] %vm2465, %v2453
        %2487 = vst.msk [vmem:[%s559 + $0xa8] sm:$0xff] %vm2465, %v2454
        %2488 = vst.msk [vmem:[%s559 + $0xb0] sm:$0xff] %vm2465, %v2455
        %2489 = vst.msk [vmem:[%s559 + $0xb8] sm:$0xff] %vm2465, %v2456
        %2490 = vst.msk [vmem:[%s559 + $0xc0] sm:$0xff] %vm2465, %v2457
        %2491 = vst.msk [vmem:[%s559 + $0xc8] sm:$0xff] %vm2465, %v2458
        %2492 = vst.msk [vmem:[%s559 + $0xd0] sm:$0xff] %vm2465, %v2459
        %2493 = vst.msk [vmem:[%s559 + $0xd8] sm:$0xff] %vm2465, %v2460
        %2494 = vst.msk [vmem:[%s559 + $0xe0] sm:$0xff] %vm2465, %v2461
        %2495 = vst.msk [vmem:[%s559 + $0xe8] sm:$0xff] %vm2465, %v2462
        %2496 = vst.msk [vmem:[%s559 + $0xf0] sm:$0xff] %vm2465, %v2463
        %2497 = vst.msk [vmem:[%s559 + $0xf8] sm:$0xff] %vm2465, %v2464
        %p2498 = scmp.eq.s32.totalorder %s22, 3
        // Predicated region
        $region63: #{_lambda_.9} parent=53 // pred_check
          %p2499 = pneg %p2498
        $region64: #{_lambda_.9} parent=53 // pred_check_branch
          %2501 = sbr.rel (%p2499) target = $region66
        $region65: #{_lambda_.9} parent=53 // pred_region
          %v2502 = vld [vmem:[%s559] sm:$0xff]
          %v2503 = vld [vmem:[%s559 + $0x8] sm:$0xff]
          %v2504 = vld [vmem:[%s559 + $0x10] sm:$0xff]
          %v2505 = vld [vmem:[%s559 + $0x18] sm:$0xff]
          %v2506 = vld [vmem:[%s559 + $0x20] sm:$0xff]
          %v2507 = vld [vmem:[%s559 + $0x28] sm:$0xff]
          %v2508 = vld [vmem:[%s559 + $0x30] sm:$0xff]
          %v2509 = vld [vmem:[%s559 + $0x38] sm:$0xff]
          %v2510 = vld [vmem:[%s559 + $0x40] sm:$0xff]
          %v2511 = vld [vmem:[%s559 + $0x48] sm:$0xff]
          %v2512 = vld [vmem:[%s559 + $0x50] sm:$0xff]
          %v2513 = vld [vmem:[%s559 + $0x58] sm:$0xff]
          %v2514 = vld [vmem:[%s559 + $0x60] sm:$0xff]
          %v2515 = vld [vmem:[%s559 + $0x68] sm:$0xff]
          %v2516 = vld [vmem:[%s559 + $0x70] sm:$0xff]
          %v2517 = vld [vmem:[%s559 + $0x78] sm:$0xff]
          %v2518 = vld [vmem:[%s559 + $0x80] sm:$0xff]
          %v2519 = vld [vmem:[%s559 + $0x88] sm:$0xff]
          %v2520 = vld [vmem:[%s559 + $0x90] sm:$0xff]
          %v2521 = vld [vmem:[%s559 + $0x98] sm:$0xff]
          %v2522 = vld [vmem:[%s559 + $0xa0] sm:$0xff]
          %v2523 = vld [vmem:[%s559 + $0xa8] sm:$0xff]
          %v2524 = vld [vmem:[%s559 + $0xb0] sm:$0xff]
          %v2525 = vld [vmem:[%s559 + $0xb8] sm:$0xff]
          %v2526 = vld [vmem:[%s559 + $0xc0] sm:$0xff]
          %v2527 = vld [vmem:[%s559 + $0xc8] sm:$0xff]
          %v2528 = vld [vmem:[%s559 + $0xd0] sm:$0xff]
          %v2529 = vld [vmem:[%s559 + $0xd8] sm:$0xff]
          %v2530 = vld [vmem:[%s559 + $0xe0] sm:$0xff]
          %v2531 = vld [vmem:[%s559 + $0xe8] sm:$0xff]
          %v2532 = vld [vmem:[%s559 + $0xf0] sm:$0xff]
          %v2533 = vld [vmem:[%s559 + $0xf8] sm:$0xff]
          %v2534 = vld [vmem:[%s2] sm:$0x1]
          %v2536 = vlaneseq
          %v2537 = vshrl.u32 %v2536, 7
          %v2538 = vsub.s32 0, %v2537
          %v2539 = vrot.slane %v2534, %v2538
          %v2541 = vadd.f32 %v2502, %v2539
          %v2542 = vadd.f32 %v2503, %v2539
          %v2543 = vadd.f32 %v2504, %v2539
          %v2544 = vadd.f32 %v2505, %v2539
          %v2545 = vadd.f32 %v2506, %v2539
          %v2546 = vadd.f32 %v2507, %v2539
          %v2547 = vadd.f32 %v2508, %v2539
          %v2548 = vadd.f32 %v2509, %v2539
          %v2549 = vadd.f32 %v2510, %v2539
          %v2550 = vadd.f32 %v2511, %v2539
          %v2551 = vadd.f32 %v2512, %v2539
          %v2552 = vadd.f32 %v2513, %v2539
          %v2553 = vadd.f32 %v2514, %v2539
          %v2554 = vadd.f32 %v2515, %v2539
          %v2555 = vadd.f32 %v2516, %v2539
          %v2556 = vadd.f32 %v2517, %v2539
          %v2557 = vadd.f32 %v2518, %v2539
          %v2558 = vadd.f32 %v2519, %v2539
          %v2559 = vadd.f32 %v2520, %v2539
          %v2560 = vadd.f32 %v2521, %v2539
          %v2561 = vadd.f32 %v2522, %v2539
          %v2562 = vadd.f32 %v2523, %v2539
          %v2563 = vadd.f32 %v2524, %v2539
          %v2564 = vadd.f32 %v2525, %v2539
          %v2565 = vadd.f32 %v2526, %v2539
          %v2566 = vadd.f32 %v2527, %v2539
          %v2567 = vadd.f32 %v2528, %v2539
          %v2568 = vadd.f32 %v2529, %v2539
          %v2569 = vadd.f32 %v2530, %v2539
          %v2570 = vadd.f32 %v2531, %v2539
          %v2571 = vadd.f32 %v2532, %v2539
          %v2572 = vadd.f32 %v2533, %v2539
          %2573 = vst.msk [vmem:[%s559] sm:$0xff] %vm2465, %v2541
          %2574 = vst.msk [vmem:[%s559 + $0x8] sm:$0xff] %vm2465, %v2542
          %2575 = vst.msk [vmem:[%s559 + $0x10] sm:$0xff] %vm2465, %v2543
          %2576 = vst.msk [vmem:[%s559 + $0x18] sm:$0xff] %vm2465, %v2544
          %2577 = vst.msk [vmem:[%s559 + $0x20] sm:$0xff] %vm2465, %v2545
          %2578 = vst.msk [vmem:[%s559 + $0x28] sm:$0xff] %vm2465, %v2546
          %2579 = vst.msk [vmem:[%s559 + $0x30] sm:$0xff] %vm2465, %v2547
          %2580 = vst.msk [vmem:[%s559 + $0x38] sm:$0xff] %vm2465, %v2548
          %2581 = vst.msk [vmem:[%s559 + $0x40] sm:$0xff] %vm2465, %v2549
          %2582 = vst.msk [vmem:[%s559 + $0x48] sm:$0xff] %vm2465, %v2550
          %2583 = vst.msk [vmem:[%s559 + $0x50] sm:$0xff] %vm2465, %v2551
          %2584 = vst.msk [vmem:[%s559 + $0x58] sm:$0xff] %vm2465, %v2552
          %2585 = vst.msk [vmem:[%s559 + $0x60] sm:$0xff] %vm2465, %v2553
          %2586 = vst.msk [vmem:[%s559 + $0x68] sm:$0xff] %vm2465, %v2554
          %2587 = vst.msk [vmem:[%s559 + $0x70] sm:$0xff] %vm2465, %v2555
          %2588 = vst.msk [vmem:[%s559 + $0x78] sm:$0xff] %vm2465, %v2556
          %2589 = vst.msk [vmem:[%s559 + $0x80] sm:$0xff] %vm2465, %v2557
          %2590 = vst.msk [vmem:[%s559 + $0x88] sm:$0xff] %vm2465, %v2558
          %2591 = vst.msk [vmem:[%s559 + $0x90] sm:$0xff] %vm2465, %v2559
          %2592 = vst.msk [vmem:[%s559 + $0x98] sm:$0xff] %vm2465, %v2560
          %2593 = vst.msk [vmem:[%s559 + $0xa0] sm:$0xff] %vm2465, %v2561
          %2594 = vst.msk [vmem:[%s559 + $0xa8] sm:$0xff] %vm2465, %v2562
          %2595 = vst.msk [vmem:[%s559 + $0xb0] sm:$0xff] %vm2465, %v2563
          %2596 = vst.msk [vmem:[%s559 + $0xb8] sm:$0xff] %vm2465, %v2564
          %2597 = vst.msk [vmem:[%s559 + $0xc0] sm:$0xff] %vm2465, %v2565
          %2598 = vst.msk [vmem:[%s559 + $0xc8] sm:$0xff] %vm2465, %v2566
          %2599 = vst.msk [vmem:[%s559 + $0xd0] sm:$0xff] %vm2465, %v2567
          %2600 = vst.msk [vmem:[%s559 + $0xd8] sm:$0xff] %vm2465, %v2568
          %2601 = vst.msk [vmem:[%s559 + $0xe0] sm:$0xff] %vm2465, %v2569
          %2602 = vst.msk [vmem:[%s559 + $0xe8] sm:$0xff] %vm2465, %v2570
          %2603 = vst.msk [vmem:[%s559 + $0xf0] sm:$0xff] %vm2465, %v2571
          %2604 = vst.msk [vmem:[%s559 + $0xf8] sm:$0xff] %vm2465, %v2572
          %v2605 = vsel %vm2465, %v2541, 0.0
          %v2606 = vsel %vm2465, %v2542, 0.0
          %v2607 = vadd.f32 %v2605, %v2606
          %v2608 = vsel %vm2465, %v2543, 0.0
          %v2609 = vadd.f32 %v2607, %v2608
          %v2610 = vsel %vm2465, %v2544, 0.0
          %v2611 = vadd.f32 %v2609, %v2610
          %v2612 = vsel %vm2465, %v2545, 0.0
          %v2613 = vadd.f32 %v2611, %v2612
          %v2614 = vsel %vm2465, %v2546, 0.0
          %v2615 = vadd.f32 %v2613, %v2614
          %v2616 = vsel %vm2465, %v2547, 0.0
          %v2617 = vadd.f32 %v2615, %v2616
          %v2618 = vsel %vm2465, %v2548, 0.0
          %v2619 = vadd.f32 %v2617, %v2618
          %v2620 = vsel %vm2465, %v2549, 0.0
          %v2621 = vadd.f32 %v2619, %v2620
          %v2622 = vsel %vm2465, %v2550, 0.0
          %v2623 = vadd.f32 %v2621, %v2622
          %v2624 = vsel %vm2465, %v2551, 0.0
          %v2625 = vadd.f32 %v2623, %v2624
          %v2626 = vsel %vm2465, %v2552, 0.0
          %v2627 = vadd.f32 %v2625, %v2626
          %v2628 = vsel %vm2465, %v2553, 0.0
          %v2629 = vadd.f32 %v2627, %v2628
          %v2630 = vsel %vm2465, %v2554, 0.0
          %v2631 = vadd.f32 %v2629, %v2630
          %v2632 = vsel %vm2465, %v2555, 0.0
          %v2633 = vadd.f32 %v2631, %v2632
          %v2634 = vsel %vm2465, %v2556, 0.0
          %v2635 = vadd.f32 %v2633, %v2634
          %v2636 = vsel %vm2465, %v2557, 0.0
          %v2637 = vadd.f32 %v2635, %v2636
          %v2638 = vsel %vm2465, %v2558, 0.0
          %v2639 = vadd.f32 %v2637, %v2638
          %v2640 = vsel %vm2465, %v2559, 0.0
          %v2641 = vadd.f32 %v2639, %v2640
          %v2642 = vsel %vm2465, %v2560, 0.0
          %v2643 = vadd.f32 %v2641, %v2642
          %v2644 = vsel %vm2465, %v2561, 0.0
          %v2645 = vadd.f32 %v2643, %v2644
          %v2646 = vsel %vm2465, %v2562, 0.0
          %v2647 = vadd.f32 %v2645, %v2646
          %v2648 = vsel %vm2465, %v2563, 0.0
          %v2649 = vadd.f32 %v2647, %v2648
          %v2650 = vsel %vm2465, %v2564, 0.0
          %v2651 = vadd.f32 %v2649, %v2650
          %v2652 = vsel %vm2465, %v2565, 0.0
          %v2653 = vadd.f32 %v2651, %v2652
          %v2654 = vsel %vm2465, %v2566, 0.0
          %v2655 = vadd.f32 %v2653, %v2654
          %v2656 = vsel %vm2465, %v2567, 0.0
          %v2657 = vadd.f32 %v2655, %v2656
          %v2658 = vsel %vm2465, %v2568, 0.0
          %v2659 = vadd.f32 %v2657, %v2658
          %v2660 = vsel %vm2465, %v2569, 0.0
          %v2661 = vadd.f32 %v2659, %v2660
          %v2662 = vsel %vm2465, %v2570, 0.0
          %v2663 = vadd.f32 %v2661, %v2662
          %v2664 = vsel %vm2465, %v2571, 0.0
          %v2665 = vadd.f32 %v2663, %v2664
          %v2666 = vsel %vm2465, %v2572, 0.0
          %v2667 = vadd.f32 %v2665, %v2666
          %v2668 = vrot.slane %v2667, 4
          %v2669 = vadd.f32 %v2667, %v2668
          %v2670 = vrot.slane %v2669, 2
          %v2671 = vadd.f32 %v2669, %v2670
          %v2672 = vrot.slane %v2671, 1
          %v2673 = vadd.f32 %v2671, %v2672
          %vm2674 = vcmask 516096
          %2675 = vst.msk [vmem:[%s563] sm:$0x1] %vm2674, %v2673
          %v2676 = vmul.f32 %v2541, %v2541
          %v2677 = vmul.f32 %v2542, %v2542
          %v2678 = vmul.f32 %v2543, %v2543
          %v2679 = vmul.f32 %v2544, %v2544
          %v2680 = vmul.f32 %v2545, %v2545
          %v2681 = vmul.f32 %v2546, %v2546
          %v2682 = vmul.f32 %v2547, %v2547
          %v2683 = vmul.f32 %v2548, %v2548
          %v2684 = vmul.f32 %v2549, %v2549
          %v2685 = vmul.f32 %v2550, %v2550
          %v2686 = vmul.f32 %v2551, %v2551
          %v2687 = vmul.f32 %v2552, %v2552
          %v2688 = vmul.f32 %v2553, %v2553
          %v2689 = vmul.f32 %v2554, %v2554
          %v2690 = vmul.f32 %v2555, %v2555
          %v2691 = vmul.f32 %v2556, %v2556
          %v2692 = vmul.f32 %v2557, %v2557
          %v2693 = vmul.f32 %v2558, %v2558
          %v2694 = vmul.f32 %v2559, %v2559
          %v2695 = vmul.f32 %v2560, %v2560
          %v2696 = vmul.f32 %v2561, %v2561
          %v2697 = vmul.f32 %v2562, %v2562
          %v2698 = vmul.f32 %v2563, %v2563
          %v2699 = vmul.f32 %v2564, %v2564
          %v2700 = vmul.f32 %v2565, %v2565
          %v2701 = vmul.f32 %v2566, %v2566
          %v2702 = vmul.f32 %v2567, %v2567
          %v2703 = vmul.f32 %v2568, %v2568
          %v2704 = vmul.f32 %v2569, %v2569
          %v2705 = vmul.f32 %v2570, %v2570
          %v2706 = vmul.f32 %v2571, %v2571
          %v2707 = vmul.f32 %v2572, %v2572
          %v2708 = vsel %vm2465, %v2676, 0.0
          %v2709 = vsel %vm2465, %v2677, 0.0
          %v2710 = vadd.f32 %v2708, %v2709
          %v2711 = vsel %vm2465, %v2678, 0.0
          %v2712 = vadd.f32 %v2710, %v2711
          %v2713 = vsel %vm2465, %v2679, 0.0
          %v2714 = vadd.f32 %v2712, %v2713
          %v2715 = vsel %vm2465, %v2680, 0.0
          %v2716 = vadd.f32 %v2714, %v2715
          %v2717 = vsel %vm2465, %v2681, 0.0
          %v2718 = vadd.f32 %v2716, %v2717
          %v2719 = vsel %vm2465, %v2682, 0.0
          %v2720 = vadd.f32 %v2718, %v2719
          %v2721 = vsel %vm2465, %v2683, 0.0
          %v2722 = vadd.f32 %v2720, %v2721
          %v2723 = vsel %vm2465, %v2684, 0.0
          %v2724 = vadd.f32 %v2722, %v2723
          %v2725 = vsel %vm2465, %v2685, 0.0
          %v2726 = vadd.f32 %v2724, %v2725
          %v2727 = vsel %vm2465, %v2686, 0.0
          %v2728 = vadd.f32 %v2726, %v2727
          %v2729 = vsel %vm2465, %v2687, 0.0
          %v2730 = vadd.f32 %v2728, %v2729
          %v2731 = vsel %vm2465, %v2688, 0.0
          %v2732 = vadd.f32 %v2730, %v2731
          %v2733 = vsel %vm2465, %v2689, 0.0
          %v2734 = vadd.f32 %v2732, %v2733
          %v2735 = vsel %vm2465, %v2690, 0.0
          %v2736 = vadd.f32 %v2734, %v2735
          %v2737 = vsel %vm2465, %v2691, 0.0
          %v2738 = vadd.f32 %v2736, %v2737
          %v2739 = vsel %vm2465, %v2692, 0.0
          %v2740 = vadd.f32 %v2738, %v2739
          %v2741 = vsel %vm2465, %v2693, 0.0
          %v2742 = vadd.f32 %v2740, %v2741
          %v2743 = vsel %vm2465, %v2694, 0.0
          %v2744 = vadd.f32 %v2742, %v2743
          %v2745 = vsel %vm2465, %v2695, 0.0
          %v2746 = vadd.f32 %v2744, %v2745
          %v2747 = vsel %vm2465, %v2696, 0.0
          %v2748 = vadd.f32 %v2746, %v2747
          %v2749 = vsel %vm2465, %v2697, 0.0
          %v2750 = vadd.f32 %v2748, %v2749
          %v2751 = vsel %vm2465, %v2698, 0.0
          %v2752 = vadd.f32 %v2750, %v2751
          %v2753 = vsel %vm2465, %v2699, 0.0
          %v2754 = vadd.f32 %v2752, %v2753
          %v2755 = vsel %vm2465, %v2700, 0.0
          %v2756 = vadd.f32 %v2754, %v2755
          %v2757 = vsel %vm2465, %v2701, 0.0
          %v2758 = vadd.f32 %v2756, %v2757
          %v2759 = vsel %vm2465, %v2702, 0.0
          %v2760 = vadd.f32 %v2758, %v2759
          %v2761 = vsel %vm2465, %v2703, 0.0
          %v2762 = vadd.f32 %v2760, %v2761
          %v2763 = vsel %vm2465, %v2704, 0.0
          %v2764 = vadd.f32 %v2762, %v2763
          %v2765 = vsel %vm2465, %v2705, 0.0
          %v2766 = vadd.f32 %v2764, %v2765
          %v2767 = vsel %vm2465, %v2706, 0.0
          %v2768 = vadd.f32 %v2766, %v2767
          %v2769 = vsel %vm2465, %v2707, 0.0
          %v2770 = vadd.f32 %v2768, %v2769
          %v2771 = vrot.slane %v2770, 4
          %v2772 = vadd.f32 %v2770, %v2771
          %v2773 = vrot.slane %v2772, 2
          %v2774 = vadd.f32 %v2772, %v2773
          %v2775 = vrot.slane %v2774, 1
          %v2776 = vadd.f32 %v2774, %v2775
          %2777 = vst.msk [vmem:[%s566] sm:$0x1] %vm2674, %v2776
        $region66: #{_lambda_.9} parent=53 // pred_fallthru
          _
        %s2778 = smul.u32 32, %s21
        %p2779 = scmp.lt.s32.totalorder %s2778, 191
        %s2780 = scalar_select %p2779, %s2778, 191
        %s2781 = smul.addr %s2780, 8
        %s2782 = scalar_lea.vmem %s3, %s2781
        %p2783 = scmp.lt.s32.totalorder %s21, 5
        %s2784 = scalar_select %p2783, %s21, 5
        %s2785 = scalar_lea.vmem %s4, %s2784
        %p2786 = scmp.lt.s32.totalorder %s21, 5
        %s2787 = scalar_select %p2786, %s21, 5
        %s2788 = scalar_lea.vmem %s5, %s2787
        // Predicated region
        $region67: #{_lambda_.9} parent=53 // pred_check
          %p2789 = pneg %p122
        $region68: #{_lambda_.9} parent=53 // pred_check_branch
          %2791 = sbr.rel (%p2789) target = $region70
        $region69: #{_lambda_.9} parent=53 // pred_region
          %s2792 = smul.u32 32, %s21
        $region70: #{_lambda_.9} parent=53 // pred_fallthru
          _
        // Predicated region
        $region71: #{_lambda_.9} parent=53 // pred_check
          %p2793 = pneg %p148
        $region72: #{_lambda_.9} parent=53 // pred_check_branch
          %2795 = sbr.rel (%p2793) target = $region74
        $region73: #{_lambda_.9} parent=53 // pred_region
          _
        $region74: #{_lambda_.9} parent=53 // pred_fallthru
          _
        // Predicated region
        $region75: #{_lambda_.9} parent=53 // pred_check
          %p2796 = pneg %p174
        $region76: #{_lambda_.9} parent=53 // pred_check_branch
          %2798 = sbr.rel (%p2796) target = $region78
        $region77: #{_lambda_.9} parent=53 // pred_region
          _
        $region78: #{_lambda_.9} parent=53 // pred_fallthru
          _
      $region54: #{_lambda_.9} parent=5 // pred_fallthru
        _
      %p2799 = scmp.le.s32.totalorder 2, %s12
      // Predicated region
      $region79: #{_lambda_.9} parent=5 // pred_check
        %p2800 = pneg %p2799
      $region80: #{_lambda_.9} parent=5 // pred_check_branch
        %2802 = sbr.rel (%p2800) target = $region82
      $region81: #{_lambda_.9} parent=5 // pred_region
        %s2803 = ssub.s32 %s12, 2
        // Predicated region
        $region83: #{_lambda_.9} parent=81 // pred_check
          %p2804 = pneg %p128
        $region84: #{_lambda_.9} parent=81 // pred_check_branch
          %2806 = sbr.rel (%p2804) target = $region86
        $region85: #{_lambda_.9} parent=81 // pred_region
          %s2807 = smul.u32 32, %s23
          %p2808 = scmp.lt.s32.totalorder %s2807, 191
          %s2809 = scalar_select %p2808, %s2807, 191
          %s2810 = smul.addr %s2809, 8
          %s2811 = scalar_lea.vmem %s3, %s2810
        $region86: #{_lambda_.9} parent=81 // pred_fallthru
          _
        // Predicated region
        $region87: #{_lambda_.9} parent=81 // pred_check
          %p2812 = pneg %p154
        $region88: #{_lambda_.9} parent=81 // pred_check_branch
          %2814 = sbr.rel (%p2812) target = $region90
        $region89: #{_lambda_.9} parent=81 // pred_region
          %p2815 = scmp.lt.s32.totalorder %s23, 5
          %s2816 = scalar_select %p2815, %s23, 5
          %s2817 = scalar_lea.vmem %s4, %s2816
        $region90: #{_lambda_.9} parent=81 // pred_fallthru
          _
        // Predicated region
        $region91: #{_lambda_.9} parent=81 // pred_check
          %p2818 = pneg %p180
        $region92: #{_lambda_.9} parent=81 // pred_check_branch
          %2820 = sbr.rel (%p2818) target = $region94
        $region93: #{_lambda_.9} parent=81 // pred_region
          %p2821 = scmp.lt.s32.totalorder %s23, 5
          %s2822 = scalar_select %p2821, %s23, 5
          %s2823 = scalar_lea.vmem %s5, %s2822
        $region94: #{_lambda_.9} parent=81 // pred_fallthru
          _
      $region82: #{_lambda_.9} parent=5 // pred_fallthru
        _
    $region6: #{_lambda_.9} parent=1 // loop_footer
      %s16 = sadd.s32 1, %s12
    $region7: #{_lambda_.9} parent=1 // loop_footer_branch
      %11 = sbr.rel target = $region3
    $region8: #{_lambda_.9} parent=1 // loop_exit
      _

// kernel: _lambda_.10
$region0: #{_lambda_.10}
  #allocation0 [shape = 'u32[]', space=smem, size = 0x4, offset = 0x4, fixed_abs, tag = 'smem constant byte address 0x4 - core index']
  #allocation1 [shape = 'u32[144,128]{1,0:T(1,128)}', space=vmem, size = 0x12000, scoped, tag = 'internal scratch']
  %s0 = inlined_call_operand.vmem [shape: f32[1536,64], index: 0, kind: input, shape index: {}]
  %s1 = inlined_call_operand.vmem [shape: f32[1,64], index: 1, kind: input, shape index: {}]
  %s2 = inlined_call_operand.vmem [shape: f32[1,64], index: 2, kind: input, shape index: {}]
  %s3 = inlined_call_operand.vmem [shape: bf16[1536,64], index: 3, kind: output, shape index: {}]
  %s4 = sld [smem:[#allocation0]]
  $region45: #{_lambda_.10} parent=0
    _
  %s6 = ssub.s32 1, %s4
  %s7 = scalar_select 0, %s6, %s4
  loop: start=0, step=1, limit=8
  $region2: #{_lambda_.10} parent=0 // loop_pre_header
    _
  $region3: #{_lambda_.10} parent=0 // loop_header
    %s9 = sphi 0, %s13
    %p10 = scmp.ge.s32.totalorder %s9, 8
    %s19 = sphi 0, %s21
    %s22 = sphi 0, %s19
    %s23 = sphi 0, %s22
    %s39 = sphi 0, %s23
    %s43 = sphi 0, %s43
    %s45 = sphi 0, %s43
    %s46 = sphi 0, %s45
    %s60 = sphi 0, %s46
    %s64 = sphi 0, %s64
    %s66 = sphi 0, %s64
    %s67 = sphi 0, %s66
    %s81 = sphi 0, %s67
    %s87 = sphi 0, %s89
    %s90 = sphi 0, %s87
    %s91 = sphi 0, %s90
    %s107 = sphi 0, %s91
  $region4: #{_lambda_.10} parent=0 // loop_header_branch
    %12 = sbr.rel (%p10) target = $region8
  $region5: #{_lambda_.10} parent=0 // loop_body
    %s14 = ssub.s32 %s9, 1
    %s15 = ssub.s32 %s9, 2
    %s16 = sadd.s32 %s9, 1
    %s17 = ssub.s32 %s9, %s16
    %p18 = scmp.eq.s32.totalorder %s17, 0
    %s20 = sadd.s32 %s19, 1
    %s21 = scalar_select %p18, %s19, %s20
    %p24 = pneg %p18
    %p25 = scmp.eq.s32.totalorder %s9, 5
    %p26 = por %p24, %p25
    %p27 = scmp.ne.s32.totalorder %s19, %s22
    %p28 = scmp.eq.s32.totalorder %s9, 0
    %p29 = por %p27, %p28
    %p30 = scmp.ne.s32.totalorder %s19, %s22
    %p31 = scmp.eq.s32.totalorder %s14, 5
    %p32 = por %p30, %p31
    %p33 = scmp.ne.s32.totalorder %s22, %s23
    %p34 = scmp.eq.s32.totalorder %s14, 0
    %p35 = por %p33, %p34
    %p36 = scmp.ne.s32.totalorder %s22, %s23
    %p37 = scmp.eq.s32.totalorder %s15, 5
    %p38 = por %p36, %p37
    %p40 = scmp.ne.s32.totalorder %s23, %s39
    %p41 = scmp.eq.s32.totalorder %s15, 0
    %p42 = por %p40, %p41
    %s44 = sadd.s32 %s43, 1
    %p47 = scmp.eq.s32.totalorder %s9, 5
    %p48 = scmp.ne.s32.totalorder %s43, %s45
    %p49 = scmp.eq.s32.totalorder %s9, 0
    %p50 = por %p48, %p49
    %p51 = scmp.ne.s32.totalorder %s43, %s45
    %p52 = scmp.eq.s32.totalorder %s14, 5
    %p53 = por %p51, %p52
    %p54 = scmp.ne.s32.totalorder %s45, %s46
    %p55 = scmp.eq.s32.totalorder %s14, 0
    %p56 = por %p54, %p55
    %p57 = scmp.ne.s32.totalorder %s45, %s46
    %p58 = scmp.eq.s32.totalorder %s15, 5
    %p59 = por %p57, %p58
    %p61 = scmp.ne.s32.totalorder %s46, %s60
    %p62 = scmp.eq.s32.totalorder %s15, 0
    %p63 = por %p61, %p62
    %s65 = sadd.s32 %s64, 1
    %p68 = scmp.eq.s32.totalorder %s9, 5
    %p69 = scmp.ne.s32.totalorder %s64, %s66
    %p70 = scmp.eq.s32.totalorder %s9, 0
    %p71 = por %p69, %p70
    %p72 = scmp.ne.s32.totalorder %s64, %s66
    %p73 = scmp.eq.s32.totalorder %s14, 5
    %p74 = por %p72, %p73
    %p75 = scmp.ne.s32.totalorder %s66, %s67
    %p76 = scmp.eq.s32.totalorder %s14, 0
    %p77 = por %p75, %p76
    %p78 = scmp.ne.s32.totalorder %s66, %s67
    %p79 = scmp.eq.s32.totalorder %s15, 5
    %p80 = por %p78, %p79
    %p82 = scmp.ne.s32.totalorder %s67, %s81
    %p83 = scmp.eq.s32.totalorder %s15, 0
    %p84 = por %p82, %p83
    %s85 = ssub.s32 %s9, %s16
    %p86 = scmp.eq.s32.totalorder %s85, 0
    %s88 = sadd.s32 %s87, 1
    %s89 = scalar_select %p86, %s87, %s88
    %p92 = pneg %p86
    %p93 = scmp.eq.s32.totalorder %s9, 5
    %p94 = por %p92, %p93
    %p95 = scmp.ne.s32.totalorder %s87, %s90
    %p96 = scmp.eq.s32.totalorder %s9, 0
    %p97 = por %p95, %p96
    %p98 = scmp.ne.s32.totalorder %s87, %s90
    %p99 = scmp.eq.s32.totalorder %s14, 5
    %p100 = por %p98, %p99
    %p101 = scmp.ne.s32.totalorder %s90, %s91
    %p102 = scmp.eq.s32.totalorder %s14, 0
    %p103 = por %p101, %p102
    %p104 = scmp.ne.s32.totalorder %s90, %s91
    %p105 = scmp.eq.s32.totalorder %s15, 5
    %p106 = por %p104, %p105
    %p108 = scmp.ne.s32.totalorder %s91, %s107
    %p109 = scmp.eq.s32.totalorder %s15, 0
    %p110 = por %p108, %p109
    %p111 = scmp.le.s32.totalorder 1, %s9
    %p112 = scmp.lt.s32.totalorder %s9, 7
    %p113 = pnand %p111, %p112
    %p114 = pneg %p113
    // Predicated region
    $region9: #{_lambda_.10} parent=5 // pred_check
      _
    $region10: #{_lambda_.10} parent=5 // pred_check_branch
      %116 = sbr.rel (%p113) target = $region12
    $region11: #{_lambda_.10} parent=5 // pred_region
      %s117 = ssub.s32 %s9, 1
      // Predicated region
      $region13: #{_lambda_.10} parent=11 // pred_check
        %p118 = pneg %p56
      $region14: #{_lambda_.10} parent=11 // pred_check_branch
        %120 = sbr.rel (%p118) target = $region16
      $region15: #{_lambda_.10} parent=11 // pred_region
        _
      $region16: #{_lambda_.10} parent=11 // pred_fallthru
        _
      // Predicated region
      $region17: #{_lambda_.10} parent=11 // pred_check
        %p121 = pneg %p77
      $region18: #{_lambda_.10} parent=11 // pred_check_branch
        %123 = sbr.rel (%p121) target = $region20
      $region19: #{_lambda_.10} parent=11 // pred_region
        _
      $region20: #{_lambda_.10} parent=11 // pred_fallthru
        _
    $region12: #{_lambda_.10} parent=5 // pred_fallthru
      _
    %p124 = scmp.lt.s32.totalorder %s9, 6
    // Predicated region
    $region21: #{_lambda_.10} parent=5 // pred_check
      %p125 = pneg %p124
    $region22: #{_lambda_.10} parent=5 // pred_check_branch
      %127 = sbr.rel (%p125) target = $region24
    $region23: #{_lambda_.10} parent=5 // pred_region
      // Predicated region
      $region25: #{_lambda_.10} parent=23 // pred_check
        %p128 = pneg %p29
      $region26: #{_lambda_.10} parent=23 // pred_check_branch
        %130 = sbr.rel (%p128) target = $region28
      $region27: #{_lambda_.10} parent=23 // pred_region
        %s131 = smul.u32 32, %s9
        %p132 = scmp.lt.s32.totalorder %s131, 191
        %s133 = scalar_select %p132, %s131, 191
        %s134 = smul.addr %s133, 8
        %s135 = scalar_lea.vmem %s0, %s134
        %s136 = smul.u32 32, %s9
      $region28: #{_lambda_.10} parent=23 // pred_fallthru
        _
    $region24: #{_lambda_.10} parent=5 // pred_fallthru
      _
    %p137 = scmp.le.s32.totalorder 1, %s9
    %p138 = scmp.lt.s32.totalorder %s9, 7
    %p139 = pnand %p137, %p138
    %p140 = pneg %p139
    // Predicated region
    $region29: #{_lambda_.10} parent=5 // pred_check
      _
    $region30: #{_lambda_.10} parent=5 // pred_check_branch
      %142 = sbr.rel (%p139) target = $region32
    $region31: #{_lambda_.10} parent=5 // pred_region
      %s143 = ssub.s32 %s9, 1
      %s144 = smul.u32 32, %s14
      %p145 = scmp.lt.s32.totalorder %s144, 191
      %s146 = scalar_select %p145, %s144, 191
      %s147 = smul.addr %s146, 8
      %s148 = scalar_lea.vmem %s0, %s147
      %p149 = pneg %p35
      %p150 = pneg %p32
      %p151 = pneg %p56
      %p152 = pneg %p53
      %p153 = pneg %p77
      %p154 = pneg %p74
      %p155 = pneg %p103
      %p156 = pneg %p100
      %s157 = smul.u32 32, %s14
      %p158 = scmp.lt.s32.totalorder %s157, 191
      %s159 = scalar_select %p158, %s157, 191
      %s160 = smul.addr %s159, 4
      %s161 = scalar_lea.vmem %s3, %s160
      %s162 = smul.u32 32, %s14
      %p163 = scmp.lt.s32.totalorder %s162, 191
      %s164 = scalar_select %p163, %s162, 191
      %s165 = smul.addr %s164, 8
      %s166 = scalar_lea.vmem %s0, %s165
      %s167 = smul.u32 32, %s14
      %s168 = smul.u32 32, %s14
      %p169 = scmp.lt.s32.totalorder %s168, 191
      %s170 = scalar_select %p169, %s168, 191
      %s171 = smul.addr %s170, 4
      %s172 = scalar_lea.vmem %s3, %s171
      %s173 = smul.u32 32, %s14
      %v174 = vld [vmem:[%s166] sm:$0xff]
      %v175 = vld [vmem:[%s166 + $0x8] sm:$0xff]
      %v176 = vld [vmem:[%s166 + $0x10] sm:$0xff]
      %v177 = vld [vmem:[%s166 + $0x18] sm:$0xff]
      %v178 = vld [vmem:[%s166 + $0x20] sm:$0xff]
      %v179 = vld [vmem:[%s166 + $0x28] sm:$0xff]
      %v180 = vld [vmem:[%s166 + $0x30] sm:$0xff]
      %v181 = vld [vmem:[%s166 + $0x38] sm:$0xff]
      %v182 = vld [vmem:[%s166 + $0x40] sm:$0xff]
      %v183 = vld [vmem:[%s166 + $0x48] sm:$0xff]
      %v184 = vld [vmem:[%s166 + $0x50] sm:$0xff]
      %v185 = vld [vmem:[%s166 + $0x58] sm:$0xff]
      %v186 = vld [vmem:[%s166 + $0x60] sm:$0xff]
      %v187 = vld [vmem:[%s166 + $0x68] sm:$0xff]
      %v188 = vld [vmem:[%s166 + $0x70] sm:$0xff]
      %v189 = vld [vmem:[%s166 + $0x78] sm:$0xff]
      %v190 = vld [vmem:[%s166 + $0x80] sm:$0xff]
      %v191 = vld [vmem:[%s166 + $0x88] sm:$0xff]
      %v192 = vld [vmem:[%s166 + $0x90] sm:$0xff]
      %v193 = vld [vmem:[%s166 + $0x98] sm:$0xff]
      %v194 = vld [vmem:[%s166 + $0xa0] sm:$0xff]
      %v195 = vld [vmem:[%s166 + $0xa8] sm:$0xff]
      %v196 = vld [vmem:[%s166 + $0xb0] sm:$0xff]
      %v197 = vld [vmem:[%s166 + $0xb8] sm:$0xff]
      %v198 = vld [vmem:[%s166 + $0xc0] sm:$0xff]
      %v199 = vld [vmem:[%s166 + $0xc8] sm:$0xff]
      %v200 = vld [vmem:[%s166 + $0xd0] sm:$0xff]
      %v201 = vld [vmem:[%s166 + $0xd8] sm:$0xff]
      %v202 = vld [vmem:[%s166 + $0xe0] sm:$0xff]
      %v203 = vld [vmem:[%s166 + $0xe8] sm:$0xff]
      %v204 = vld [vmem:[%s166 + $0xf0] sm:$0xff]
      %v205 = vld [vmem:[%s166 + $0xf8] sm:$0xff]
      %v206 = vld [vmem:[%s1] sm:$0x1]
      %v208 = vlaneseq
      %v209 = vshrl.u32 %v208, 7
      %v210 = vsub.s32 0, %v209
      %v211 = vrot.slane %v206, %v210
      %v213 = vmul.f32 %v174, %v211
      %v214 = vmul.f32 %v175, %v211
      %v215 = vmul.f32 %v176, %v211
      %v216 = vmul.f32 %v177, %v211
      %v217 = vmul.f32 %v178, %v211
      %v218 = vmul.f32 %v179, %v211
      %v219 = vmul.f32 %v180, %v211
      %v220 = vmul.f32 %v181, %v211
      %v221 = vmul.f32 %v182, %v211
      %v222 = vmul.f32 %v183, %v211
      %v223 = vmul.f32 %v184, %v211
      %v224 = vmul.f32 %v185, %v211
      %v225 = vmul.f32 %v186, %v211
      %v226 = vmul.f32 %v187, %v211
      %v227 = vmul.f32 %v188, %v211
      %v228 = vmul.f32 %v189, %v211
      %v229 = vmul.f32 %v190, %v211
      %v230 = vmul.f32 %v191, %v211
      %v231 = vmul.f32 %v192, %v211
      %v232 = vmul.f32 %v193, %v211
      %v233 = vmul.f32 %v194, %v211
      %v234 = vmul.f32 %v195, %v211
      %v235 = vmul.f32 %v196, %v211
      %v236 = vmul.f32 %v197, %v211
      %v237 = vmul.f32 %v198, %v211
      %v238 = vmul.f32 %v199, %v211
      %v239 = vmul.f32 %v200, %v211
      %v240 = vmul.f32 %v201, %v211
      %v241 = vmul.f32 %v202, %v211
      %v242 = vmul.f32 %v203, %v211
      %v243 = vmul.f32 %v204, %v211
      %v244 = vmul.f32 %v205, %v211
      %v245 = vld [vmem:[%s2] sm:$0x1]
      %v247 = vlaneseq
      %v248 = vshrl.u32 %v247, 7
      %v249 = vsub.s32 0, %v248
      %v250 = vrot.slane %v245, %v249
      %v252 = vadd.f32 %v213, %v250
      %v253 = vadd.f32 %v214, %v250
      %v254 = vadd.f32 %v215, %v250
      %v255 = vadd.f32 %v216, %v250
      %v256 = vadd.f32 %v217, %v250
      %v257 = vadd.f32 %v218, %v250
      %v258 = vadd.f32 %v219, %v250
      %v259 = vadd.f32 %v220, %v250
      %v260 = vadd.f32 %v221, %v250
      %v261 = vadd.f32 %v222, %v250
      %v262 = vadd.f32 %v223, %v250
      %v263 = vadd.f32 %v224, %v250
      %v264 = vadd.f32 %v225, %v250
      %v265 = vadd.f32 %v226, %v250
      %v266 = vadd.f32 %v227, %v250
      %v267 = vadd.f32 %v228, %v250
      %v268 = vadd.f32 %v229, %v250
      %v269 = vadd.f32 %v230, %v250
      %v270 = vadd.f32 %v231, %v250
      %v271 = vadd.f32 %v232, %v250
      %v272 = vadd.f32 %v233, %v250
      %v273 = vadd.f32 %v234, %v250
      %v274 = vadd.f32 %v235, %v250
      %v275 = vadd.f32 %v236, %v250
      %v276 = vadd.f32 %v237, %v250
      %v277 = vadd.f32 %v238, %v250
      %v278 = vadd.f32 %v239, %v250
      %v279 = vadd.f32 %v240, %v250
      %v280 = vadd.f32 %v241, %v250
      %v281 = vadd.f32 %v242, %v250
      %v282 = vadd.f32 %v243, %v250
      %v283 = vadd.f32 %v244, %v250
      %v284 = vmax.f32 %v252, 0.0
      %v285 = vmax.f32 %v253, 0.0
      %v286 = vmax.f32 %v254, 0.0
      %v287 = vmax.f32 %v255, 0.0
      %v288 = vmax.f32 %v256, 0.0
      %v289 = vmax.f32 %v257, 0.0
      %v290 = vmax.f32 %v258, 0.0
      %v291 = vmax.f32 %v259, 0.0
      %v292 = vmax.f32 %v260, 0.0
      %v293 = vmax.f32 %v261, 0.0
      %v294 = vmax.f32 %v262, 0.0
      %v295 = vmax.f32 %v263, 0.0
      %v296 = vmax.f32 %v264, 0.0
      %v297 = vmax.f32 %v265, 0.0
      %v298 = vmax.f32 %v266, 0.0
      %v299 = vmax.f32 %v267, 0.0
      %v300 = vmax.f32 %v268, 0.0
      %v301 = vmax.f32 %v269, 0.0
      %v302 = vmax.f32 %v270, 0.0
      %v303 = vmax.f32 %v271, 0.0
      %v304 = vmax.f32 %v272, 0.0
      %v305 = vmax.f32 %v273, 0.0
      %v306 = vmax.f32 %v274, 0.0
      %v307 = vmax.f32 %v275, 0.0
      %v308 = vmax.f32 %v276, 0.0
      %v309 = vmax.f32 %v277, 0.0
      %v310 = vmax.f32 %v278, 0.0
      %v311 = vmax.f32 %v279, 0.0
      %v312 = vmax.f32 %v280, 0.0
      %v313 = vmax.f32 %v281, 0.0
      %v314 = vmax.f32 %v282, 0.0
      %v315 = vmax.f32 %v283, 0.0
      %v316 = vpack.c.bf16 %v285, %v284
      %v317 = vpack.c.bf16 %v287, %v286
      %v318 = vpack.c.bf16 %v289, %v288
      %v319 = vpack.c.bf16 %v291, %v290
      %v320 = vpack.c.bf16 %v293, %v292
      %v321 = vpack.c.bf16 %v295, %v294
      %v322 = vpack.c.bf16 %v297, %v296
      %v323 = vpack.c.bf16 %v299, %v298
      %v324 = vpack.c.bf16 %v301, %v300
      %v325 = vpack.c.bf16 %v303, %v302
      %v326 = vpack.c.bf16 %v305, %v304
      %v327 = vpack.c.bf16 %v307, %v306
      %v328 = vpack.c.bf16 %v309, %v308
      %v329 = vpack.c.bf16 %v311, %v310
      %v330 = vpack.c.bf16 %v313, %v312
      %v331 = vpack.c.bf16 %v315, %v314
      %v348 = vunpack.c.l.b16 %v316
      %v349 = vunpack.c.h.b16 %v316
      %v350 = vunpack.c.l.b16 %v317
      %v351 = vunpack.c.h.b16 %v317
      %v352 = vunpack.c.l.b16 %v318
      %v353 = vunpack.c.h.b16 %v318
      %v354 = vunpack.c.l.b16 %v319
      %v355 = vunpack.c.h.b16 %v319
      %v356 = vunpack.c.l.b16 %v320
      %v357 = vunpack.c.h.b16 %v320
      %v358 = vunpack.c.l.b16 %v321
      %v359 = vunpack.c.h.b16 %v321
      %v360 = vunpack.c.l.b16 %v322
      %v361 = vunpack.c.h.b16 %v322
      %v362 = vunpack.c.l.b16 %v323
      %v363 = vunpack.c.h.b16 %v323
      %v364 = vunpack.c.l.b16 %v324
      %v365 = vunpack.c.h.b16 %v324
      %v366 = vunpack.c.l.b16 %v325
      %v367 = vunpack.c.h.b16 %v325
      %v368 = vunpack.c.l.b16 %v326
      %v369 = vunpack.c.h.b16 %v326
      %v370 = vunpack.c.l.b16 %v327
      %v371 = vunpack.c.h.b16 %v327
      %v372 = vunpack.c.l.b16 %v328
      %v373 = vunpack.c.h.b16 %v328
      %v374 = vunpack.c.l.b16 %v329
      %v375 = vunpack.c.h.b16 %v329
      %v376 = vunpack.c.l.b16 %v330
      %v377 = vunpack.c.h.b16 %v330
      %v378 = vunpack.c.l.b16 %v331
      %v379 = vunpack.c.h.b16 %v331
      %v380 = vpack.c.b16 %v348, %v348
      %v381 = vpack.c.b16 %v349, %v349
      %v382 = vpack.c.b16 %v350, %v350
      %v383 = vpack.c.b16 %v351, %v351
      %v384 = vpack.c.b16 %v352, %v352
      %v385 = vpack.c.b16 %v353, %v353
      %v386 = vpack.c.b16 %v354, %v354
      %v387 = vpack.c.b16 %v355, %v355
      %v388 = vpack.c.b16 %v356, %v356
      %v389 = vpack.c.b16 %v357, %v357
      %v390 = vpack.c.b16 %v358, %v358
      %v391 = vpack.c.b16 %v359, %v359
      %v392 = vpack.c.b16 %v360, %v360
      %v393 = vpack.c.b16 %v361, %v361
      %v394 = vpack.c.b16 %v362, %v362
      %v395 = vpack.c.b16 %v363, %v363
      %v396 = vpack.c.b16 %v364, %v364
      %v397 = vpack.c.b16 %v365, %v365
      %v398 = vpack.c.b16 %v366, %v366
      %v399 = vpack.c.b16 %v367, %v367
      %v400 = vpack.c.b16 %v368, %v368
      %v401 = vpack.c.b16 %v369, %v369
      %v402 = vpack.c.b16 %v370, %v370
      %v403 = vpack.c.b16 %v371, %v371
      %v404 = vpack.c.b16 %v372, %v372
      %v405 = vpack.c.b16 %v373, %v373
      %v406 = vpack.c.b16 %v374, %v374
      %v407 = vpack.c.b16 %v375, %v375
      %v408 = vpack.c.b16 %v376, %v376
      %v409 = vpack.c.b16 %v377, %v377
      %v410 = vpack.c.b16 %v378, %v378
      %v411 = vpack.c.b16 %v379, %v379
      %vm444 = vcmask 519168
      %445 = vst.msk [vmem:[%s172] sm:$0xf] %vm444, %v380
      %446 = vst.msk [vmem:[%s172 + $0x4] sm:$0xf] %vm444, %v381
      %447 = vst.msk [vmem:[%s172 + $0x8] sm:$0xf] %vm444, %v382
      %448 = vst.msk [vmem:[%s172 + $0xc] sm:$0xf] %vm444, %v383
      %449 = vst.msk [vmem:[%s172 + $0x10] sm:$0xf] %vm444, %v384
      %450 = vst.msk [vmem:[%s172 + $0x14] sm:$0xf] %vm444, %v385
      %451 = vst.msk [vmem:[%s172 + $0x18] sm:$0xf] %vm444, %v386
      %452 = vst.msk [vmem:[%s172 + $0x1c] sm:$0xf] %vm444, %v387
      %453 = vst.msk [vmem:[%s172 + $0x20] sm:$0xf] %vm444, %v388
      %454 = vst.msk [vmem:[%s172 + $0x24] sm:$0xf] %vm444, %v389
      %455 = vst.msk [vmem:[%s172 + $0x28] sm:$0xf] %vm444, %v390
      %456 = vst.msk [vmem:[%s172 + $0x2c] sm:$0xf] %vm444, %v391
      %457 = vst.msk [vmem:[%s172 + $0x30] sm:$0xf] %vm444, %v392
      %458 = vst.msk [vmem:[%s172 + $0x34] sm:$0xf] %vm444, %v393
      %459 = vst.msk [vmem:[%s172 + $0x38] sm:$0xf] %vm444, %v394
      %460 = vst.msk [vmem:[%s172 + $0x3c] sm:$0xf] %vm444, %v395
      %461 = vst.msk [vmem:[%s172 + $0x40] sm:$0xf] %vm444, %v396
      %462 = vst.msk [vmem:[%s172 + $0x44] sm:$0xf] %vm444, %v397
      %463 = vst.msk [vmem:[%s172 + $0x48] sm:$0xf] %vm444, %v398
      %464 = vst.msk [vmem:[%s172 + $0x4c] sm:$0xf] %vm444, %v399
      %465 = vst.msk [vmem:[%s172 + $0x50] sm:$0xf] %vm444, %v400
      %466 = vst.msk [vmem:[%s172 + $0x54] sm:$0xf] %vm444, %v401
      %467 = vst.msk [vmem:[%s172 + $0x58] sm:$0xf] %vm444, %v402
      %468 = vst.msk [vmem:[%s172 + $0x5c] sm:$0xf] %vm444, %v403
      %469 = vst.msk [vmem:[%s172 + $0x60] sm:$0xf] %vm444, %v404
      %470 = vst.msk [vmem:[%s172 + $0x64] sm:$0xf] %vm444, %v405
      %471 = vst.msk [vmem:[%s172 + $0x68] sm:$0xf] %vm444, %v406
      %472 = vst.msk [vmem:[%s172 + $0x6c] sm:$0xf] %vm444, %v407
      %473 = vst.msk [vmem:[%s172 + $0x70] sm:$0xf] %vm444, %v408
      %474 = vst.msk [vmem:[%s172 + $0x74] sm:$0xf] %vm444, %v409
      %475 = vst.msk [vmem:[%s172 + $0x78] sm:$0xf] %vm444, %v410
      %476 = vst.msk [vmem:[%s172 + $0x7c] sm:$0xf] %vm444, %v411
      %s477 = smul.u32 32, %s14
      %p478 = scmp.lt.s32.totalorder %s477, 191
      %s479 = scalar_select %p478, %s477, 191
      %s480 = smul.addr %s479, 4
      %s481 = scalar_lea.vmem %s3, %s480
      // Predicated region
      $region33: #{_lambda_.10} parent=31 // pred_check
        %p482 = pneg %p100
      $region34: #{_lambda_.10} parent=31 // pred_check_branch
        %484 = sbr.rel (%p482) target = $region36
      $region35: #{_lambda_.10} parent=31 // pred_region
        %s485 = smul.u32 32, %s14
      $region36: #{_lambda_.10} parent=31 // pred_fallthru
        _
    $region32: #{_lambda_.10} parent=5 // pred_fallthru
      _
    %p486 = scmp.le.s32.totalorder 2, %s9
    // Predicated region
    $region37: #{_lambda_.10} parent=5 // pred_check
      %p487 = pneg %p486
    $region38: #{_lambda_.10} parent=5 // pred_check_branch
      %489 = sbr.rel (%p487) target = $region40
    $region39: #{_lambda_.10} parent=5 // pred_region
      %s490 = ssub.s32 %s9, 2
      // Predicated region
      $region41: #{_lambda_.10} parent=39 // pred_check
        %p491 = pneg %p106
      $region42: #{_lambda_.10} parent=39 // pred_check_branch
        %493 = sbr.rel (%p491) target = $region44
      $region43: #{_lambda_.10} parent=39 // pred_region
        %s494 = smul.u32 32, %s15
        %p495 = scmp.lt.s32.totalorder %s494, 191
        %s496 = scalar_select %p495, %s494, 191
        %s497 = smul.addr %s496, 4
        %s498 = scalar_lea.vmem %s3, %s497
      $region44: #{_lambda_.10} parent=39 // pred_fallthru
        _
    $region40: #{_lambda_.10} parent=5 // pred_fallthru
      _
  $region6: #{_lambda_.10} parent=0 // loop_footer
    %s13 = sadd.s32 1, %s9
  $region7: #{_lambda_.10} parent=0 // loop_footer_branch
    %8 = sbr.rel target = $region3
  $region8: #{_lambda_.10} parent=0 // loop_exit
    _

// kernel: _lambda_.12
$region0: #{_lambda_.12}
  #allocation0 [shape = 'u32[]', space=smem, size = 0x4, offset = 0x4, fixed_abs, tag = 'smem constant byte address 0x4 - core index']
  #allocation1 [shape = 'u32[144,128]{1,0:T(1,128)}', space=vmem, size = 0x12000, scoped, tag = 'internal scratch']
  %s0 = inlined_call_operand.vmem [shape: f32[5632,32], index: 0, kind: input, shape index: {}]
  %s1 = inlined_call_operand.vmem [shape: f32[1,32], index: 1, kind: input, shape index: {}]
  %s2 = inlined_call_operand.vmem [shape: f32[1,32], index: 2, kind: input, shape index: {}]
  %s3 = inlined_call_operand.vmem [shape: bf16[5632,32], index: 3, kind: output, shape index: {}]
  %s4 = sld [smem:[#allocation0]]
  $region45: #{_lambda_.12} parent=0
    _
  %s6 = ssub.s32 1, %s4
  %s7 = scalar_select 0, %s6, %s4
  loop: start=0, step=1, limit=24
  $region2: #{_lambda_.12} parent=0 // loop_pre_header
    _
  $region3: #{_lambda_.12} parent=0 // loop_header
    %s9 = sphi 0, %s13
    %p10 = scmp.ge.s32.totalorder %s9, 24
    %s19 = sphi 0, %s21
    %s22 = sphi 0, %s19
    %s23 = sphi 0, %s22
    %s39 = sphi 0, %s23
    %s43 = sphi 0, %s43
    %s45 = sphi 0, %s43
    %s46 = sphi 0, %s45
    %s60 = sphi 0, %s46
    %s64 = sphi 0, %s64
    %s66 = sphi 0, %s64
    %s67 = sphi 0, %s66
    %s81 = sphi 0, %s67
    %s87 = sphi 0, %s89
    %s90 = sphi 0, %s87
    %s91 = sphi 0, %s90
    %s107 = sphi 0, %s91
  $region4: #{_lambda_.12} parent=0 // loop_header_branch
    %12 = sbr.rel (%p10) target = $region8
  $region5: #{_lambda_.12} parent=0 // loop_body
    %s14 = ssub.s32 %s9, 1
    %s15 = ssub.s32 %s9, 2
    %s16 = sadd.s32 %s9, 1
    %s17 = ssub.s32 %s9, %s16
    %p18 = scmp.eq.s32.totalorder %s17, 0
    %s20 = sadd.s32 %s19, 1
    %s21 = scalar_select %p18, %s19, %s20
    %p24 = pneg %p18
    %p25 = scmp.eq.s32.totalorder %s9, 21
    %p26 = por %p24, %p25
    %p27 = scmp.ne.s32.totalorder %s19, %s22
    %p28 = scmp.eq.s32.totalorder %s9, 0
    %p29 = por %p27, %p28
    %p30 = scmp.ne.s32.totalorder %s19, %s22
    %p31 = scmp.eq.s32.totalorder %s14, 21
    %p32 = por %p30, %p31
    %p33 = scmp.ne.s32.totalorder %s22, %s23
    %p34 = scmp.eq.s32.totalorder %s14, 0
    %p35 = por %p33, %p34
    %p36 = scmp.ne.s32.totalorder %s22, %s23
    %p37 = scmp.eq.s32.totalorder %s15, 21
    %p38 = por %p36, %p37
    %p40 = scmp.ne.s32.totalorder %s23, %s39
    %p41 = scmp.eq.s32.totalorder %s15, 0
    %p42 = por %p40, %p41
    %s44 = sadd.s32 %s43, 1
    %p47 = scmp.eq.s32.totalorder %s9, 21
    %p48 = scmp.ne.s32.totalorder %s43, %s45
    %p49 = scmp.eq.s32.totalorder %s9, 0
    %p50 = por %p48, %p49
    %p51 = scmp.ne.s32.totalorder %s43, %s45
    %p52 = scmp.eq.s32.totalorder %s14, 21
    %p53 = por %p51, %p52
    %p54 = scmp.ne.s32.totalorder %s45, %s46
    %p55 = scmp.eq.s32.totalorder %s14, 0
    %p56 = por %p54, %p55
    %p57 = scmp.ne.s32.totalorder %s45, %s46
    %p58 = scmp.eq.s32.totalorder %s15, 21
    %p59 = por %p57, %p58
    %p61 = scmp.ne.s32.totalorder %s46, %s60
    %p62 = scmp.eq.s32.totalorder %s15, 0
    %p63 = por %p61, %p62
    %s65 = sadd.s32 %s64, 1
    %p68 = scmp.eq.s32.totalorder %s9, 21
    %p69 = scmp.ne.s32.totalorder %s64, %s66
    %p70 = scmp.eq.s32.totalorder %s9, 0
    %p71 = por %p69, %p70
    %p72 = scmp.ne.s32.totalorder %s64, %s66
    %p73 = scmp.eq.s32.totalorder %s14, 21
    %p74 = por %p72, %p73
    %p75 = scmp.ne.s32.totalorder %s66, %s67
    %p76 = scmp.eq.s32.totalorder %s14, 0
    %p77 = por %p75, %p76
    %p78 = scmp.ne.s32.totalorder %s66, %s67
    %p79 = scmp.eq.s32.totalorder %s15, 21
    %p80 = por %p78, %p79
    %p82 = scmp.ne.s32.totalorder %s67, %s81
    %p83 = scmp.eq.s32.totalorder %s15, 0
    %p84 = por %p82, %p83
    %s85 = ssub.s32 %s9, %s16
    %p86 = scmp.eq.s32.totalorder %s85, 0
    %s88 = sadd.s32 %s87, 1
    %s89 = scalar_select %p86, %s87, %s88
    %p92 = pneg %p86
    %p93 = scmp.eq.s32.totalorder %s9, 21
    %p94 = por %p92, %p93
    %p95 = scmp.ne.s32.totalorder %s87, %s90
    %p96 = scmp.eq.s32.totalorder %s9, 0
    %p97 = por %p95, %p96
    %p98 = scmp.ne.s32.totalorder %s87, %s90
    %p99 = scmp.eq.s32.totalorder %s14, 21
    %p100 = por %p98, %p99
    %p101 = scmp.ne.s32.totalorder %s90, %s91
    %p102 = scmp.eq.s32.totalorder %s14, 0
    %p103 = por %p101, %p102
    %p104 = scmp.ne.s32.totalorder %s90, %s91
    %p105 = scmp.eq.s32.totalorder %s15, 21
    %p106 = por %p104, %p105
    %p108 = scmp.ne.s32.totalorder %s91, %s107
    %p109 = scmp.eq.s32.totalorder %s15, 0
    %p110 = por %p108, %p109
    %p111 = scmp.le.s32.totalorder 1, %s9
    %p112 = scmp.lt.s32.totalorder %s9, 23
    %p113 = pnand %p111, %p112
    %p114 = pneg %p113
    // Predicated region
    $region9: #{_lambda_.12} parent=5 // pred_check
      _
    $region10: #{_lambda_.12} parent=5 // pred_check_branch
      %116 = sbr.rel (%p113) target = $region12
    $region11: #{_lambda_.12} parent=5 // pred_region
      %s117 = ssub.s32 %s9, 1
      // Predicated region
      $region13: #{_lambda_.12} parent=11 // pred_check
        %p118 = pneg %p56
      $region14: #{_lambda_.12} parent=11 // pred_check_branch
        %120 = sbr.rel (%p118) target = $region16
      $region15: #{_lambda_.12} parent=11 // pred_region
        _
      $region16: #{_lambda_.12} parent=11 // pred_fallthru
        _
      // Predicated region
      $region17: #{_lambda_.12} parent=11 // pred_check
        %p121 = pneg %p77
      $region18: #{_lambda_.12} parent=11 // pred_check_branch
        %123 = sbr.rel (%p121) target = $region20
      $region19: #{_lambda_.12} parent=11 // pred_region
        _
      $region20: #{_lambda_.12} parent=11 // pred_fallthru
        _
    $region12: #{_lambda_.12} parent=5 // pred_fallthru
      _
    %p124 = scmp.lt.s32.totalorder %s9, 22
    // Predicated region
    $region21: #{_lambda_.12} parent=5 // pred_check
      %p125 = pneg %p124
    $region22: #{_lambda_.12} parent=5 // pred_check_branch
      %127 = sbr.rel (%p125) target = $region24
    $region23: #{_lambda_.12} parent=5 // pred_region
      // Predicated region
      $region25: #{_lambda_.12} parent=23 // pred_check
        %p128 = pneg %p29
      $region26: #{_lambda_.12} parent=23 // pred_check_branch
        %130 = sbr.rel (%p128) target = $region28
      $region27: #{_lambda_.12} parent=23 // pred_region
        %s131 = smul.u32 32, %s9
        %p132 = scmp.lt.s32.totalorder %s131, 703
        %s133 = scalar_select %p132, %s131, 703
        %s134 = smul.addr %s133, 8
        %s135 = scalar_lea.vmem %s0, %s134
        %s136 = smul.u32 32, %s9
      $region28: #{_lambda_.12} parent=23 // pred_fallthru
        _
    $region24: #{_lambda_.12} parent=5 // pred_fallthru
      _
    %p137 = scmp.le.s32.totalorder 1, %s9
    %p138 = scmp.lt.s32.totalorder %s9, 23
    %p139 = pnand %p137, %p138
    %p140 = pneg %p139
    // Predicated region
    $region29: #{_lambda_.12} parent=5 // pred_check
      _
    $region30: #{_lambda_.12} parent=5 // pred_check_branch
      %142 = sbr.rel (%p139) target = $region32
    $region31: #{_lambda_.12} parent=5 // pred_region
      %s143 = ssub.s32 %s9, 1
      %s144 = smul.u32 32, %s14
      %p145 = scmp.lt.s32.totalorder %s144, 703
      %s146 = scalar_select %p145, %s144, 703
      %s147 = smul.addr %s146, 8
      %s148 = scalar_lea.vmem %s0, %s147
      %p149 = pneg %p35
      %p150 = pneg %p32
      %p151 = pneg %p56
      %p152 = pneg %p53
      %p153 = pneg %p77
      %p154 = pneg %p74
      %p155 = pneg %p103
      %p156 = pneg %p100
      %s157 = smul.u32 32, %s14
      %p158 = scmp.lt.s32.totalorder %s157, 703
      %s159 = scalar_select %p158, %s157, 703
      %s160 = smul.addr %s159, 4
      %s161 = scalar_lea.vmem %s3, %s160
      %s162 = smul.u32 32, %s14
      %p163 = scmp.lt.s32.totalorder %s162, 703
      %s164 = scalar_select %p163, %s162, 703
      %s165 = smul.addr %s164, 8
      %s166 = scalar_lea.vmem %s0, %s165
      %s167 = smul.u32 32, %s14
      %s168 = smul.u32 32, %s14
      %p169 = scmp.lt.s32.totalorder %s168, 703
      %s170 = scalar_select %p169, %s168, 703
      %s171 = smul.addr %s170, 4
      %s172 = scalar_lea.vmem %s3, %s171
      %s173 = smul.u32 32, %s14
      %v174 = vld [vmem:[%s166] sm:$0xff]
      %v175 = vld [vmem:[%s166 + $0x8] sm:$0xff]
      %v176 = vld [vmem:[%s166 + $0x10] sm:$0xff]
      %v177 = vld [vmem:[%s166 + $0x18] sm:$0xff]
      %v178 = vld [vmem:[%s166 + $0x20] sm:$0xff]
      %v179 = vld [vmem:[%s166 + $0x28] sm:$0xff]
      %v180 = vld [vmem:[%s166 + $0x30] sm:$0xff]
      %v181 = vld [vmem:[%s166 + $0x38] sm:$0xff]
      %v182 = vld [vmem:[%s166 + $0x40] sm:$0xff]
      %v183 = vld [vmem:[%s166 + $0x48] sm:$0xff]
      %v184 = vld [vmem:[%s166 + $0x50] sm:$0xff]
      %v185 = vld [vmem:[%s166 + $0x58] sm:$0xff]
      %v186 = vld [vmem:[%s166 + $0x60] sm:$0xff]
      %v187 = vld [vmem:[%s166 + $0x68] sm:$0xff]
      %v188 = vld [vmem:[%s166 + $0x70] sm:$0xff]
      %v189 = vld [vmem:[%s166 + $0x78] sm:$0xff]
      %v190 = vld [vmem:[%s166 + $0x80] sm:$0xff]
      %v191 = vld [vmem:[%s166 + $0x88] sm:$0xff]
      %v192 = vld [vmem:[%s166 + $0x90] sm:$0xff]
      %v193 = vld [vmem:[%s166 + $0x98] sm:$0xff]
      %v194 = vld [vmem:[%s166 + $0xa0] sm:$0xff]
      %v195 = vld [vmem:[%s166 + $0xa8] sm:$0xff]
      %v196 = vld [vmem:[%s166 + $0xb0] sm:$0xff]
      %v197 = vld [vmem:[%s166 + $0xb8] sm:$0xff]
      %v198 = vld [vmem:[%s166 + $0xc0] sm:$0xff]
      %v199 = vld [vmem:[%s166 + $0xc8] sm:$0xff]
      %v200 = vld [vmem:[%s166 + $0xd0] sm:$0xff]
      %v201 = vld [vmem:[%s166 + $0xd8] sm:$0xff]
      %v202 = vld [vmem:[%s166 + $0xe0] sm:$0xff]
      %v203 = vld [vmem:[%s166 + $0xe8] sm:$0xff]
      %v204 = vld [vmem:[%s166 + $0xf0] sm:$0xff]
      %v205 = vld [vmem:[%s166 + $0xf8] sm:$0xff]
      %v206 = vld [vmem:[%s1] sm:$0x1]
      %v208 = vlaneseq
      %v209 = vshrl.u32 %v208, 7
      %v210 = vsub.s32 0, %v209
      %v211 = vrot.slane %v206, %v210
      %v213 = vmul.f32 %v174, %v211
      %v214 = vmul.f32 %v175, %v211
      %v215 = vmul.f32 %v176, %v211
      %v216 = vmul.f32 %v177, %v211
      %v217 = vmul.f32 %v178, %v211
      %v218 = vmul.f32 %v179, %v211
      %v219 = vmul.f32 %v180, %v211
      %v220 = vmul.f32 %v181, %v211
      %v221 = vmul.f32 %v182, %v211
      %v222 = vmul.f32 %v183, %v211
      %v223 = vmul.f32 %v184, %v211
      %v224 = vmul.f32 %v185, %v211
      %v225 = vmul.f32 %v186, %v211
      %v226 = vmul.f32 %v187, %v211
      %v227 = vmul.f32 %v188, %v211
      %v228 = vmul.f32 %v189, %v211
      %v229 = vmul.f32 %v190, %v211
      %v230 = vmul.f32 %v191, %v211
      %v231 = vmul.f32 %v192, %v211
      %v232 = vmul.f32 %v193, %v211
      %v233 = vmul.f32 %v194, %v211
      %v234 = vmul.f32 %v195, %v211
      %v235 = vmul.f32 %v196, %v211
      %v236 = vmul.f32 %v197, %v211
      %v237 = vmul.f32 %v198, %v211
      %v238 = vmul.f32 %v199, %v211
      %v239 = vmul.f32 %v200, %v211
      %v240 = vmul.f32 %v201, %v211
      %v241 = vmul.f32 %v202, %v211
      %v242 = vmul.f32 %v203, %v211
      %v243 = vmul.f32 %v204, %v211
      %v244 = vmul.f32 %v205, %v211
      %v245 = vld [vmem:[%s2] sm:$0x1]
      %v247 = vlaneseq
      %v248 = vshrl.u32 %v247, 7
      %v249 = vsub.s32 0, %v248
      %v250 = vrot.slane %v245, %v249
      %v252 = vadd.f32 %v213, %v250
      %v253 = vadd.f32 %v214, %v250
      %v254 = vadd.f32 %v215, %v250
      %v255 = vadd.f32 %v216, %v250
      %v256 = vadd.f32 %v217, %v250
      %v257 = vadd.f32 %v218, %v250
      %v258 = vadd.f32 %v219, %v250
      %v259 = vadd.f32 %v220, %v250
      %v260 = vadd.f32 %v221, %v250
      %v261 = vadd.f32 %v222, %v250
      %v262 = vadd.f32 %v223, %v250
      %v263 = vadd.f32 %v224, %v250
      %v264 = vadd.f32 %v225, %v250
      %v265 = vadd.f32 %v226, %v250
      %v266 = vadd.f32 %v227, %v250
      %v267 = vadd.f32 %v228, %v250
      %v268 = vadd.f32 %v229, %v250
      %v269 = vadd.f32 %v230, %v250
      %v270 = vadd.f32 %v231, %v250
      %v271 = vadd.f32 %v232, %v250
      %v272 = vadd.f32 %v233, %v250
      %v273 = vadd.f32 %v234, %v250
      %v274 = vadd.f32 %v235, %v250
      %v275 = vadd.f32 %v236, %v250
      %v276 = vadd.f32 %v237, %v250
      %v277 = vadd.f32 %v238, %v250
      %v278 = vadd.f32 %v239, %v250
      %v279 = vadd.f32 %v240, %v250
      %v280 = vadd.f32 %v241, %v250
      %v281 = vadd.f32 %v242, %v250
      %v282 = vadd.f32 %v243, %v250
      %v283 = vadd.f32 %v244, %v250
      %v284 = vmax.f32 %v252, 0.0
      %v285 = vmax.f32 %v253, 0.0
      %v286 = vmax.f32 %v254, 0.0
      %v287 = vmax.f32 %v255, 0.0
      %v288 = vmax.f32 %v256, 0.0
      %v289 = vmax.f32 %v257, 0.0
      %v290 = vmax.f32 %v258, 0.0
      %v291 = vmax.f32 %v259, 0.0
      %v292 = vmax.f32 %v260, 0.0
      %v293 = vmax.f32 %v261, 0.0
      %v294 = vmax.f32 %v262, 0.0
      %v295 = vmax.f32 %v263, 0.0
      %v296 = vmax.f32 %v264, 0.0
      %v297 = vmax.f32 %v265, 0.0
      %v298 = vmax.f32 %v266, 0.0
      %v299 = vmax.f32 %v267, 0.0
      %v300 = vmax.f32 %v268, 0.0
      %v301 = vmax.f32 %v269, 0.0
      %v302 = vmax.f32 %v270, 0.0
      %v303 = vmax.f32 %v271, 0.0
      %v304 = vmax.f32 %v272, 0.0
      %v305 = vmax.f32 %v273, 0.0
      %v306 = vmax.f32 %v274, 0.0
      %v307 = vmax.f32 %v275, 0.0
      %v308 = vmax.f32 %v276, 0.0
      %v309 = vmax.f32 %v277, 0.0
      %v310 = vmax.f32 %v278, 0.0
      %v311 = vmax.f32 %v279, 0.0
      %v312 = vmax.f32 %v280, 0.0
      %v313 = vmax.f32 %v281, 0.0
      %v314 = vmax.f32 %v282, 0.0
      %v315 = vmax.f32 %v283, 0.0
      %v316 = vpack.c.bf16 %v285, %v284
      %v317 = vpack.c.bf16 %v287, %v286
      %v318 = vpack.c.bf16 %v289, %v288
      %v319 = vpack.c.bf16 %v291, %v290
      %v320 = vpack.c.bf16 %v293, %v292
      %v321 = vpack.c.bf16 %v295, %v294
      %v322 = vpack.c.bf16 %v297, %v296
      %v323 = vpack.c.bf16 %v299, %v298
      %v324 = vpack.c.bf16 %v301, %v300
      %v325 = vpack.c.bf16 %v303, %v302
      %v326 = vpack.c.bf16 %v305, %v304
      %v327 = vpack.c.bf16 %v307, %v306
      %v328 = vpack.c.bf16 %v309, %v308
      %v329 = vpack.c.bf16 %v311, %v310
      %v330 = vpack.c.bf16 %v313, %v312
      %v331 = vpack.c.bf16 %v315, %v314
      %v348 = vunpack.c.l.b16 %v316
      %v349 = vunpack.c.h.b16 %v316
      %v350 = vunpack.c.l.b16 %v317
      %v351 = vunpack.c.h.b16 %v317
      %v352 = vunpack.c.l.b16 %v318
      %v353 = vunpack.c.h.b16 %v318
      %v354 = vunpack.c.l.b16 %v319
      %v355 = vunpack.c.h.b16 %v319
      %v356 = vunpack.c.l.b16 %v320
      %v357 = vunpack.c.h.b16 %v320
      %v358 = vunpack.c.l.b16 %v321
      %v359 = vunpack.c.h.b16 %v321
      %v360 = vunpack.c.l.b16 %v322
      %v361 = vunpack.c.h.b16 %v322
      %v362 = vunpack.c.l.b16 %v323
      %v363 = vunpack.c.h.b16 %v323
      %v364 = vunpack.c.l.b16 %v324
      %v365 = vunpack.c.h.b16 %v324
      %v366 = vunpack.c.l.b16 %v325
      %v367 = vunpack.c.h.b16 %v325
      %v368 = vunpack.c.l.b16 %v326
      %v369 = vunpack.c.h.b16 %v326
      %v370 = vunpack.c.l.b16 %v327
      %v371 = vunpack.c.h.b16 %v327
      %v372 = vunpack.c.l.b16 %v328
      %v373 = vunpack.c.h.b16 %v328
      %v374 = vunpack.c.l.b16 %v329
      %v375 = vunpack.c.h.b16 %v329
      %v376 = vunpack.c.l.b16 %v330
      %v377 = vunpack.c.h.b16 %v330
      %v378 = vunpack.c.l.b16 %v331
      %v379 = vunpack.c.h.b16 %v331
      %v380 = vpack.c.b16 %v348, %v348
      %v381 = vpack.c.b16 %v349, %v349
      %v382 = vpack.c.b16 %v350, %v350
      %v383 = vpack.c.b16 %v351, %v351
      %v384 = vpack.c.b16 %v352, %v352
      %v385 = vpack.c.b16 %v353, %v353
      %v386 = vpack.c.b16 %v354, %v354
      %v387 = vpack.c.b16 %v355, %v355
      %v388 = vpack.c.b16 %v356, %v356
      %v389 = vpack.c.b16 %v357, %v357
      %v390 = vpack.c.b16 %v358, %v358
      %v391 = vpack.c.b16 %v359, %v359
      %v392 = vpack.c.b16 %v360, %v360
      %v393 = vpack.c.b16 %v361, %v361
      %v394 = vpack.c.b16 %v362, %v362
      %v395 = vpack.c.b16 %v363, %v363
      %v396 = vpack.c.b16 %v364, %v364
      %v397 = vpack.c.b16 %v365, %v365
      %v398 = vpack.c.b16 %v366, %v366
      %v399 = vpack.c.b16 %v367, %v367
      %v400 = vpack.c.b16 %v368, %v368
      %v401 = vpack.c.b16 %v369, %v369
      %v402 = vpack.c.b16 %v370, %v370
      %v403 = vpack.c.b16 %v371, %v371
      %v404 = vpack.c.b16 %v372, %v372
      %v405 = vpack.c.b16 %v373, %v373
      %v406 = vpack.c.b16 %v374, %v374
      %v407 = vpack.c.b16 %v375, %v375
      %v408 = vpack.c.b16 %v376, %v376
      %v409 = vpack.c.b16 %v377, %v377
      %v410 = vpack.c.b16 %v378, %v378
      %v411 = vpack.c.b16 %v379, %v379
      %vm444 = vcmask 257024
      %445 = vst.msk [vmem:[%s172] sm:$0xf] %vm444, %v380
      %446 = vst.msk [vmem:[%s172 + $0x4] sm:$0xf] %vm444, %v381
      %447 = vst.msk [vmem:[%s172 + $0x8] sm:$0xf] %vm444, %v382
      %448 = vst.msk [vmem:[%s172 + $0xc] sm:$0xf] %vm444, %v383
      %449 = vst.msk [vmem:[%s172 + $0x10] sm:$0xf] %vm444, %v384
      %450 = vst.msk [vmem:[%s172 + $0x14] sm:$0xf] %vm444, %v385
      %451 = vst.msk [vmem:[%s172 + $0x18] sm:$0xf] %vm444, %v386
      %452 = vst.msk [vmem:[%s172 + $0x1c] sm:$0xf] %vm444, %v387
      %453 = vst.msk [vmem:[%s172 + $0x20] sm:$0xf] %vm444, %v388
      %454 = vst.msk [vmem:[%s172 + $0x24] sm:$0xf] %vm444, %v389
      %455 = vst.msk [vmem:[%s172 + $0x28] sm:$0xf] %vm444, %v390
      %456 = vst.msk [vmem:[%s172 + $0x2c] sm:$0xf] %vm444, %v391
      %457 = vst.msk [vmem:[%s172 + $0x30] sm:$0xf] %vm444, %v392
      %458 = vst.msk [vmem:[%s172 + $0x34] sm:$0xf] %vm444, %v393
      %459 = vst.msk [vmem:[%s172 + $0x38] sm:$0xf] %vm444, %v394
      %460 = vst.msk [vmem:[%s172 + $0x3c] sm:$0xf] %vm444, %v395
      %461 = vst.msk [vmem:[%s172 + $0x40] sm:$0xf] %vm444, %v396
      %462 = vst.msk [vmem:[%s172 + $0x44] sm:$0xf] %vm444, %v397
      %463 = vst.msk [vmem:[%s172 + $0x48] sm:$0xf] %vm444, %v398
      %464 = vst.msk [vmem:[%s172 + $0x4c] sm:$0xf] %vm444, %v399
      %465 = vst.msk [vmem:[%s172 + $0x50] sm:$0xf] %vm444, %v400
      %466 = vst.msk [vmem:[%s172 + $0x54] sm:$0xf] %vm444, %v401
      %467 = vst.msk [vmem:[%s172 + $0x58] sm:$0xf] %vm444, %v402
      %468 = vst.msk [vmem:[%s172 + $0x5c] sm:$0xf] %vm444, %v403
      %469 = vst.msk [vmem:[%s172 + $0x60] sm:$0xf] %vm444, %v404
      %470 = vst.msk [vmem:[%s172 + $0x64] sm:$0xf] %vm444, %v405
      %471 = vst.msk [vmem:[%s172 + $0x68] sm:$0xf] %vm444, %v406
      %472 = vst.msk [vmem:[%s172 + $0x6c] sm:$0xf] %vm444, %v407
      %473 = vst.msk [vmem:[%s172 + $0x70] sm:$0xf] %vm444, %v408
      %474 = vst.msk [vmem:[%s172 + $0x74] sm:$0xf] %vm444, %v409
      %475 = vst.msk [vmem:[%s172 + $0x78] sm:$0xf] %vm444, %v410
      %476 = vst.msk [vmem:[%s172 + $0x7c] sm:$0xf] %vm444, %v411
      %s477 = smul.u32 32, %s14
      %p478 = scmp.lt.s32.totalorder %s477, 703
      %s479 = scalar_select %p478, %s477, 703
      %s480 = smul.addr %s479, 4
      %s481 = scalar_lea.vmem %s3, %s480
      // Predicated region
      $region33: #{_lambda_.12} parent=31 // pred_check
        %p482 = pneg %p100
      $region34: #{_lambda_.12} parent=31 // pred_check_branch
        %484 = sbr.rel (%p482) target = $region36
      $region35: #{_lambda_.12} parent=31 // pred_region
        %s485 = smul.u32 32, %s14
      $region36: #{_lambda_.12} parent=31 // pred_fallthru
        _
    $region32: #{_lambda_.12} parent=5 // pred_fallthru
      _
    %p486 = scmp.le.s32.totalorder 2, %s9
    // Predicated region
    $region37: #{_lambda_.12} parent=5 // pred_check
      %p487 = pneg %p486
    $region38: #{_lambda_.12} parent=5 // pred_check_branch
      %489 = sbr.rel (%p487) target = $region40
    $region39: #{_lambda_.12} parent=5 // pred_region
      %s490 = ssub.s32 %s9, 2
      // Predicated region
      $region41: #{_lambda_.12} parent=39 // pred_check
        %p491 = pneg %p106
      $region42: #{_lambda_.12} parent=39 // pred_check_branch
        %493 = sbr.rel (%p491) target = $region44
      $region43: #{_lambda_.12} parent=39 // pred_region
        %s494 = smul.u32 32, %s15
        %p495 = scmp.lt.s32.totalorder %s494, 703
        %s496 = scalar_select %p495, %s494, 703
        %s497 = smul.addr %s496, 4
        %s498 = scalar_lea.vmem %s3, %s497
      $region44: #{_lambda_.12} parent=39 // pred_fallthru
        _
    $region40: #{_lambda_.12} parent=5 // pred_fallthru
      _
  $region6: #{_lambda_.12} parent=0 // loop_footer
    %s13 = sadd.s32 1, %s9
  $region7: #{_lambda_.12} parent=0 // loop_footer_branch
    %8 = sbr.rel target = $region3
  $region8: #{_lambda_.12} parent=0 // loop_exit
    _

// kernel: _lambda_.11
$region0: #{_lambda_.11}
  #allocation0 [shape = 'u32[]', space=smem, size = 0x4, offset = 0x4, fixed_abs, tag = 'smem constant byte address 0x4 - core index']
  #allocation1 [shape = 'u32[144,128]{1,0:T(1,128)}', space=vmem, size = 0x12000, scoped, tag = 'internal scratch']
  %s0 = inlined_call_operand.vmem [shape: bf16[5632,640], index: 0, kind: input, shape index: {}]
  %s1 = inlined_call_operand.vmem [shape: bf16[640,32], index: 1, kind: input, shape index: {}]
  %s2 = inlined_call_operand.vmem [shape: f32[1,32], index: 2, kind: input, shape index: {}]
  %s3 = inlined_call_operand.vmem [shape: f32[5632,32], index: 3, kind: output, shape index: {0}]
  %s4 = inlined_call_operand.vmem [shape: f32[22,1,32], index: 4, kind: output, shape index: {1}]
  %s5 = inlined_call_operand.vmem [shape: f32[22,1,32], index: 5, kind: output, shape index: {2}]
  %6 = xla_tuple %s3, %s4, %s5
  %s7 = sld [smem:[#allocation0]]
  $region69: #{_lambda_.11} parent=0
    _
  %s9 = ssub.s32 1, %s7
  %s10 = scalar_select 0, %s9, %s7
  loop: start=0, step=1, limit=24
  $region2: #{_lambda_.11} parent=0 // loop_pre_header
    _
  $region3: #{_lambda_.11} parent=0 // loop_header
    %s12 = sphi 0, %s16
    %p13 = scmp.ge.s32.totalorder %s12, 24
    %s19 = sphi 0, %s31
    %s20 = sphi 0, %s27
    %s21 = sphi 0, %s19
    %s22 = sphi 0, %s20
    %s23 = sphi 0, %s21
    %s24 = sphi 0, %s22
    %s36 = sphi 0, %s38
    %s39 = sphi 0, %s36
    %s40 = sphi 0, %s39
    %s56 = sphi 0, %s40
    %s62 = sphi 0, %s64
    %s65 = sphi 0, %s62
    %s66 = sphi 0, %s65
    %s82 = sphi 0, %s66
    %s86 = sphi 0, %s86
    %s88 = sphi 0, %s86
    %s89 = sphi 0, %s88
    %s103 = sphi 0, %s89
    %s109 = sphi 0, %s111
    %s112 = sphi 0, %s109
    %s113 = sphi 0, %s112
    %s129 = sphi 0, %s113
    %s135 = sphi 0, %s137
    %s138 = sphi 0, %s135
    %s139 = sphi 0, %s138
    %s155 = sphi 0, %s139
    %s161 = sphi 0, %s163
    %s164 = sphi 0, %s161
    %s165 = sphi 0, %s164
    %s181 = sphi 0, %s165
  $region4: #{_lambda_.11} parent=0 // loop_header_branch
    %15 = sbr.rel (%p13) target = $region8
  $region5: #{_lambda_.11} parent=0 // loop_body
    %s17 = ssub.s32 %s12, 1
    %s18 = ssub.s32 %s12, 2
    %s25 = sadd.s32 1, %s20
    %p26 = scmp.ge.s32.totalorder %s25, 1
    %s27 = scalar_select %p26, 0, %s25
    %s28 = sadd.s32 1, %s19
    %s29 = scalar_select %p26, %s28, %s19
    %p30 = scmp.ge.s32.totalorder %s29, 22
    %s31 = scalar_select %p30, 0, %s29
    %s32 = ssub.s32 %s19, %s31
    %s33 = ssub.s32 %s20, %s27
    %s34 = sor.u32 %s32, %s33
    %p35 = scmp.eq.s32.totalorder %s34, 0
    %s37 = sadd.s32 %s36, 1
    %s38 = scalar_select %p35, %s36, %s37
    %p41 = pneg %p35
    %p42 = scmp.eq.s32.totalorder %s12, 21
    %p43 = por %p41, %p42
    %p44 = scmp.ne.s32.totalorder %s36, %s39
    %p45 = scmp.eq.s32.totalorder %s12, 0
    %p46 = por %p44, %p45
    %p47 = scmp.ne.s32.totalorder %s36, %s39
    %p48 = scmp.eq.s32.totalorder %s17, 21
    %p49 = por %p47, %p48
    %p50 = scmp.ne.s32.totalorder %s39, %s40
    %p51 = scmp.eq.s32.totalorder %s17, 0
    %p52 = por %p50, %p51
    %p53 = scmp.ne.s32.totalorder %s39, %s40
    %p54 = scmp.eq.s32.totalorder %s18, 21
    %p55 = por %p53, %p54
    %p57 = scmp.ne.s32.totalorder %s40, %s56
    %p58 = scmp.eq.s32.totalorder %s18, 0
    %p59 = por %p57, %p58
    %s60 = ssub.s32 %s20, %s27
    %p61 = scmp.eq.s32.totalorder %s60, 0
    %s63 = sadd.s32 %s62, 1
    %s64 = scalar_select %p61, %s62, %s63
    %p67 = pneg %p61
    %p68 = scmp.eq.s32.totalorder %s12, 21
    %p69 = por %p67, %p68
    %p70 = scmp.ne.s32.totalorder %s62, %s65
    %p71 = scmp.eq.s32.totalorder %s12, 0
    %p72 = por %p70, %p71
    %p73 = scmp.ne.s32.totalorder %s62, %s65
    %p74 = scmp.eq.s32.totalorder %s17, 21
    %p75 = por %p73, %p74
    %p76 = scmp.ne.s32.totalorder %s65, %s66
    %p77 = scmp.eq.s32.totalorder %s17, 0
    %p78 = por %p76, %p77
    %p79 = scmp.ne.s32.totalorder %s65, %s66
    %p80 = scmp.eq.s32.totalorder %s18, 21
    %p81 = por %p79, %p80
    %p83 = scmp.ne.s32.totalorder %s66, %s82
    %p84 = scmp.eq.s32.totalorder %s18, 0
    %p85 = por %p83, %p84
    %s87 = sadd.s32 %s86, 1
    %p90 = scmp.eq.s32.totalorder %s12, 21
    %p91 = scmp.ne.s32.totalorder %s86, %s88
    %p92 = scmp.eq.s32.totalorder %s12, 0
    %p93 = por %p91, %p92
    %p94 = scmp.ne.s32.totalorder %s86, %s88
    %p95 = scmp.eq.s32.totalorder %s17, 21
    %p96 = por %p94, %p95
    %p97 = scmp.ne.s32.totalorder %s88, %s89
    %p98 = scmp.eq.s32.totalorder %s17, 0
    %p99 = por %p97, %p98
    %p100 = scmp.ne.s32.totalorder %s88, %s89
    %p101 = scmp.eq.s32.totalorder %s18, 21
    %p102 = por %p100, %p101
    %p104 = scmp.ne.s32.totalorder %s89, %s103
    %p105 = scmp.eq.s32.totalorder %s18, 0
    %p106 = por %p104, %p105
    %s107 = ssub.s32 %s19, %s31
    %p108 = scmp.eq.s32.totalorder %s107, 0
    %s110 = sadd.s32 %s109, 1
    %s111 = scalar_select %p108, %s109, %s110
    %p114 = pneg %p108
    %p115 = scmp.eq.s32.totalorder %s12, 21
    %p116 = por %p114, %p115
    %p117 = scmp.ne.s32.totalorder %s109, %s112
    %p118 = scmp.eq.s32.totalorder %s12, 0
    %p119 = por %p117, %p118
    %p120 = scmp.ne.s32.totalorder %s109, %s112
    %p121 = scmp.eq.s32.totalorder %s17, 21
    %p122 = por %p120, %p121
    %p123 = scmp.ne.s32.totalorder %s112, %s113
    %p124 = scmp.eq.s32.totalorder %s17, 0
    %p125 = por %p123, %p124
    %p126 = scmp.ne.s32.totalorder %s112, %s113
    %p127 = scmp.eq.s32.totalorder %s18, 21
    %p128 = por %p126, %p127
    %p130 = scmp.ne.s32.totalorder %s113, %s129
    %p131 = scmp.eq.s32.totalorder %s18, 0
    %p132 = por %p130, %p131
    %s133 = ssub.s32 %s19, %s31
    %p134 = scmp.eq.s32.totalorder %s133, 0
    %s136 = sadd.s32 %s135, 1
    %s137 = scalar_select %p134, %s135, %s136
    %p140 = pneg %p134
    %p141 = scmp.eq.s32.totalorder %s12, 21
    %p142 = por %p140, %p141
    %p143 = scmp.ne.s32.totalorder %s135, %s138
    %p144 = scmp.eq.s32.totalorder %s12, 0
    %p145 = por %p143, %p144
    %p146 = scmp.ne.s32.totalorder %s135, %s138
    %p147 = scmp.eq.s32.totalorder %s17, 21
    %p148 = por %p146, %p147
    %p149 = scmp.ne.s32.totalorder %s138, %s139
    %p150 = scmp.eq.s32.totalorder %s17, 0
    %p151 = por %p149, %p150
    %p152 = scmp.ne.s32.totalorder %s138, %s139
    %p153 = scmp.eq.s32.totalorder %s18, 21
    %p154 = por %p152, %p153
    %p156 = scmp.ne.s32.totalorder %s139, %s155
    %p157 = scmp.eq.s32.totalorder %s18, 0
    %p158 = por %p156, %p157
    %s159 = ssub.s32 %s19, %s31
    %p160 = scmp.eq.s32.totalorder %s159, 0
    %s162 = sadd.s32 %s161, 1
    %s163 = scalar_select %p160, %s161, %s162
    %p166 = pneg %p160
    %p167 = scmp.eq.s32.totalorder %s12, 21
    %p168 = por %p166, %p167
    %p169 = scmp.ne.s32.totalorder %s161, %s164
    %p170 = scmp.eq.s32.totalorder %s12, 0
    %p171 = por %p169, %p170
    %p172 = scmp.ne.s32.totalorder %s161, %s164
    %p173 = scmp.eq.s32.totalorder %s17, 21
    %p174 = por %p172, %p173
    %p175 = scmp.ne.s32.totalorder %s164, %s165
    %p176 = scmp.eq.s32.totalorder %s17, 0
    %p177 = por %p175, %p176
    %p178 = scmp.ne.s32.totalorder %s164, %s165
    %p179 = scmp.eq.s32.totalorder %s18, 21
    %p180 = por %p178, %p179
    %p182 = scmp.ne.s32.totalorder %s165, %s181
    %p183 = scmp.eq.s32.totalorder %s18, 0
    %p184 = por %p182, %p183
    %p185 = scmp.le.s32.totalorder 1, %s12
    %p186 = scmp.lt.s32.totalorder %s12, 23
    %p187 = pnand %p185, %p186
    %p188 = pneg %p187
    // Predicated region
    $region9: #{_lambda_.11} parent=5 // pred_check
      _
    $region10: #{_lambda_.11} parent=5 // pred_check_branch
      %190 = sbr.rel (%p187) target = $region12
    $region11: #{_lambda_.11} parent=5 // pred_region
      %s191 = ssub.s32 %s12, 1
      // Predicated region
      $region13: #{_lambda_.11} parent=11 // pred_check
        %p192 = pneg %p78
      $region14: #{_lambda_.11} parent=11 // pred_check_branch
        %194 = sbr.rel (%p192) target = $region16
      $region15: #{_lambda_.11} parent=11 // pred_region
        %s195 = smul.u32 80, %s22
        %p196 = scmp.lt.s32.totalorder %s195, 79
        %s197 = scalar_select %p196, %s195, 79
        %s198 = smul.addr %s197, 4
        %s199 = scalar_lea.vmem %s1, %s198
        %s200 = smul.u32 80, %s22
      $region16: #{_lambda_.11} parent=11 // pred_fallthru
        _
      // Predicated region
      $region17: #{_lambda_.11} parent=11 // pred_check
        %p201 = pneg %p99
      $region18: #{_lambda_.11} parent=11 // pred_check_branch
        %203 = sbr.rel (%p201) target = $region20
      $region19: #{_lambda_.11} parent=11 // pred_region
        _
      $region20: #{_lambda_.11} parent=11 // pred_fallthru
        _
    $region12: #{_lambda_.11} parent=5 // pred_fallthru
      _
    %p204 = scmp.lt.s32.totalorder %s12, 22
    // Predicated region
    $region21: #{_lambda_.11} parent=5 // pred_check
      %p205 = pneg %p204
    $region22: #{_lambda_.11} parent=5 // pred_check_branch
      %207 = sbr.rel (%p205) target = $region24
    $region23: #{_lambda_.11} parent=5 // pred_region
      // Predicated region
      $region25: #{_lambda_.11} parent=23 // pred_check
        %p208 = pneg %p46
      $region26: #{_lambda_.11} parent=23 // pred_check_branch
        %210 = sbr.rel (%p208) target = $region28
      $region27: #{_lambda_.11} parent=23 // pred_region
        %s211 = smul.u32 32, %s19
        %s212 = smul.u32 5, %s20
        %p213 = scmp.lt.s32.totalorder %s211, 703
        %s214 = scalar_select %p213, %s211, 703
        %p215 = scmp.lt.s32.totalorder %s212, 4
        %s216 = scalar_select %p215, %s212, 4
        %s217 = smul.addr %s214, 5
        %s218 = sadd.s32 %s216, %s217
        %s219 = smul.addr %s218, 4
        %s220 = scalar_lea.vmem %s0, %s219
        %s221 = smul.u32 32, %s19
        %s222 = smul.u32 5, %s20
      $region28: #{_lambda_.11} parent=23 // pred_fallthru
        _
    $region24: #{_lambda_.11} parent=5 // pred_fallthru
      _
    %p223 = scmp.le.s32.totalorder 1, %s12
    %p224 = scmp.lt.s32.totalorder %s12, 23
    %p225 = pnand %p223, %p224
    %p226 = pneg %p225
    // Predicated region
    $region29: #{_lambda_.11} parent=5 // pred_check
      _
    $region30: #{_lambda_.11} parent=5 // pred_check_branch
      %228 = sbr.rel (%p225) target = $region32
    $region31: #{_lambda_.11} parent=5 // pred_region
      %s229 = ssub.s32 %s12, 1
      %s230 = smul.u32 32, %s21
      %s231 = smul.u32 5, %s22
      %p232 = scmp.lt.s32.totalorder %s230, 703
      %s233 = scalar_select %p232, %s230, 703
      %p234 = scmp.lt.s32.totalorder %s231, 4
      %s235 = scalar_select %p234, %s231, 4
      %s236 = smul.addr %s233, 5
      %s237 = sadd.s32 %s235, %s236
      %s238 = smul.addr %s237, 4
      %s239 = scalar_lea.vmem %s0, %s238
      %p240 = pneg %p52
      %p241 = pneg %p49
      %s242 = smul.u32 80, %s22
      %p243 = scmp.lt.s32.totalorder %s242, 79
      %s244 = scalar_select %p243, %s242, 79
      %s245 = smul.addr %s244, 4
      %s246 = scalar_lea.vmem %s1, %s245
      %p247 = pneg %p78
      %p248 = pneg %p75
      %p249 = pneg %p99
      %p250 = pneg %p96
      %p251 = pneg %p125
      %p252 = pneg %p122
      %s253 = smul.u32 32, %s21
      %p254 = scmp.lt.s32.totalorder %s253, 703
      %s255 = scalar_select %p254, %s253, 703
      %s256 = smul.addr %s255, 8
      %s257 = scalar_lea.vmem %s3, %s256
      %p258 = pneg %p151
      %p259 = pneg %p148
      %p260 = scmp.lt.s32.totalorder %s21, 21
      %s261 = scalar_select %p260, %s21, 21
      %s262 = scalar_lea.vmem %s4, %s261
      %p263 = pneg %p177
      %p264 = pneg %p174
      %p265 = scmp.lt.s32.totalorder %s21, 21
      %s266 = scalar_select %p265, %s21, 21
      %s267 = scalar_lea.vmem %s5, %s266
      %s268 = smul.u32 32, %s21
      %s269 = smul.u32 5, %s22
      %p270 = scmp.lt.s32.totalorder %s268, 703
      %s271 = scalar_select %p270, %s268, 703
      %p272 = scmp.lt.s32.totalorder %s269, 4
      %s273 = scalar_select %p272, %s269, 4
      %s274 = smul.addr %s271, 5
      %s275 = sadd.s32 %s273, %s274
      %s276 = smul.addr %s275, 4
      %s277 = scalar_lea.vmem %s0, %s276
      %s278 = smul.u32 32, %s21
      %s279 = smul.u32 5, %s22
      %s280 = smul.u32 80, %s22
      %p281 = scmp.lt.s32.totalorder %s280, 79
      %s282 = scalar_select %p281, %s280, 79
      %s283 = smul.addr %s282, 4
      %s284 = scalar_lea.vmem %s1, %s283
      %s285 = smul.u32 80, %s22
      %s286 = smul.u32 32, %s21
      %p287 = scmp.lt.s32.totalorder %s286, 703
      %s288 = scalar_select %p287, %s286, 703
      %s289 = smul.addr %s288, 8
      %s290 = scalar_lea.vmem %s3, %s289
      %s291 = smul.u32 32, %s21
      %p292 = scmp.lt.s32.totalorder %s21, 21
      %s293 = scalar_select %p292, %s21, 21
      %s294 = scalar_lea.vmem %s4, %s293
      %p295 = scmp.lt.s32.totalorder %s21, 21
      %s296 = scalar_select %p295, %s21, 21
      %s297 = scalar_lea.vmem %s5, %s296
      %p299 = scmp.eq.s32.totalorder %s22, 0
      // Predicated region
      $region33: #{_lambda_.11} parent=31 // pred_check
        %p300 = pneg %p299
      $region34: #{_lambda_.11} parent=31 // pred_check_branch
        %302 = sbr.rel (%p300) target = $region36
      $region35: #{_lambda_.11} parent=31 // pred_region
        %vm303 = vcmask 261120
        %304 = vst.msk [vmem:[%s290] sm:$0xff] %vm303, 0.0
        %305 = vst.msk [vmem:[%s290 + $0x8] sm:$0xff] %vm303, 0.0
        %306 = vst.msk [vmem:[%s290 + $0x10] sm:$0xff] %vm303, 0.0
        %307 = vst.msk [vmem:[%s290 + $0x18] sm:$0xff] %vm303, 0.0
        %308 = vst.msk [vmem:[%s290 + $0x20] sm:$0xff] %vm303, 0.0
        %309 = vst.msk [vmem:[%s290 + $0x28] sm:$0xff] %vm303, 0.0
        %310 = vst.msk [vmem:[%s290 + $0x30] sm:$0xff] %vm303, 0.0
        %311 = vst.msk [vmem:[%s290 + $0x38] sm:$0xff] %vm303, 0.0
        %312 = vst.msk [vmem:[%s290 + $0x40] sm:$0xff] %vm303, 0.0
        %313 = vst.msk [vmem:[%s290 + $0x48] sm:$0xff] %vm303, 0.0
        %314 = vst.msk [vmem:[%s290 + $0x50] sm:$0xff] %vm303, 0.0
        %315 = vst.msk [vmem:[%s290 + $0x58] sm:$0xff] %vm303, 0.0
        %316 = vst.msk [vmem:[%s290 + $0x60] sm:$0xff] %vm303, 0.0
        %317 = vst.msk [vmem:[%s290 + $0x68] sm:$0xff] %vm303, 0.0
        %318 = vst.msk [vmem:[%s290 + $0x70] sm:$0xff] %vm303, 0.0
        %319 = vst.msk [vmem:[%s290 + $0x78] sm:$0xff] %vm303, 0.0
        %320 = vst.msk [vmem:[%s290 + $0x80] sm:$0xff] %vm303, 0.0
        %321 = vst.msk [vmem:[%s290 + $0x88] sm:$0xff] %vm303, 0.0
        %322 = vst.msk [vmem:[%s290 + $0x90] sm:$0xff] %vm303, 0.0
        %323 = vst.msk [vmem:[%s290 + $0x98] sm:$0xff] %vm303, 0.0
        %324 = vst.msk [vmem:[%s290 + $0xa0] sm:$0xff] %vm303, 0.0
        %325 = vst.msk [vmem:[%s290 + $0xa8] sm:$0xff] %vm303, 0.0
        %326 = vst.msk [vmem:[%s290 + $0xb0] sm:$0xff] %vm303, 0.0
        %327 = vst.msk [vmem:[%s290 + $0xb8] sm:$0xff] %vm303, 0.0
        %328 = vst.msk [vmem:[%s290 + $0xc0] sm:$0xff] %vm303, 0.0
        %329 = vst.msk [vmem:[%s290 + $0xc8] sm:$0xff] %vm303, 0.0
        %330 = vst.msk [vmem:[%s290 + $0xd0] sm:$0xff] %vm303, 0.0
        %331 = vst.msk [vmem:[%s290 + $0xd8] sm:$0xff] %vm303, 0.0
        %332 = vst.msk [vmem:[%s290 + $0xe0] sm:$0xff] %vm303, 0.0
        %333 = vst.msk [vmem:[%s290 + $0xe8] sm:$0xff] %vm303, 0.0
        %334 = vst.msk [vmem:[%s290 + $0xf0] sm:$0xff] %vm303, 0.0
        %335 = vst.msk [vmem:[%s290 + $0xf8] sm:$0xff] %vm303, 0.0
      $region36: #{_lambda_.11} parent=31 // pred_fallthru
        _
      %v336 = vld [vmem:[%s290] sm:$0xff]
      %v337 = vld [vmem:[%s290 + $0x8] sm:$0xff]
      %v338 = vld [vmem:[%s290 + $0x10] sm:$0xff]
      %v339 = vld [vmem:[%s290 + $0x18] sm:$0xff]
      %v340 = vld [vmem:[%s290 + $0x20] sm:$0xff]
      %v341 = vld [vmem:[%s290 + $0x28] sm:$0xff]
      %v342 = vld [vmem:[%s290 + $0x30] sm:$0xff]
      %v343 = vld [vmem:[%s290 + $0x38] sm:$0xff]
      %v344 = vld [vmem:[%s290 + $0x40] sm:$0xff]
      %v345 = vld [vmem:[%s290 + $0x48] sm:$0xff]
      %v346 = vld [vmem:[%s290 + $0x50] sm:$0xff]
      %v347 = vld [vmem:[%s290 + $0x58] sm:$0xff]
      %v348 = vld [vmem:[%s290 + $0x60] sm:$0xff]
      %v349 = vld [vmem:[%s290 + $0x68] sm:$0xff]
      %v350 = vld [vmem:[%s290 + $0x70] sm:$0xff]
      %v351 = vld [vmem:[%s290 + $0x78] sm:$0xff]
      %v352 = vld [vmem:[%s290 + $0x80] sm:$0xff]
      %v353 = vld [vmem:[%s290 + $0x88] sm:$0xff]
      %v354 = vld [vmem:[%s290 + $0x90] sm:$0xff]
      %v355 = vld [vmem:[%s290 + $0x98] sm:$0xff]
      %v356 = vld [vmem:[%s290 + $0xa0] sm:$0xff]
      %v357 = vld [vmem:[%s290 + $0xa8] sm:$0xff]
      %v358 = vld [vmem:[%s290 + $0xb0] sm:$0xff]
      %v359 = vld [vmem:[%s290 + $0xb8] sm:$0xff]
      %v360 = vld [vmem:[%s290 + $0xc0] sm:$0xff]
      %v361 = vld [vmem:[%s290 + $0xc8] sm:$0xff]
      %v362 = vld [vmem:[%s290 + $0xd0] sm:$0xff]
      %v363 = vld [vmem:[%s290 + $0xd8] sm:$0xff]
      %v364 = vld [vmem:[%s290 + $0xe0] sm:$0xff]
      %v365 = vld [vmem:[%s290 + $0xe8] sm:$0xff]
      %v366 = vld [vmem:[%s290 + $0xf0] sm:$0xff]
      %v367 = vld [vmem:[%s290 + $0xf8] sm:$0xff]
      %v368 = vld [vmem:[%s277] sm:$0xff]
      %v369 = vld [vmem:[%s277 + $0x8] sm:$0xff]
      %v370 = vld [vmem:[%s277 + $0x10] sm:$0xf]
      %v371 = vld [vmem:[%s277 + $0x14] sm:$0xff]
      %v372 = vld [vmem:[%s277 + $0x1c] sm:$0xff]
      %v373 = vld [vmem:[%s277 + $0x24] sm:$0xf]
      %v374 = vld [vmem:[%s277 + $0x28] sm:$0xff]
      %v375 = vld [vmem:[%s277 + $0x30] sm:$0xff]
      %v376 = vld [vmem:[%s277 + $0x38] sm:$0xf]
      %v377 = vld [vmem:[%s277 + $0x3c] sm:$0xff]
      %v378 = vld [vmem:[%s277 + $0x44] sm:$0xff]
      %v379 = vld [vmem:[%s277 + $0x4c] sm:$0xf]
      %v380 = vld [vmem:[%s277 + $0x50] sm:$0xff]
      %v381 = vld [vmem:[%s277 + $0x58] sm:$0xff]
      %v382 = vld [vmem:[%s277 + $0x60] sm:$0xf]
      %v383 = vld [vmem:[%s277 + $0x64] sm:$0xff]
      %v384 = vld [vmem:[%s277 + $0x6c] sm:$0xff]
      %v385 = vld [vmem:[%s277 + $0x74] sm:$0xf]
      %v386 = vld [vmem:[%s277 + $0x78] sm:$0xff]
      %v387 = vld [vmem:[%s277 + $0x80] sm:$0xff]
      %v388 = vld [vmem:[%s277 + $0x88] sm:$0xf]
      %v389 = vld [vmem:[%s277 + $0x8c] sm:$0xff]
      %v390 = vld [vmem:[%s277 + $0x94] sm:$0xff]
      %v391 = vld [vmem:[%s277 + $0x9c] sm:$0xf]
      %v392 = vld [vmem:[%s277 + $0xa0] sm:$0xff]
      %v393 = vld [vmem:[%s277 + $0xa8] sm:$0xff]
      %v394 = vld [vmem:[%s277 + $0xb0] sm:$0xf]
      %v395 = vld [vmem:[%s277 + $0xb4] sm:$0xff]
      %v396 = vld [vmem:[%s277 + $0xbc] sm:$0xff]
      %v397 = vld [vmem:[%s277 + $0xc4] sm:$0xf]
      %v398 = vld [vmem:[%s277 + $0xc8] sm:$0xff]
      %v399 = vld [vmem:[%s277 + $0xd0] sm:$0xff]
      %v400 = vld [vmem:[%s277 + $0xd8] sm:$0xf]
      %v401 = vld [vmem:[%s277 + $0xdc] sm:$0xff]
      %v402 = vld [vmem:[%s277 + $0xe4] sm:$0xff]
      %v403 = vld [vmem:[%s277 + $0xec] sm:$0xf]
      %v404 = vld [vmem:[%s277 + $0xf0] sm:$0xff]
      %v405 = vld [vmem:[%s277 + $0xf8] sm:$0xff]
      %v406 = vld [vmem:[%s277 + $0x100] sm:$0xf]
      %v407 = vld [vmem:[%s277 + $0x104] sm:$0xff]
      %v408 = vld [vmem:[%s277 + $0x10c] sm:$0xff]
      %v409 = vld [vmem:[%s277 + $0x114] sm:$0xf]
      %v410 = vld [vmem:[%s277 + $0x118] sm:$0xff]
      %v411 = vld [vmem:[%s277 + $0x120] sm:$0xff]
      %v412 = vld [vmem:[%s277 + $0x128] sm:$0xf]
      %v413 = vld [vmem:[%s277 + $0x12c] sm:$0xff]
      %v414 = vld [vmem:[%s277 + $0x134] sm:$0xff]
      %v415 = vld [vmem:[%s277 + $0x13c] sm:$0xf]
      %v416 = vld [vmem:[%s277 + $0x140] sm:$0xff]
      %v417 = vld [vmem:[%s277 + $0x148] sm:$0xff]
      %v418 = vld [vmem:[%s277 + $0x150] sm:$0xf]
      %v419 = vld [vmem:[%s277 + $0x154] sm:$0xff]
      %v420 = vld [vmem:[%s277 + $0x15c] sm:$0xff]
      %v421 = vld [vmem:[%s277 + $0x164] sm:$0xf]
      %v422 = vld [vmem:[%s277 + $0x168] sm:$0xff]
      %v423 = vld [vmem:[%s277 + $0x170] sm:$0xff]
      %v424 = vld [vmem:[%s277 + $0x178] sm:$0xf]
      %v425 = vld [vmem:[%s277 + $0x17c] sm:$0xff]
      %v426 = vld [vmem:[%s277 + $0x184] sm:$0xff]
      %v427 = vld [vmem:[%s277 + $0x18c] sm:$0xf]
      %v428 = vld [vmem:[%s277 + $0x190] sm:$0xff]
      %v429 = vld [vmem:[%s277 + $0x198] sm:$0xff]
      %v430 = vld [vmem:[%s277 + $0x1a0] sm:$0xf]
      %v431 = vld [vmem:[%s277 + $0x1a4] sm:$0xff]
      %v432 = vld [vmem:[%s277 + $0x1ac] sm:$0xff]
      %v433 = vld [vmem:[%s277 + $0x1b4] sm:$0xf]
      %v434 = vld [vmem:[%s277 + $0x1b8] sm:$0xff]
      %v435 = vld [vmem:[%s277 + $0x1c0] sm:$0xff]
      %v436 = vld [vmem:[%s277 + $0x1c8] sm:$0xf]
      %v437 = vld [vmem:[%s277 + $0x1cc] sm:$0xff]
      %v438 = vld [vmem:[%s277 + $0x1d4] sm:$0xff]
      %v439 = vld [vmem:[%s277 + $0x1dc] sm:$0xf]
      %v440 = vld [vmem:[%s277 + $0x1e0] sm:$0xff]
      %v441 = vld [vmem:[%s277 + $0x1e8] sm:$0xff]
      %v442 = vld [vmem:[%s277 + $0x1f0] sm:$0xf]
      %v443 = vld [vmem:[%s277 + $0x1f4] sm:$0xff]
      %v444 = vld [vmem:[%s277 + $0x1fc] sm:$0xff]
      %v445 = vld [vmem:[%s277 + $0x204] sm:$0xf]
      %v446 = vld [vmem:[%s277 + $0x208] sm:$0xff]
      %v447 = vld [vmem:[%s277 + $0x210] sm:$0xff]
      %v448 = vld [vmem:[%s277 + $0x218] sm:$0xf]
      %v449 = vld [vmem:[%s277 + $0x21c] sm:$0xff]
      %v450 = vld [vmem:[%s277 + $0x224] sm:$0xff]
      %v451 = vld [vmem:[%s277 + $0x22c] sm:$0xf]
      %v452 = vld [vmem:[%s277 + $0x230] sm:$0xff]
      %v453 = vld [vmem:[%s277 + $0x238] sm:$0xff]
      %v454 = vld [vmem:[%s277 + $0x240] sm:$0xf]
      %v455 = vld [vmem:[%s277 + $0x244] sm:$0xff]
      %v456 = vld [vmem:[%s277 + $0x24c] sm:$0xff]
      %v457 = vld [vmem:[%s277 + $0x254] sm:$0xf]
      %v458 = vld [vmem:[%s277 + $0x258] sm:$0xff]
      %v459 = vld [vmem:[%s277 + $0x260] sm:$0xff]
      %v460 = vld [vmem:[%s277 + $0x268] sm:$0xf]
      %v461 = vld [vmem:[%s277 + $0x26c] sm:$0xff]
      %v462 = vld [vmem:[%s277 + $0x274] sm:$0xff]
      %v463 = vld [vmem:[%s277 + $0x27c] sm:$0xf]
      %v464 = vld [vmem:[%s284] sm:$0xf]
      %v465 = vld [vmem:[%s284 + $0x4] sm:$0xf]
      %v466 = vld [vmem:[%s284 + $0x8] sm:$0xf]
      %v467 = vld [vmem:[%s284 + $0xc] sm:$0xf]
      %v468 = vld [vmem:[%s284 + $0x10] sm:$0xf]
      %v469 = vld [vmem:[%s284 + $0x14] sm:$0xf]
      %v470 = vld [vmem:[%s284 + $0x18] sm:$0xf]
      %v471 = vld [vmem:[%s284 + $0x1c] sm:$0xf]
      %v472 = vld [vmem:[%s284 + $0x20] sm:$0xf]
      %v473 = vld [vmem:[%s284 + $0x24] sm:$0xf]
      %v474 = vld [vmem:[%s284 + $0x28] sm:$0xf]
      %v475 = vld [vmem:[%s284 + $0x2c] sm:$0xf]
      %v476 = vld [vmem:[%s284 + $0x30] sm:$0xf]
      %v477 = vld [vmem:[%s284 + $0x34] sm:$0xf]
      %v478 = vld [vmem:[%s284 + $0x38] sm:$0xf]
      %v479 = vld [vmem:[%s284 + $0x3c] sm:$0xf]
      %v480 = vld [vmem:[%s284 + $0x40] sm:$0xf]
      %v481 = vld [vmem:[%s284 + $0x44] sm:$0xf]
      %v482 = vld [vmem:[%s284 + $0x48] sm:$0xf]
      %v483 = vld [vmem:[%s284 + $0x4c] sm:$0xf]
      %v484 = vld [vmem:[%s284 + $0x50] sm:$0xf]
      %v485 = vld [vmem:[%s284 + $0x54] sm:$0xf]
      %v486 = vld [vmem:[%s284 + $0x58] sm:$0xf]
      %v487 = vld [vmem:[%s284 + $0x5c] sm:$0xf]
      %v488 = vld [vmem:[%s284 + $0x60] sm:$0xf]
      %v489 = vld [vmem:[%s284 + $0x64] sm:$0xf]
      %v490 = vld [vmem:[%s284 + $0x68] sm:$0xf]
      %v491 = vld [vmem:[%s284 + $0x6c] sm:$0xf]
      %v492 = vld [vmem:[%s284 + $0x70] sm:$0xf]
      %v493 = vld [vmem:[%s284 + $0x74] sm:$0xf]
      %v494 = vld [vmem:[%s284 + $0x78] sm:$0xf]
      %v495 = vld [vmem:[%s284 + $0x7c] sm:$0xf]
      %v496 = vld [vmem:[%s284 + $0x80] sm:$0xf]
      %v497 = vld [vmem:[%s284 + $0x84] sm:$0xf]
      %v498 = vld [vmem:[%s284 + $0x88] sm:$0xf]
      %v499 = vld [vmem:[%s284 + $0x8c] sm:$0xf]
      %v500 = vld [vmem:[%s284 + $0x90] sm:$0xf]
      %v501 = vld [vmem:[%s284 + $0x94] sm:$0xf]
      %v502 = vld [vmem:[%s284 + $0x98] sm:$0xf]
      %v503 = vld [vmem:[%s284 + $0x9c] sm:$0xf]
      %v504 = vld [vmem:[%s284 + $0xa0] sm:$0xf]
      %v505 = vld [vmem:[%s284 + $0xa4] sm:$0xf]
      %v506 = vld [vmem:[%s284 + $0xa8] sm:$0xf]
      %v507 = vld [vmem:[%s284 + $0xac] sm:$0xf]
      %v508 = vld [vmem:[%s284 + $0xb0] sm:$0xf]
      %v509 = vld [vmem:[%s284 + $0xb4] sm:$0xf]
      %v510 = vld [vmem:[%s284 + $0xb8] sm:$0xf]
      %v511 = vld [vmem:[%s284 + $0xbc] sm:$0xf]
      %v512 = vld [vmem:[%s284 + $0xc0] sm:$0xf]
      %v513 = vld [vmem:[%s284 + $0xc4] sm:$0xf]
      %v514 = vld [vmem:[%s284 + $0xc8] sm:$0xf]
      %v515 = vld [vmem:[%s284 + $0xcc] sm:$0xf]
      %v516 = vld [vmem:[%s284 + $0xd0] sm:$0xf]
      %v517 = vld [vmem:[%s284 + $0xd4] sm:$0xf]
      %v518 = vld [vmem:[%s284 + $0xd8] sm:$0xf]
      %v519 = vld [vmem:[%s284 + $0xdc] sm:$0xf]
      %v520 = vld [vmem:[%s284 + $0xe0] sm:$0xf]
      %v521 = vld [vmem:[%s284 + $0xe4] sm:$0xf]
      %v522 = vld [vmem:[%s284 + $0xe8] sm:$0xf]
      %v523 = vld [vmem:[%s284 + $0xec] sm:$0xf]
      %v524 = vld [vmem:[%s284 + $0xf0] sm:$0xf]
      %v525 = vld [vmem:[%s284 + $0xf4] sm:$0xf]
      %v526 = vld [vmem:[%s284 + $0xf8] sm:$0xf]
      %v527 = vld [vmem:[%s284 + $0xfc] sm:$0xf]
      %v528 = vld [vmem:[%s284 + $0x100] sm:$0xf]
      %v529 = vld [vmem:[%s284 + $0x104] sm:$0xf]
      %v530 = vld [vmem:[%s284 + $0x108] sm:$0xf]
      %v531 = vld [vmem:[%s284 + $0x10c] sm:$0xf]
      %v532 = vld [vmem:[%s284 + $0x110] sm:$0xf]
      %v533 = vld [vmem:[%s284 + $0x114] sm:$0xf]
      %v534 = vld [vmem:[%s284 + $0x118] sm:$0xf]
      %v535 = vld [vmem:[%s284 + $0x11c] sm:$0xf]
      %v536 = vld [vmem:[%s284 + $0x120] sm:$0xf]
      %v537 = vld [vmem:[%s284 + $0x124] sm:$0xf]
      %v538 = vld [vmem:[%s284 + $0x128] sm:$0xf]
      %v539 = vld [vmem:[%s284 + $0x12c] sm:$0xf]
      %v540 = vld [vmem:[%s284 + $0x130] sm:$0xf]
      %v541 = vld [vmem:[%s284 + $0x134] sm:$0xf]
      %v542 = vld [vmem:[%s284 + $0x138] sm:$0xf]
      %v543 = vld [vmem:[%s284 + $0x13c] sm:$0xf]
      %v640 = vunpack.c.l.b16 %v368
      %v641 = vunpack.c.h.b16 %v368
      %v642 = vunpack.c.l.b16 %v369
      %v643 = vunpack.c.h.b16 %v369
      %v644 = vunpack.c.l.b16 %v370
      %v645 = vunpack.c.l.b16 %v371
      %v646 = vunpack.c.h.b16 %v371
      %v647 = vunpack.c.l.b16 %v372
      %v648 = vunpack.c.h.b16 %v372
      %v649 = vunpack.c.l.b16 %v373
      %v650 = vunpack.c.l.b16 %v374
      %v651 = vunpack.c.h.b16 %v374
      %v652 = vunpack.c.l.b16 %v375
      %v653 = vunpack.c.h.b16 %v375
      %v654 = vunpack.c.l.b16 %v376
      %v655 = vunpack.c.l.b16 %v377
      %v656 = vunpack.c.h.b16 %v377
      %v657 = vunpack.c.l.b16 %v378
      %v658 = vunpack.c.h.b16 %v378
      %v659 = vunpack.c.l.b16 %v379
      %v660 = vunpack.c.l.b16 %v380
      %v661 = vunpack.c.h.b16 %v380
      %v662 = vunpack.c.l.b16 %v381
      %v663 = vunpack.c.h.b16 %v381
      %v664 = vunpack.c.l.b16 %v382
      %v665 = vunpack.c.l.b16 %v383
      %v666 = vunpack.c.h.b16 %v383
      %v667 = vunpack.c.l.b16 %v384
      %v668 = vunpack.c.h.b16 %v384
      %v669 = vunpack.c.l.b16 %v385
      %v670 = vunpack.c.l.b16 %v386
      %v671 = vunpack.c.h.b16 %v386
      %v672 = vunpack.c.l.b16 %v387
      %v673 = vunpack.c.h.b16 %v387
      %v674 = vunpack.c.l.b16 %v388
      %v675 = vunpack.c.l.b16 %v389
      %v676 = vunpack.c.h.b16 %v389
      %v677 = vunpack.c.l.b16 %v390
      %v678 = vunpack.c.h.b16 %v390
      %v679 = vunpack.c.l.b16 %v391
      %v680 = vunpack.c.l.b16 %v392
      %v681 = vunpack.c.h.b16 %v392
      %v682 = vunpack.c.l.b16 %v393
      %v683 = vunpack.c.h.b16 %v393
      %v684 = vunpack.c.l.b16 %v394
      %v685 = vunpack.c.l.b16 %v395
      %v686 = vunpack.c.h.b16 %v395
      %v687 = vunpack.c.l.b16 %v396
      %v688 = vunpack.c.h.b16 %v396
      %v689 = vunpack.c.l.b16 %v397
      %v690 = vunpack.c.l.b16 %v398
      %v691 = vunpack.c.h.b16 %v398
      %v692 = vunpack.c.l.b16 %v399
      %v693 = vunpack.c.h.b16 %v399
      %v694 = vunpack.c.l.b16 %v400
      %v695 = vunpack.c.l.b16 %v401
      %v696 = vunpack.c.h.b16 %v401
      %v697 = vunpack.c.l.b16 %v402
      %v698 = vunpack.c.h.b16 %v402
      %v699 = vunpack.c.l.b16 %v403
      %v700 = vunpack.c.l.b16 %v404
      %v701 = vunpack.c.h.b16 %v404
      %v702 = vunpack.c.l.b16 %v405
      %v703 = vunpack.c.h.b16 %v405
      %v704 = vunpack.c.l.b16 %v406
      %v705 = vunpack.c.l.b16 %v407
      %v706 = vunpack.c.h.b16 %v407
      %v707 = vunpack.c.l.b16 %v408
      %v708 = vunpack.c.h.b16 %v408
      %v709 = vunpack.c.l.b16 %v409
      %v710 = vunpack.c.l.b16 %v410
      %v711 = vunpack.c.h.b16 %v410
      %v712 = vunpack.c.l.b16 %v411
      %v713 = vunpack.c.h.b16 %v411
      %v714 = vunpack.c.l.b16 %v412
      %v715 = vunpack.c.l.b16 %v413
      %v716 = vunpack.c.h.b16 %v413
      %v717 = vunpack.c.l.b16 %v414
      %v718 = vunpack.c.h.b16 %v414
      %v719 = vunpack.c.l.b16 %v415
      %v720 = vunpack.c.l.b16 %v416
      %v721 = vunpack.c.h.b16 %v416
      %v722 = vunpack.c.l.b16 %v417
      %v723 = vunpack.c.h.b16 %v417
      %v724 = vunpack.c.l.b16 %v418
      %v725 = vunpack.c.l.b16 %v419
      %v726 = vunpack.c.h.b16 %v419
      %v727 = vunpack.c.l.b16 %v420
      %v728 = vunpack.c.h.b16 %v420
      %v729 = vunpack.c.l.b16 %v421
      %v730 = vunpack.c.l.b16 %v422
      %v731 = vunpack.c.h.b16 %v422
      %v732 = vunpack.c.l.b16 %v423
      %v733 = vunpack.c.h.b16 %v423
      %v734 = vunpack.c.l.b16 %v424
      %v735 = vunpack.c.l.b16 %v425
      %v736 = vunpack.c.h.b16 %v425
      %v737 = vunpack.c.l.b16 %v426
      %v738 = vunpack.c.h.b16 %v426
      %v739 = vunpack.c.l.b16 %v427
      %v740 = vunpack.c.l.b16 %v428
      %v741 = vunpack.c.h.b16 %v428
      %v742 = vunpack.c.l.b16 %v429
      %v743 = vunpack.c.h.b16 %v429
      %v744 = vunpack.c.l.b16 %v430
      %v745 = vunpack.c.l.b16 %v431
      %v746 = vunpack.c.h.b16 %v431
      %v747 = vunpack.c.l.b16 %v432
      %v748 = vunpack.c.h.b16 %v432
      %v749 = vunpack.c.l.b16 %v433
      %v750 = vunpack.c.l.b16 %v434
      %v751 = vunpack.c.h.b16 %v434
      %v752 = vunpack.c.l.b16 %v435
      %v753 = vunpack.c.h.b16 %v435
      %v754 = vunpack.c.l.b16 %v436
      %v755 = vunpack.c.l.b16 %v437
      %v756 = vunpack.c.h.b16 %v437
      %v757 = vunpack.c.l.b16 %v438
      %v758 = vunpack.c.h.b16 %v438
      %v759 = vunpack.c.l.b16 %v439
      %v760 = vunpack.c.l.b16 %v440
      %v761 = vunpack.c.h.b16 %v440
      %v762 = vunpack.c.l.b16 %v441
      %v763 = vunpack.c.h.b16 %v441
      %v764 = vunpack.c.l.b16 %v442
      %v765 = vunpack.c.l.b16 %v443
      %v766 = vunpack.c.h.b16 %v443
      %v767 = vunpack.c.l.b16 %v444
      %v768 = vunpack.c.h.b16 %v444
      %v769 = vunpack.c.l.b16 %v445
      %v770 = vunpack.c.l.b16 %v446
      %v771 = vunpack.c.h.b16 %v446
      %v772 = vunpack.c.l.b16 %v447
      %v773 = vunpack.c.h.b16 %v447
      %v774 = vunpack.c.l.b16 %v448
      %v775 = vunpack.c.l.b16 %v449
      %v776 = vunpack.c.h.b16 %v449
      %v777 = vunpack.c.l.b16 %v450
      %v778 = vunpack.c.h.b16 %v450
      %v779 = vunpack.c.l.b16 %v451
      %v780 = vunpack.c.l.b16 %v452
      %v781 = vunpack.c.h.b16 %v452
      %v782 = vunpack.c.l.b16 %v453
      %v783 = vunpack.c.h.b16 %v453
      %v784 = vunpack.c.l.b16 %v454
      %v785 = vunpack.c.l.b16 %v455
      %v786 = vunpack.c.h.b16 %v455
      %v787 = vunpack.c.l.b16 %v456
      %v788 = vunpack.c.h.b16 %v456
      %v789 = vunpack.c.l.b16 %v457
      %v790 = vunpack.c.l.b16 %v458
      %v791 = vunpack.c.h.b16 %v458
      %v792 = vunpack.c.l.b16 %v459
      %v793 = vunpack.c.h.b16 %v459
      %v794 = vunpack.c.l.b16 %v460
      %v795 = vunpack.c.l.b16 %v461
      %v796 = vunpack.c.h.b16 %v461
      %v797 = vunpack.c.l.b16 %v462
      %v798 = vunpack.c.h.b16 %v462
      %v799 = vunpack.c.l.b16 %v463
      %v800 = vpack.c.b16 %v645, %v640
      %v801 = vpack.c.b16 %v646, %v641
      %v802 = vpack.c.b16 %v647, %v642
      %v803 = vpack.c.b16 %v648, %v643
      %v804 = vpack.c.b16 %v649, %v644
      %v805 = vpack.c.b16 %v655, %v650
      %v806 = vpack.c.b16 %v656, %v651
      %v807 = vpack.c.b16 %v657, %v652
      %v808 = vpack.c.b16 %v658, %v653
      %v809 = vpack.c.b16 %v659, %v654
      %v810 = vpack.c.b16 %v665, %v660
      %v811 = vpack.c.b16 %v666, %v661
      %v812 = vpack.c.b16 %v667, %v662
      %v813 = vpack.c.b16 %v668, %v663
      %v814 = vpack.c.b16 %v669, %v664
      %v815 = vpack.c.b16 %v675, %v670
      %v816 = vpack.c.b16 %v676, %v671
      %v817 = vpack.c.b16 %v677, %v672
      %v818 = vpack.c.b16 %v678, %v673
      %v819 = vpack.c.b16 %v679, %v674
      %v820 = vpack.c.b16 %v685, %v680
      %v821 = vpack.c.b16 %v686, %v681
      %v822 = vpack.c.b16 %v687, %v682
      %v823 = vpack.c.b16 %v688, %v683
      %v824 = vpack.c.b16 %v689, %v684
      %v825 = vpack.c.b16 %v695, %v690
      %v826 = vpack.c.b16 %v696, %v691
      %v827 = vpack.c.b16 %v697, %v692
      %v828 = vpack.c.b16 %v698, %v693
      %v829 = vpack.c.b16 %v699, %v694
      %v830 = vpack.c.b16 %v705, %v700
      %v831 = vpack.c.b16 %v706, %v701
      %v832 = vpack.c.b16 %v707, %v702
      %v833 = vpack.c.b16 %v708, %v703
      %v834 = vpack.c.b16 %v709, %v704
      %v835 = vpack.c.b16 %v715, %v710
      %v836 = vpack.c.b16 %v716, %v711
      %v837 = vpack.c.b16 %v717, %v712
      %v838 = vpack.c.b16 %v718, %v713
      %v839 = vpack.c.b16 %v719, %v714
      %v840 = vpack.c.b16 %v725, %v720
      %v841 = vpack.c.b16 %v726, %v721
      %v842 = vpack.c.b16 %v727, %v722
      %v843 = vpack.c.b16 %v728, %v723
      %v844 = vpack.c.b16 %v729, %v724
      %v845 = vpack.c.b16 %v735, %v730
      %v846 = vpack.c.b16 %v736, %v731
      %v847 = vpack.c.b16 %v737, %v732
      %v848 = vpack.c.b16 %v738, %v733
      %v849 = vpack.c.b16 %v739, %v734
      %v850 = vpack.c.b16 %v745, %v740
      %v851 = vpack.c.b16 %v746, %v741
      %v852 = vpack.c.b16 %v747, %v742
      %v853 = vpack.c.b16 %v748, %v743
      %v854 = vpack.c.b16 %v749, %v744
      %v855 = vpack.c.b16 %v755, %v750
      %v856 = vpack.c.b16 %v756, %v751
      %v857 = vpack.c.b16 %v757, %v752
      %v858 = vpack.c.b16 %v758, %v753
      %v859 = vpack.c.b16 %v759, %v754
      %v860 = vpack.c.b16 %v765, %v760
      %v861 = vpack.c.b16 %v766, %v761
      %v862 = vpack.c.b16 %v767, %v762
      %v863 = vpack.c.b16 %v768, %v763
      %v864 = vpack.c.b16 %v769, %v764
      %v865 = vpack.c.b16 %v775, %v770
      %v866 = vpack.c.b16 %v776, %v771
      %v867 = vpack.c.b16 %v777, %v772
      %v868 = vpack.c.b16 %v778, %v773
      %v869 = vpack.c.b16 %v779, %v774
      %v870 = vpack.c.b16 %v785, %v780
      %v871 = vpack.c.b16 %v786, %v781
      %v872 = vpack.c.b16 %v787, %v782
      %v873 = vpack.c.b16 %v788, %v783
      %v874 = vpack.c.b16 %v789, %v784
      %v875 = vpack.c.b16 %v795, %v790
      %v876 = vpack.c.b16 %v796, %v791
      %v877 = vpack.c.b16 %v797, %v792
      %v878 = vpack.c.b16 %v798, %v793
      %v879 = vpack.c.b16 %v799, %v794
      %v1040 = vunpack.c.l.b16 %v464
      %v1041 = vunpack.c.l.b16 %v465
      %v1042 = vunpack.c.l.b16 %v466
      %v1043 = vunpack.c.l.b16 %v467
      %v1044 = vunpack.c.l.b16 %v468
      %v1045 = vunpack.c.l.b16 %v469
      %v1046 = vunpack.c.l.b16 %v470
      %v1047 = vunpack.c.l.b16 %v471
      %v1048 = vunpack.c.l.b16 %v472
      %v1049 = vunpack.c.l.b16 %v473
      %v1050 = vunpack.c.l.b16 %v474
      %v1051 = vunpack.c.l.b16 %v475
      %v1052 = vunpack.c.l.b16 %v476
      %v1053 = vunpack.c.l.b16 %v477
      %v1054 = vunpack.c.l.b16 %v478
      %v1055 = vunpack.c.l.b16 %v479
      %v1056 = vunpack.c.l.b16 %v480
      %v1057 = vunpack.c.l.b16 %v481
      %v1058 = vunpack.c.l.b16 %v482
      %v1059 = vunpack.c.l.b16 %v483
      %v1060 = vunpack.c.l.b16 %v484
      %v1061 = vunpack.c.l.b16 %v485
      %v1062 = vunpack.c.l.b16 %v486
      %v1063 = vunpack.c.l.b16 %v487
      %v1064 = vunpack.c.l.b16 %v488
      %v1065 = vunpack.c.l.b16 %v489
      %v1066 = vunpack.c.l.b16 %v490
      %v1067 = vunpack.c.l.b16 %v491
      %v1068 = vunpack.c.l.b16 %v492
      %v1069 = vunpack.c.l.b16 %v493
      %v1070 = vunpack.c.l.b16 %v494
      %v1071 = vunpack.c.l.b16 %v495
      %v1072 = vunpack.c.l.b16 %v496
      %v1073 = vunpack.c.l.b16 %v497
      %v1074 = vunpack.c.l.b16 %v498
      %v1075 = vunpack.c.l.b16 %v499
      %v1076 = vunpack.c.l.b16 %v500
      %v1077 = vunpack.c.l.b16 %v501
      %v1078 = vunpack.c.l.b16 %v502
      %v1079 = vunpack.c.l.b16 %v503
      %v1080 = vunpack.c.l.b16 %v504
      %v1081 = vunpack.c.l.b16 %v505
      %v1082 = vunpack.c.l.b16 %v506
      %v1083 = vunpack.c.l.b16 %v507
      %v1084 = vunpack.c.l.b16 %v508
      %v1085 = vunpack.c.l.b16 %v509
      %v1086 = vunpack.c.l.b16 %v510
      %v1087 = vunpack.c.l.b16 %v511
      %v1088 = vunpack.c.l.b16 %v512
      %v1089 = vunpack.c.l.b16 %v513
      %v1090 = vunpack.c.l.b16 %v514
      %v1091 = vunpack.c.l.b16 %v515
      %v1092 = vunpack.c.l.b16 %v516
      %v1093 = vunpack.c.l.b16 %v517
      %v1094 = vunpack.c.l.b16 %v518
      %v1095 = vunpack.c.l.b16 %v519
      %v1096 = vunpack.c.l.b16 %v520
      %v1097 = vunpack.c.l.b16 %v521
      %v1098 = vunpack.c.l.b16 %v522
      %v1099 = vunpack.c.l.b16 %v523
      %v1100 = vunpack.c.l.b16 %v524
      %v1101 = vunpack.c.l.b16 %v525
      %v1102 = vunpack.c.l.b16 %v526
      %v1103 = vunpack.c.l.b16 %v527
      %v1104 = vunpack.c.l.b16 %v528
      %v1105 = vunpack.c.l.b16 %v529
      %v1106 = vunpack.c.l.b16 %v530
      %v1107 = vunpack.c.l.b16 %v531
      %v1108 = vunpack.c.l.b16 %v532
      %v1109 = vunpack.c.l.b16 %v533
      %v1110 = vunpack.c.l.b16 %v534
      %v1111 = vunpack.c.l.b16 %v535
      %v1112 = vunpack.c.l.b16 %v536
      %v1113 = vunpack.c.l.b16 %v537
      %v1114 = vunpack.c.l.b16 %v538
      %v1115 = vunpack.c.l.b16 %v539
      %v1116 = vunpack.c.l.b16 %v540
      %v1117 = vunpack.c.l.b16 %v541
      %v1118 = vunpack.c.l.b16 %v542
      %v1119 = vunpack.c.l.b16 %v543
      %v1120 = vpack.c.b16 %v1041, %v1040
      %v1121 = vpack.c.b16 %v1043, %v1042
      %v1122 = vpack.c.b16 %v1045, %v1044
      %v1123 = vpack.c.b16 %v1047, %v1046
      %v1124 = vpack.c.b16 %v1049, %v1048
      %v1125 = vpack.c.b16 %v1051, %v1050
      %v1126 = vpack.c.b16 %v1053, %v1052
      %v1127 = vpack.c.b16 %v1055, %v1054
      %v1128 = vpack.c.b16 %v1057, %v1056
      %v1129 = vpack.c.b16 %v1059, %v1058
      %v1130 = vpack.c.b16 %v1061, %v1060
      %v1131 = vpack.c.b16 %v1063, %v1062
      %v1132 = vpack.c.b16 %v1065, %v1064
      %v1133 = vpack.c.b16 %v1067, %v1066
      %v1134 = vpack.c.b16 %v1069, %v1068
      %v1135 = vpack.c.b16 %v1071, %v1070
      %v1136 = vpack.c.b16 %v1073, %v1072
      %v1137 = vpack.c.b16 %v1075, %v1074
      %v1138 = vpack.c.b16 %v1077, %v1076
      %v1139 = vpack.c.b16 %v1079, %v1078
      %v1140 = vpack.c.b16 %v1081, %v1080
      %v1141 = vpack.c.b16 %v1083, %v1082
      %v1142 = vpack.c.b16 %v1085, %v1084
      %v1143 = vpack.c.b16 %v1087, %v1086
      %v1144 = vpack.c.b16 %v1089, %v1088
      %v1145 = vpack.c.b16 %v1091, %v1090
      %v1146 = vpack.c.b16 %v1093, %v1092
      %v1147 = vpack.c.b16 %v1095, %v1094
      %v1148 = vpack.c.b16 %v1097, %v1096
      %v1149 = vpack.c.b16 %v1099, %v1098
      %v1150 = vpack.c.b16 %v1101, %v1100
      %v1151 = vpack.c.b16 %v1103, %v1102
      %v1152 = vpack.c.b16 %v1105, %v1104
      %v1153 = vpack.c.b16 %v1107, %v1106
      %v1154 = vpack.c.b16 %v1109, %v1108
      %v1155 = vpack.c.b16 %v1111, %v1110
      %v1156 = vpack.c.b16 %v1113, %v1112
      %v1157 = vpack.c.b16 %v1115, %v1114
      %v1158 = vpack.c.b16 %v1117, %v1116
      %v1159 = vpack.c.b16 %v1119, %v1118
      %1200 = vmatprep.subr.bf16.mxu0 0
      %1201 = vmatpush1.bf16.msra.mxu0 %v1120
      %1202 = vmatprep.subr.bf16.mxu0 0
      %1203 = vmatpush1.bf16.msra.mxu0 %v1121
      %1204 = vmatprep.subr.bf16.mxu0 0
      %1205 = vmatpush1.bf16.msra.mxu0 %v1122
      %1206 = vmatprep.subr.bf16.mxu0 0
      %1207 = vmatpush1.bf16.msra.mxu0 %v1123
      %1208 = vmatprep.subr.bf16.mxu0 0
      %1209 = vmatpush1.bf16.msra.mxu0 %v1124
      %1210 = vmatprep.subr.bf16.mxu0 0
      %1211 = vmatpush1.bf16.msra.mxu0 %v1125
      %1212 = vmatprep.subr.bf16.mxu0 0
      %1213 = vmatpush1.bf16.msra.mxu0 %v1126
      %1214 = vmatprep.subr.bf16.mxu0 0
      %1215 = vmatpush1.bf16.msra.mxu0 %v1127
      %1216 = vmatprep.subr.bf16.mxu0 0
      %1217 = vmatpush1.bf16.msra.mxu0 %v1128
      %1218 = vmatprep.subr.bf16.mxu0 0
      %1219 = vmatpush1.bf16.msra.mxu0 %v1129
      %1220 = vmatprep.subr.bf16.mxu0 0
      %1221 = vmatpush1.bf16.msra.mxu0 %v1130
      %1222 = vmatprep.subr.bf16.mxu0 0
      %1223 = vmatpush1.bf16.msra.mxu0 %v1131
      %1224 = vmatprep.subr.bf16.mxu0 0
      %1225 = vmatpush1.bf16.msra.mxu0 %v1132
      %1226 = vmatprep.subr.bf16.mxu0 0
      %1227 = vmatpush1.bf16.msra.mxu0 %v1133
      %1228 = vmatprep.subr.bf16.mxu0 0
      %1229 = vmatpush1.bf16.msra.mxu0 %v1134
      %1230 = vmatprep.subr.bf16.mxu0 0
      %1231 = vmatpush1.bf16.msra.mxu0 %v1135
      %1232 = vmatprep.mubr.bf16.mxu0 %v801
      %1233 = vmatmul.mubr.bf16.gmra.mrb[0].mxu0 %v800
      %v1234 = vpop.f32.mrb[0].mxu0
      %v1235 = vadd.f32 0.0, %v1234
      %v1236 = vpop.f32.mrb[0].mxu0
      %v1237 = vpop.f32.mrb[0].mxu0
      %v1238 = vadd.f32 0.0, %v1237
      %v1239 = vpop.f32.mrb[0].mxu0
      %1240 = vmatprep.mubr.bf16.mxu0 %v806
      %1241 = vmatmul.mubr.bf16.gmra.mrb[0].mxu0 %v805
      %v1242 = vpop.f32.mrb[0].mxu0
      %v1243 = vadd.f32 0.0, %v1242
      %v1244 = vpop.f32.mrb[0].mxu0
      %v1245 = vpop.f32.mrb[0].mxu0
      %v1246 = vadd.f32 0.0, %v1245
      %v1247 = vpop.f32.mrb[0].mxu0
      %1248 = vmatprep.mubr.bf16.mxu0 %v811
      %1249 = vmatmul.mubr.bf16.gmra.mrb[0].mxu0 %v810
      %v1250 = vpop.f32.mrb[0].mxu0
      %v1251 = vadd.f32 0.0, %v1250
      %v1252 = vpop.f32.mrb[0].mxu0
      %v1253 = vpop.f32.mrb[0].mxu0
      %v1254 = vadd.f32 0.0, %v1253
      %v1255 = vpop.f32.mrb[0].mxu0
      %1256 = vmatprep.mubr.bf16.mxu0 %v816
      %1257 = vmatmul.mubr.bf16.gmra.mrb[0].mxu0 %v815
      %v1258 = vpop.f32.mrb[0].mxu0
      %v1259 = vadd.f32 0.0, %v1258
      %v1260 = vpop.f32.mrb[0].mxu0
      %v1261 = vpop.f32.mrb[0].mxu0
      %v1262 = vadd.f32 0.0, %v1261
      %v1263 = vpop.f32.mrb[0].mxu0
      %1264 = vmatprep.mubr.bf16.mxu0 %v821
      %1265 = vmatmul.mubr.bf16.gmra.mrb[0].mxu0 %v820
      %v1266 = vpop.f32.mrb[0].mxu0
      %v1267 = vadd.f32 0.0, %v1266
      %v1268 = vpop.f32.mrb[0].mxu0
      %v1269 = vpop.f32.mrb[0].mxu0
      %v1270 = vadd.f32 0.0, %v1269
      %v1271 = vpop.f32.mrb[0].mxu0
      %1272 = vmatprep.mubr.bf16.mxu0 %v826
      %1273 = vmatmul.mubr.bf16.gmra.mrb[0].mxu0 %v825
      %v1274 = vpop.f32.mrb[0].mxu0
      %v1275 = vadd.f32 0.0, %v1274
      %v1276 = vpop.f32.mrb[0].mxu0
      %v1277 = vpop.f32.mrb[0].mxu0
      %v1278 = vadd.f32 0.0, %v1277
      %v1279 = vpop.f32.mrb[0].mxu0
      %1280 = vmatprep.mubr.bf16.mxu0 %v831
      %1281 = vmatmul.mubr.bf16.gmra.mrb[0].mxu0 %v830
      %v1282 = vpop.f32.mrb[0].mxu0
      %v1283 = vadd.f32 0.0, %v1282
      %v1284 = vpop.f32.mrb[0].mxu0
      %v1285 = vpop.f32.mrb[0].mxu0
      %v1286 = vadd.f32 0.0, %v1285
      %v1287 = vpop.f32.mrb[0].mxu0
      %1288 = vmatprep.mubr.bf16.mxu0 %v836
      %1289 = vmatmul.mubr.bf16.gmra.mrb[0].mxu0 %v835
      %v1290 = vpop.f32.mrb[0].mxu0
      %v1291 = vadd.f32 0.0, %v1290
      %v1292 = vpop.f32.mrb[0].mxu0
      %v1293 = vpop.f32.mrb[0].mxu0
      %v1294 = vadd.f32 0.0, %v1293
      %v1295 = vpop.f32.mrb[0].mxu0
      %1296 = vmatprep.mubr.bf16.mxu0 %v841
      %1297 = vmatmul.mubr.bf16.gmra.mrb[0].mxu0 %v840
      %v1298 = vpop.f32.mrb[0].mxu0
      %v1299 = vadd.f32 0.0, %v1298
      %v1300 = vpop.f32.mrb[0].mxu0
      %v1301 = vpop.f32.mrb[0].mxu0
      %v1302 = vadd.f32 0.0, %v1301
      %v1303 = vpop.f32.mrb[0].mxu0
      %1304 = vmatprep.mubr.bf16.mxu0 %v846
      %1305 = vmatmul.mubr.bf16.gmra.mrb[0].mxu0 %v845
      %v1306 = vpop.f32.mrb[0].mxu0
      %v1307 = vadd.f32 0.0, %v1306
      %v1308 = vpop.f32.mrb[0].mxu0
      %v1309 = vpop.f32.mrb[0].mxu0
      %v1310 = vadd.f32 0.0, %v1309
      %v1311 = vpop.f32.mrb[0].mxu0
      %1312 = vmatprep.mubr.bf16.mxu0 %v851
      %1313 = vmatmul.mubr.bf16.gmra.mrb[0].mxu0 %v850
      %v1314 = vpop.f32.mrb[0].mxu0
      %v1315 = vadd.f32 0.0, %v1314
      %v1316 = vpop.f32.mrb[0].mxu0
      %v1317 = vpop.f32.mrb[0].mxu0
      %v1318 = vadd.f32 0.0, %v1317
      %v1319 = vpop.f32.mrb[0].mxu0
      %1320 = vmatprep.mubr.bf16.mxu0 %v856
      %1321 = vmatmul.mubr.bf16.gmra.mrb[0].mxu0 %v855
      %v1322 = vpop.f32.mrb[0].mxu0
      %v1323 = vadd.f32 0.0, %v1322
      %v1324 = vpop.f32.mrb[0].mxu0
      %v1325 = vpop.f32.mrb[0].mxu0
      %v1326 = vadd.f32 0.0, %v1325
      %v1327 = vpop.f32.mrb[0].mxu0
      %1328 = vmatprep.mubr.bf16.mxu0 %v861
      %1329 = vmatmul.mubr.bf16.gmra.mrb[0].mxu0 %v860
      %v1330 = vpop.f32.mrb[0].mxu0
      %v1331 = vadd.f32 0.0, %v1330
      %v1332 = vpop.f32.mrb[0].mxu0
      %v1333 = vpop.f32.mrb[0].mxu0
      %v1334 = vadd.f32 0.0, %v1333
      %v1335 = vpop.f32.mrb[0].mxu0
      %1336 = vmatprep.mubr.bf16.mxu0 %v866
      %1337 = vmatmul.mubr.bf16.gmra.mrb[0].mxu0 %v865
      %v1338 = vpop.f32.mrb[0].mxu0
      %v1339 = vadd.f32 0.0, %v1338
      %v1340 = vpop.f32.mrb[0].mxu0
      %v1341 = vpop.f32.mrb[0].mxu0
      %v1342 = vadd.f32 0.0, %v1341
      %v1343 = vpop.f32.mrb[0].mxu0
      %1344 = vmatprep.mubr.bf16.mxu0 %v871
      %1345 = vmatmul.mubr.bf16.gmra.mrb[0].mxu0 %v870
      %v1346 = vpop.f32.mrb[0].mxu0
      %v1347 = vadd.f32 0.0, %v1346
      %v1348 = vpop.f32.mrb[0].mxu0
      %v1349 = vpop.f32.mrb[0].mxu0
      %v1350 = vadd.f32 0.0, %v1349
      %v1351 = vpop.f32.mrb[0].mxu0
      %1352 = vmatprep.mubr.bf16.mxu0 %v876
      %1353 = vmatmul.mubr.bf16.gmra.mrb[0].mxu0 %v875
      %v1354 = vpop.f32.mrb[0].mxu0
      %v1355 = vadd.f32 0.0, %v1354
      %v1356 = vpop.f32.mrb[0].mxu0
      %v1357 = vpop.f32.mrb[0].mxu0
      %v1358 = vadd.f32 0.0, %v1357
      %v1359 = vpop.f32.mrb[0].mxu0
      %1360 = vdwg.mxu0
      %1361 = vmatprep.subr.bf16.mxu0 0
      %1362 = vmatpush1.bf16.msra.mxu0 %v1136
      %1363 = vmatprep.subr.bf16.mxu0 0
      %1364 = vmatpush1.bf16.msra.mxu0 %v1137
      %1365 = vmatprep.subr.bf16.mxu0 0
      %1366 = vmatpush1.bf16.msra.mxu0 %v1138
      %1367 = vmatprep.subr.bf16.mxu0 0
      %1368 = vmatpush1.bf16.msra.mxu0 %v1139
      %1369 = vmatprep.subr.bf16.mxu0 0
      %1370 = vmatpush1.bf16.msra.mxu0 %v1140
      %1371 = vmatprep.subr.bf16.mxu0 0
      %1372 = vmatpush1.bf16.msra.mxu0 %v1141
      %1373 = vmatprep.subr.bf16.mxu0 0
      %1374 = vmatpush1.bf16.msra.mxu0 %v1142
      %1375 = vmatprep.subr.bf16.mxu0 0
      %1376 = vmatpush1.bf16.msra.mxu0 %v1143
      %1377 = vmatprep.subr.bf16.mxu0 0
      %1378 = vmatpush1.bf16.msra.mxu0 %v1144
      %1379 = vmatprep.subr.bf16.mxu0 0
      %1380 = vmatpush1.bf16.msra.mxu0 %v1145
      %1381 = vmatprep.subr.bf16.mxu0 0
      %1382 = vmatpush1.bf16.msra.mxu0 %v1146
      %1383 = vmatprep.subr.bf16.mxu0 0
      %1384 = vmatpush1.bf16.msra.mxu0 %v1147
      %1385 = vmatprep.subr.bf16.mxu0 0
      %1386 = vmatpush1.bf16.msra.mxu0 %v1148
      %1387 = vmatprep.subr.bf16.mxu0 0
      %1388 = vmatpush1.bf16.msra.mxu0 %v1149
      %1389 = vmatprep.subr.bf16.mxu0 0
      %1390 = vmatpush1.bf16.msra.mxu0 %v1150
      %1391 = vmatprep.subr.bf16.mxu0 0
      %1392 = vmatpush1.bf16.msra.mxu0 %v1151
      %1393 = vmatprep.mubr.bf16.mxu0 %v803
      %1394 = vmatmul.mubr.bf16.gmra.mrb[0].mxu0 %v802
      %v1395 = vpop.f32.mrb[0].mxu0
      %v1396 = vadd.f32 %v1235, %v1395
      %v1397 = vpop.f32.mrb[0].mxu0
      %v1398 = vpop.f32.mrb[0].mxu0
      %v1399 = vadd.f32 %v1238, %v1398
      %v1400 = vpop.f32.mrb[0].mxu0
      %1401 = vmatprep.mubr.bf16.mxu0 %v808
      %1402 = vmatmul.mubr.bf16.gmra.mrb[0].mxu0 %v807
      %v1403 = vpop.f32.mrb[0].mxu0
      %v1404 = vadd.f32 %v1243, %v1403
      %v1405 = vpop.f32.mrb[0].mxu0
      %v1406 = vpop.f32.mrb[0].mxu0
      %v1407 = vadd.f32 %v1246, %v1406
      %v1408 = vpop.f32.mrb[0].mxu0
      %1409 = vmatprep.mubr.bf16.mxu0 %v813
      %1410 = vmatmul.mubr.bf16.gmra.mrb[0].mxu0 %v812
      %v1411 = vpop.f32.mrb[0].mxu0
      %v1412 = vadd.f32 %v1251, %v1411
      %v1413 = vpop.f32.mrb[0].mxu0
      %v1414 = vpop.f32.mrb[0].mxu0
      %v1415 = vadd.f32 %v1254, %v1414
      %v1416 = vpop.f32.mrb[0].mxu0
      %1417 = vmatprep.mubr.bf16.mxu0 %v818
      %1418 = vmatmul.mubr.bf16.gmra.mrb[0].mxu0 %v817
      %v1419 = vpop.f32.mrb[0].mxu0
      %v1420 = vadd.f32 %v1259, %v1419
      %v1421 = vpop.f32.mrb[0].mxu0
      %v1422 = vpop.f32.mrb[0].mxu0
      %v1423 = vadd.f32 %v1262, %v1422
      %v1424 = vpop.f32.mrb[0].mxu0
      %1425 = vmatprep.mubr.bf16.mxu0 %v823
      %1426 = vmatmul.mubr.bf16.gmra.mrb[0].mxu0 %v822
      %v1427 = vpop.f32.mrb[0].mxu0
      %v1428 = vadd.f32 %v1267, %v1427
      %v1429 = vpop.f32.mrb[0].mxu0
      %v1430 = vpop.f32.mrb[0].mxu0
      %v1431 = vadd.f32 %v1270, %v1430
      %v1432 = vpop.f32.mrb[0].mxu0
      %1433 = vmatprep.mubr.bf16.mxu0 %v828
      %1434 = vmatmul.mubr.bf16.gmra.mrb[0].mxu0 %v827
      %v1435 = vpop.f32.mrb[0].mxu0
      %v1436 = vadd.f32 %v1275, %v1435
      %v1437 = vpop.f32.mrb[0].mxu0
      %v1438 = vpop.f32.mrb[0].mxu0
      %v1439 = vadd.f32 %v1278, %v1438
      %v1440 = vpop.f32.mrb[0].mxu0
      %1441 = vmatprep.mubr.bf16.mxu0 %v833
      %1442 = vmatmul.mubr.bf16.gmra.mrb[0].mxu0 %v832
      %v1443 = vpop.f32.mrb[0].mxu0
      %v1444 = vadd.f32 %v1283, %v1443
      %v1445 = vpop.f32.mrb[0].mxu0
      %v1446 = vpop.f32.mrb[0].mxu0
      %v1447 = vadd.f32 %v1286, %v1446
      %v1448 = vpop.f32.mrb[0].mxu0
      %1449 = vmatprep.mubr.bf16.mxu0 %v838
      %1450 = vmatmul.mubr.bf16.gmra.mrb[0].mxu0 %v837
      %v1451 = vpop.f32.mrb[0].mxu0
      %v1452 = vadd.f32 %v1291, %v1451
      %v1453 = vpop.f32.mrb[0].mxu0
      %v1454 = vpop.f32.mrb[0].mxu0
      %v1455 = vadd.f32 %v1294, %v1454
      %v1456 = vpop.f32.mrb[0].mxu0
      %1457 = vmatprep.mubr.bf16.mxu0 %v843
      %1458 = vmatmul.mubr.bf16.gmra.mrb[0].mxu0 %v842
      %v1459 = vpop.f32.mrb[0].mxu0
      %v1460 = vadd.f32 %v1299, %v1459
      %v1461 = vpop.f32.mrb[0].mxu0
      %v1462 = vpop.f32.mrb[0].mxu0
      %v1463 = vadd.f32 %v1302, %v1462
      %v1464 = vpop.f32.mrb[0].mxu0
      %1465 = vmatprep.mubr.bf16.mxu0 %v848
      %1466 = vmatmul.mubr.bf16.gmra.mrb[0].mxu0 %v847
      %v1467 = vpop.f32.mrb[0].mxu0
      %v1468 = vadd.f32 %v1307, %v1467
      %v1469 = vpop.f32.mrb[0].mxu0
      %v1470 = vpop.f32.mrb[0].mxu0
      %v1471 = vadd.f32 %v1310, %v1470
      %v1472 = vpop.f32.mrb[0].mxu0
      %1473 = vmatprep.mubr.bf16.mxu0 %v853
      %1474 = vmatmul.mubr.bf16.gmra.mrb[0].mxu0 %v852
      %v1475 = vpop.f32.mrb[0].mxu0
      %v1476 = vadd.f32 %v1315, %v1475
      %v1477 = vpop.f32.mrb[0].mxu0
      %v1478 = vpop.f32.mrb[0].mxu0
      %v1479 = vadd.f32 %v1318, %v1478
      %v1480 = vpop.f32.mrb[0].mxu0
      %1481 = vmatprep.mubr.bf16.mxu0 %v858
      %1482 = vmatmul.mubr.bf16.gmra.mrb[0].mxu0 %v857
      %v1483 = vpop.f32.mrb[0].mxu0
      %v1484 = vadd.f32 %v1323, %v1483
      %v1485 = vpop.f32.mrb[0].mxu0
      %v1486 = vpop.f32.mrb[0].mxu0
      %v1487 = vadd.f32 %v1326, %v1486
      %v1488 = vpop.f32.mrb[0].mxu0
      %1489 = vmatprep.mubr.bf16.mxu0 %v863
      %1490 = vmatmul.mubr.bf16.gmra.mrb[0].mxu0 %v862
      %v1491 = vpop.f32.mrb[0].mxu0
      %v1492 = vadd.f32 %v1331, %v1491
      %v1493 = vpop.f32.mrb[0].mxu0
      %v1494 = vpop.f32.mrb[0].mxu0
      %v1495 = vadd.f32 %v1334, %v1494
      %v1496 = vpop.f32.mrb[0].mxu0
      %1497 = vmatprep.mubr.bf16.mxu0 %v868
      %1498 = vmatmul.mubr.bf16.gmra.mrb[0].mxu0 %v867
      %v1499 = vpop.f32.mrb[0].mxu0
      %v1500 = vadd.f32 %v1339, %v1499
      %v1501 = vpop.f32.mrb[0].mxu0
      %v1502 = vpop.f32.mrb[0].mxu0
      %v1503 = vadd.f32 %v1342, %v1502
      %v1504 = vpop.f32.mrb[0].mxu0
      %1505 = vmatprep.mubr.bf16.mxu0 %v873
      %1506 = vmatmul.mubr.bf16.gmra.mrb[0].mxu0 %v872
      %v1507 = vpop.f32.mrb[0].mxu0
      %v1508 = vadd.f32 %v1347, %v1507
      %v1509 = vpop.f32.mrb[0].mxu0
      %v1510 = vpop.f32.mrb[0].mxu0
      %v1511 = vadd.f32 %v1350, %v1510
      %v1512 = vpop.f32.mrb[0].mxu0
      %1513 = vmatprep.mubr.bf16.mxu0 %v878
      %1514 = vmatmul.mubr.bf16.gmra.mrb[0].mxu0 %v877
      %v1515 = vpop.f32.mrb[0].mxu0
      %v1516 = vadd.f32 %v1355, %v1515
      %v1517 = vpop.f32.mrb[0].mxu0
      %v1518 = vpop.f32.mrb[0].mxu0
      %v1519 = vadd.f32 %v1358, %v1518
      %v1520 = vpop.f32.mrb[0].mxu0
      %1521 = vdwg.mxu0
      %1522 = vmatprep.subr.bf16.mxu0 0
      %1523 = vmatpush1.bf16.msra.mxu0 %v1152
      %1524 = vmatprep.subr.bf16.mxu0 0
      %1525 = vmatpush1.bf16.msra.mxu0 %v1153
      %1526 = vmatprep.subr.bf16.mxu0 0
      %1527 = vmatpush1.bf16.msra.mxu0 %v1154
      %1528 = vmatprep.subr.bf16.mxu0 0
      %1529 = vmatpush1.bf16.msra.mxu0 %v1155
      %1530 = vmatprep.subr.bf16.mxu0 0
      %1531 = vmatpush1.bf16.msra.mxu0 %v1156
      %1532 = vmatprep.subr.bf16.mxu0 0
      %1533 = vmatpush1.bf16.msra.mxu0 %v1157
      %1534 = vmatprep.subr.bf16.mxu0 0
      %1535 = vmatpush1.bf16.msra.mxu0 %v1158
      %1536 = vmatprep.subr.bf16.mxu0 0
      %1537 = vmatpush1.bf16.msra.mxu0 %v1159
      %1538 = vmatprep.subr.bf16.mxu0 0
      %1539 = vmatpush1.bf16.msra.mxu0 0
      %1540 = vmatprep.subr.bf16.mxu0 0
      %1541 = vmatpush1.bf16.msra.mxu0 0
      %1542 = vmatprep.subr.bf16.mxu0 0
      %1543 = vmatpush1.bf16.msra.mxu0 0
      %1544 = vmatprep.subr.bf16.mxu0 0
      %1545 = vmatpush1.bf16.msra.mxu0 0
      %1546 = vmatprep.subr.bf16.mxu0 0
      %1547 = vmatpush1.bf16.msra.mxu0 0
      %1548 = vmatprep.subr.bf16.mxu0 0
      %1549 = vmatpush1.bf16.msra.mxu0 0
      %1550 = vmatprep.subr.bf16.mxu0 0
      %1551 = vmatpush1.bf16.msra.mxu0 0
      %1552 = vmatprep.subr.bf16.mxu0 0
      %1553 = vmatpush1.bf16.msra.mxu0 0
      %1554 = vmatprep.mubr.bf16.mxu0 0
      %1555 = vmatmul.mubr.bf16.gmra.mrb[0].mxu0 %v804
      %v1556 = vpop.f32.mrb[0].mxu0
      %v1557 = vadd.f32 %v1396, %v1556
      %v1558 = vpop.f32.mrb[0].mxu0
      %v1559 = vpop.f32.mrb[0].mxu0
      %v1560 = vadd.f32 %v1399, %v1559
      %v1561 = vpop.f32.mrb[0].mxu0
      %1562 = vmatprep.mubr.bf16.mxu0 0
      %1563 = vmatmul.mubr.bf16.gmra.mrb[0].mxu0 %v809
      %v1564 = vpop.f32.mrb[0].mxu0
      %v1565 = vadd.f32 %v1404, %v1564
      %v1566 = vpop.f32.mrb[0].mxu0
      %v1567 = vpop.f32.mrb[0].mxu0
      %v1568 = vadd.f32 %v1407, %v1567
      %v1569 = vpop.f32.mrb[0].mxu0
      %1570 = vmatprep.mubr.bf16.mxu0 0
      %1571 = vmatmul.mubr.bf16.gmra.mrb[0].mxu0 %v814
      %v1572 = vpop.f32.mrb[0].mxu0
      %v1573 = vadd.f32 %v1412, %v1572
      %v1574 = vpop.f32.mrb[0].mxu0
      %v1575 = vpop.f32.mrb[0].mxu0
      %v1576 = vadd.f32 %v1415, %v1575
      %v1577 = vpop.f32.mrb[0].mxu0
      %1578 = vmatprep.mubr.bf16.mxu0 0
      %1579 = vmatmul.mubr.bf16.gmra.mrb[0].mxu0 %v819
      %v1580 = vpop.f32.mrb[0].mxu0
      %v1581 = vadd.f32 %v1420, %v1580
      %v1582 = vpop.f32.mrb[0].mxu0
      %v1583 = vpop.f32.mrb[0].mxu0
      %v1584 = vadd.f32 %v1423, %v1583
      %v1585 = vpop.f32.mrb[0].mxu0
      %1586 = vmatprep.mubr.bf16.mxu0 0
      %1587 = vmatmul.mubr.bf16.gmra.mrb[0].mxu0 %v824
      %v1588 = vpop.f32.mrb[0].mxu0
      %v1589 = vadd.f32 %v1428, %v1588
      %v1590 = vpop.f32.mrb[0].mxu0
      %v1591 = vpop.f32.mrb[0].mxu0
      %v1592 = vadd.f32 %v1431, %v1591
      %v1593 = vpop.f32.mrb[0].mxu0
      %1594 = vmatprep.mubr.bf16.mxu0 0
      %1595 = vmatmul.mubr.bf16.gmra.mrb[0].mxu0 %v829
      %v1596 = vpop.f32.mrb[0].mxu0
      %v1597 = vadd.f32 %v1436, %v1596
      %v1598 = vpop.f32.mrb[0].mxu0
      %v1599 = vpop.f32.mrb[0].mxu0
      %v1600 = vadd.f32 %v1439, %v1599
      %v1601 = vpop.f32.mrb[0].mxu0
      %1602 = vmatprep.mubr.bf16.mxu0 0
      %1603 = vmatmul.mubr.bf16.gmra.mrb[0].mxu0 %v834
      %v1604 = vpop.f32.mrb[0].mxu0
      %v1605 = vadd.f32 %v1444, %v1604
      %v1606 = vpop.f32.mrb[0].mxu0
      %v1607 = vpop.f32.mrb[0].mxu0
      %v1608 = vadd.f32 %v1447, %v1607
      %v1609 = vpop.f32.mrb[0].mxu0
      %1610 = vmatprep.mubr.bf16.mxu0 0
      %1611 = vmatmul.mubr.bf16.gmra.mrb[0].mxu0 %v839
      %v1612 = vpop.f32.mrb[0].mxu0
      %v1613 = vadd.f32 %v1452, %v1612
      %v1614 = vpop.f32.mrb[0].mxu0
      %v1615 = vpop.f32.mrb[0].mxu0
      %v1616 = vadd.f32 %v1455, %v1615
      %v1617 = vpop.f32.mrb[0].mxu0
      %1618 = vmatprep.mubr.bf16.mxu0 0
      %1619 = vmatmul.mubr.bf16.gmra.mrb[0].mxu0 %v844
      %v1620 = vpop.f32.mrb[0].mxu0
      %v1621 = vadd.f32 %v1460, %v1620
      %v1622 = vpop.f32.mrb[0].mxu0
      %v1623 = vpop.f32.mrb[0].mxu0
      %v1624 = vadd.f32 %v1463, %v1623
      %v1625 = vpop.f32.mrb[0].mxu0
      %1626 = vmatprep.mubr.bf16.mxu0 0
      %1627 = vmatmul.mubr.bf16.gmra.mrb[0].mxu0 %v849
      %v1628 = vpop.f32.mrb[0].mxu0
      %v1629 = vadd.f32 %v1468, %v1628
      %v1630 = vpop.f32.mrb[0].mxu0
      %v1631 = vpop.f32.mrb[0].mxu0
      %v1632 = vadd.f32 %v1471, %v1631
      %v1633 = vpop.f32.mrb[0].mxu0
      %1634 = vmatprep.mubr.bf16.mxu0 0
      %1635 = vmatmul.mubr.bf16.gmra.mrb[0].mxu0 %v854
      %v1636 = vpop.f32.mrb[0].mxu0
      %v1637 = vadd.f32 %v1476, %v1636
      %v1638 = vpop.f32.mrb[0].mxu0
      %v1639 = vpop.f32.mrb[0].mxu0
      %v1640 = vadd.f32 %v1479, %v1639
      %v1641 = vpop.f32.mrb[0].mxu0
      %1642 = vmatprep.mubr.bf16.mxu0 0
      %1643 = vmatmul.mubr.bf16.gmra.mrb[0].mxu0 %v859
      %v1644 = vpop.f32.mrb[0].mxu0
      %v1645 = vadd.f32 %v1484, %v1644
      %v1646 = vpop.f32.mrb[0].mxu0
      %v1647 = vpop.f32.mrb[0].mxu0
      %v1648 = vadd.f32 %v1487, %v1647
      %v1649 = vpop.f32.mrb[0].mxu0
      %1650 = vmatprep.mubr.bf16.mxu0 0
      %1651 = vmatmul.mubr.bf16.gmra.mrb[0].mxu0 %v864
      %v1652 = vpop.f32.mrb[0].mxu0
      %v1653 = vadd.f32 %v1492, %v1652
      %v1654 = vpop.f32.mrb[0].mxu0
      %v1655 = vpop.f32.mrb[0].mxu0
      %v1656 = vadd.f32 %v1495, %v1655
      %v1657 = vpop.f32.mrb[0].mxu0
      %1658 = vmatprep.mubr.bf16.mxu0 0
      %1659 = vmatmul.mubr.bf16.gmra.mrb[0].mxu0 %v869
      %v1660 = vpop.f32.mrb[0].mxu0
      %v1661 = vadd.f32 %v1500, %v1660
      %v1662 = vpop.f32.mrb[0].mxu0
      %v1663 = vpop.f32.mrb[0].mxu0
      %v1664 = vadd.f32 %v1503, %v1663
      %v1665 = vpop.f32.mrb[0].mxu0
      %1666 = vmatprep.mubr.bf16.mxu0 0
      %1667 = vmatmul.mubr.bf16.gmra.mrb[0].mxu0 %v874
      %v1668 = vpop.f32.mrb[0].mxu0
      %v1669 = vadd.f32 %v1508, %v1668
      %v1670 = vpop.f32.mrb[0].mxu0
      %v1671 = vpop.f32.mrb[0].mxu0
      %v1672 = vadd.f32 %v1511, %v1671
      %v1673 = vpop.f32.mrb[0].mxu0
      %1674 = vmatprep.mubr.bf16.mxu0 0
      %1675 = vmatmul.mubr.bf16.gmra.mrb[0].mxu0 %v879
      %v1676 = vpop.f32.mrb[0].mxu0
      %v1677 = vadd.f32 %v1516, %v1676
      %v1678 = vpop.f32.mrb[0].mxu0
      %v1679 = vpop.f32.mrb[0].mxu0
      %v1680 = vadd.f32 %v1519, %v1679
      %v1681 = vpop.f32.mrb[0].mxu0
      %1682 = vdwg.mxu0
      %v1683 = vadd.f32 %v336, %v1557
      %v1684 = vadd.f32 %v337, %v1560
      %v1685 = vadd.f32 %v338, %v1565
      %v1686 = vadd.f32 %v339, %v1568
      %v1687 = vadd.f32 %v340, %v1573
      %v1688 = vadd.f32 %v341, %v1576
      %v1689 = vadd.f32 %v342, %v1581
      %v1690 = vadd.f32 %v343, %v1584
      %v1691 = vadd.f32 %v344, %v1589
      %v1692 = vadd.f32 %v345, %v1592
      %v1693 = vadd.f32 %v346, %v1597
      %v1694 = vadd.f32 %v347, %v1600
      %v1695 = vadd.f32 %v348, %v1605
      %v1696 = vadd.f32 %v349, %v1608
      %v1697 = vadd.f32 %v350, %v1613
      %v1698 = vadd.f32 %v351, %v1616
      %v1699 = vadd.f32 %v352, %v1621
      %v1700 = vadd.f32 %v353, %v1624
      %v1701 = vadd.f32 %v354, %v1629
      %v1702 = vadd.f32 %v355, %v1632
      %v1703 = vadd.f32 %v356, %v1637
      %v1704 = vadd.f32 %v357, %v1640
      %v1705 = vadd.f32 %v358, %v1645
      %v1706 = vadd.f32 %v359, %v1648
      %v1707 = vadd.f32 %v360, %v1653
      %v1708 = vadd.f32 %v361, %v1656
      %v1709 = vadd.f32 %v362, %v1661
      %v1710 = vadd.f32 %v363, %v1664
      %v1711 = vadd.f32 %v364, %v1669
      %v1712 = vadd.f32 %v365, %v1672
      %v1713 = vadd.f32 %v366, %v1677
      %v1714 = vadd.f32 %v367, %v1680
      %vm1715 = vcmask 261120
      %1716 = vst.msk [vmem:[%s290] sm:$0xff] %vm1715, %v1683
      %1717 = vst.msk [vmem:[%s290 + $0x8] sm:$0xff] %vm1715, %v1684
      %1718 = vst.msk [vmem:[%s290 + $0x10] sm:$0xff] %vm1715, %v1685
      %1719 = vst.msk [vmem:[%s290 + $0x18] sm:$0xff] %vm1715, %v1686
      %1720 = vst.msk [vmem:[%s290 + $0x20] sm:$0xff] %vm1715, %v1687
      %1721 = vst.msk [vmem:[%s290 + $0x28] sm:$0xff] %vm1715, %v1688
      %1722 = vst.msk [vmem:[%s290 + $0x30] sm:$0xff] %vm1715, %v1689
      %1723 = vst.msk [vmem:[%s290 + $0x38] sm:$0xff] %vm1715, %v1690
      %1724 = vst.msk [vmem:[%s290 + $0x40] sm:$0xff] %vm1715, %v1691
      %1725 = vst.msk [vmem:[%s290 + $0x48] sm:$0xff] %vm1715, %v1692
      %1726 = vst.msk [vmem:[%s290 + $0x50] sm:$0xff] %vm1715, %v1693
      %1727 = vst.msk [vmem:[%s290 + $0x58] sm:$0xff] %vm1715, %v1694
      %1728 = vst.msk [vmem:[%s290 + $0x60] sm:$0xff] %vm1715, %v1695
      %1729 = vst.msk [vmem:[%s290 + $0x68] sm:$0xff] %vm1715, %v1696
      %1730 = vst.msk [vmem:[%s290 + $0x70] sm:$0xff] %vm1715, %v1697
      %1731 = vst.msk [vmem:[%s290 + $0x78] sm:$0xff] %vm1715, %v1698
      %1732 = vst.msk [vmem:[%s290 + $0x80] sm:$0xff] %vm1715, %v1699
      %1733 = vst.msk [vmem:[%s290 + $0x88] sm:$0xff] %vm1715, %v1700
      %1734 = vst.msk [vmem:[%s290 + $0x90] sm:$0xff] %vm1715, %v1701
      %1735 = vst.msk [vmem:[%s290 + $0x98] sm:$0xff] %vm1715, %v1702
      %1736 = vst.msk [vmem:[%s290 + $0xa0] sm:$0xff] %vm1715, %v1703
      %1737 = vst.msk [vmem:[%s290 + $0xa8] sm:$0xff] %vm1715, %v1704
      %1738 = vst.msk [vmem:[%s290 + $0xb0] sm:$0xff] %vm1715, %v1705
      %1739 = vst.msk [vmem:[%s290 + $0xb8] sm:$0xff] %vm1715, %v1706
      %1740 = vst.msk [vmem:[%s290 + $0xc0] sm:$0xff] %vm1715, %v1707
      %1741 = vst.msk [vmem:[%s290 + $0xc8] sm:$0xff] %vm1715, %v1708
      %1742 = vst.msk [vmem:[%s290 + $0xd0] sm:$0xff] %vm1715, %v1709
      %1743 = vst.msk [vmem:[%s290 + $0xd8] sm:$0xff] %vm1715, %v1710
      %1744 = vst.msk [vmem:[%s290 + $0xe0] sm:$0xff] %vm1715, %v1711
      %1745 = vst.msk [vmem:[%s290 + $0xe8] sm:$0xff] %vm1715, %v1712
      %1746 = vst.msk [vmem:[%s290 + $0xf0] sm:$0xff] %vm1715, %v1713
      %1747 = vst.msk [vmem:[%s290 + $0xf8] sm:$0xff] %vm1715, %v1714
      // Predicated region
      $region37: #{_lambda_.11} parent=31 // pred_check
        %p1748 = pneg %p299
      $region38: #{_lambda_.11} parent=31 // pred_check_branch
        %1750 = sbr.rel (%p1748) target = $region40
      $region39: #{_lambda_.11} parent=31 // pred_region
        %v1751 = vld [vmem:[%s290] sm:$0xff]
        %v1752 = vld [vmem:[%s290 + $0x8] sm:$0xff]
        %v1753 = vld [vmem:[%s290 + $0x10] sm:$0xff]
        %v1754 = vld [vmem:[%s290 + $0x18] sm:$0xff]
        %v1755 = vld [vmem:[%s290 + $0x20] sm:$0xff]
        %v1756 = vld [vmem:[%s290 + $0x28] sm:$0xff]
        %v1757 = vld [vmem:[%s290 + $0x30] sm:$0xff]
        %v1758 = vld [vmem:[%s290 + $0x38] sm:$0xff]
        %v1759 = vld [vmem:[%s290 + $0x40] sm:$0xff]
        %v1760 = vld [vmem:[%s290 + $0x48] sm:$0xff]
        %v1761 = vld [vmem:[%s290 + $0x50] sm:$0xff]
        %v1762 = vld [vmem:[%s290 + $0x58] sm:$0xff]
        %v1763 = vld [vmem:[%s290 + $0x60] sm:$0xff]
        %v1764 = vld [vmem:[%s290 + $0x68] sm:$0xff]
        %v1765 = vld [vmem:[%s290 + $0x70] sm:$0xff]
        %v1766 = vld [vmem:[%s290 + $0x78] sm:$0xff]
        %v1767 = vld [vmem:[%s290 + $0x80] sm:$0xff]
        %v1768 = vld [vmem:[%s290 + $0x88] sm:$0xff]
        %v1769 = vld [vmem:[%s290 + $0x90] sm:$0xff]
        %v1770 = vld [vmem:[%s290 + $0x98] sm:$0xff]
        %v1771 = vld [vmem:[%s290 + $0xa0] sm:$0xff]
        %v1772 = vld [vmem:[%s290 + $0xa8] sm:$0xff]
        %v1773 = vld [vmem:[%s290 + $0xb0] sm:$0xff]
        %v1774 = vld [vmem:[%s290 + $0xb8] sm:$0xff]
        %v1775 = vld [vmem:[%s290 + $0xc0] sm:$0xff]
        %v1776 = vld [vmem:[%s290 + $0xc8] sm:$0xff]
        %v1777 = vld [vmem:[%s290 + $0xd0] sm:$0xff]
        %v1778 = vld [vmem:[%s290 + $0xd8] sm:$0xff]
        %v1779 = vld [vmem:[%s290 + $0xe0] sm:$0xff]
        %v1780 = vld [vmem:[%s290 + $0xe8] sm:$0xff]
        %v1781 = vld [vmem:[%s290 + $0xf0] sm:$0xff]
        %v1782 = vld [vmem:[%s290 + $0xf8] sm:$0xff]
        %v1783 = vld [vmem:[%s2] sm:$0x1]
        %v1785 = vlaneseq
        %v1786 = vshrl.u32 %v1785, 7
        %v1787 = vsub.s32 0, %v1786
        %v1788 = vrot.slane %v1783, %v1787
        %v1790 = vadd.f32 %v1751, %v1788
        %v1791 = vadd.f32 %v1752, %v1788
        %v1792 = vadd.f32 %v1753, %v1788
        %v1793 = vadd.f32 %v1754, %v1788
        %v1794 = vadd.f32 %v1755, %v1788
        %v1795 = vadd.f32 %v1756, %v1788
        %v1796 = vadd.f32 %v1757, %v1788
        %v1797 = vadd.f32 %v1758, %v1788
        %v1798 = vadd.f32 %v1759, %v1788
        %v1799 = vadd.f32 %v1760, %v1788
        %v1800 = vadd.f32 %v1761, %v1788
        %v1801 = vadd.f32 %v1762, %v1788
        %v1802 = vadd.f32 %v1763, %v1788
        %v1803 = vadd.f32 %v1764, %v1788
        %v1804 = vadd.f32 %v1765, %v1788
        %v1805 = vadd.f32 %v1766, %v1788
        %v1806 = vadd.f32 %v1767, %v1788
        %v1807 = vadd.f32 %v1768, %v1788
        %v1808 = vadd.f32 %v1769, %v1788
        %v1809 = vadd.f32 %v1770, %v1788
        %v1810 = vadd.f32 %v1771, %v1788
        %v1811 = vadd.f32 %v1772, %v1788
        %v1812 = vadd.f32 %v1773, %v1788
        %v1813 = vadd.f32 %v1774, %v1788
        %v1814 = vadd.f32 %v1775, %v1788
        %v1815 = vadd.f32 %v1776, %v1788
        %v1816 = vadd.f32 %v1777, %v1788
        %v1817 = vadd.f32 %v1778, %v1788
        %v1818 = vadd.f32 %v1779, %v1788
        %v1819 = vadd.f32 %v1780, %v1788
        %v1820 = vadd.f32 %v1781, %v1788
        %v1821 = vadd.f32 %v1782, %v1788
        %1822 = vst.msk [vmem:[%s290] sm:$0xff] %vm1715, %v1790
        %1823 = vst.msk [vmem:[%s290 + $0x8] sm:$0xff] %vm1715, %v1791
        %1824 = vst.msk [vmem:[%s290 + $0x10] sm:$0xff] %vm1715, %v1792
        %1825 = vst.msk [vmem:[%s290 + $0x18] sm:$0xff] %vm1715, %v1793
        %1826 = vst.msk [vmem:[%s290 + $0x20] sm:$0xff] %vm1715, %v1794
        %1827 = vst.msk [vmem:[%s290 + $0x28] sm:$0xff] %vm1715, %v1795
        %1828 = vst.msk [vmem:[%s290 + $0x30] sm:$0xff] %vm1715, %v1796
        %1829 = vst.msk [vmem:[%s290 + $0x38] sm:$0xff] %vm1715, %v1797
        %1830 = vst.msk [vmem:[%s290 + $0x40] sm:$0xff] %vm1715, %v1798
        %1831 = vst.msk [vmem:[%s290 + $0x48] sm:$0xff] %vm1715, %v1799
        %1832 = vst.msk [vmem:[%s290 + $0x50] sm:$0xff] %vm1715, %v1800
        %1833 = vst.msk [vmem:[%s290 + $0x58] sm:$0xff] %vm1715, %v1801
        %1834 = vst.msk [vmem:[%s290 + $0x60] sm:$0xff] %vm1715, %v1802
        %1835 = vst.msk [vmem:[%s290 + $0x68] sm:$0xff] %vm1715, %v1803
        %1836 = vst.msk [vmem:[%s290 + $0x70] sm:$0xff] %vm1715, %v1804
        %1837 = vst.msk [vmem:[%s290 + $0x78] sm:$0xff] %vm1715, %v1805
        %1838 = vst.msk [vmem:[%s290 + $0x80] sm:$0xff] %vm1715, %v1806
        %1839 = vst.msk [vmem:[%s290 + $0x88] sm:$0xff] %vm1715, %v1807
        %1840 = vst.msk [vmem:[%s290 + $0x90] sm:$0xff] %vm1715, %v1808
        %1841 = vst.msk [vmem:[%s290 + $0x98] sm:$0xff] %vm1715, %v1809
        %1842 = vst.msk [vmem:[%s290 + $0xa0] sm:$0xff] %vm1715, %v1810
        %1843 = vst.msk [vmem:[%s290 + $0xa8] sm:$0xff] %vm1715, %v1811
        %1844 = vst.msk [vmem:[%s290 + $0xb0] sm:$0xff] %vm1715, %v1812
        %1845 = vst.msk [vmem:[%s290 + $0xb8] sm:$0xff] %vm1715, %v1813
        %1846 = vst.msk [vmem:[%s290 + $0xc0] sm:$0xff] %vm1715, %v1814
        %1847 = vst.msk [vmem:[%s290 + $0xc8] sm:$0xff] %vm1715, %v1815
        %1848 = vst.msk [vmem:[%s290 + $0xd0] sm:$0xff] %vm1715, %v1816
        %1849 = vst.msk [vmem:[%s290 + $0xd8] sm:$0xff] %vm1715, %v1817
        %1850 = vst.msk [vmem:[%s290 + $0xe0] sm:$0xff] %vm1715, %v1818
        %1851 = vst.msk [vmem:[%s290 + $0xe8] sm:$0xff] %vm1715, %v1819
        %1852 = vst.msk [vmem:[%s290 + $0xf0] sm:$0xff] %vm1715, %v1820
        %1853 = vst.msk [vmem:[%s290 + $0xf8] sm:$0xff] %vm1715, %v1821
        %v1854 = vsel %vm1715, %v1790, 0.0
        %v1855 = vsel %vm1715, %v1791, 0.0
        %v1856 = vadd.f32 %v1854, %v1855
        %v1857 = vsel %vm1715, %v1792, 0.0
        %v1858 = vadd.f32 %v1856, %v1857
        %v1859 = vsel %vm1715, %v1793, 0.0
        %v1860 = vadd.f32 %v1858, %v1859
        %v1861 = vsel %vm1715, %v1794, 0.0
        %v1862 = vadd.f32 %v1860, %v1861
        %v1863 = vsel %vm1715, %v1795, 0.0
        %v1864 = vadd.f32 %v1862, %v1863
        %v1865 = vsel %vm1715, %v1796, 0.0
        %v1866 = vadd.f32 %v1864, %v1865
        %v1867 = vsel %vm1715, %v1797, 0.0
        %v1868 = vadd.f32 %v1866, %v1867
        %v1869 = vsel %vm1715, %v1798, 0.0
        %v1870 = vadd.f32 %v1868, %v1869
        %v1871 = vsel %vm1715, %v1799, 0.0
        %v1872 = vadd.f32 %v1870, %v1871
        %v1873 = vsel %vm1715, %v1800, 0.0
        %v1874 = vadd.f32 %v1872, %v1873
        %v1875 = vsel %vm1715, %v1801, 0.0
        %v1876 = vadd.f32 %v1874, %v1875
        %v1877 = vsel %vm1715, %v1802, 0.0
        %v1878 = vadd.f32 %v1876, %v1877
        %v1879 = vsel %vm1715, %v1803, 0.0
        %v1880 = vadd.f32 %v1878, %v1879
        %v1881 = vsel %vm1715, %v1804, 0.0
        %v1882 = vadd.f32 %v1880, %v1881
        %v1883 = vsel %vm1715, %v1805, 0.0
        %v1884 = vadd.f32 %v1882, %v1883
        %v1885 = vsel %vm1715, %v1806, 0.0
        %v1886 = vadd.f32 %v1884, %v1885
        %v1887 = vsel %vm1715, %v1807, 0.0
        %v1888 = vadd.f32 %v1886, %v1887
        %v1889 = vsel %vm1715, %v1808, 0.0
        %v1890 = vadd.f32 %v1888, %v1889
        %v1891 = vsel %vm1715, %v1809, 0.0
        %v1892 = vadd.f32 %v1890, %v1891
        %v1893 = vsel %vm1715, %v1810, 0.0
        %v1894 = vadd.f32 %v1892, %v1893
        %v1895 = vsel %vm1715, %v1811, 0.0
        %v1896 = vadd.f32 %v1894, %v1895
        %v1897 = vsel %vm1715, %v1812, 0.0
        %v1898 = vadd.f32 %v1896, %v1897
        %v1899 = vsel %vm1715, %v1813, 0.0
        %v1900 = vadd.f32 %v1898, %v1899
        %v1901 = vsel %vm1715, %v1814, 0.0
        %v1902 = vadd.f32 %v1900, %v1901
        %v1903 = vsel %vm1715, %v1815, 0.0
        %v1904 = vadd.f32 %v1902, %v1903
        %v1905 = vsel %vm1715, %v1816, 0.0
        %v1906 = vadd.f32 %v1904, %v1905
        %v1907 = vsel %vm1715, %v1817, 0.0
        %v1908 = vadd.f32 %v1906, %v1907
        %v1909 = vsel %vm1715, %v1818, 0.0
        %v1910 = vadd.f32 %v1908, %v1909
        %v1911 = vsel %vm1715, %v1819, 0.0
        %v1912 = vadd.f32 %v1910, %v1911
        %v1913 = vsel %vm1715, %v1820, 0.0
        %v1914 = vadd.f32 %v1912, %v1913
        %v1915 = vsel %vm1715, %v1821, 0.0
        %v1916 = vadd.f32 %v1914, %v1915
        %v1917 = vrot.slane %v1916, 4
        %v1918 = vadd.f32 %v1916, %v1917
        %v1919 = vrot.slane %v1918, 2
        %v1920 = vadd.f32 %v1918, %v1919
        %v1921 = vrot.slane %v1920, 1
        %v1922 = vadd.f32 %v1920, %v1921
        %vm1923 = vcmask 253952
        %1924 = vst.msk [vmem:[%s294] sm:$0x1] %vm1923, %v1922
        %v1925 = vmul.f32 %v1790, %v1790
        %v1926 = vmul.f32 %v1791, %v1791
        %v1927 = vmul.f32 %v1792, %v1792
        %v1928 = vmul.f32 %v1793, %v1793
        %v1929 = vmul.f32 %v1794, %v1794
        %v1930 = vmul.f32 %v1795, %v1795
        %v1931 = vmul.f32 %v1796, %v1796
        %v1932 = vmul.f32 %v1797, %v1797
        %v1933 = vmul.f32 %v1798, %v1798
        %v1934 = vmul.f32 %v1799, %v1799
        %v1935 = vmul.f32 %v1800, %v1800
        %v1936 = vmul.f32 %v1801, %v1801
        %v1937 = vmul.f32 %v1802, %v1802
        %v1938 = vmul.f32 %v1803, %v1803
        %v1939 = vmul.f32 %v1804, %v1804
        %v1940 = vmul.f32 %v1805, %v1805
        %v1941 = vmul.f32 %v1806, %v1806
        %v1942 = vmul.f32 %v1807, %v1807
        %v1943 = vmul.f32 %v1808, %v1808
        %v1944 = vmul.f32 %v1809, %v1809
        %v1945 = vmul.f32 %v1810, %v1810
        %v1946 = vmul.f32 %v1811, %v1811
        %v1947 = vmul.f32 %v1812, %v1812
        %v1948 = vmul.f32 %v1813, %v1813
        %v1949 = vmul.f32 %v1814, %v1814
        %v1950 = vmul.f32 %v1815, %v1815
        %v1951 = vmul.f32 %v1816, %v1816
        %v1952 = vmul.f32 %v1817, %v1817
        %v1953 = vmul.f32 %v1818, %v1818
        %v1954 = vmul.f32 %v1819, %v1819
        %v1955 = vmul.f32 %v1820, %v1820
        %v1956 = vmul.f32 %v1821, %v1821
        %v1957 = vsel %vm1715, %v1925, 0.0
        %v1958 = vsel %vm1715, %v1926, 0.0
        %v1959 = vadd.f32 %v1957, %v1958
        %v1960 = vsel %vm1715, %v1927, 0.0
        %v1961 = vadd.f32 %v1959, %v1960
        %v1962 = vsel %vm1715, %v1928, 0.0
        %v1963 = vadd.f32 %v1961, %v1962
        %v1964 = vsel %vm1715, %v1929, 0.0
        %v1965 = vadd.f32 %v1963, %v1964
        %v1966 = vsel %vm1715, %v1930, 0.0
        %v1967 = vadd.f32 %v1965, %v1966
        %v1968 = vsel %vm1715, %v1931, 0.0
        %v1969 = vadd.f32 %v1967, %v1968
        %v1970 = vsel %vm1715, %v1932, 0.0
        %v1971 = vadd.f32 %v1969, %v1970
        %v1972 = vsel %vm1715, %v1933, 0.0
        %v1973 = vadd.f32 %v1971, %v1972
        %v1974 = vsel %vm1715, %v1934, 0.0
        %v1975 = vadd.f32 %v1973, %v1974
        %v1976 = vsel %vm1715, %v1935, 0.0
        %v1977 = vadd.f32 %v1975, %v1976
        %v1978 = vsel %vm1715, %v1936, 0.0
        %v1979 = vadd.f32 %v1977, %v1978
        %v1980 = vsel %vm1715, %v1937, 0.0
        %v1981 = vadd.f32 %v1979, %v1980
        %v1982 = vsel %vm1715, %v1938, 0.0
        %v1983 = vadd.f32 %v1981, %v1982
        %v1984 = vsel %vm1715, %v1939, 0.0
        %v1985 = vadd.f32 %v1983, %v1984
        %v1986 = vsel %vm1715, %v1940, 0.0
        %v1987 = vadd.f32 %v1985, %v1986
        %v1988 = vsel %vm1715, %v1941, 0.0
        %v1989 = vadd.f32 %v1987, %v1988
        %v1990 = vsel %vm1715, %v1942, 0.0
        %v1991 = vadd.f32 %v1989, %v1990
        %v1992 = vsel %vm1715, %v1943, 0.0
        %v1993 = vadd.f32 %v1991, %v1992
        %v1994 = vsel %vm1715, %v1944, 0.0
        %v1995 = vadd.f32 %v1993, %v1994
        %v1996 = vsel %vm1715, %v1945, 0.0
        %v1997 = vadd.f32 %v1995, %v1996
        %v1998 = vsel %vm1715, %v1946, 0.0
        %v1999 = vadd.f32 %v1997, %v1998
        %v2000 = vsel %vm1715, %v1947, 0.0
        %v2001 = vadd.f32 %v1999, %v2000
        %v2002 = vsel %vm1715, %v1948, 0.0
        %v2003 = vadd.f32 %v2001, %v2002
        %v2004 = vsel %vm1715, %v1949, 0.0
        %v2005 = vadd.f32 %v2003, %v2004
        %v2006 = vsel %vm1715, %v1950, 0.0
        %v2007 = vadd.f32 %v2005, %v2006
        %v2008 = vsel %vm1715, %v1951, 0.0
        %v2009 = vadd.f32 %v2007, %v2008
        %v2010 = vsel %vm1715, %v1952, 0.0
        %v2011 = vadd.f32 %v2009, %v2010
        %v2012 = vsel %vm1715, %v1953, 0.0
        %v2013 = vadd.f32 %v2011, %v2012
        %v2014 = vsel %vm1715, %v1954, 0.0
        %v2015 = vadd.f32 %v2013, %v2014
        %v2016 = vsel %vm1715, %v1955, 0.0
        %v2017 = vadd.f32 %v2015, %v2016
        %v2018 = vsel %vm1715, %v1956, 0.0
        %v2019 = vadd.f32 %v2017, %v2018
        %v2020 = vrot.slane %v2019, 4
        %v2021 = vadd.f32 %v2019, %v2020
        %v2022 = vrot.slane %v2021, 2
        %v2023 = vadd.f32 %v2021, %v2022
        %v2024 = vrot.slane %v2023, 1
        %v2025 = vadd.f32 %v2023, %v2024
        %2026 = vst.msk [vmem:[%s297] sm:$0x1] %vm1923, %v2025
      $region40: #{_lambda_.11} parent=31 // pred_fallthru
        _
      %s2027 = smul.u32 32, %s21
      %p2028 = scmp.lt.s32.totalorder %s2027, 703
      %s2029 = scalar_select %p2028, %s2027, 703
      %s2030 = smul.addr %s2029, 8
      %s2031 = scalar_lea.vmem %s3, %s2030
      %p2032 = scmp.lt.s32.totalorder %s21, 21
      %s2033 = scalar_select %p2032, %s21, 21
      %s2034 = scalar_lea.vmem %s4, %s2033
      %p2035 = scmp.lt.s32.totalorder %s21, 21
      %s2036 = scalar_select %p2035, %s21, 21
      %s2037 = scalar_lea.vmem %s5, %s2036
      // Predicated region
      $region41: #{_lambda_.11} parent=31 // pred_check
        %p2038 = pneg %p122
      $region42: #{_lambda_.11} parent=31 // pred_check_branch
        %2040 = sbr.rel (%p2038) target = $region44
      $region43: #{_lambda_.11} parent=31 // pred_region
        %s2041 = smul.u32 32, %s21
      $region44: #{_lambda_.11} parent=31 // pred_fallthru
        _
      // Predicated region
      $region45: #{_lambda_.11} parent=31 // pred_check
        %p2042 = pneg %p148
      $region46: #{_lambda_.11} parent=31 // pred_check_branch
        %2044 = sbr.rel (%p2042) target = $region48
      $region47: #{_lambda_.11} parent=31 // pred_region
        _
      $region48: #{_lambda_.11} parent=31 // pred_fallthru
        _
      // Predicated region
      $region49: #{_lambda_.11} parent=31 // pred_check
        %p2045 = pneg %p174
      $region50: #{_lambda_.11} parent=31 // pred_check_branch
        %2047 = sbr.rel (%p2045) target = $region52
      $region51: #{_lambda_.11} parent=31 // pred_region
        _
      $region52: #{_lambda_.11} parent=31 // pred_fallthru
        _
    $region32: #{_lambda_.11} parent=5 // pred_fallthru
      _
    %p2048 = scmp.le.s32.totalorder 2, %s12
    // Predicated region
    $region53: #{_lambda_.11} parent=5 // pred_check
      %p2049 = pneg %p2048
    $region54: #{_lambda_.11} parent=5 // pred_check_branch
      %2051 = sbr.rel (%p2049) target = $region56
    $region55: #{_lambda_.11} parent=5 // pred_region
      %s2052 = ssub.s32 %s12, 2
      // Predicated region
      $region57: #{_lambda_.11} parent=55 // pred_check
        %p2053 = pneg %p128
      $region58: #{_lambda_.11} parent=55 // pred_check_branch
        %2055 = sbr.rel (%p2053) target = $region60
      $region59: #{_lambda_.11} parent=55 // pred_region
        %s2056 = smul.u32 32, %s23
        %p2057 = scmp.lt.s32.totalorder %s2056, 703
        %s2058 = scalar_select %p2057, %s2056, 703
        %s2059 = smul.addr %s2058, 8
        %s2060 = scalar_lea.vmem %s3, %s2059
      $region60: #{_lambda_.11} parent=55 // pred_fallthru
        _
      // Predicated region
      $region61: #{_lambda_.11} parent=55 // pred_check
        %p2061 = pneg %p154
      $region62: #{_lambda_.11} parent=55 // pred_check_branch
        %2063 = sbr.rel (%p2061) target = $region64
      $region63: #{_lambda_.11} parent=55 // pred_region
        %p2064 = scmp.lt.s32.totalorder %s23, 21
        %s2065 = scalar_select %p2064, %s23, 21
        %s2066 = scalar_lea.vmem %s4, %s2065
      $region64: #{_lambda_.11} parent=55 // pred_fallthru
        _
      // Predicated region
      $region65: #{_lambda_.11} parent=55 // pred_check
        %p2067 = pneg %p180
      $region66: #{_lambda_.11} parent=55 // pred_check_branch
        %2069 = sbr.rel (%p2067) target = $region68
      $region67: #{_lambda_.11} parent=55 // pred_region
        %p2070 = scmp.lt.s32.totalorder %s23, 21
        %s2071 = scalar_select %p2070, %s23, 21
        %s2072 = scalar_lea.vmem %s5, %s2071
      $region68: #{_lambda_.11} parent=55 // pred_fallthru
        _
    $region56: #{_lambda_.11} parent=5 // pred_fallthru
      _
  $region6: #{_lambda_.11} parent=0 // loop_footer
    %s16 = sadd.s32 1, %s12
  $region7: #{_lambda_.11} parent=0 // loop_footer_branch
    %11 = sbr.rel target = $region3
  $region8: #{_lambda_.11} parent=0 // loop_exit
    _

// kernel: _lambda_.13
$region0: #{_lambda_.13}
  #allocation0 [shape = 'u32[]', space=smem, size = 0x4, offset = 0x4, fixed_abs, tag = 'smem constant byte address 0x4 - core index']
  #allocation1 [shape = 'u32[144,128]{1,0:T(1,128)}', space=vmem, size = 0x12000, scoped, tag = 'internal scratch']
  %s0 = inlined_call_operand.vmem [shape: bf16[4352,1792], index: 0, kind: input, shape index: {}]
  %s1 = inlined_call_operand.vmem [shape: bf16[1792,128], index: 1, kind: input, shape index: {}]
  %s2 = inlined_call_operand.vmem [shape: f32[1,128], index: 2, kind: input, shape index: {}]
  %s3 = inlined_call_operand.vmem [shape: f32[4352,128], index: 3, kind: output, shape index: {}]
  %s4 = sld [smem:[#allocation0]]
  $region79: #{_lambda_.13} parent=0
    _
  %s6 = ssub.s32 1, %s4
  %s7 = scalar_select 0, %s6, %s4
  $region1: #{_lambda_.13} parent=0
    #allocation2 [shape = 'u8[917504]{0}', space=vmem, size = 0xe0000, scoped, tag = 'input window, operand 0']
    loop: start=0, step=1, limit=36
    $region2: #{_lambda_.13} parent=1 // loop_pre_header
      _
    $region3: #{_lambda_.13} parent=1 // loop_header
      %s9 = sphi 0, %s13
      %p10 = scmp.ge.s32.totalorder %s9, 36
      %s16 = sphi 0, %s28
      %s17 = sphi 0, %s24
      %s18 = sphi 0, %s16
      %s19 = sphi 0, %s17
      %s20 = sphi 0, %s18
      %s21 = sphi 0, %s19
      %s33 = sphi 0, %s35
      %s36 = sphi 0, %s33
      %s37 = sphi 0, %s36
      %s53 = sphi 0, %s37
      %s59 = sphi 0, %s61
      %s62 = sphi 0, %s59
      %s63 = sphi 0, %s62
      %s79 = sphi 0, %s63
      %s83 = sphi 0, %s83
      %s85 = sphi 0, %s83
      %s86 = sphi 0, %s85
      %s100 = sphi 0, %s86
      %s106 = sphi 0, %s108
      %s109 = sphi 0, %s106
      %s110 = sphi 0, %s109
      %s126 = sphi 0, %s110
    $region4: #{_lambda_.13} parent=1 // loop_header_branch
      %12 = sbr.rel (%p10) target = $region8
    $region5: #{_lambda_.13} parent=1 // loop_body
      %s14 = ssub.s32 %s9, 1
      %s15 = ssub.s32 %s9, 2
      %s22 = sadd.s32 1, %s17
      %p23 = scmp.ge.s32.totalorder %s22, 2
      %s24 = scalar_select %p23, 0, %s22
      %s25 = sadd.s32 1, %s16
      %s26 = scalar_select %p23, %s25, %s16
      %p27 = scmp.ge.s32.totalorder %s26, 17
      %s28 = scalar_select %p27, 0, %s26
      %s29 = ssub.s32 %s16, %s28
      %s30 = ssub.s32 %s17, %s24
      %s31 = sor.u32 %s29, %s30
      %p32 = scmp.eq.s32.totalorder %s31, 0
      %s34 = sadd.s32 %s33, 1
      %s35 = scalar_select %p32, %s33, %s34
      %p38 = pneg %p32
      %p39 = scmp.eq.s32.totalorder %s9, 33
      %p40 = por %p38, %p39
      %p41 = scmp.ne.s32.totalorder %s33, %s36
      %p42 = scmp.eq.s32.totalorder %s9, 0
      %p43 = por %p41, %p42
      %p44 = scmp.ne.s32.totalorder %s33, %s36
      %p45 = scmp.eq.s32.totalorder %s14, 33
      %p46 = por %p44, %p45
      %p47 = scmp.ne.s32.totalorder %s36, %s37
      %p48 = scmp.eq.s32.totalorder %s14, 0
      %p49 = por %p47, %p48
      %p50 = scmp.ne.s32.totalorder %s36, %s37
      %p51 = scmp.eq.s32.totalorder %s15, 33
      %p52 = por %p50, %p51
      %p54 = scmp.ne.s32.totalorder %s37, %s53
      %p55 = scmp.eq.s32.totalorder %s15, 0
      %p56 = por %p54, %p55
      %s57 = ssub.s32 %s17, %s24
      %p58 = scmp.eq.s32.totalorder %s57, 0
      %s60 = sadd.s32 %s59, 1
      %s61 = scalar_select %p58, %s59, %s60
      %p64 = pneg %p58
      %p65 = scmp.eq.s32.totalorder %s9, 33
      %p66 = por %p64, %p65
      %p67 = scmp.ne.s32.totalorder %s59, %s62
      %p68 = scmp.eq.s32.totalorder %s9, 0
      %p69 = por %p67, %p68
      %p70 = scmp.ne.s32.totalorder %s59, %s62
      %p71 = scmp.eq.s32.totalorder %s14, 33
      %p72 = por %p70, %p71
      %p73 = scmp.ne.s32.totalorder %s62, %s63
      %p74 = scmp.eq.s32.totalorder %s14, 0
      %p75 = por %p73, %p74
      %p76 = scmp.ne.s32.totalorder %s62, %s63
      %p77 = scmp.eq.s32.totalorder %s15, 33
      %p78 = por %p76, %p77
      %p80 = scmp.ne.s32.totalorder %s63, %s79
      %p81 = scmp.eq.s32.totalorder %s15, 0
      %p82 = por %p80, %p81
      %s84 = sadd.s32 %s83, 1
      %p87 = scmp.eq.s32.totalorder %s9, 33
      %p88 = scmp.ne.s32.totalorder %s83, %s85
      %p89 = scmp.eq.s32.totalorder %s9, 0
      %p90 = por %p88, %p89
      %p91 = scmp.ne.s32.totalorder %s83, %s85
      %p92 = scmp.eq.s32.totalorder %s14, 33
      %p93 = por %p91, %p92
      %p94 = scmp.ne.s32.totalorder %s85, %s86
      %p95 = scmp.eq.s32.totalorder %s14, 0
      %p96 = por %p94, %p95
      %p97 = scmp.ne.s32.totalorder %s85, %s86
      %p98 = scmp.eq.s32.totalorder %s15, 33
      %p99 = por %p97, %p98
      %p101 = scmp.ne.s32.totalorder %s86, %s100
      %p102 = scmp.eq.s32.totalorder %s15, 0
      %p103 = por %p101, %p102
      %s104 = ssub.s32 %s16, %s28
      %p105 = scmp.eq.s32.totalorder %s104, 0
      %s107 = sadd.s32 %s106, 1
      %s108 = scalar_select %p105, %s106, %s107
      %p111 = pneg %p105
      %p112 = scmp.eq.s32.totalorder %s9, 33
      %p113 = por %p111, %p112
      %p114 = scmp.ne.s32.totalorder %s106, %s109
      %p115 = scmp.eq.s32.totalorder %s9, 0
      %p116 = por %p114, %p115
      %p117 = scmp.ne.s32.totalorder %s106, %s109
      %p118 = scmp.eq.s32.totalorder %s14, 33
      %p119 = por %p117, %p118
      %p120 = scmp.ne.s32.totalorder %s109, %s110
      %p121 = scmp.eq.s32.totalorder %s14, 0
      %p122 = por %p120, %p121
      %p123 = scmp.ne.s32.totalorder %s109, %s110
      %p124 = scmp.eq.s32.totalorder %s15, 33
      %p125 = por %p123, %p124
      %p127 = scmp.ne.s32.totalorder %s110, %s126
      %p128 = scmp.eq.s32.totalorder %s15, 0
      %p129 = por %p127, %p128
      %p130 = scmp.le.s32.totalorder 1, %s9
      %p131 = scmp.lt.s32.totalorder %s9, 35
      %p132 = pnand %p130, %p131
      %p133 = pneg %p132
      // Predicated region
      $region9: #{_lambda_.13} parent=5 // pred_check
        _
      $region10: #{_lambda_.13} parent=5 // pred_check_branch
        %135 = sbr.rel (%p132) target = $region12
      $region11: #{_lambda_.13} parent=5 // pred_region
        %s136 = ssub.s32 %s9, 1
        // Predicated region
        $region13: #{_lambda_.13} parent=11 // pred_check
          %p137 = pneg %p96
        $region14: #{_lambda_.13} parent=11 // pred_check_branch
          %139 = sbr.rel (%p137) target = $region16
        $region15: #{_lambda_.13} parent=11 // pred_region
          _
        $region16: #{_lambda_.13} parent=11 // pred_fallthru
          _
      $region12: #{_lambda_.13} parent=5 // pred_fallthru
        _
      %p140 = scmp.lt.s32.totalorder %s9, 34
      // Predicated region
      $region17: #{_lambda_.13} parent=5 // pred_check
        %p141 = pneg %p140
      $region18: #{_lambda_.13} parent=5 // pred_check_branch
        %143 = sbr.rel (%p141) target = $region20
      $region19: #{_lambda_.13} parent=5 // pred_region
        // Predicated region
        $region21: #{_lambda_.13} parent=19 // pred_check
          %p144 = pneg %p43
        $region22: #{_lambda_.13} parent=19 // pred_check_branch
          %146 = sbr.rel (%p144) target = $region24
        $region23: #{_lambda_.13} parent=19 // pred_region
          %s147 = sand.u32 %s33, 1
          %s148 = sand.u32 %s33, 1
          %s149 = smul.addr %s148, 896
          %s150 = scalar_lea.vmem [#allocation2], %s149
          %s151 = smul.u32 32, %s16
          %s152 = smul.u32 7, %s17
          %s153 = smul.addr %s151, 14
          %s154 = sadd.s32 %s152, %s153
          %s155 = smul.addr %s154, 4
          %s156 = scalar_lea.vmem %s0, %s155
          // Predicated region
          $region25: #{_lambda_.13} parent=23 // pred_check
            _
          $region26: #{_lambda_.13} parent=23 // pred_check_branch
            %158 = sbr.rel (0) target = $region28
          $region27: #{_lambda_.13} parent=23 // pred_region
            // Predicated region
            $region29: #{_lambda_.13} parent=27 // pred_check
              _
            $region30: #{_lambda_.13} parent=27 // pred_check_branch
              %160 = sbr.rel (0) target = $region32
            $region31: #{_lambda_.13} parent=27 // pred_region
              %s161 = scalar_lea.vmem %s156, 24
              %s162 = scalar_lea.vmem %s150, 24 [#allocation2]
              loop: start=0, step=1, limit=1
              $region33: #{_lambda_.13} parent=31 // loop_pre_header
                _
              $region34: #{_lambda_.13} parent=31 // loop_header
                %s164 = sphi 0, %s168
                %p165 = scmp.ge.s32.totalorder %s164, 1
                %s169 = sphi %s156, %s156
                %s170 = sphi %s150, %s150
              $region35: #{_lambda_.13} parent=31 // loop_header_branch
                %167 = sbr.rel (%p165) target = $region39
              $region36: #{_lambda_.13} parent=31 // loop_body
                %v171 = vld [vmem:[%s169] sm:$0xff]
                %172 = vst [vmem:[%s170] sm:$0xff] %v171
                %v173 = vld [vmem:[%s169 + $0x8] sm:$0xff]
                %174 = vst [vmem:[%s170 + $0x8] sm:$0xff] %v173
                %v175 = vld [vmem:[%s169 + $0x10] sm:$0xff]
                %176 = vst [vmem:[%s170 + $0x10] sm:$0xff] %v175
                %v177 = vld [vmem:[%s169 + $0x38] sm:$0xff]
                %178 = vst [vmem:[%s170 + $0x1c] sm:$0xff] %v177
                %v179 = vld [vmem:[%s169 + $0x40] sm:$0xff]
                %180 = vst [vmem:[%s170 + $0x24] sm:$0xff] %v179
                %v181 = vld [vmem:[%s169 + $0x48] sm:$0xff]
                %182 = vst [vmem:[%s170 + $0x2c] sm:$0xff] %v181
                %v183 = vld [vmem:[%s169 + $0x70] sm:$0xff]
                %184 = vst [vmem:[%s170 + $0x38] sm:$0xff] %v183
                %v185 = vld [vmem:[%s169 + $0x78] sm:$0xff]
                %186 = vst [vmem:[%s170 + $0x40] sm:$0xff] %v185
                %v187 = vld [vmem:[%s169 + $0x80] sm:$0xff]
                %188 = vst [vmem:[%s170 + $0x48] sm:$0xff] %v187
                %v189 = vld [vmem:[%s169 + $0xa8] sm:$0xff]
                %190 = vst [vmem:[%s170 + $0x54] sm:$0xff] %v189
                %v191 = vld [vmem:[%s169 + $0xb0] sm:$0xff]
                %192 = vst [vmem:[%s170 + $0x5c] sm:$0xff] %v191
                %v193 = vld [vmem:[%s169 + $0xb8] sm:$0xff]
                %194 = vst [vmem:[%s170 + $0x64] sm:$0xff] %v193
                %v195 = vld [vmem:[%s169 + $0xe0] sm:$0xff]
                %196 = vst [vmem:[%s170 + $0x70] sm:$0xff] %v195
                %v197 = vld [vmem:[%s169 + $0xe8] sm:$0xff]
                %198 = vst [vmem:[%s170 + $0x78] sm:$0xff] %v197
                %v199 = vld [vmem:[%s169 + $0xf0] sm:$0xff]
                %200 = vst [vmem:[%s170 + $0x80] sm:$0xff] %v199
                %v201 = vld [vmem:[%s169 + $0x118] sm:$0xff]
                %202 = vst [vmem:[%s170 + $0x8c] sm:$0xff] %v201
                %v203 = vld [vmem:[%s169 + $0x120] sm:$0xff]
                %204 = vst [vmem:[%s170 + $0x94] sm:$0xff] %v203
                %v205 = vld [vmem:[%s169 + $0x128] sm:$0xff]
                %206 = vst [vmem:[%s170 + $0x9c] sm:$0xff] %v205
                %v207 = vld [vmem:[%s169 + $0x150] sm:$0xff]
                %208 = vst [vmem:[%s170 + $0xa8] sm:$0xff] %v207
                %v209 = vld [vmem:[%s169 + $0x158] sm:$0xff]
                %210 = vst [vmem:[%s170 + $0xb0] sm:$0xff] %v209
                %v211 = vld [vmem:[%s169 + $0x160] sm:$0xff]
                %212 = vst [vmem:[%s170 + $0xb8] sm:$0xff] %v211
                %v213 = vld [vmem:[%s169 + $0x188] sm:$0xff]
                %214 = vst [vmem:[%s170 + $0xc4] sm:$0xff] %v213
                %v215 = vld [vmem:[%s169 + $0x190] sm:$0xff]
                %216 = vst [vmem:[%s170 + $0xcc] sm:$0xff] %v215
                %v217 = vld [vmem:[%s169 + $0x198] sm:$0xff]
                %218 = vst [vmem:[%s170 + $0xd4] sm:$0xff] %v217
                %v219 = vld [vmem:[%s169 + $0x1c0] sm:$0xff]
                %220 = vst [vmem:[%s170 + $0xe0] sm:$0xff] %v219
                %v221 = vld [vmem:[%s169 + $0x1c8] sm:$0xff]
                %222 = vst [vmem:[%s170 + $0xe8] sm:$0xff] %v221
                %v223 = vld [vmem:[%s169 + $0x1d0] sm:$0xff]
                %224 = vst [vmem:[%s170 + $0xf0] sm:$0xff] %v223
                %v225 = vld [vmem:[%s169 + $0x1f8] sm:$0xff]
                %226 = vst [vmem:[%s170 + $0xfc] sm:$0xff] %v225
                %v227 = vld [vmem:[%s169 + $0x200] sm:$0xff]
                %228 = vst [vmem:[%s170 + $0x104] sm:$0xff] %v227
                %v229 = vld [vmem:[%s169 + $0x208] sm:$0xff]
                %230 = vst [vmem:[%s170 + $0x10c] sm:$0xff] %v229
                %v231 = vld [vmem:[%s169 + $0x230] sm:$0xff]
                %232 = vst [vmem:[%s170 + $0x118] sm:$0xff] %v231
                %v233 = vld [vmem:[%s169 + $0x238] sm:$0xff]
                %234 = vst [vmem:[%s170 + $0x120] sm:$0xff] %v233
                %v235 = vld [vmem:[%s169 + $0x240] sm:$0xff]
                %236 = vst [vmem:[%s170 + $0x128] sm:$0xff] %v235
                %v237 = vld [vmem:[%s169 + $0x268] sm:$0xff]
                %238 = vst [vmem:[%s170 + $0x134] sm:$0xff] %v237
                %v239 = vld [vmem:[%s169 + $0x270] sm:$0xff]
                %240 = vst [vmem:[%s170 + $0x13c] sm:$0xff] %v239
                %v241 = vld [vmem:[%s169 + $0x278] sm:$0xff]
                %242 = vst [vmem:[%s170 + $0x144] sm:$0xff] %v241
                %v243 = vld [vmem:[%s169 + $0x2a0] sm:$0xff]
                %244 = vst [vmem:[%s170 + $0x150] sm:$0xff] %v243
                %v245 = vld [vmem:[%s169 + $0x2a8] sm:$0xff]
                %246 = vst [vmem:[%s170 + $0x158] sm:$0xff] %v245
                %v247 = vld [vmem:[%s169 + $0x2b0] sm:$0xff]
                %248 = vst [vmem:[%s170 + $0x160] sm:$0xff] %v247
                %v249 = vld [vmem:[%s169 + $0x2d8] sm:$0xff]
                %250 = vst [vmem:[%s170 + $0x16c] sm:$0xff] %v249
                %v251 = vld [vmem:[%s169 + $0x2e0] sm:$0xff]
                %252 = vst [vmem:[%s170 + $0x174] sm:$0xff] %v251
                %v253 = vld [vmem:[%s169 + $0x2e8] sm:$0xff]
                %254 = vst [vmem:[%s170 + $0x17c] sm:$0xff] %v253
                %v255 = vld [vmem:[%s169 + $0x310] sm:$0xff]
                %256 = vst [vmem:[%s170 + $0x188] sm:$0xff] %v255
                %v257 = vld [vmem:[%s169 + $0x318] sm:$0xff]
                %258 = vst [vmem:[%s170 + $0x190] sm:$0xff] %v257
                %v259 = vld [vmem:[%s169 + $0x320] sm:$0xff]
                %260 = vst [vmem:[%s170 + $0x198] sm:$0xff] %v259
                %v261 = vld [vmem:[%s169 + $0x348] sm:$0xff]
                %262 = vst [vmem:[%s170 + $0x1a4] sm:$0xff] %v261
                %v263 = vld [vmem:[%s169 + $0x350] sm:$0xff]
                %264 = vst [vmem:[%s170 + $0x1ac] sm:$0xff] %v263
                %v265 = vld [vmem:[%s169 + $0x358] sm:$0xff]
                %266 = vst [vmem:[%s170 + $0x1b4] sm:$0xff] %v265
                %v267 = vld [vmem:[%s169 + $0x380] sm:$0xff]
                %268 = vst [vmem:[%s170 + $0x1c0] sm:$0xff] %v267
                %v269 = vld [vmem:[%s169 + $0x388] sm:$0xff]
                %270 = vst [vmem:[%s170 + $0x1c8] sm:$0xff] %v269
                %v271 = vld [vmem:[%s169 + $0x390] sm:$0xff]
                %272 = vst [vmem:[%s170 + $0x1d0] sm:$0xff] %v271
                %v273 = vld [vmem:[%s169 + $0x3b8] sm:$0xff]
                %274 = vst [vmem:[%s170 + $0x1dc] sm:$0xff] %v273
                %v275 = vld [vmem:[%s169 + $0x3c0] sm:$0xff]
                %276 = vst [vmem:[%s170 + $0x1e4] sm:$0xff] %v275
                %v277 = vld [vmem:[%s169 + $0x3c8] sm:$0xff]
                %278 = vst [vmem:[%s170 + $0x1ec] sm:$0xff] %v277
                %v279 = vld [vmem:[%s169 + $0x3f0] sm:$0xff]
                %280 = vst [vmem:[%s170 + $0x1f8] sm:$0xff] %v279
                %v281 = vld [vmem:[%s169 + $0x3f8] sm:$0xff]
                %282 = vst [vmem:[%s170 + $0x200] sm:$0xff] %v281
                %v283 = vld [vmem:[%s169 + $0x400] sm:$0xff]
                %284 = vst [vmem:[%s170 + $0x208] sm:$0xff] %v283
                %v285 = vld [vmem:[%s169 + $0x428] sm:$0xff]
                %286 = vst [vmem:[%s170 + $0x214] sm:$0xff] %v285
                %v287 = vld [vmem:[%s169 + $0x430] sm:$0xff]
                %288 = vst [vmem:[%s170 + $0x21c] sm:$0xff] %v287
                %v289 = vld [vmem:[%s169 + $0x438] sm:$0xff]
                %290 = vst [vmem:[%s170 + $0x224] sm:$0xff] %v289
                %v291 = vld [vmem:[%s169 + $0x460] sm:$0xff]
                %292 = vst [vmem:[%s170 + $0x230] sm:$0xff] %v291
                %v293 = vld [vmem:[%s169 + $0x468] sm:$0xff]
                %294 = vst [vmem:[%s170 + $0x238] sm:$0xff] %v293
                %v295 = vld [vmem:[%s169 + $0x470] sm:$0xff]
                %296 = vst [vmem:[%s170 + $0x240] sm:$0xff] %v295
                %v297 = vld [vmem:[%s169 + $0x498] sm:$0xff]
                %298 = vst [vmem:[%s170 + $0x24c] sm:$0xff] %v297
                %v299 = vld [vmem:[%s169 + $0x4a0] sm:$0xff]
                %300 = vst [vmem:[%s170 + $0x254] sm:$0xff] %v299
                %v301 = vld [vmem:[%s169 + $0x4a8] sm:$0xff]
                %302 = vst [vmem:[%s170 + $0x25c] sm:$0xff] %v301
                %v303 = vld [vmem:[%s169 + $0x4d0] sm:$0xff]
                %304 = vst [vmem:[%s170 + $0x268] sm:$0xff] %v303
                %v305 = vld [vmem:[%s169 + $0x4d8] sm:$0xff]
                %306 = vst [vmem:[%s170 + $0x270] sm:$0xff] %v305
                %v307 = vld [vmem:[%s169 + $0x4e0] sm:$0xff]
                %308 = vst [vmem:[%s170 + $0x278] sm:$0xff] %v307
                %v309 = vld [vmem:[%s169 + $0x508] sm:$0xff]
                %310 = vst [vmem:[%s170 + $0x284] sm:$0xff] %v309
                %v311 = vld [vmem:[%s169 + $0x510] sm:$0xff]
                %312 = vst [vmem:[%s170 + $0x28c] sm:$0xff] %v311
                %v313 = vld [vmem:[%s169 + $0x518] sm:$0xff]
                %314 = vst [vmem:[%s170 + $0x294] sm:$0xff] %v313
                %v315 = vld [vmem:[%s169 + $0x540] sm:$0xff]
                %316 = vst [vmem:[%s170 + $0x2a0] sm:$0xff] %v315
                %v317 = vld [vmem:[%s169 + $0x548] sm:$0xff]
                %318 = vst [vmem:[%s170 + $0x2a8] sm:$0xff] %v317
                %v319 = vld [vmem:[%s169 + $0x550] sm:$0xff]
                %320 = vst [vmem:[%s170 + $0x2b0] sm:$0xff] %v319
                %v321 = vld [vmem:[%s169 + $0x578] sm:$0xff]
                %322 = vst [vmem:[%s170 + $0x2bc] sm:$0xff] %v321
                %v323 = vld [vmem:[%s169 + $0x580] sm:$0xff]
                %324 = vst [vmem:[%s170 + $0x2c4] sm:$0xff] %v323
                %v325 = vld [vmem:[%s169 + $0x588] sm:$0xff]
                %326 = vst [vmem:[%s170 + $0x2cc] sm:$0xff] %v325
                %v327 = vld [vmem:[%s169 + $0x5b0] sm:$0xff]
                %328 = vst [vmem:[%s170 + $0x2d8] sm:$0xff] %v327
                %v329 = vld [vmem:[%s169 + $0x5b8] sm:$0xff]
                %330 = vst [vmem:[%s170 + $0x2e0] sm:$0xff] %v329
                %v331 = vld [vmem:[%s169 + $0x5c0] sm:$0xff]
                %332 = vst [vmem:[%s170 + $0x2e8] sm:$0xff] %v331
                %v333 = vld [vmem:[%s169 + $0x5e8] sm:$0xff]
                %334 = vst [vmem:[%s170 + $0x2f4] sm:$0xff] %v333
                %v335 = vld [vmem:[%s169 + $0x5f0] sm:$0xff]
                %336 = vst [vmem:[%s170 + $0x2fc] sm:$0xff] %v335
                %v337 = vld [vmem:[%s169 + $0x5f8] sm:$0xff]
                %338 = vst [vmem:[%s170 + $0x304] sm:$0xff] %v337
                %v339 = vld [vmem:[%s169 + $0x620] sm:$0xff]
                %340 = vst [vmem:[%s170 + $0x310] sm:$0xff] %v339
                %v341 = vld [vmem:[%s169 + $0x628] sm:$0xff]
                %342 = vst [vmem:[%s170 + $0x318] sm:$0xff] %v341
                %v343 = vld [vmem:[%s169 + $0x630] sm:$0xff]
                %344 = vst [vmem:[%s170 + $0x320] sm:$0xff] %v343
                %v345 = vld [vmem:[%s169 + $0x658] sm:$0xff]
                %346 = vst [vmem:[%s170 + $0x32c] sm:$0xff] %v345
                %v347 = vld [vmem:[%s169 + $0x660] sm:$0xff]
                %348 = vst [vmem:[%s170 + $0x334] sm:$0xff] %v347
                %v349 = vld [vmem:[%s169 + $0x668] sm:$0xff]
                %350 = vst [vmem:[%s170 + $0x33c] sm:$0xff] %v349
                %v351 = vld [vmem:[%s169 + $0x690] sm:$0xff]
                %352 = vst [vmem:[%s170 + $0x348] sm:$0xff] %v351
                %v353 = vld [vmem:[%s169 + $0x698] sm:$0xff]
                %354 = vst [vmem:[%s170 + $0x350] sm:$0xff] %v353
                %v355 = vld [vmem:[%s169 + $0x6a0] sm:$0xff]
                %356 = vst [vmem:[%s170 + $0x358] sm:$0xff] %v355
                %v357 = vld [vmem:[%s169 + $0x6c8] sm:$0xff]
                %358 = vst [vmem:[%s170 + $0x364] sm:$0xff] %v357
                %v359 = vld [vmem:[%s169 + $0x6d0] sm:$0xff]
                %360 = vst [vmem:[%s170 + $0x36c] sm:$0xff] %v359
                %v361 = vld [vmem:[%s169 + $0x6d8] sm:$0xff]
                %362 = vst [vmem:[%s170 + $0x374] sm:$0xff] %v361
              $region37: #{_lambda_.13} parent=31 // loop_footer
                %s168 = sadd.s32 1, %s164
              $region38: #{_lambda_.13} parent=31 // loop_footer_branch
                %163 = sbr.rel target = $region34
              $region39: #{_lambda_.13} parent=31 // loop_exit
                _
              loop: start=0, step=1, limit=1
              $region40: #{_lambda_.13} parent=31 // loop_pre_header
                _
              $region41: #{_lambda_.13} parent=31 // loop_header
                %s365 = sphi 0, %s369
                %p366 = scmp.ge.s32.totalorder %s365, 1
                %s370 = sphi %s161, %s161
                %s371 = sphi %s162, %s162
              $region42: #{_lambda_.13} parent=31 // loop_header_branch
                %368 = sbr.rel (%p366) target = $region46
              $region43: #{_lambda_.13} parent=31 // loop_body
                %v372 = vld [vmem:[%s370] sm:$0xf]
                %373 = vst [vmem:[%s371] sm:$0xf] %v372
                %v374 = vld [vmem:[%s370 + $0x38] sm:$0xf]
                %375 = vst [vmem:[%s371 + $0x1c] sm:$0xf] %v374
                %v376 = vld [vmem:[%s370 + $0x70] sm:$0xf]
                %377 = vst [vmem:[%s371 + $0x38] sm:$0xf] %v376
                %v378 = vld [vmem:[%s370 + $0xa8] sm:$0xf]
                %379 = vst [vmem:[%s371 + $0x54] sm:$0xf] %v378
                %v380 = vld [vmem:[%s370 + $0xe0] sm:$0xf]
                %381 = vst [vmem:[%s371 + $0x70] sm:$0xf] %v380
                %v382 = vld [vmem:[%s370 + $0x118] sm:$0xf]
                %383 = vst [vmem:[%s371 + $0x8c] sm:$0xf] %v382
                %v384 = vld [vmem:[%s370 + $0x150] sm:$0xf]
                %385 = vst [vmem:[%s371 + $0xa8] sm:$0xf] %v384
                %v386 = vld [vmem:[%s370 + $0x188] sm:$0xf]
                %387 = vst [vmem:[%s371 + $0xc4] sm:$0xf] %v386
                %v388 = vld [vmem:[%s370 + $0x1c0] sm:$0xf]
                %389 = vst [vmem:[%s371 + $0xe0] sm:$0xf] %v388
                %v390 = vld [vmem:[%s370 + $0x1f8] sm:$0xf]
                %391 = vst [vmem:[%s371 + $0xfc] sm:$0xf] %v390
                %v392 = vld [vmem:[%s370 + $0x230] sm:$0xf]
                %393 = vst [vmem:[%s371 + $0x118] sm:$0xf] %v392
                %v394 = vld [vmem:[%s370 + $0x268] sm:$0xf]
                %395 = vst [vmem:[%s371 + $0x134] sm:$0xf] %v394
                %v396 = vld [vmem:[%s370 + $0x2a0] sm:$0xf]
                %397 = vst [vmem:[%s371 + $0x150] sm:$0xf] %v396
                %v398 = vld [vmem:[%s370 + $0x2d8] sm:$0xf]
                %399 = vst [vmem:[%s371 + $0x16c] sm:$0xf] %v398
                %v400 = vld [vmem:[%s370 + $0x310] sm:$0xf]
                %401 = vst [vmem:[%s371 + $0x188] sm:$0xf] %v400
                %v402 = vld [vmem:[%s370 + $0x348] sm:$0xf]
                %403 = vst [vmem:[%s371 + $0x1a4] sm:$0xf] %v402
                %v404 = vld [vmem:[%s370 + $0x380] sm:$0xf]
                %405 = vst [vmem:[%s371 + $0x1c0] sm:$0xf] %v404
                %v406 = vld [vmem:[%s370 + $0x3b8] sm:$0xf]
                %407 = vst [vmem:[%s371 + $0x1dc] sm:$0xf] %v406
                %v408 = vld [vmem:[%s370 + $0x3f0] sm:$0xf]
                %409 = vst [vmem:[%s371 + $0x1f8] sm:$0xf] %v408
                %v410 = vld [vmem:[%s370 + $0x428] sm:$0xf]
                %411 = vst [vmem:[%s371 + $0x214] sm:$0xf] %v410
                %v412 = vld [vmem:[%s370 + $0x460] sm:$0xf]
                %413 = vst [vmem:[%s371 + $0x230] sm:$0xf] %v412
                %v414 = vld [vmem:[%s370 + $0x498] sm:$0xf]
                %415 = vst [vmem:[%s371 + $0x24c] sm:$0xf] %v414
                %v416 = vld [vmem:[%s370 + $0x4d0] sm:$0xf]
                %417 = vst [vmem:[%s371 + $0x268] sm:$0xf] %v416
                %v418 = vld [vmem:[%s370 + $0x508] sm:$0xf]
                %419 = vst [vmem:[%s371 + $0x284] sm:$0xf] %v418
                %v420 = vld [vmem:[%s370 + $0x540] sm:$0xf]
                %421 = vst [vmem:[%s371 + $0x2a0] sm:$0xf] %v420
                %v422 = vld [vmem:[%s370 + $0x578] sm:$0xf]
                %423 = vst [vmem:[%s371 + $0x2bc] sm:$0xf] %v422
                %v424 = vld [vmem:[%s370 + $0x5b0] sm:$0xf]
                %425 = vst [vmem:[%s371 + $0x2d8] sm:$0xf] %v424
                %v426 = vld [vmem:[%s370 + $0x5e8] sm:$0xf]
                %427 = vst [vmem:[%s371 + $0x2f4] sm:$0xf] %v426
                %v428 = vld [vmem:[%s370 + $0x620] sm:$0xf]
                %429 = vst [vmem:[%s371 + $0x310] sm:$0xf] %v428
                %v430 = vld [vmem:[%s370 + $0x658] sm:$0xf]
                %431 = vst [vmem:[%s371 + $0x32c] sm:$0xf] %v430
                %v432 = vld [vmem:[%s370 + $0x690] sm:$0xf]
                %433 = vst [vmem:[%s371 + $0x348] sm:$0xf] %v432
                %v434 = vld [vmem:[%s370 + $0x6c8] sm:$0xf]
                %435 = vst [vmem:[%s371 + $0x364] sm:$0xf] %v434
              $region44: #{_lambda_.13} parent=31 // loop_footer
                %s369 = sadd.s32 1, %s365
              $region45: #{_lambda_.13} parent=31 // loop_footer_branch
                %364 = sbr.rel target = $region41
              $region46: #{_lambda_.13} parent=31 // loop_exit
                _
            $region32: #{_lambda_.13} parent=27 // pred_fallthru
              _
          $region28: #{_lambda_.13} parent=23 // pred_fallthru
            _
          %436 = vnop
        $region24: #{_lambda_.13} parent=19 // pred_fallthru
          _
        // Predicated region
        $region47: #{_lambda_.13} parent=19 // pred_check
          %p437 = pneg %p69
        $region48: #{_lambda_.13} parent=19 // pred_check_branch
          %439 = sbr.rel (%p437) target = $region50
        $region49: #{_lambda_.13} parent=19 // pred_region
          %s440 = smul.u32 112, %s17
          %p441 = scmp.lt.s32.totalorder %s440, 223
          %s442 = scalar_select %p441, %s440, 223
          %s443 = smul.addr %s442, 4
          %s444 = scalar_lea.vmem %s1, %s443
          %s445 = smul.u32 112, %s17
        $region50: #{_lambda_.13} parent=19 // pred_fallthru
          _
      $region20: #{_lambda_.13} parent=5 // pred_fallthru
        _
      %p446 = scmp.le.s32.totalorder 1, %s9
      %p447 = scmp.lt.s32.totalorder %s9, 35
      %p448 = pnand %p446, %p447
      %p449 = pneg %p448
      // Predicated region
      $region51: #{_lambda_.13} parent=5 // pred_check
        _
      $region52: #{_lambda_.13} parent=5 // pred_check_branch
        %451 = sbr.rel (%p448) target = $region54
      $region53: #{_lambda_.13} parent=5 // pred_region
        %s452 = ssub.s32 %s9, 1
        %s453 = sand.u32 %s36, 1
        %s454 = sand.u32 %s36, 1
        %s455 = smul.addr %s454, 896
        %s456 = scalar_lea.vmem [#allocation2], %s455
        // Predicated region
        $region55: #{_lambda_.13} parent=53 // pred_check
          %p457 = pneg %p49
        $region56: #{_lambda_.13} parent=53 // pred_check_branch
          %459 = sbr.rel (%p457) target = $region58
        $region57: #{_lambda_.13} parent=53 // pred_region
          _
        $region58: #{_lambda_.13} parent=53 // pred_fallthru
          _
        %s460 = sand.u32 %s36, 1
        %s461 = sand.u32 %s36, 1
        %s462 = smul.addr %s461, 896
        %s463 = scalar_lea.vmem [#allocation2], %s462
        %p464 = pneg %p49
        %p465 = pneg %p46
        %s466 = smul.u32 112, %s19
        %p467 = scmp.lt.s32.totalorder %s466, 223
        %s468 = scalar_select %p467, %s466, 223
        %s469 = smul.addr %s468, 4
        %s470 = scalar_lea.vmem %s1, %s469
        %p471 = pneg %p75
        %p472 = pneg %p72
        %p473 = pneg %p96
        %p474 = pneg %p93
        %p475 = pneg %p122
        %p476 = pneg %p119
        %s477 = smul.u32 32, %s18
        %p478 = scmp.lt.s32.totalorder %s477, 543
        %s479 = scalar_select %p478, %s477, 543
        %s480 = smul.addr %s479, 8
        %s481 = scalar_lea.vmem %s3, %s480
        %s482 = smul.u32 32, %s18
        %s483 = smul.u32 7, %s19
        %s484 = smul.u32 112, %s19
        %p485 = scmp.lt.s32.totalorder %s484, 223
        %s486 = scalar_select %p485, %s484, 223
        %s487 = smul.addr %s486, 4
        %s488 = scalar_lea.vmem %s1, %s487
        %s489 = smul.u32 112, %s19
        %s490 = smul.u32 32, %s18
        %p491 = scmp.lt.s32.totalorder %s490, 543
        %s492 = scalar_select %p491, %s490, 543
        %s493 = smul.addr %s492, 8
        %s494 = scalar_lea.vmem %s3, %s493
        %s495 = smul.u32 32, %s18
        %p497 = scmp.eq.s32.totalorder %s19, 0
        // Predicated region
        $region59: #{_lambda_.13} parent=53 // pred_check
          %p498 = pneg %p497
        $region60: #{_lambda_.13} parent=53 // pred_check_branch
          %500 = sbr.rel (%p498) target = $region62
        $region61: #{_lambda_.13} parent=53 // pred_region
          %501 = vst [vmem:[%s494] sm:$0xff] 0.0
          %502 = vst [vmem:[%s494 + $0x8] sm:$0xff] 0.0
          %503 = vst [vmem:[%s494 + $0x10] sm:$0xff] 0.0
          %504 = vst [vmem:[%s494 + $0x18] sm:$0xff] 0.0
          %505 = vst [vmem:[%s494 + $0x20] sm:$0xff] 0.0
          %506 = vst [vmem:[%s494 + $0x28] sm:$0xff] 0.0
          %507 = vst [vmem:[%s494 + $0x30] sm:$0xff] 0.0
          %508 = vst [vmem:[%s494 + $0x38] sm:$0xff] 0.0
          %509 = vst [vmem:[%s494 + $0x40] sm:$0xff] 0.0
          %510 = vst [vmem:[%s494 + $0x48] sm:$0xff] 0.0
          %511 = vst [vmem:[%s494 + $0x50] sm:$0xff] 0.0
          %512 = vst [vmem:[%s494 + $0x58] sm:$0xff] 0.0
          %513 = vst [vmem:[%s494 + $0x60] sm:$0xff] 0.0
          %514 = vst [vmem:[%s494 + $0x68] sm:$0xff] 0.0
          %515 = vst [vmem:[%s494 + $0x70] sm:$0xff] 0.0
          %516 = vst [vmem:[%s494 + $0x78] sm:$0xff] 0.0
          %517 = vst [vmem:[%s494 + $0x80] sm:$0xff] 0.0
          %518 = vst [vmem:[%s494 + $0x88] sm:$0xff] 0.0
          %519 = vst [vmem:[%s494 + $0x90] sm:$0xff] 0.0
          %520 = vst [vmem:[%s494 + $0x98] sm:$0xff] 0.0
          %521 = vst [vmem:[%s494 + $0xa0] sm:$0xff] 0.0
          %522 = vst [vmem:[%s494 + $0xa8] sm:$0xff] 0.0
          %523 = vst [vmem:[%s494 + $0xb0] sm:$0xff] 0.0
          %524 = vst [vmem:[%s494 + $0xb8] sm:$0xff] 0.0
          %525 = vst [vmem:[%s494 + $0xc0] sm:$0xff] 0.0
          %526 = vst [vmem:[%s494 + $0xc8] sm:$0xff] 0.0
          %527 = vst [vmem:[%s494 + $0xd0] sm:$0xff] 0.0
          %528 = vst [vmem:[%s494 + $0xd8] sm:$0xff] 0.0
          %529 = vst [vmem:[%s494 + $0xe0] sm:$0xff] 0.0
          %530 = vst [vmem:[%s494 + $0xe8] sm:$0xff] 0.0
          %531 = vst [vmem:[%s494 + $0xf0] sm:$0xff] 0.0
          %532 = vst [vmem:[%s494 + $0xf8] sm:$0xff] 0.0
        $region62: #{_lambda_.13} parent=53 // pred_fallthru
          _
        %v533 = vld [vmem:[%s494] sm:$0xff]
        %v534 = vld [vmem:[%s494 + $0x8] sm:$0xff]
        %v535 = vld [vmem:[%s494 + $0x10] sm:$0xff]
        %v536 = vld [vmem:[%s494 + $0x18] sm:$0xff]
        %v537 = vld [vmem:[%s494 + $0x20] sm:$0xff]
        %v538 = vld [vmem:[%s494 + $0x28] sm:$0xff]
        %v539 = vld [vmem:[%s494 + $0x30] sm:$0xff]
        %v540 = vld [vmem:[%s494 + $0x38] sm:$0xff]
        %v541 = vld [vmem:[%s494 + $0x40] sm:$0xff]
        %v542 = vld [vmem:[%s494 + $0x48] sm:$0xff]
        %v543 = vld [vmem:[%s494 + $0x50] sm:$0xff]
        %v544 = vld [vmem:[%s494 + $0x58] sm:$0xff]
        %v545 = vld [vmem:[%s494 + $0x60] sm:$0xff]
        %v546 = vld [vmem:[%s494 + $0x68] sm:$0xff]
        %v547 = vld [vmem:[%s494 + $0x70] sm:$0xff]
        %v548 = vld [vmem:[%s494 + $0x78] sm:$0xff]
        %v549 = vld [vmem:[%s494 + $0x80] sm:$0xff]
        %v550 = vld [vmem:[%s494 + $0x88] sm:$0xff]
        %v551 = vld [vmem:[%s494 + $0x90] sm:$0xff]
        %v552 = vld [vmem:[%s494 + $0x98] sm:$0xff]
        %v553 = vld [vmem:[%s494 + $0xa0] sm:$0xff]
        %v554 = vld [vmem:[%s494 + $0xa8] sm:$0xff]
        %v555 = vld [vmem:[%s494 + $0xb0] sm:$0xff]
        %v556 = vld [vmem:[%s494 + $0xb8] sm:$0xff]
        %v557 = vld [vmem:[%s494 + $0xc0] sm:$0xff]
        %v558 = vld [vmem:[%s494 + $0xc8] sm:$0xff]
        %v559 = vld [vmem:[%s494 + $0xd0] sm:$0xff]
        %v560 = vld [vmem:[%s494 + $0xd8] sm:$0xff]
        %v561 = vld [vmem:[%s494 + $0xe0] sm:$0xff]
        %v562 = vld [vmem:[%s494 + $0xe8] sm:$0xff]
        %v563 = vld [vmem:[%s494 + $0xf0] sm:$0xff]
        %v564 = vld [vmem:[%s494 + $0xf8] sm:$0xff]
        %v565 = vld [vmem:[%s456] sm:$0xff]
        %v566 = vld [vmem:[%s456 + $0x8] sm:$0xff]
        %v567 = vld [vmem:[%s456 + $0x10] sm:$0xff]
        %v568 = vld [vmem:[%s456 + $0x18] sm:$0xf]
        %v569 = vld [vmem:[%s456 + $0x1c] sm:$0xff]
        %v570 = vld [vmem:[%s456 + $0x24] sm:$0xff]
        %v571 = vld [vmem:[%s456 + $0x2c] sm:$0xff]
        %v572 = vld [vmem:[%s456 + $0x34] sm:$0xf]
        %v573 = vld [vmem:[%s456 + $0x38] sm:$0xff]
        %v574 = vld [vmem:[%s456 + $0x40] sm:$0xff]
        %v575 = vld [vmem:[%s456 + $0x48] sm:$0xff]
        %v576 = vld [vmem:[%s456 + $0x50] sm:$0xf]
        %v577 = vld [vmem:[%s456 + $0x54] sm:$0xff]
        %v578 = vld [vmem:[%s456 + $0x5c] sm:$0xff]
        %v579 = vld [vmem:[%s456 + $0x64] sm:$0xff]
        %v580 = vld [vmem:[%s456 + $0x6c] sm:$0xf]
        %v581 = vld [vmem:[%s456 + $0x70] sm:$0xff]
        %v582 = vld [vmem:[%s456 + $0x78] sm:$0xff]
        %v583 = vld [vmem:[%s456 + $0x80] sm:$0xff]
        %v584 = vld [vmem:[%s456 + $0x88] sm:$0xf]
        %v585 = vld [vmem:[%s456 + $0x8c] sm:$0xff]
        %v586 = vld [vmem:[%s456 + $0x94] sm:$0xff]
        %v587 = vld [vmem:[%s456 + $0x9c] sm:$0xff]
        %v588 = vld [vmem:[%s456 + $0xa4] sm:$0xf]
        %v589 = vld [vmem:[%s456 + $0xa8] sm:$0xff]
        %v590 = vld [vmem:[%s456 + $0xb0] sm:$0xff]
        %v591 = vld [vmem:[%s456 + $0xb8] sm:$0xff]
        %v592 = vld [vmem:[%s456 + $0xc0] sm:$0xf]
        %v593 = vld [vmem:[%s456 + $0xc4] sm:$0xff]
        %v594 = vld [vmem:[%s456 + $0xcc] sm:$0xff]
        %v595 = vld [vmem:[%s456 + $0xd4] sm:$0xff]
        %v596 = vld [vmem:[%s456 + $0xdc] sm:$0xf]
        %v597 = vld [vmem:[%s456 + $0xe0] sm:$0xff]
        %v598 = vld [vmem:[%s456 + $0xe8] sm:$0xff]
        %v599 = vld [vmem:[%s456 + $0xf0] sm:$0xff]
        %v600 = vld [vmem:[%s456 + $0xf8] sm:$0xf]
        %v601 = vld [vmem:[%s456 + $0xfc] sm:$0xff]
        %v602 = vld [vmem:[%s456 + $0x104] sm:$0xff]
        %v603 = vld [vmem:[%s456 + $0x10c] sm:$0xff]
        %v604 = vld [vmem:[%s456 + $0x114] sm:$0xf]
        %v605 = vld [vmem:[%s456 + $0x118] sm:$0xff]
        %v606 = vld [vmem:[%s456 + $0x120] sm:$0xff]
        %v607 = vld [vmem:[%s456 + $0x128] sm:$0xff]
        %v608 = vld [vmem:[%s456 + $0x130] sm:$0xf]
        %v609 = vld [vmem:[%s456 + $0x134] sm:$0xff]
        %v610 = vld [vmem:[%s456 + $0x13c] sm:$0xff]
        %v611 = vld [vmem:[%s456 + $0x144] sm:$0xff]
        %v612 = vld [vmem:[%s456 + $0x14c] sm:$0xf]
        %v613 = vld [vmem:[%s456 + $0x150] sm:$0xff]
        %v614 = vld [vmem:[%s456 + $0x158] sm:$0xff]
        %v615 = vld [vmem:[%s456 + $0x160] sm:$0xff]
        %v616 = vld [vmem:[%s456 + $0x168] sm:$0xf]
        %v617 = vld [vmem:[%s456 + $0x16c] sm:$0xff]
        %v618 = vld [vmem:[%s456 + $0x174] sm:$0xff]
        %v619 = vld [vmem:[%s456 + $0x17c] sm:$0xff]
        %v620 = vld [vmem:[%s456 + $0x184] sm:$0xf]
        %v621 = vld [vmem:[%s456 + $0x188] sm:$0xff]
        %v622 = vld [vmem:[%s456 + $0x190] sm:$0xff]
        %v623 = vld [vmem:[%s456 + $0x198] sm:$0xff]
        %v624 = vld [vmem:[%s456 + $0x1a0] sm:$0xf]
        %v625 = vld [vmem:[%s456 + $0x1a4] sm:$0xff]
        %v626 = vld [vmem:[%s456 + $0x1ac] sm:$0xff]
        %v627 = vld [vmem:[%s456 + $0x1b4] sm:$0xff]
        %v628 = vld [vmem:[%s456 + $0x1bc] sm:$0xf]
        %v629 = vld [vmem:[%s456 + $0x1c0] sm:$0xff]
        %v630 = vld [vmem:[%s456 + $0x1c8] sm:$0xff]
        %v631 = vld [vmem:[%s456 + $0x1d0] sm:$0xff]
        %v632 = vld [vmem:[%s456 + $0x1d8] sm:$0xf]
        %v633 = vld [vmem:[%s456 + $0x1dc] sm:$0xff]
        %v634 = vld [vmem:[%s456 + $0x1e4] sm:$0xff]
        %v635 = vld [vmem:[%s456 + $0x1ec] sm:$0xff]
        %v636 = vld [vmem:[%s456 + $0x1f4] sm:$0xf]
        %v637 = vld [vmem:[%s456 + $0x1f8] sm:$0xff]
        %v638 = vld [vmem:[%s456 + $0x200] sm:$0xff]
        %v639 = vld [vmem:[%s456 + $0x208] sm:$0xff]
        %v640 = vld [vmem:[%s456 + $0x210] sm:$0xf]
        %v641 = vld [vmem:[%s456 + $0x214] sm:$0xff]
        %v642 = vld [vmem:[%s456 + $0x21c] sm:$0xff]
        %v643 = vld [vmem:[%s456 + $0x224] sm:$0xff]
        %v644 = vld [vmem:[%s456 + $0x22c] sm:$0xf]
        %v645 = vld [vmem:[%s456 + $0x230] sm:$0xff]
        %v646 = vld [vmem:[%s456 + $0x238] sm:$0xff]
        %v647 = vld [vmem:[%s456 + $0x240] sm:$0xff]
        %v648 = vld [vmem:[%s456 + $0x248] sm:$0xf]
        %v649 = vld [vmem:[%s456 + $0x24c] sm:$0xff]
        %v650 = vld [vmem:[%s456 + $0x254] sm:$0xff]
        %v651 = vld [vmem:[%s456 + $0x25c] sm:$0xff]
        %v652 = vld [vmem:[%s456 + $0x264] sm:$0xf]
        %v653 = vld [vmem:[%s456 + $0x268] sm:$0xff]
        %v654 = vld [vmem:[%s456 + $0x270] sm:$0xff]
        %v655 = vld [vmem:[%s456 + $0x278] sm:$0xff]
        %v656 = vld [vmem:[%s456 + $0x280] sm:$0xf]
        %v657 = vld [vmem:[%s456 + $0x284] sm:$0xff]
        %v658 = vld [vmem:[%s456 + $0x28c] sm:$0xff]
        %v659 = vld [vmem:[%s456 + $0x294] sm:$0xff]
        %v660 = vld [vmem:[%s456 + $0x29c] sm:$0xf]
        %v661 = vld [vmem:[%s456 + $0x2a0] sm:$0xff]
        %v662 = vld [vmem:[%s456 + $0x2a8] sm:$0xff]
        %v663 = vld [vmem:[%s456 + $0x2b0] sm:$0xff]
        %v664 = vld [vmem:[%s456 + $0x2b8] sm:$0xf]
        %v665 = vld [vmem:[%s456 + $0x2bc] sm:$0xff]
        %v666 = vld [vmem:[%s456 + $0x2c4] sm:$0xff]
        %v667 = vld [vmem:[%s456 + $0x2cc] sm:$0xff]
        %v668 = vld [vmem:[%s456 + $0x2d4] sm:$0xf]
        %v669 = vld [vmem:[%s456 + $0x2d8] sm:$0xff]
        %v670 = vld [vmem:[%s456 + $0x2e0] sm:$0xff]
        %v671 = vld [vmem:[%s456 + $0x2e8] sm:$0xff]
        %v672 = vld [vmem:[%s456 + $0x2f0] sm:$0xf]
        %v673 = vld [vmem:[%s456 + $0x2f4] sm:$0xff]
        %v674 = vld [vmem:[%s456 + $0x2fc] sm:$0xff]
        %v675 = vld [vmem:[%s456 + $0x304] sm:$0xff]
        %v676 = vld [vmem:[%s456 + $0x30c] sm:$0xf]
        %v677 = vld [vmem:[%s456 + $0x310] sm:$0xff]
        %v678 = vld [vmem:[%s456 + $0x318] sm:$0xff]
        %v679 = vld [vmem:[%s456 + $0x320] sm:$0xff]
        %v680 = vld [vmem:[%s456 + $0x328] sm:$0xf]
        %v681 = vld [vmem:[%s456 + $0x32c] sm:$0xff]
        %v682 = vld [vmem:[%s456 + $0x334] sm:$0xff]
        %v683 = vld [vmem:[%s456 + $0x33c] sm:$0xff]
        %v684 = vld [vmem:[%s456 + $0x344] sm:$0xf]
        %v685 = vld [vmem:[%s456 + $0x348] sm:$0xff]
        %v686 = vld [vmem:[%s456 + $0x350] sm:$0xff]
        %v687 = vld [vmem:[%s456 + $0x358] sm:$0xff]
        %v688 = vld [vmem:[%s456 + $0x360] sm:$0xf]
        %v689 = vld [vmem:[%s456 + $0x364] sm:$0xff]
        %v690 = vld [vmem:[%s456 + $0x36c] sm:$0xff]
        %v691 = vld [vmem:[%s456 + $0x374] sm:$0xff]
        %v692 = vld [vmem:[%s456 + $0x37c] sm:$0xf]
        %v693 = vld [vmem:[%s488] sm:$0xf]
        %v694 = vld [vmem:[%s488 + $0x4] sm:$0xf]
        %v695 = vld [vmem:[%s488 + $0x8] sm:$0xf]
        %v696 = vld [vmem:[%s488 + $0xc] sm:$0xf]
        %v697 = vld [vmem:[%s488 + $0x10] sm:$0xf]
        %v698 = vld [vmem:[%s488 + $0x14] sm:$0xf]
        %v699 = vld [vmem:[%s488 + $0x18] sm:$0xf]
        %v700 = vld [vmem:[%s488 + $0x1c] sm:$0xf]
        %v701 = vld [vmem:[%s488 + $0x20] sm:$0xf]
        %v702 = vld [vmem:[%s488 + $0x24] sm:$0xf]
        %v703 = vld [vmem:[%s488 + $0x28] sm:$0xf]
        %v704 = vld [vmem:[%s488 + $0x2c] sm:$0xf]
        %v705 = vld [vmem:[%s488 + $0x30] sm:$0xf]
        %v706 = vld [vmem:[%s488 + $0x34] sm:$0xf]
        %v707 = vld [vmem:[%s488 + $0x38] sm:$0xf]
        %v708 = vld [vmem:[%s488 + $0x3c] sm:$0xf]
        %v709 = vld [vmem:[%s488 + $0x40] sm:$0xf]
        %v710 = vld [vmem:[%s488 + $0x44] sm:$0xf]
        %v711 = vld [vmem:[%s488 + $0x48] sm:$0xf]
        %v712 = vld [vmem:[%s488 + $0x4c] sm:$0xf]
        %v713 = vld [vmem:[%s488 + $0x50] sm:$0xf]
        %v714 = vld [vmem:[%s488 + $0x54] sm:$0xf]
        %v715 = vld [vmem:[%s488 + $0x58] sm:$0xf]
        %v716 = vld [vmem:[%s488 + $0x5c] sm:$0xf]
        %v717 = vld [vmem:[%s488 + $0x60] sm:$0xf]
        %v718 = vld [vmem:[%s488 + $0x64] sm:$0xf]
        %v719 = vld [vmem:[%s488 + $0x68] sm:$0xf]
        %v720 = vld [vmem:[%s488 + $0x6c] sm:$0xf]
        %v721 = vld [vmem:[%s488 + $0x70] sm:$0xf]
        %v722 = vld [vmem:[%s488 + $0x74] sm:$0xf]
        %v723 = vld [vmem:[%s488 + $0x78] sm:$0xf]
        %v724 = vld [vmem:[%s488 + $0x7c] sm:$0xf]
        %v725 = vld [vmem:[%s488 + $0x80] sm:$0xf]
        %v726 = vld [vmem:[%s488 + $0x84] sm:$0xf]
        %v727 = vld [vmem:[%s488 + $0x88] sm:$0xf]
        %v728 = vld [vmem:[%s488 + $0x8c] sm:$0xf]
        %v729 = vld [vmem:[%s488 + $0x90] sm:$0xf]
        %v730 = vld [vmem:[%s488 + $0x94] sm:$0xf]
        %v731 = vld [vmem:[%s488 + $0x98] sm:$0xf]
        %v732 = vld [vmem:[%s488 + $0x9c] sm:$0xf]
        %v733 = vld [vmem:[%s488 + $0xa0] sm:$0xf]
        %v734 = vld [vmem:[%s488 + $0xa4] sm:$0xf]
        %v735 = vld [vmem:[%s488 + $0xa8] sm:$0xf]
        %v736 = vld [vmem:[%s488 + $0xac] sm:$0xf]
        %v737 = vld [vmem:[%s488 + $0xb0] sm:$0xf]
        %v738 = vld [vmem:[%s488 + $0xb4] sm:$0xf]
        %v739 = vld [vmem:[%s488 + $0xb8] sm:$0xf]
        %v740 = vld [vmem:[%s488 + $0xbc] sm:$0xf]
        %v741 = vld [vmem:[%s488 + $0xc0] sm:$0xf]
        %v742 = vld [vmem:[%s488 + $0xc4] sm:$0xf]
        %v743 = vld [vmem:[%s488 + $0xc8] sm:$0xf]
        %v744 = vld [vmem:[%s488 + $0xcc] sm:$0xf]
        %v745 = vld [vmem:[%s488 + $0xd0] sm:$0xf]
        %v746 = vld [vmem:[%s488 + $0xd4] sm:$0xf]
        %v747 = vld [vmem:[%s488 + $0xd8] sm:$0xf]
        %v748 = vld [vmem:[%s488 + $0xdc] sm:$0xf]
        %v749 = vld [vmem:[%s488 + $0xe0] sm:$0xf]
        %v750 = vld [vmem:[%s488 + $0xe4] sm:$0xf]
        %v751 = vld [vmem:[%s488 + $0xe8] sm:$0xf]
        %v752 = vld [vmem:[%s488 + $0xec] sm:$0xf]
        %v753 = vld [vmem:[%s488 + $0xf0] sm:$0xf]
        %v754 = vld [vmem:[%s488 + $0xf4] sm:$0xf]
        %v755 = vld [vmem:[%s488 + $0xf8] sm:$0xf]
        %v756 = vld [vmem:[%s488 + $0xfc] sm:$0xf]
        %v757 = vld [vmem:[%s488 + $0x100] sm:$0xf]
        %v758 = vld [vmem:[%s488 + $0x104] sm:$0xf]
        %v759 = vld [vmem:[%s488 + $0x108] sm:$0xf]
        %v760 = vld [vmem:[%s488 + $0x10c] sm:$0xf]
        %v761 = vld [vmem:[%s488 + $0x110] sm:$0xf]
        %v762 = vld [vmem:[%s488 + $0x114] sm:$0xf]
        %v763 = vld [vmem:[%s488 + $0x118] sm:$0xf]
        %v764 = vld [vmem:[%s488 + $0x11c] sm:$0xf]
        %v765 = vld [vmem:[%s488 + $0x120] sm:$0xf]
        %v766 = vld [vmem:[%s488 + $0x124] sm:$0xf]
        %v767 = vld [vmem:[%s488 + $0x128] sm:$0xf]
        %v768 = vld [vmem:[%s488 + $0x12c] sm:$0xf]
        %v769 = vld [vmem:[%s488 + $0x130] sm:$0xf]
        %v770 = vld [vmem:[%s488 + $0x134] sm:$0xf]
        %v771 = vld [vmem:[%s488 + $0x138] sm:$0xf]
        %v772 = vld [vmem:[%s488 + $0x13c] sm:$0xf]
        %v773 = vld [vmem:[%s488 + $0x140] sm:$0xf]
        %v774 = vld [vmem:[%s488 + $0x144] sm:$0xf]
        %v775 = vld [vmem:[%s488 + $0x148] sm:$0xf]
        %v776 = vld [vmem:[%s488 + $0x14c] sm:$0xf]
        %v777 = vld [vmem:[%s488 + $0x150] sm:$0xf]
        %v778 = vld [vmem:[%s488 + $0x154] sm:$0xf]
        %v779 = vld [vmem:[%s488 + $0x158] sm:$0xf]
        %v780 = vld [vmem:[%s488 + $0x15c] sm:$0xf]
        %v781 = vld [vmem:[%s488 + $0x160] sm:$0xf]
        %v782 = vld [vmem:[%s488 + $0x164] sm:$0xf]
        %v783 = vld [vmem:[%s488 + $0x168] sm:$0xf]
        %v784 = vld [vmem:[%s488 + $0x16c] sm:$0xf]
        %v785 = vld [vmem:[%s488 + $0x170] sm:$0xf]
        %v786 = vld [vmem:[%s488 + $0x174] sm:$0xf]
        %v787 = vld [vmem:[%s488 + $0x178] sm:$0xf]
        %v788 = vld [vmem:[%s488 + $0x17c] sm:$0xf]
        %v789 = vld [vmem:[%s488 + $0x180] sm:$0xf]
        %v790 = vld [vmem:[%s488 + $0x184] sm:$0xf]
        %v791 = vld [vmem:[%s488 + $0x188] sm:$0xf]
        %v792 = vld [vmem:[%s488 + $0x18c] sm:$0xf]
        %v793 = vld [vmem:[%s488 + $0x190] sm:$0xf]
        %v794 = vld [vmem:[%s488 + $0x194] sm:$0xf]
        %v795 = vld [vmem:[%s488 + $0x198] sm:$0xf]
        %v796 = vld [vmem:[%s488 + $0x19c] sm:$0xf]
        %v797 = vld [vmem:[%s488 + $0x1a0] sm:$0xf]
        %v798 = vld [vmem:[%s488 + $0x1a4] sm:$0xf]
        %v799 = vld [vmem:[%s488 + $0x1a8] sm:$0xf]
        %v800 = vld [vmem:[%s488 + $0x1ac] sm:$0xf]
        %v801 = vld [vmem:[%s488 + $0x1b0] sm:$0xf]
        %v802 = vld [vmem:[%s488 + $0x1b4] sm:$0xf]
        %v803 = vld [vmem:[%s488 + $0x1b8] sm:$0xf]
        %v804 = vld [vmem:[%s488 + $0x1bc] sm:$0xf]
        %v933 = vunpack.c.l.b16 %v565
        %v934 = vunpack.c.h.b16 %v565
        %v935 = vunpack.c.l.b16 %v566
        %v936 = vunpack.c.h.b16 %v566
        %v937 = vunpack.c.l.b16 %v567
        %v938 = vunpack.c.h.b16 %v567
        %v939 = vunpack.c.l.b16 %v568
        %v940 = vunpack.c.l.b16 %v569
        %v941 = vunpack.c.h.b16 %v569
        %v942 = vunpack.c.l.b16 %v570
        %v943 = vunpack.c.h.b16 %v570
        %v944 = vunpack.c.l.b16 %v571
        %v945 = vunpack.c.h.b16 %v571
        %v946 = vunpack.c.l.b16 %v572
        %v947 = vunpack.c.l.b16 %v573
        %v948 = vunpack.c.h.b16 %v573
        %v949 = vunpack.c.l.b16 %v574
        %v950 = vunpack.c.h.b16 %v574
        %v951 = vunpack.c.l.b16 %v575
        %v952 = vunpack.c.h.b16 %v575
        %v953 = vunpack.c.l.b16 %v576
        %v954 = vunpack.c.l.b16 %v577
        %v955 = vunpack.c.h.b16 %v577
        %v956 = vunpack.c.l.b16 %v578
        %v957 = vunpack.c.h.b16 %v578
        %v958 = vunpack.c.l.b16 %v579
        %v959 = vunpack.c.h.b16 %v579
        %v960 = vunpack.c.l.b16 %v580
        %v961 = vunpack.c.l.b16 %v581
        %v962 = vunpack.c.h.b16 %v581
        %v963 = vunpack.c.l.b16 %v582
        %v964 = vunpack.c.h.b16 %v582
        %v965 = vunpack.c.l.b16 %v583
        %v966 = vunpack.c.h.b16 %v583
        %v967 = vunpack.c.l.b16 %v584
        %v968 = vunpack.c.l.b16 %v585
        %v969 = vunpack.c.h.b16 %v585
        %v970 = vunpack.c.l.b16 %v586
        %v971 = vunpack.c.h.b16 %v586
        %v972 = vunpack.c.l.b16 %v587
        %v973 = vunpack.c.h.b16 %v587
        %v974 = vunpack.c.l.b16 %v588
        %v975 = vunpack.c.l.b16 %v589
        %v976 = vunpack.c.h.b16 %v589
        %v977 = vunpack.c.l.b16 %v590
        %v978 = vunpack.c.h.b16 %v590
        %v979 = vunpack.c.l.b16 %v591
        %v980 = vunpack.c.h.b16 %v591
        %v981 = vunpack.c.l.b16 %v592
        %v982 = vunpack.c.l.b16 %v593
        %v983 = vunpack.c.h.b16 %v593
        %v984 = vunpack.c.l.b16 %v594
        %v985 = vunpack.c.h.b16 %v594
        %v986 = vunpack.c.l.b16 %v595
        %v987 = vunpack.c.h.b16 %v595
        %v988 = vunpack.c.l.b16 %v596
        %v989 = vunpack.c.l.b16 %v597
        %v990 = vunpack.c.h.b16 %v597
        %v991 = vunpack.c.l.b16 %v598
        %v992 = vunpack.c.h.b16 %v598
        %v993 = vunpack.c.l.b16 %v599
        %v994 = vunpack.c.h.b16 %v599
        %v995 = vunpack.c.l.b16 %v600
        %v996 = vunpack.c.l.b16 %v601
        %v997 = vunpack.c.h.b16 %v601
        %v998 = vunpack.c.l.b16 %v602
        %v999 = vunpack.c.h.b16 %v602
        %v1000 = vunpack.c.l.b16 %v603
        %v1001 = vunpack.c.h.b16 %v603
        %v1002 = vunpack.c.l.b16 %v604
        %v1003 = vunpack.c.l.b16 %v605
        %v1004 = vunpack.c.h.b16 %v605
        %v1005 = vunpack.c.l.b16 %v606
        %v1006 = vunpack.c.h.b16 %v606
        %v1007 = vunpack.c.l.b16 %v607
        %v1008 = vunpack.c.h.b16 %v607
        %v1009 = vunpack.c.l.b16 %v608
        %v1010 = vunpack.c.l.b16 %v609
        %v1011 = vunpack.c.h.b16 %v609
        %v1012 = vunpack.c.l.b16 %v610
        %v1013 = vunpack.c.h.b16 %v610
        %v1014 = vunpack.c.l.b16 %v611
        %v1015 = vunpack.c.h.b16 %v611
        %v1016 = vunpack.c.l.b16 %v612
        %v1017 = vunpack.c.l.b16 %v613
        %v1018 = vunpack.c.h.b16 %v613
        %v1019 = vunpack.c.l.b16 %v614
        %v1020 = vunpack.c.h.b16 %v614
        %v1021 = vunpack.c.l.b16 %v615
        %v1022 = vunpack.c.h.b16 %v615
        %v1023 = vunpack.c.l.b16 %v616
        %v1024 = vunpack.c.l.b16 %v617
        %v1025 = vunpack.c.h.b16 %v617
        %v1026 = vunpack.c.l.b16 %v618
        %v1027 = vunpack.c.h.b16 %v618
        %v1028 = vunpack.c.l.b16 %v619
        %v1029 = vunpack.c.h.b16 %v619
        %v1030 = vunpack.c.l.b16 %v620
        %v1031 = vunpack.c.l.b16 %v621
        %v1032 = vunpack.c.h.b16 %v621
        %v1033 = vunpack.c.l.b16 %v622
        %v1034 = vunpack.c.h.b16 %v622
        %v1035 = vunpack.c.l.b16 %v623
        %v1036 = vunpack.c.h.b16 %v623
        %v1037 = vunpack.c.l.b16 %v624
        %v1038 = vunpack.c.l.b16 %v625
        %v1039 = vunpack.c.h.b16 %v625
        %v1040 = vunpack.c.l.b16 %v626
        %v1041 = vunpack.c.h.b16 %v626
        %v1042 = vunpack.c.l.b16 %v627
        %v1043 = vunpack.c.h.b16 %v627
        %v1044 = vunpack.c.l.b16 %v628
        %v1045 = vunpack.c.l.b16 %v629
        %v1046 = vunpack.c.h.b16 %v629
        %v1047 = vunpack.c.l.b16 %v630
        %v1048 = vunpack.c.h.b16 %v630
        %v1049 = vunpack.c.l.b16 %v631
        %v1050 = vunpack.c.h.b16 %v631
        %v1051 = vunpack.c.l.b16 %v632
        %v1052 = vunpack.c.l.b16 %v633
        %v1053 = vunpack.c.h.b16 %v633
        %v1054 = vunpack.c.l.b16 %v634
        %v1055 = vunpack.c.h.b16 %v634
        %v1056 = vunpack.c.l.b16 %v635
        %v1057 = vunpack.c.h.b16 %v635
        %v1058 = vunpack.c.l.b16 %v636
        %v1059 = vunpack.c.l.b16 %v637
        %v1060 = vunpack.c.h.b16 %v637
        %v1061 = vunpack.c.l.b16 %v638
        %v1062 = vunpack.c.h.b16 %v638
        %v1063 = vunpack.c.l.b16 %v639
        %v1064 = vunpack.c.h.b16 %v639
        %v1065 = vunpack.c.l.b16 %v640
        %v1066 = vunpack.c.l.b16 %v641
        %v1067 = vunpack.c.h.b16 %v641
        %v1068 = vunpack.c.l.b16 %v642
        %v1069 = vunpack.c.h.b16 %v642
        %v1070 = vunpack.c.l.b16 %v643
        %v1071 = vunpack.c.h.b16 %v643
        %v1072 = vunpack.c.l.b16 %v644
        %v1073 = vunpack.c.l.b16 %v645
        %v1074 = vunpack.c.h.b16 %v645
        %v1075 = vunpack.c.l.b16 %v646
        %v1076 = vunpack.c.h.b16 %v646
        %v1077 = vunpack.c.l.b16 %v647
        %v1078 = vunpack.c.h.b16 %v647
        %v1079 = vunpack.c.l.b16 %v648
        %v1080 = vunpack.c.l.b16 %v649
        %v1081 = vunpack.c.h.b16 %v649
        %v1082 = vunpack.c.l.b16 %v650
        %v1083 = vunpack.c.h.b16 %v650
        %v1084 = vunpack.c.l.b16 %v651
        %v1085 = vunpack.c.h.b16 %v651
        %v1086 = vunpack.c.l.b16 %v652
        %v1087 = vunpack.c.l.b16 %v653
        %v1088 = vunpack.c.h.b16 %v653
        %v1089 = vunpack.c.l.b16 %v654
        %v1090 = vunpack.c.h.b16 %v654
        %v1091 = vunpack.c.l.b16 %v655
        %v1092 = vunpack.c.h.b16 %v655
        %v1093 = vunpack.c.l.b16 %v656
        %v1094 = vunpack.c.l.b16 %v657
        %v1095 = vunpack.c.h.b16 %v657
        %v1096 = vunpack.c.l.b16 %v658
        %v1097 = vunpack.c.h.b16 %v658
        %v1098 = vunpack.c.l.b16 %v659
        %v1099 = vunpack.c.h.b16 %v659
        %v1100 = vunpack.c.l.b16 %v660
        %v1101 = vunpack.c.l.b16 %v661
        %v1102 = vunpack.c.h.b16 %v661
        %v1103 = vunpack.c.l.b16 %v662
        %v1104 = vunpack.c.h.b16 %v662
        %v1105 = vunpack.c.l.b16 %v663
        %v1106 = vunpack.c.h.b16 %v663
        %v1107 = vunpack.c.l.b16 %v664
        %v1108 = vunpack.c.l.b16 %v665
        %v1109 = vunpack.c.h.b16 %v665
        %v1110 = vunpack.c.l.b16 %v666
        %v1111 = vunpack.c.h.b16 %v666
        %v1112 = vunpack.c.l.b16 %v667
        %v1113 = vunpack.c.h.b16 %v667
        %v1114 = vunpack.c.l.b16 %v668
        %v1115 = vunpack.c.l.b16 %v669
        %v1116 = vunpack.c.h.b16 %v669
        %v1117 = vunpack.c.l.b16 %v670
        %v1118 = vunpack.c.h.b16 %v670
        %v1119 = vunpack.c.l.b16 %v671
        %v1120 = vunpack.c.h.b16 %v671
        %v1121 = vunpack.c.l.b16 %v672
        %v1122 = vunpack.c.l.b16 %v673
        %v1123 = vunpack.c.h.b16 %v673
        %v1124 = vunpack.c.l.b16 %v674
        %v1125 = vunpack.c.h.b16 %v674
        %v1126 = vunpack.c.l.b16 %v675
        %v1127 = vunpack.c.h.b16 %v675
        %v1128 = vunpack.c.l.b16 %v676
        %v1129 = vunpack.c.l.b16 %v677
        %v1130 = vunpack.c.h.b16 %v677
        %v1131 = vunpack.c.l.b16 %v678
        %v1132 = vunpack.c.h.b16 %v678
        %v1133 = vunpack.c.l.b16 %v679
        %v1134 = vunpack.c.h.b16 %v679
        %v1135 = vunpack.c.l.b16 %v680
        %v1136 = vunpack.c.l.b16 %v681
        %v1137 = vunpack.c.h.b16 %v681
        %v1138 = vunpack.c.l.b16 %v682
        %v1139 = vunpack.c.h.b16 %v682
        %v1140 = vunpack.c.l.b16 %v683
        %v1141 = vunpack.c.h.b16 %v683
        %v1142 = vunpack.c.l.b16 %v684
        %v1143 = vunpack.c.l.b16 %v685
        %v1144 = vunpack.c.h.b16 %v685
        %v1145 = vunpack.c.l.b16 %v686
        %v1146 = vunpack.c.h.b16 %v686
        %v1147 = vunpack.c.l.b16 %v687
        %v1148 = vunpack.c.h.b16 %v687
        %v1149 = vunpack.c.l.b16 %v688
        %v1150 = vunpack.c.l.b16 %v689
        %v1151 = vunpack.c.h.b16 %v689
        %v1152 = vunpack.c.l.b16 %v690
        %v1153 = vunpack.c.h.b16 %v690
        %v1154 = vunpack.c.l.b16 %v691
        %v1155 = vunpack.c.h.b16 %v691
        %v1156 = vunpack.c.l.b16 %v692
        %v1157 = vpack.c.b16 %v940, %v933
        %v1158 = vpack.c.b16 %v941, %v934
        %v1159 = vpack.c.b16 %v942, %v935
        %v1160 = vpack.c.b16 %v943, %v936
        %v1161 = vpack.c.b16 %v944, %v937
        %v1162 = vpack.c.b16 %v945, %v938
        %v1163 = vpack.c.b16 %v946, %v939
        %v1164 = vpack.c.b16 %v954, %v947
        %v1165 = vpack.c.b16 %v955, %v948
        %v1166 = vpack.c.b16 %v956, %v949
        %v1167 = vpack.c.b16 %v957, %v950
        %v1168 = vpack.c.b16 %v958, %v951
        %v1169 = vpack.c.b16 %v959, %v952
        %v1170 = vpack.c.b16 %v960, %v953
        %v1171 = vpack.c.b16 %v968, %v961
        %v1172 = vpack.c.b16 %v969, %v962
        %v1173 = vpack.c.b16 %v970, %v963
        %v1174 = vpack.c.b16 %v971, %v964
        %v1175 = vpack.c.b16 %v972, %v965
        %v1176 = vpack.c.b16 %v973, %v966
        %v1177 = vpack.c.b16 %v974, %v967
        %v1178 = vpack.c.b16 %v982, %v975
        %v1179 = vpack.c.b16 %v983, %v976
        %v1180 = vpack.c.b16 %v984, %v977
        %v1181 = vpack.c.b16 %v985, %v978
        %v1182 = vpack.c.b16 %v986, %v979
        %v1183 = vpack.c.b16 %v987, %v980
        %v1184 = vpack.c.b16 %v988, %v981
        %v1185 = vpack.c.b16 %v996, %v989
        %v1186 = vpack.c.b16 %v997, %v990
        %v1187 = vpack.c.b16 %v998, %v991
        %v1188 = vpack.c.b16 %v999, %v992
        %v1189 = vpack.c.b16 %v1000, %v993
        %v1190 = vpack.c.b16 %v1001, %v994
        %v1191 = vpack.c.b16 %v1002, %v995
        %v1192 = vpack.c.b16 %v1010, %v1003
        %v1193 = vpack.c.b16 %v1011, %v1004
        %v1194 = vpack.c.b16 %v1012, %v1005
        %v1195 = vpack.c.b16 %v1013, %v1006
        %v1196 = vpack.c.b16 %v1014, %v1007
        %v1197 = vpack.c.b16 %v1015, %v1008
        %v1198 = vpack.c.b16 %v1016, %v1009
        %v1199 = vpack.c.b16 %v1024, %v1017
        %v1200 = vpack.c.b16 %v1025, %v1018
        %v1201 = vpack.c.b16 %v1026, %v1019
        %v1202 = vpack.c.b16 %v1027, %v1020
        %v1203 = vpack.c.b16 %v1028, %v1021
        %v1204 = vpack.c.b16 %v1029, %v1022
        %v1205 = vpack.c.b16 %v1030, %v1023
        %v1206 = vpack.c.b16 %v1038, %v1031
        %v1207 = vpack.c.b16 %v1039, %v1032
        %v1208 = vpack.c.b16 %v1040, %v1033
        %v1209 = vpack.c.b16 %v1041, %v1034
        %v1210 = vpack.c.b16 %v1042, %v1035
        %v1211 = vpack.c.b16 %v1043, %v1036
        %v1212 = vpack.c.b16 %v1044, %v1037
        %v1213 = vpack.c.b16 %v1052, %v1045
        %v1214 = vpack.c.b16 %v1053, %v1046
        %v1215 = vpack.c.b16 %v1054, %v1047
        %v1216 = vpack.c.b16 %v1055, %v1048
        %v1217 = vpack.c.b16 %v1056, %v1049
        %v1218 = vpack.c.b16 %v1057, %v1050
        %v1219 = vpack.c.b16 %v1058, %v1051
        %v1220 = vpack.c.b16 %v1066, %v1059
        %v1221 = vpack.c.b16 %v1067, %v1060
        %v1222 = vpack.c.b16 %v1068, %v1061
        %v1223 = vpack.c.b16 %v1069, %v1062
        %v1224 = vpack.c.b16 %v1070, %v1063
        %v1225 = vpack.c.b16 %v1071, %v1064
        %v1226 = vpack.c.b16 %v1072, %v1065
        %v1227 = vpack.c.b16 %v1080, %v1073
        %v1228 = vpack.c.b16 %v1081, %v1074
        %v1229 = vpack.c.b16 %v1082, %v1075
        %v1230 = vpack.c.b16 %v1083, %v1076
        %v1231 = vpack.c.b16 %v1084, %v1077
        %v1232 = vpack.c.b16 %v1085, %v1078
        %v1233 = vpack.c.b16 %v1086, %v1079
        %v1234 = vpack.c.b16 %v1094, %v1087
        %v1235 = vpack.c.b16 %v1095, %v1088
        %v1236 = vpack.c.b16 %v1096, %v1089
        %v1237 = vpack.c.b16 %v1097, %v1090
        %v1238 = vpack.c.b16 %v1098, %v1091
        %v1239 = vpack.c.b16 %v1099, %v1092
        %v1240 = vpack.c.b16 %v1100, %v1093
        %v1241 = vpack.c.b16 %v1108, %v1101
        %v1242 = vpack.c.b16 %v1109, %v1102
        %v1243 = vpack.c.b16 %v1110, %v1103
        %v1244 = vpack.c.b16 %v1111, %v1104
        %v1245 = vpack.c.b16 %v1112, %v1105
        %v1246 = vpack.c.b16 %v1113, %v1106
        %v1247 = vpack.c.b16 %v1114, %v1107
        %v1248 = vpack.c.b16 %v1122, %v1115
        %v1249 = vpack.c.b16 %v1123, %v1116
        %v1250 = vpack.c.b16 %v1124, %v1117
        %v1251 = vpack.c.b16 %v1125, %v1118
        %v1252 = vpack.c.b16 %v1126, %v1119
        %v1253 = vpack.c.b16 %v1127, %v1120
        %v1254 = vpack.c.b16 %v1128, %v1121
        %v1255 = vpack.c.b16 %v1136, %v1129
        %v1256 = vpack.c.b16 %v1137, %v1130
        %v1257 = vpack.c.b16 %v1138, %v1131
        %v1258 = vpack.c.b16 %v1139, %v1132
        %v1259 = vpack.c.b16 %v1140, %v1133
        %v1260 = vpack.c.b16 %v1141, %v1134
        %v1261 = vpack.c.b16 %v1142, %v1135
        %v1262 = vpack.c.b16 %v1150, %v1143
        %v1263 = vpack.c.b16 %v1151, %v1144
        %v1264 = vpack.c.b16 %v1152, %v1145
        %v1265 = vpack.c.b16 %v1153, %v1146
        %v1266 = vpack.c.b16 %v1154, %v1147
        %v1267 = vpack.c.b16 %v1155, %v1148
        %v1268 = vpack.c.b16 %v1156, %v1149
        %v1493 = vunpack.c.l.b16 %v693
        %v1494 = vunpack.c.l.b16 %v694
        %v1495 = vunpack.c.l.b16 %v695
        %v1496 = vunpack.c.l.b16 %v696
        %v1497 = vunpack.c.l.b16 %v697
        %v1498 = vunpack.c.l.b16 %v698
        %v1499 = vunpack.c.l.b16 %v699
        %v1500 = vunpack.c.l.b16 %v700
        %v1501 = vunpack.c.l.b16 %v701
        %v1502 = vunpack.c.l.b16 %v702
        %v1503 = vunpack.c.l.b16 %v703
        %v1504 = vunpack.c.l.b16 %v704
        %v1505 = vunpack.c.l.b16 %v705
        %v1506 = vunpack.c.l.b16 %v706
        %v1507 = vunpack.c.l.b16 %v707
        %v1508 = vunpack.c.l.b16 %v708
        %v1509 = vunpack.c.l.b16 %v709
        %v1510 = vunpack.c.l.b16 %v710
        %v1511 = vunpack.c.l.b16 %v711
        %v1512 = vunpack.c.l.b16 %v712
        %v1513 = vunpack.c.l.b16 %v713
        %v1514 = vunpack.c.l.b16 %v714
        %v1515 = vunpack.c.l.b16 %v715
        %v1516 = vunpack.c.l.b16 %v716
        %v1517 = vunpack.c.l.b16 %v717
        %v1518 = vunpack.c.l.b16 %v718
        %v1519 = vunpack.c.l.b16 %v719
        %v1520 = vunpack.c.l.b16 %v720
        %v1521 = vunpack.c.l.b16 %v721
        %v1522 = vunpack.c.l.b16 %v722
        %v1523 = vunpack.c.l.b16 %v723
        %v1524 = vunpack.c.l.b16 %v724
        %v1525 = vunpack.c.l.b16 %v725
        %v1526 = vunpack.c.l.b16 %v726
        %v1527 = vunpack.c.l.b16 %v727
        %v1528 = vunpack.c.l.b16 %v728
        %v1529 = vunpack.c.l.b16 %v729
        %v1530 = vunpack.c.l.b16 %v730
        %v1531 = vunpack.c.l.b16 %v731
        %v1532 = vunpack.c.l.b16 %v732
        %v1533 = vunpack.c.l.b16 %v733
        %v1534 = vunpack.c.l.b16 %v734
        %v1535 = vunpack.c.l.b16 %v735
        %v1536 = vunpack.c.l.b16 %v736
        %v1537 = vunpack.c.l.b16 %v737
        %v1538 = vunpack.c.l.b16 %v738
        %v1539 = vunpack.c.l.b16 %v739
        %v1540 = vunpack.c.l.b16 %v740
        %v1541 = vunpack.c.l.b16 %v741
        %v1542 = vunpack.c.l.b16 %v742
        %v1543 = vunpack.c.l.b16 %v743
        %v1544 = vunpack.c.l.b16 %v744
        %v1545 = vunpack.c.l.b16 %v745
        %v1546 = vunpack.c.l.b16 %v746
        %v1547 = vunpack.c.l.b16 %v747
        %v1548 = vunpack.c.l.b16 %v748
        %v1549 = vunpack.c.l.b16 %v749
        %v1550 = vunpack.c.l.b16 %v750
        %v1551 = vunpack.c.l.b16 %v751
        %v1552 = vunpack.c.l.b16 %v752
        %v1553 = vunpack.c.l.b16 %v753
        %v1554 = vunpack.c.l.b16 %v754
        %v1555 = vunpack.c.l.b16 %v755
        %v1556 = vunpack.c.l.b16 %v756
        %v1557 = vunpack.c.l.b16 %v757
        %v1558 = vunpack.c.l.b16 %v758
        %v1559 = vunpack.c.l.b16 %v759
        %v1560 = vunpack.c.l.b16 %v760
        %v1561 = vunpack.c.l.b16 %v761
        %v1562 = vunpack.c.l.b16 %v762
        %v1563 = vunpack.c.l.b16 %v763
        %v1564 = vunpack.c.l.b16 %v764
        %v1565 = vunpack.c.l.b16 %v765
        %v1566 = vunpack.c.l.b16 %v766
        %v1567 = vunpack.c.l.b16 %v767
        %v1568 = vunpack.c.l.b16 %v768
        %v1569 = vunpack.c.l.b16 %v769
        %v1570 = vunpack.c.l.b16 %v770
        %v1571 = vunpack.c.l.b16 %v771
        %v1572 = vunpack.c.l.b16 %v772
        %v1573 = vunpack.c.l.b16 %v773
        %v1574 = vunpack.c.l.b16 %v774
        %v1575 = vunpack.c.l.b16 %v775
        %v1576 = vunpack.c.l.b16 %v776
        %v1577 = vunpack.c.l.b16 %v777
        %v1578 = vunpack.c.l.b16 %v778
        %v1579 = vunpack.c.l.b16 %v779
        %v1580 = vunpack.c.l.b16 %v780
        %v1581 = vunpack.c.l.b16 %v781
        %v1582 = vunpack.c.l.b16 %v782
        %v1583 = vunpack.c.l.b16 %v783
        %v1584 = vunpack.c.l.b16 %v784
        %v1585 = vunpack.c.l.b16 %v785
        %v1586 = vunpack.c.l.b16 %v786
        %v1587 = vunpack.c.l.b16 %v787
        %v1588 = vunpack.c.l.b16 %v788
        %v1589 = vunpack.c.l.b16 %v789
        %v1590 = vunpack.c.l.b16 %v790
        %v1591 = vunpack.c.l.b16 %v791
        %v1592 = vunpack.c.l.b16 %v792
        %v1593 = vunpack.c.l.b16 %v793
        %v1594 = vunpack.c.l.b16 %v794
        %v1595 = vunpack.c.l.b16 %v795
        %v1596 = vunpack.c.l.b16 %v796
        %v1597 = vunpack.c.l.b16 %v797
        %v1598 = vunpack.c.l.b16 %v798
        %v1599 = vunpack.c.l.b16 %v799
        %v1600 = vunpack.c.l.b16 %v800
        %v1601 = vunpack.c.l.b16 %v801
        %v1602 = vunpack.c.l.b16 %v802
        %v1603 = vunpack.c.l.b16 %v803
        %v1604 = vunpack.c.l.b16 %v804
        %v1605 = vpack.c.b16 %v1494, %v1493
        %v1606 = vpack.c.b16 %v1496, %v1495
        %v1607 = vpack.c.b16 %v1498, %v1497
        %v1608 = vpack.c.b16 %v1500, %v1499
        %v1609 = vpack.c.b16 %v1502, %v1501
        %v1610 = vpack.c.b16 %v1504, %v1503
        %v1611 = vpack.c.b16 %v1506, %v1505
        %v1612 = vpack.c.b16 %v1508, %v1507
        %v1613 = vpack.c.b16 %v1510, %v1509
        %v1614 = vpack.c.b16 %v1512, %v1511
        %v1615 = vpack.c.b16 %v1514, %v1513
        %v1616 = vpack.c.b16 %v1516, %v1515
        %v1617 = vpack.c.b16 %v1518, %v1517
        %v1618 = vpack.c.b16 %v1520, %v1519
        %v1619 = vpack.c.b16 %v1522, %v1521
        %v1620 = vpack.c.b16 %v1524, %v1523
        %v1621 = vpack.c.b16 %v1526, %v1525
        %v1622 = vpack.c.b16 %v1528, %v1527
        %v1623 = vpack.c.b16 %v1530, %v1529
        %v1624 = vpack.c.b16 %v1532, %v1531
        %v1625 = vpack.c.b16 %v1534, %v1533
        %v1626 = vpack.c.b16 %v1536, %v1535
        %v1627 = vpack.c.b16 %v1538, %v1537
        %v1628 = vpack.c.b16 %v1540, %v1539
        %v1629 = vpack.c.b16 %v1542, %v1541
        %v1630 = vpack.c.b16 %v1544, %v1543
        %v1631 = vpack.c.b16 %v1546, %v1545
        %v1632 = vpack.c.b16 %v1548, %v1547
        %v1633 = vpack.c.b16 %v1550, %v1549
        %v1634 = vpack.c.b16 %v1552, %v1551
        %v1635 = vpack.c.b16 %v1554, %v1553
        %v1636 = vpack.c.b16 %v1556, %v1555
        %v1637 = vpack.c.b16 %v1558, %v1557
        %v1638 = vpack.c.b16 %v1560, %v1559
        %v1639 = vpack.c.b16 %v1562, %v1561
        %v1640 = vpack.c.b16 %v1564, %v1563
        %v1641 = vpack.c.b16 %v1566, %v1565
        %v1642 = vpack.c.b16 %v1568, %v1567
        %v1643 = vpack.c.b16 %v1570, %v1569
        %v1644 = vpack.c.b16 %v1572, %v1571
        %v1645 = vpack.c.b16 %v1574, %v1573
        %v1646 = vpack.c.b16 %v1576, %v1575
        %v1647 = vpack.c.b16 %v1578, %v1577
        %v1648 = vpack.c.b16 %v1580, %v1579
        %v1649 = vpack.c.b16 %v1582, %v1581
        %v1650 = vpack.c.b16 %v1584, %v1583
        %v1651 = vpack.c.b16 %v1586, %v1585
        %v1652 = vpack.c.b16 %v1588, %v1587
        %v1653 = vpack.c.b16 %v1590, %v1589
        %v1654 = vpack.c.b16 %v1592, %v1591
        %v1655 = vpack.c.b16 %v1594, %v1593
        %v1656 = vpack.c.b16 %v1596, %v1595
        %v1657 = vpack.c.b16 %v1598, %v1597
        %v1658 = vpack.c.b16 %v1600, %v1599
        %v1659 = vpack.c.b16 %v1602, %v1601
        %v1660 = vpack.c.b16 %v1604, %v1603
        %1717 = vmatprep.subr.bf16.mxu0 0
        %1718 = vmatpush1.bf16.msra.mxu0 %v1605
        %1719 = vmatprep.subr.bf16.mxu0 0
        %1720 = vmatpush1.bf16.msra.mxu0 %v1606
        %1721 = vmatprep.subr.bf16.mxu0 0
        %1722 = vmatpush1.bf16.msra.mxu0 %v1607
        %1723 = vmatprep.subr.bf16.mxu0 0
        %1724 = vmatpush1.bf16.msra.mxu0 %v1608
        %1725 = vmatprep.subr.bf16.mxu0 0
        %1726 = vmatpush1.bf16.msra.mxu0 %v1609
        %1727 = vmatprep.subr.bf16.mxu0 0
        %1728 = vmatpush1.bf16.msra.mxu0 %v1610
        %1729 = vmatprep.subr.bf16.mxu0 0
        %1730 = vmatpush1.bf16.msra.mxu0 %v1611
        %1731 = vmatprep.subr.bf16.mxu0 0
        %1732 = vmatpush1.bf16.msra.mxu0 %v1612
        %1733 = vmatprep.subr.bf16.mxu0 0
        %1734 = vmatpush1.bf16.msra.mxu0 %v1613
        %1735 = vmatprep.subr.bf16.mxu0 0
        %1736 = vmatpush1.bf16.msra.mxu0 %v1614
        %1737 = vmatprep.subr.bf16.mxu0 0
        %1738 = vmatpush1.bf16.msra.mxu0 %v1615
        %1739 = vmatprep.subr.bf16.mxu0 0
        %1740 = vmatpush1.bf16.msra.mxu0 %v1616
        %1741 = vmatprep.subr.bf16.mxu0 0
        %1742 = vmatpush1.bf16.msra.mxu0 %v1617
        %1743 = vmatprep.subr.bf16.mxu0 0
        %1744 = vmatpush1.bf16.msra.mxu0 %v1618
        %1745 = vmatprep.subr.bf16.mxu0 0
        %1746 = vmatpush1.bf16.msra.mxu0 %v1619
        %1747 = vmatprep.subr.bf16.mxu0 0
        %1748 = vmatpush1.bf16.msra.mxu0 %v1620
        %1749 = vmatprep.mubr.bf16.mxu0 %v1158
        %1750 = vmatmul.mubr.bf16.gmra.mrb[0].mxu0 %v1157
        %v1751 = vpop.f32.mrb[0].mxu0
        %v1752 = vadd.f32 0.0, %v1751
        %v1753 = vpop.f32.mrb[0].mxu0
        %v1754 = vpop.f32.mrb[0].mxu0
        %v1755 = vadd.f32 0.0, %v1754
        %v1756 = vpop.f32.mrb[0].mxu0
        %1757 = vmatprep.mubr.bf16.mxu0 %v1165
        %1758 = vmatmul.mubr.bf16.gmra.mrb[0].mxu0 %v1164
        %v1759 = vpop.f32.mrb[0].mxu0
        %v1760 = vadd.f32 0.0, %v1759
        %v1761 = vpop.f32.mrb[0].mxu0
        %v1762 = vpop.f32.mrb[0].mxu0
        %v1763 = vadd.f32 0.0, %v1762
        %v1764 = vpop.f32.mrb[0].mxu0
        %1765 = vmatprep.mubr.bf16.mxu0 %v1172
        %1766 = vmatmul.mubr.bf16.gmra.mrb[0].mxu0 %v1171
        %v1767 = vpop.f32.mrb[0].mxu0
        %v1768 = vadd.f32 0.0, %v1767
        %v1769 = vpop.f32.mrb[0].mxu0
        %v1770 = vpop.f32.mrb[0].mxu0
        %v1771 = vadd.f32 0.0, %v1770
        %v1772 = vpop.f32.mrb[0].mxu0
        %1773 = vmatprep.mubr.bf16.mxu0 %v1179
        %1774 = vmatmul.mubr.bf16.gmra.mrb[0].mxu0 %v1178
        %v1775 = vpop.f32.mrb[0].mxu0
        %v1776 = vadd.f32 0.0, %v1775
        %v1777 = vpop.f32.mrb[0].mxu0
        %v1778 = vpop.f32.mrb[0].mxu0
        %v1779 = vadd.f32 0.0, %v1778
        %v1780 = vpop.f32.mrb[0].mxu0
        %1781 = vmatprep.mubr.bf16.mxu0 %v1186
        %1782 = vmatmul.mubr.bf16.gmra.mrb[0].mxu0 %v1185
        %v1783 = vpop.f32.mrb[0].mxu0
        %v1784 = vadd.f32 0.0, %v1783
        %v1785 = vpop.f32.mrb[0].mxu0
        %v1786 = vpop.f32.mrb[0].mxu0
        %v1787 = vadd.f32 0.0, %v1786
        %v1788 = vpop.f32.mrb[0].mxu0
        %1789 = vmatprep.mubr.bf16.mxu0 %v1193
        %1790 = vmatmul.mubr.bf16.gmra.mrb[0].mxu0 %v1192
        %v1791 = vpop.f32.mrb[0].mxu0
        %v1792 = vadd.f32 0.0, %v1791
        %v1793 = vpop.f32.mrb[0].mxu0
        %v1794 = vpop.f32.mrb[0].mxu0
        %v1795 = vadd.f32 0.0, %v1794
        %v1796 = vpop.f32.mrb[0].mxu0
        %1797 = vmatprep.mubr.bf16.mxu0 %v1200
        %1798 = vmatmul.mubr.bf16.gmra.mrb[0].mxu0 %v1199
        %v1799 = vpop.f32.mrb[0].mxu0
        %v1800 = vadd.f32 0.0, %v1799
        %v1801 = vpop.f32.mrb[0].mxu0
        %v1802 = vpop.f32.mrb[0].mxu0
        %v1803 = vadd.f32 0.0, %v1802
        %v1804 = vpop.f32.mrb[0].mxu0
        %1805 = vmatprep.mubr.bf16.mxu0 %v1207
        %1806 = vmatmul.mubr.bf16.gmra.mrb[0].mxu0 %v1206
        %v1807 = vpop.f32.mrb[0].mxu0
        %v1808 = vadd.f32 0.0, %v1807
        %v1809 = vpop.f32.mrb[0].mxu0
        %v1810 = vpop.f32.mrb[0].mxu0
        %v1811 = vadd.f32 0.0, %v1810
        %v1812 = vpop.f32.mrb[0].mxu0
        %1813 = vmatprep.mubr.bf16.mxu0 %v1214
        %1814 = vmatmul.mubr.bf16.gmra.mrb[0].mxu0 %v1213
        %v1815 = vpop.f32.mrb[0].mxu0
        %v1816 = vadd.f32 0.0, %v1815
        %v1817 = vpop.f32.mrb[0].mxu0
        %v1818 = vpop.f32.mrb[0].mxu0
        %v1819 = vadd.f32 0.0, %v1818
        %v1820 = vpop.f32.mrb[0].mxu0
        %1821 = vmatprep.mubr.bf16.mxu0 %v1221
        %1822 = vmatmul.mubr.bf16.gmra.mrb[0].mxu0 %v1220
        %v1823 = vpop.f32.mrb[0].mxu0
        %v1824 = vadd.f32 0.0, %v1823
        %v1825 = vpop.f32.mrb[0].mxu0
        %v1826 = vpop.f32.mrb[0].mxu0
        %v1827 = vadd.f32 0.0, %v1826
        %v1828 = vpop.f32.mrb[0].mxu0
        %1829 = vmatprep.mubr.bf16.mxu0 %v1228
        %1830 = vmatmul.mubr.bf16.gmra.mrb[0].mxu0 %v1227
        %v1831 = vpop.f32.mrb[0].mxu0
        %v1832 = vadd.f32 0.0, %v1831
        %v1833 = vpop.f32.mrb[0].mxu0
        %v1834 = vpop.f32.mrb[0].mxu0
        %v1835 = vadd.f32 0.0, %v1834
        %v1836 = vpop.f32.mrb[0].mxu0
        %1837 = vmatprep.mubr.bf16.mxu0 %v1235
        %1838 = vmatmul.mubr.bf16.gmra.mrb[0].mxu0 %v1234
        %v1839 = vpop.f32.mrb[0].mxu0
        %v1840 = vadd.f32 0.0, %v1839
        %v1841 = vpop.f32.mrb[0].mxu0
        %v1842 = vpop.f32.mrb[0].mxu0
        %v1843 = vadd.f32 0.0, %v1842
        %v1844 = vpop.f32.mrb[0].mxu0
        %1845 = vmatprep.mubr.bf16.mxu0 %v1242
        %1846 = vmatmul.mubr.bf16.gmra.mrb[0].mxu0 %v1241
        %v1847 = vpop.f32.mrb[0].mxu0
        %v1848 = vadd.f32 0.0, %v1847
        %v1849 = vpop.f32.mrb[0].mxu0
        %v1850 = vpop.f32.mrb[0].mxu0
        %v1851 = vadd.f32 0.0, %v1850
        %v1852 = vpop.f32.mrb[0].mxu0
        %1853 = vmatprep.mubr.bf16.mxu0 %v1249
        %1854 = vmatmul.mubr.bf16.gmra.mrb[0].mxu0 %v1248
        %v1855 = vpop.f32.mrb[0].mxu0
        %v1856 = vadd.f32 0.0, %v1855
        %v1857 = vpop.f32.mrb[0].mxu0
        %v1858 = vpop.f32.mrb[0].mxu0
        %v1859 = vadd.f32 0.0, %v1858
        %v1860 = vpop.f32.mrb[0].mxu0
        %1861 = vmatprep.mubr.bf16.mxu0 %v1256
        %1862 = vmatmul.mubr.bf16.gmra.mrb[0].mxu0 %v1255
        %v1863 = vpop.f32.mrb[0].mxu0
        %v1864 = vadd.f32 0.0, %v1863
        %v1865 = vpop.f32.mrb[0].mxu0
        %v1866 = vpop.f32.mrb[0].mxu0
        %v1867 = vadd.f32 0.0, %v1866
        %v1868 = vpop.f32.mrb[0].mxu0
        %1869 = vmatprep.mubr.bf16.mxu0 %v1263
        %1870 = vmatmul.mubr.bf16.gmra.mrb[0].mxu0 %v1262
        %v1871 = vpop.f32.mrb[0].mxu0
        %v1872 = vadd.f32 0.0, %v1871
        %v1873 = vpop.f32.mrb[0].mxu0
        %v1874 = vpop.f32.mrb[0].mxu0
        %v1875 = vadd.f32 0.0, %v1874
        %v1876 = vpop.f32.mrb[0].mxu0
        %1877 = vdwg.mxu0
        %1878 = vmatprep.subr.bf16.mxu0 0
        %1879 = vmatpush1.bf16.msra.mxu0 %v1621
        %1880 = vmatprep.subr.bf16.mxu0 0
        %1881 = vmatpush1.bf16.msra.mxu0 %v1622
        %1882 = vmatprep.subr.bf16.mxu0 0
        %1883 = vmatpush1.bf16.msra.mxu0 %v1623
        %1884 = vmatprep.subr.bf16.mxu0 0
        %1885 = vmatpush1.bf16.msra.mxu0 %v1624
        %1886 = vmatprep.subr.bf16.mxu0 0
        %1887 = vmatpush1.bf16.msra.mxu0 %v1625
        %1888 = vmatprep.subr.bf16.mxu0 0
        %1889 = vmatpush1.bf16.msra.mxu0 %v1626
        %1890 = vmatprep.subr.bf16.mxu0 0
        %1891 = vmatpush1.bf16.msra.mxu0 %v1627
        %1892 = vmatprep.subr.bf16.mxu0 0
        %1893 = vmatpush1.bf16.msra.mxu0 %v1628
        %1894 = vmatprep.subr.bf16.mxu0 0
        %1895 = vmatpush1.bf16.msra.mxu0 %v1629
        %1896 = vmatprep.subr.bf16.mxu0 0
        %1897 = vmatpush1.bf16.msra.mxu0 %v1630
        %1898 = vmatprep.subr.bf16.mxu0 0
        %1899 = vmatpush1.bf16.msra.mxu0 %v1631
        %1900 = vmatprep.subr.bf16.mxu0 0
        %1901 = vmatpush1.bf16.msra.mxu0 %v1632
        %1902 = vmatprep.subr.bf16.mxu0 0
        %1903 = vmatpush1.bf16.msra.mxu0 %v1633
        %1904 = vmatprep.subr.bf16.mxu0 0
        %1905 = vmatpush1.bf16.msra.mxu0 %v1634
        %1906 = vmatprep.subr.bf16.mxu0 0
        %1907 = vmatpush1.bf16.msra.mxu0 %v1635
        %1908 = vmatprep.subr.bf16.mxu0 0
        %1909 = vmatpush1.bf16.msra.mxu0 %v1636
        %1910 = vmatprep.mubr.bf16.mxu0 %v1160
        %1911 = vmatmul.mubr.bf16.gmra.mrb[0].mxu0 %v1159
        %v1912 = vpop.f32.mrb[0].mxu0
        %v1913 = vadd.f32 %v1752, %v1912
        %v1914 = vpop.f32.mrb[0].mxu0
        %v1915 = vpop.f32.mrb[0].mxu0
        %v1916 = vadd.f32 %v1755, %v1915
        %v1917 = vpop.f32.mrb[0].mxu0
        %1918 = vmatprep.mubr.bf16.mxu0 %v1167
        %1919 = vmatmul.mubr.bf16.gmra.mrb[0].mxu0 %v1166
        %v1920 = vpop.f32.mrb[0].mxu0
        %v1921 = vadd.f32 %v1760, %v1920
        %v1922 = vpop.f32.mrb[0].mxu0
        %v1923 = vpop.f32.mrb[0].mxu0
        %v1924 = vadd.f32 %v1763, %v1923
        %v1925 = vpop.f32.mrb[0].mxu0
        %1926 = vmatprep.mubr.bf16.mxu0 %v1174
        %1927 = vmatmul.mubr.bf16.gmra.mrb[0].mxu0 %v1173
        %v1928 = vpop.f32.mrb[0].mxu0
        %v1929 = vadd.f32 %v1768, %v1928
        %v1930 = vpop.f32.mrb[0].mxu0
        %v1931 = vpop.f32.mrb[0].mxu0
        %v1932 = vadd.f32 %v1771, %v1931
        %v1933 = vpop.f32.mrb[0].mxu0
        %1934 = vmatprep.mubr.bf16.mxu0 %v1181
        %1935 = vmatmul.mubr.bf16.gmra.mrb[0].mxu0 %v1180
        %v1936 = vpop.f32.mrb[0].mxu0
        %v1937 = vadd.f32 %v1776, %v1936
        %v1938 = vpop.f32.mrb[0].mxu0
        %v1939 = vpop.f32.mrb[0].mxu0
        %v1940 = vadd.f32 %v1779, %v1939
        %v1941 = vpop.f32.mrb[0].mxu0
        %1942 = vmatprep.mubr.bf16.mxu0 %v1188
        %1943 = vmatmul.mubr.bf16.gmra.mrb[0].mxu0 %v1187
        %v1944 = vpop.f32.mrb[0].mxu0
        %v1945 = vadd.f32 %v1784, %v1944
        %v1946 = vpop.f32.mrb[0].mxu0
        %v1947 = vpop.f32.mrb[0].mxu0
        %v1948 = vadd.f32 %v1787, %v1947
        %v1949 = vpop.f32.mrb[0].mxu0
        %1950 = vmatprep.mubr.bf16.mxu0 %v1195
        %1951 = vmatmul.mubr.bf16.gmra.mrb[0].mxu0 %v1194
        %v1952 = vpop.f32.mrb[0].mxu0
        %v1953 = vadd.f32 %v1792, %v1952
        %v1954 = vpop.f32.mrb[0].mxu0
        %v1955 = vpop.f32.mrb[0].mxu0
        %v1956 = vadd.f32 %v1795, %v1955
        %v1957 = vpop.f32.mrb[0].mxu0
        %1958 = vmatprep.mubr.bf16.mxu0 %v1202
        %1959 = vmatmul.mubr.bf16.gmra.mrb[0].mxu0 %v1201
        %v1960 = vpop.f32.mrb[0].mxu0
        %v1961 = vadd.f32 %v1800, %v1960
        %v1962 = vpop.f32.mrb[0].mxu0
        %v1963 = vpop.f32.mrb[0].mxu0
        %v1964 = vadd.f32 %v1803, %v1963
        %v1965 = vpop.f32.mrb[0].mxu0
        %1966 = vmatprep.mubr.bf16.mxu0 %v1209
        %1967 = vmatmul.mubr.bf16.gmra.mrb[0].mxu0 %v1208
        %v1968 = vpop.f32.mrb[0].mxu0
        %v1969 = vadd.f32 %v1808, %v1968
        %v1970 = vpop.f32.mrb[0].mxu0
        %v1971 = vpop.f32.mrb[0].mxu0
        %v1972 = vadd.f32 %v1811, %v1971
        %v1973 = vpop.f32.mrb[0].mxu0
        %1974 = vmatprep.mubr.bf16.mxu0 %v1216
        %1975 = vmatmul.mubr.bf16.gmra.mrb[0].mxu0 %v1215
        %v1976 = vpop.f32.mrb[0].mxu0
        %v1977 = vadd.f32 %v1816, %v1976
        %v1978 = vpop.f32.mrb[0].mxu0
        %v1979 = vpop.f32.mrb[0].mxu0
        %v1980 = vadd.f32 %v1819, %v1979
        %v1981 = vpop.f32.mrb[0].mxu0
        %1982 = vmatprep.mubr.bf16.mxu0 %v1223
        %1983 = vmatmul.mubr.bf16.gmra.mrb[0].mxu0 %v1222
        %v1984 = vpop.f32.mrb[0].mxu0
        %v1985 = vadd.f32 %v1824, %v1984
        %v1986 = vpop.f32.mrb[0].mxu0
        %v1987 = vpop.f32.mrb[0].mxu0
        %v1988 = vadd.f32 %v1827, %v1987
        %v1989 = vpop.f32.mrb[0].mxu0
        %1990 = vmatprep.mubr.bf16.mxu0 %v1230
        %1991 = vmatmul.mubr.bf16.gmra.mrb[0].mxu0 %v1229
        %v1992 = vpop.f32.mrb[0].mxu0
        %v1993 = vadd.f32 %v1832, %v1992
        %v1994 = vpop.f32.mrb[0].mxu0
        %v1995 = vpop.f32.mrb[0].mxu0
        %v1996 = vadd.f32 %v1835, %v1995
        %v1997 = vpop.f32.mrb[0].mxu0
        %1998 = vmatprep.mubr.bf16.mxu0 %v1237
        %1999 = vmatmul.mubr.bf16.gmra.mrb[0].mxu0 %v1236
        %v2000 = vpop.f32.mrb[0].mxu0
        %v2001 = vadd.f32 %v1840, %v2000
        %v2002 = vpop.f32.mrb[0].mxu0
        %v2003 = vpop.f32.mrb[0].mxu0
        %v2004 = vadd.f32 %v1843, %v2003
        %v2005 = vpop.f32.mrb[0].mxu0
        %2006 = vmatprep.mubr.bf16.mxu0 %v1244
        %2007 = vmatmul.mubr.bf16.gmra.mrb[0].mxu0 %v1243
        %v2008 = vpop.f32.mrb[0].mxu0
        %v2009 = vadd.f32 %v1848, %v2008
        %v2010 = vpop.f32.mrb[0].mxu0
        %v2011 = vpop.f32.mrb[0].mxu0
        %v2012 = vadd.f32 %v1851, %v2011
        %v2013 = vpop.f32.mrb[0].mxu0
        %2014 = vmatprep.mubr.bf16.mxu0 %v1251
        %2015 = vmatmul.mubr.bf16.gmra.mrb[0].mxu0 %v1250
        %v2016 = vpop.f32.mrb[0].mxu0
        %v2017 = vadd.f32 %v1856, %v2016
        %v2018 = vpop.f32.mrb[0].mxu0
        %v2019 = vpop.f32.mrb[0].mxu0
        %v2020 = vadd.f32 %v1859, %v2019
        %v2021 = vpop.f32.mrb[0].mxu0
        %2022 = vmatprep.mubr.bf16.mxu0 %v1258
        %2023 = vmatmul.mubr.bf16.gmra.mrb[0].mxu0 %v1257
        %v2024 = vpop.f32.mrb[0].mxu0
        %v2025 = vadd.f32 %v1864, %v2024
        %v2026 = vpop.f32.mrb[0].mxu0
        %v2027 = vpop.f32.mrb[0].mxu0
        %v2028 = vadd.f32 %v1867, %v2027
        %v2029 = vpop.f32.mrb[0].mxu0
        %2030 = vmatprep.mubr.bf16.mxu0 %v1265
        %2031 = vmatmul.mubr.bf16.gmra.mrb[0].mxu0 %v1264
        %v2032 = vpop.f32.mrb[0].mxu0
        %v2033 = vadd.f32 %v1872, %v2032
        %v2034 = vpop.f32.mrb[0].mxu0
        %v2035 = vpop.f32.mrb[0].mxu0
        %v2036 = vadd.f32 %v1875, %v2035
        %v2037 = vpop.f32.mrb[0].mxu0
        %2038 = vdwg.mxu0
        %2039 = vmatprep.subr.bf16.mxu0 0
        %2040 = vmatpush1.bf16.msra.mxu0 %v1637
        %2041 = vmatprep.subr.bf16.mxu0 0
        %2042 = vmatpush1.bf16.msra.mxu0 %v1638
        %2043 = vmatprep.subr.bf16.mxu0 0
        %2044 = vmatpush1.bf16.msra.mxu0 %v1639
        %2045 = vmatprep.subr.bf16.mxu0 0
        %2046 = vmatpush1.bf16.msra.mxu0 %v1640
        %2047 = vmatprep.subr.bf16.mxu0 0
        %2048 = vmatpush1.bf16.msra.mxu0 %v1641
        %2049 = vmatprep.subr.bf16.mxu0 0
        %2050 = vmatpush1.bf16.msra.mxu0 %v1642
        %2051 = vmatprep.subr.bf16.mxu0 0
        %2052 = vmatpush1.bf16.msra.mxu0 %v1643
        %2053 = vmatprep.subr.bf16.mxu0 0
        %2054 = vmatpush1.bf16.msra.mxu0 %v1644
        %2055 = vmatprep.subr.bf16.mxu0 0
        %2056 = vmatpush1.bf16.msra.mxu0 %v1645
        %2057 = vmatprep.subr.bf16.mxu0 0
        %2058 = vmatpush1.bf16.msra.mxu0 %v1646
        %2059 = vmatprep.subr.bf16.mxu0 0
        %2060 = vmatpush1.bf16.msra.mxu0 %v1647
        %2061 = vmatprep.subr.bf16.mxu0 0
        %2062 = vmatpush1.bf16.msra.mxu0 %v1648
        %2063 = vmatprep.subr.bf16.mxu0 0
        %2064 = vmatpush1.bf16.msra.mxu0 %v1649
        %2065 = vmatprep.subr.bf16.mxu0 0
        %2066 = vmatpush1.bf16.msra.mxu0 %v1650
        %2067 = vmatprep.subr.bf16.mxu0 0
        %2068 = vmatpush1.bf16.msra.mxu0 %v1651
        %2069 = vmatprep.subr.bf16.mxu0 0
        %2070 = vmatpush1.bf16.msra.mxu0 %v1652
        %2071 = vmatprep.mubr.bf16.mxu0 %v1162
        %2072 = vmatmul.mubr.bf16.gmra.mrb[0].mxu0 %v1161
        %v2073 = vpop.f32.mrb[0].mxu0
        %v2074 = vadd.f32 %v1913, %v2073
        %v2075 = vpop.f32.mrb[0].mxu0
        %v2076 = vpop.f32.mrb[0].mxu0
        %v2077 = vadd.f32 %v1916, %v2076
        %v2078 = vpop.f32.mrb[0].mxu0
        %2079 = vmatprep.mubr.bf16.mxu0 %v1169
        %2080 = vmatmul.mubr.bf16.gmra.mrb[0].mxu0 %v1168
        %v2081 = vpop.f32.mrb[0].mxu0
        %v2082 = vadd.f32 %v1921, %v2081
        %v2083 = vpop.f32.mrb[0].mxu0
        %v2084 = vpop.f32.mrb[0].mxu0
        %v2085 = vadd.f32 %v1924, %v2084
        %v2086 = vpop.f32.mrb[0].mxu0
        %2087 = vmatprep.mubr.bf16.mxu0 %v1176
        %2088 = vmatmul.mubr.bf16.gmra.mrb[0].mxu0 %v1175
        %v2089 = vpop.f32.mrb[0].mxu0
        %v2090 = vadd.f32 %v1929, %v2089
        %v2091 = vpop.f32.mrb[0].mxu0
        %v2092 = vpop.f32.mrb[0].mxu0
        %v2093 = vadd.f32 %v1932, %v2092
        %v2094 = vpop.f32.mrb[0].mxu0
        %2095 = vmatprep.mubr.bf16.mxu0 %v1183
        %2096 = vmatmul.mubr.bf16.gmra.mrb[0].mxu0 %v1182
        %v2097 = vpop.f32.mrb[0].mxu0
        %v2098 = vadd.f32 %v1937, %v2097
        %v2099 = vpop.f32.mrb[0].mxu0
        %v2100 = vpop.f32.mrb[0].mxu0
        %v2101 = vadd.f32 %v1940, %v2100
        %v2102 = vpop.f32.mrb[0].mxu0
        %2103 = vmatprep.mubr.bf16.mxu0 %v1190
        %2104 = vmatmul.mubr.bf16.gmra.mrb[0].mxu0 %v1189
        %v2105 = vpop.f32.mrb[0].mxu0
        %v2106 = vadd.f32 %v1945, %v2105
        %v2107 = vpop.f32.mrb[0].mxu0
        %v2108 = vpop.f32.mrb[0].mxu0
        %v2109 = vadd.f32 %v1948, %v2108
        %v2110 = vpop.f32.mrb[0].mxu0
        %2111 = vmatprep.mubr.bf16.mxu0 %v1197
        %2112 = vmatmul.mubr.bf16.gmra.mrb[0].mxu0 %v1196
        %v2113 = vpop.f32.mrb[0].mxu0
        %v2114 = vadd.f32 %v1953, %v2113
        %v2115 = vpop.f32.mrb[0].mxu0
        %v2116 = vpop.f32.mrb[0].mxu0
        %v2117 = vadd.f32 %v1956, %v2116
        %v2118 = vpop.f32.mrb[0].mxu0
        %2119 = vmatprep.mubr.bf16.mxu0 %v1204
        %2120 = vmatmul.mubr.bf16.gmra.mrb[0].mxu0 %v1203
        %v2121 = vpop.f32.mrb[0].mxu0
        %v2122 = vadd.f32 %v1961, %v2121
        %v2123 = vpop.f32.mrb[0].mxu0
        %v2124 = vpop.f32.mrb[0].mxu0
        %v2125 = vadd.f32 %v1964, %v2124
        %v2126 = vpop.f32.mrb[0].mxu0
        %2127 = vmatprep.mubr.bf16.mxu0 %v1211
        %2128 = vmatmul.mubr.bf16.gmra.mrb[0].mxu0 %v1210
        %v2129 = vpop.f32.mrb[0].mxu0
        %v2130 = vadd.f32 %v1969, %v2129
        %v2131 = vpop.f32.mrb[0].mxu0
        %v2132 = vpop.f32.mrb[0].mxu0
        %v2133 = vadd.f32 %v1972, %v2132
        %v2134 = vpop.f32.mrb[0].mxu0
        %2135 = vmatprep.mubr.bf16.mxu0 %v1218
        %2136 = vmatmul.mubr.bf16.gmra.mrb[0].mxu0 %v1217
        %v2137 = vpop.f32.mrb[0].mxu0
        %v2138 = vadd.f32 %v1977, %v2137
        %v2139 = vpop.f32.mrb[0].mxu0
        %v2140 = vpop.f32.mrb[0].mxu0
        %v2141 = vadd.f32 %v1980, %v2140
        %v2142 = vpop.f32.mrb[0].mxu0
        %2143 = vmatprep.mubr.bf16.mxu0 %v1225
        %2144 = vmatmul.mubr.bf16.gmra.mrb[0].mxu0 %v1224
        %v2145 = vpop.f32.mrb[0].mxu0
        %v2146 = vadd.f32 %v1985, %v2145
        %v2147 = vpop.f32.mrb[0].mxu0
        %v2148 = vpop.f32.mrb[0].mxu0
        %v2149 = vadd.f32 %v1988, %v2148
        %v2150 = vpop.f32.mrb[0].mxu0
        %2151 = vmatprep.mubr.bf16.mxu0 %v1232
        %2152 = vmatmul.mubr.bf16.gmra.mrb[0].mxu0 %v1231
        %v2153 = vpop.f32.mrb[0].mxu0
        %v2154 = vadd.f32 %v1993, %v2153
        %v2155 = vpop.f32.mrb[0].mxu0
        %v2156 = vpop.f32.mrb[0].mxu0
        %v2157 = vadd.f32 %v1996, %v2156
        %v2158 = vpop.f32.mrb[0].mxu0
        %2159 = vmatprep.mubr.bf16.mxu0 %v1239
        %2160 = vmatmul.mubr.bf16.gmra.mrb[0].mxu0 %v1238
        %v2161 = vpop.f32.mrb[0].mxu0
        %v2162 = vadd.f32 %v2001, %v2161
        %v2163 = vpop.f32.mrb[0].mxu0
        %v2164 = vpop.f32.mrb[0].mxu0
        %v2165 = vadd.f32 %v2004, %v2164
        %v2166 = vpop.f32.mrb[0].mxu0
        %2167 = vmatprep.mubr.bf16.mxu0 %v1246
        %2168 = vmatmul.mubr.bf16.gmra.mrb[0].mxu0 %v1245
        %v2169 = vpop.f32.mrb[0].mxu0
        %v2170 = vadd.f32 %v2009, %v2169
        %v2171 = vpop.f32.mrb[0].mxu0
        %v2172 = vpop.f32.mrb[0].mxu0
        %v2173 = vadd.f32 %v2012, %v2172
        %v2174 = vpop.f32.mrb[0].mxu0
        %2175 = vmatprep.mubr.bf16.mxu0 %v1253
        %2176 = vmatmul.mubr.bf16.gmra.mrb[0].mxu0 %v1252
        %v2177 = vpop.f32.mrb[0].mxu0
        %v2178 = vadd.f32 %v2017, %v2177
        %v2179 = vpop.f32.mrb[0].mxu0
        %v2180 = vpop.f32.mrb[0].mxu0
        %v2181 = vadd.f32 %v2020, %v2180
        %v2182 = vpop.f32.mrb[0].mxu0
        %2183 = vmatprep.mubr.bf16.mxu0 %v1260
        %2184 = vmatmul.mubr.bf16.gmra.mrb[0].mxu0 %v1259
        %v2185 = vpop.f32.mrb[0].mxu0
        %v2186 = vadd.f32 %v2025, %v2185
        %v2187 = vpop.f32.mrb[0].mxu0
        %v2188 = vpop.f32.mrb[0].mxu0
        %v2189 = vadd.f32 %v2028, %v2188
        %v2190 = vpop.f32.mrb[0].mxu0
        %2191 = vmatprep.mubr.bf16.mxu0 %v1267
        %2192 = vmatmul.mubr.bf16.gmra.mrb[0].mxu0 %v1266
        %v2193 = vpop.f32.mrb[0].mxu0
        %v2194 = vadd.f32 %v2033, %v2193
        %v2195 = vpop.f32.mrb[0].mxu0
        %v2196 = vpop.f32.mrb[0].mxu0
        %v2197 = vadd.f32 %v2036, %v2196
        %v2198 = vpop.f32.mrb[0].mxu0
        %2199 = vdwg.mxu0
        %2200 = vmatprep.subr.bf16.mxu0 0
        %2201 = vmatpush1.bf16.msra.mxu0 %v1653
        %2202 = vmatprep.subr.bf16.mxu0 0
        %2203 = vmatpush1.bf16.msra.mxu0 %v1654
        %2204 = vmatprep.subr.bf16.mxu0 0
        %2205 = vmatpush1.bf16.msra.mxu0 %v1655
        %2206 = vmatprep.subr.bf16.mxu0 0
        %2207 = vmatpush1.bf16.msra.mxu0 %v1656
        %2208 = vmatprep.subr.bf16.mxu0 0
        %2209 = vmatpush1.bf16.msra.mxu0 %v1657
        %2210 = vmatprep.subr.bf16.mxu0 0
        %2211 = vmatpush1.bf16.msra.mxu0 %v1658
        %2212 = vmatprep.subr.bf16.mxu0 0
        %2213 = vmatpush1.bf16.msra.mxu0 %v1659
        %2214 = vmatprep.subr.bf16.mxu0 0
        %2215 = vmatpush1.bf16.msra.mxu0 %v1660
        %2216 = vmatprep.subr.bf16.mxu0 0
        %2217 = vmatpush1.bf16.msra.mxu0 0
        %2218 = vmatprep.subr.bf16.mxu0 0
        %2219 = vmatpush1.bf16.msra.mxu0 0
        %2220 = vmatprep.subr.bf16.mxu0 0
        %2221 = vmatpush1.bf16.msra.mxu0 0
        %2222 = vmatprep.subr.bf16.mxu0 0
        %2223 = vmatpush1.bf16.msra.mxu0 0
        %2224 = vmatprep.subr.bf16.mxu0 0
        %2225 = vmatpush1.bf16.msra.mxu0 0
        %2226 = vmatprep.subr.bf16.mxu0 0
        %2227 = vmatpush1.bf16.msra.mxu0 0
        %2228 = vmatprep.subr.bf16.mxu0 0
        %2229 = vmatpush1.bf16.msra.mxu0 0
        %2230 = vmatprep.subr.bf16.mxu0 0
        %2231 = vmatpush1.bf16.msra.mxu0 0
        %2232 = vmatprep.mubr.bf16.mxu0 0
        %2233 = vmatmul.mubr.bf16.gmra.mrb[0].mxu0 %v1163
        %v2234 = vpop.f32.mrb[0].mxu0
        %v2235 = vadd.f32 %v2074, %v2234
        %v2236 = vpop.f32.mrb[0].mxu0
        %v2237 = vpop.f32.mrb[0].mxu0
        %v2238 = vadd.f32 %v2077, %v2237
        %v2239 = vpop.f32.mrb[0].mxu0
        %2240 = vmatprep.mubr.bf16.mxu0 0
        %2241 = vmatmul.mubr.bf16.gmra.mrb[0].mxu0 %v1170
        %v2242 = vpop.f32.mrb[0].mxu0
        %v2243 = vadd.f32 %v2082, %v2242
        %v2244 = vpop.f32.mrb[0].mxu0
        %v2245 = vpop.f32.mrb[0].mxu0
        %v2246 = vadd.f32 %v2085, %v2245
        %v2247 = vpop.f32.mrb[0].mxu0
        %2248 = vmatprep.mubr.bf16.mxu0 0
        %2249 = vmatmul.mubr.bf16.gmra.mrb[0].mxu0 %v1177
        %v2250 = vpop.f32.mrb[0].mxu0
        %v2251 = vadd.f32 %v2090, %v2250
        %v2252 = vpop.f32.mrb[0].mxu0
        %v2253 = vpop.f32.mrb[0].mxu0
        %v2254 = vadd.f32 %v2093, %v2253
        %v2255 = vpop.f32.mrb[0].mxu0
        %2256 = vmatprep.mubr.bf16.mxu0 0
        %2257 = vmatmul.mubr.bf16.gmra.mrb[0].mxu0 %v1184
        %v2258 = vpop.f32.mrb[0].mxu0
        %v2259 = vadd.f32 %v2098, %v2258
        %v2260 = vpop.f32.mrb[0].mxu0
        %v2261 = vpop.f32.mrb[0].mxu0
        %v2262 = vadd.f32 %v2101, %v2261
        %v2263 = vpop.f32.mrb[0].mxu0
        %2264 = vmatprep.mubr.bf16.mxu0 0
        %2265 = vmatmul.mubr.bf16.gmra.mrb[0].mxu0 %v1191
        %v2266 = vpop.f32.mrb[0].mxu0
        %v2267 = vadd.f32 %v2106, %v2266
        %v2268 = vpop.f32.mrb[0].mxu0
        %v2269 = vpop.f32.mrb[0].mxu0
        %v2270 = vadd.f32 %v2109, %v2269
        %v2271 = vpop.f32.mrb[0].mxu0
        %2272 = vmatprep.mubr.bf16.mxu0 0
        %2273 = vmatmul.mubr.bf16.gmra.mrb[0].mxu0 %v1198
        %v2274 = vpop.f32.mrb[0].mxu0
        %v2275 = vadd.f32 %v2114, %v2274
        %v2276 = vpop.f32.mrb[0].mxu0
        %v2277 = vpop.f32.mrb[0].mxu0
        %v2278 = vadd.f32 %v2117, %v2277
        %v2279 = vpop.f32.mrb[0].mxu0
        %2280 = vmatprep.mubr.bf16.mxu0 0
        %2281 = vmatmul.mubr.bf16.gmra.mrb[0].mxu0 %v1205
        %v2282 = vpop.f32.mrb[0].mxu0
        %v2283 = vadd.f32 %v2122, %v2282
        %v2284 = vpop.f32.mrb[0].mxu0
        %v2285 = vpop.f32.mrb[0].mxu0
        %v2286 = vadd.f32 %v2125, %v2285
        %v2287 = vpop.f32.mrb[0].mxu0
        %2288 = vmatprep.mubr.bf16.mxu0 0
        %2289 = vmatmul.mubr.bf16.gmra.mrb[0].mxu0 %v1212
        %v2290 = vpop.f32.mrb[0].mxu0
        %v2291 = vadd.f32 %v2130, %v2290
        %v2292 = vpop.f32.mrb[0].mxu0
        %v2293 = vpop.f32.mrb[0].mxu0
        %v2294 = vadd.f32 %v2133, %v2293
        %v2295 = vpop.f32.mrb[0].mxu0
        %2296 = vmatprep.mubr.bf16.mxu0 0
        %2297 = vmatmul.mubr.bf16.gmra.mrb[0].mxu0 %v1219
        %v2298 = vpop.f32.mrb[0].mxu0
        %v2299 = vadd.f32 %v2138, %v2298
        %v2300 = vpop.f32.mrb[0].mxu0
        %v2301 = vpop.f32.mrb[0].mxu0
        %v2302 = vadd.f32 %v2141, %v2301
        %v2303 = vpop.f32.mrb[0].mxu0
        %2304 = vmatprep.mubr.bf16.mxu0 0
        %2305 = vmatmul.mubr.bf16.gmra.mrb[0].mxu0 %v1226
        %v2306 = vpop.f32.mrb[0].mxu0
        %v2307 = vadd.f32 %v2146, %v2306
        %v2308 = vpop.f32.mrb[0].mxu0
        %v2309 = vpop.f32.mrb[0].mxu0
        %v2310 = vadd.f32 %v2149, %v2309
        %v2311 = vpop.f32.mrb[0].mxu0
        %2312 = vmatprep.mubr.bf16.mxu0 0
        %2313 = vmatmul.mubr.bf16.gmra.mrb[0].mxu0 %v1233
        %v2314 = vpop.f32.mrb[0].mxu0
        %v2315 = vadd.f32 %v2154, %v2314
        %v2316 = vpop.f32.mrb[0].mxu0
        %v2317 = vpop.f32.mrb[0].mxu0
        %v2318 = vadd.f32 %v2157, %v2317
        %v2319 = vpop.f32.mrb[0].mxu0
        %2320 = vmatprep.mubr.bf16.mxu0 0
        %2321 = vmatmul.mubr.bf16.gmra.mrb[0].mxu0 %v1240
        %v2322 = vpop.f32.mrb[0].mxu0
        %v2323 = vadd.f32 %v2162, %v2322
        %v2324 = vpop.f32.mrb[0].mxu0
        %v2325 = vpop.f32.mrb[0].mxu0
        %v2326 = vadd.f32 %v2165, %v2325
        %v2327 = vpop.f32.mrb[0].mxu0
        %2328 = vmatprep.mubr.bf16.mxu0 0
        %2329 = vmatmul.mubr.bf16.gmra.mrb[0].mxu0 %v1247
        %v2330 = vpop.f32.mrb[0].mxu0
        %v2331 = vadd.f32 %v2170, %v2330
        %v2332 = vpop.f32.mrb[0].mxu0
        %v2333 = vpop.f32.mrb[0].mxu0
        %v2334 = vadd.f32 %v2173, %v2333
        %v2335 = vpop.f32.mrb[0].mxu0
        %2336 = vmatprep.mubr.bf16.mxu0 0
        %2337 = vmatmul.mubr.bf16.gmra.mrb[0].mxu0 %v1254
        %v2338 = vpop.f32.mrb[0].mxu0
        %v2339 = vadd.f32 %v2178, %v2338
        %v2340 = vpop.f32.mrb[0].mxu0
        %v2341 = vpop.f32.mrb[0].mxu0
        %v2342 = vadd.f32 %v2181, %v2341
        %v2343 = vpop.f32.mrb[0].mxu0
        %2344 = vmatprep.mubr.bf16.mxu0 0
        %2345 = vmatmul.mubr.bf16.gmra.mrb[0].mxu0 %v1261
        %v2346 = vpop.f32.mrb[0].mxu0
        %v2347 = vadd.f32 %v2186, %v2346
        %v2348 = vpop.f32.mrb[0].mxu0
        %v2349 = vpop.f32.mrb[0].mxu0
        %v2350 = vadd.f32 %v2189, %v2349
        %v2351 = vpop.f32.mrb[0].mxu0
        %2352 = vmatprep.mubr.bf16.mxu0 0
        %2353 = vmatmul.mubr.bf16.gmra.mrb[0].mxu0 %v1268
        %v2354 = vpop.f32.mrb[0].mxu0
        %v2355 = vadd.f32 %v2194, %v2354
        %v2356 = vpop.f32.mrb[0].mxu0
        %v2357 = vpop.f32.mrb[0].mxu0
        %v2358 = vadd.f32 %v2197, %v2357
        %v2359 = vpop.f32.mrb[0].mxu0
        %2360 = vdwg.mxu0
        %v2361 = vadd.f32 %v533, %v2235
        %v2362 = vadd.f32 %v534, %v2238
        %v2363 = vadd.f32 %v535, %v2243
        %v2364 = vadd.f32 %v536, %v2246
        %v2365 = vadd.f32 %v537, %v2251
        %v2366 = vadd.f32 %v538, %v2254
        %v2367 = vadd.f32 %v539, %v2259
        %v2368 = vadd.f32 %v540, %v2262
        %v2369 = vadd.f32 %v541, %v2267
        %v2370 = vadd.f32 %v542, %v2270
        %v2371 = vadd.f32 %v543, %v2275
        %v2372 = vadd.f32 %v544, %v2278
        %v2373 = vadd.f32 %v545, %v2283
        %v2374 = vadd.f32 %v546, %v2286
        %v2375 = vadd.f32 %v547, %v2291
        %v2376 = vadd.f32 %v548, %v2294
        %v2377 = vadd.f32 %v549, %v2299
        %v2378 = vadd.f32 %v550, %v2302
        %v2379 = vadd.f32 %v551, %v2307
        %v2380 = vadd.f32 %v552, %v2310
        %v2381 = vadd.f32 %v553, %v2315
        %v2382 = vadd.f32 %v554, %v2318
        %v2383 = vadd.f32 %v555, %v2323
        %v2384 = vadd.f32 %v556, %v2326
        %v2385 = vadd.f32 %v557, %v2331
        %v2386 = vadd.f32 %v558, %v2334
        %v2387 = vadd.f32 %v559, %v2339
        %v2388 = vadd.f32 %v560, %v2342
        %v2389 = vadd.f32 %v561, %v2347
        %v2390 = vadd.f32 %v562, %v2350
        %v2391 = vadd.f32 %v563, %v2355
        %v2392 = vadd.f32 %v564, %v2358
        %2393 = vst [vmem:[%s494] sm:$0xff] %v2361
        %2394 = vst [vmem:[%s494 + $0x8] sm:$0xff] %v2362
        %2395 = vst [vmem:[%s494 + $0x10] sm:$0xff] %v2363
        %2396 = vst [vmem:[%s494 + $0x18] sm:$0xff] %v2364
        %2397 = vst [vmem:[%s494 + $0x20] sm:$0xff] %v2365
        %2398 = vst [vmem:[%s494 + $0x28] sm:$0xff] %v2366
        %2399 = vst [vmem:[%s494 + $0x30] sm:$0xff] %v2367
        %2400 = vst [vmem:[%s494 + $0x38] sm:$0xff] %v2368
        %2401 = vst [vmem:[%s494 + $0x40] sm:$0xff] %v2369
        %2402 = vst [vmem:[%s494 + $0x48] sm:$0xff] %v2370
        %2403 = vst [vmem:[%s494 + $0x50] sm:$0xff] %v2371
        %2404 = vst [vmem:[%s494 + $0x58] sm:$0xff] %v2372
        %2405 = vst [vmem:[%s494 + $0x60] sm:$0xff] %v2373
        %2406 = vst [vmem:[%s494 + $0x68] sm:$0xff] %v2374
        %2407 = vst [vmem:[%s494 + $0x70] sm:$0xff] %v2375
        %2408 = vst [vmem:[%s494 + $0x78] sm:$0xff] %v2376
        %2409 = vst [vmem:[%s494 + $0x80] sm:$0xff] %v2377
        %2410 = vst [vmem:[%s494 + $0x88] sm:$0xff] %v2378
        %2411 = vst [vmem:[%s494 + $0x90] sm:$0xff] %v2379
        %2412 = vst [vmem:[%s494 + $0x98] sm:$0xff] %v2380
        %2413 = vst [vmem:[%s494 + $0xa0] sm:$0xff] %v2381
        %2414 = vst [vmem:[%s494 + $0xa8] sm:$0xff] %v2382
        %2415 = vst [vmem:[%s494 + $0xb0] sm:$0xff] %v2383
        %2416 = vst [vmem:[%s494 + $0xb8] sm:$0xff] %v2384
        %2417 = vst [vmem:[%s494 + $0xc0] sm:$0xff] %v2385
        %2418 = vst [vmem:[%s494 + $0xc8] sm:$0xff] %v2386
        %2419 = vst [vmem:[%s494 + $0xd0] sm:$0xff] %v2387
        %2420 = vst [vmem:[%s494 + $0xd8] sm:$0xff] %v2388
        %2421 = vst [vmem:[%s494 + $0xe0] sm:$0xff] %v2389
        %2422 = vst [vmem:[%s494 + $0xe8] sm:$0xff] %v2390
        %2423 = vst [vmem:[%s494 + $0xf0] sm:$0xff] %v2391
        %2424 = vst [vmem:[%s494 + $0xf8] sm:$0xff] %v2392
        %p2425 = scmp.eq.s32.totalorder %s19, 1
        // Predicated region
        $region63: #{_lambda_.13} parent=53 // pred_check
          %p2426 = pneg %p2425
        $region64: #{_lambda_.13} parent=53 // pred_check_branch
          %2428 = sbr.rel (%p2426) target = $region66
        $region65: #{_lambda_.13} parent=53 // pred_region
          %v2429 = vld [vmem:[%s494] sm:$0xff]
          %v2430 = vld [vmem:[%s494 + $0x8] sm:$0xff]
          %v2431 = vld [vmem:[%s494 + $0x10] sm:$0xff]
          %v2432 = vld [vmem:[%s494 + $0x18] sm:$0xff]
          %v2433 = vld [vmem:[%s494 + $0x20] sm:$0xff]
          %v2434 = vld [vmem:[%s494 + $0x28] sm:$0xff]
          %v2435 = vld [vmem:[%s494 + $0x30] sm:$0xff]
          %v2436 = vld [vmem:[%s494 + $0x38] sm:$0xff]
          %v2437 = vld [vmem:[%s494 + $0x40] sm:$0xff]
          %v2438 = vld [vmem:[%s494 + $0x48] sm:$0xff]
          %v2439 = vld [vmem:[%s494 + $0x50] sm:$0xff]
          %v2440 = vld [vmem:[%s494 + $0x58] sm:$0xff]
          %v2441 = vld [vmem:[%s494 + $0x60] sm:$0xff]
          %v2442 = vld [vmem:[%s494 + $0x68] sm:$0xff]
          %v2443 = vld [vmem:[%s494 + $0x70] sm:$0xff]
          %v2444 = vld [vmem:[%s494 + $0x78] sm:$0xff]
          %v2445 = vld [vmem:[%s494 + $0x80] sm:$0xff]
          %v2446 = vld [vmem:[%s494 + $0x88] sm:$0xff]
          %v2447 = vld [vmem:[%s494 + $0x90] sm:$0xff]
          %v2448 = vld [vmem:[%s494 + $0x98] sm:$0xff]
          %v2449 = vld [vmem:[%s494 + $0xa0] sm:$0xff]
          %v2450 = vld [vmem:[%s494 + $0xa8] sm:$0xff]
          %v2451 = vld [vmem:[%s494 + $0xb0] sm:$0xff]
          %v2452 = vld [vmem:[%s494 + $0xb8] sm:$0xff]
          %v2453 = vld [vmem:[%s494 + $0xc0] sm:$0xff]
          %v2454 = vld [vmem:[%s494 + $0xc8] sm:$0xff]
          %v2455 = vld [vmem:[%s494 + $0xd0] sm:$0xff]
          %v2456 = vld [vmem:[%s494 + $0xd8] sm:$0xff]
          %v2457 = vld [vmem:[%s494 + $0xe0] sm:$0xff]
          %v2458 = vld [vmem:[%s494 + $0xe8] sm:$0xff]
          %v2459 = vld [vmem:[%s494 + $0xf0] sm:$0xff]
          %v2460 = vld [vmem:[%s494 + $0xf8] sm:$0xff]
          %v2461 = vld [vmem:[%s2] sm:$0x1]
          %v2463 = vlaneseq
          %v2464 = vshrl.u32 %v2463, 7
          %v2465 = vsub.s32 0, %v2464
          %v2466 = vrot.slane %v2461, %v2465
          %v2468 = vadd.f32 %v2429, %v2466
          %v2469 = vadd.f32 %v2430, %v2466
          %v2470 = vadd.f32 %v2431, %v2466
          %v2471 = vadd.f32 %v2432, %v2466
          %v2472 = vadd.f32 %v2433, %v2466
          %v2473 = vadd.f32 %v2434, %v2466
          %v2474 = vadd.f32 %v2435, %v2466
          %v2475 = vadd.f32 %v2436, %v2466
          %v2476 = vadd.f32 %v2437, %v2466
          %v2477 = vadd.f32 %v2438, %v2466
          %v2478 = vadd.f32 %v2439, %v2466
          %v2479 = vadd.f32 %v2440, %v2466
          %v2480 = vadd.f32 %v2441, %v2466
          %v2481 = vadd.f32 %v2442, %v2466
          %v2482 = vadd.f32 %v2443, %v2466
          %v2483 = vadd.f32 %v2444, %v2466
          %v2484 = vadd.f32 %v2445, %v2466
          %v2485 = vadd.f32 %v2446, %v2466
          %v2486 = vadd.f32 %v2447, %v2466
          %v2487 = vadd.f32 %v2448, %v2466
          %v2488 = vadd.f32 %v2449, %v2466
          %v2489 = vadd.f32 %v2450, %v2466
          %v2490 = vadd.f32 %v2451, %v2466
          %v2491 = vadd.f32 %v2452, %v2466
          %v2492 = vadd.f32 %v2453, %v2466
          %v2493 = vadd.f32 %v2454, %v2466
          %v2494 = vadd.f32 %v2455, %v2466
          %v2495 = vadd.f32 %v2456, %v2466
          %v2496 = vadd.f32 %v2457, %v2466
          %v2497 = vadd.f32 %v2458, %v2466
          %v2498 = vadd.f32 %v2459, %v2466
          %v2499 = vadd.f32 %v2460, %v2466
          %v2500 = vtanh.pop %v2468
          %v2501 = vtanh.pop %v2469
          %v2502 = vtanh.pop %v2470
          %v2503 = vtanh.pop %v2471
          %v2504 = vtanh.pop %v2472
          %v2505 = vtanh.pop %v2473
          %v2506 = vtanh.pop %v2474
          %v2507 = vtanh.pop %v2475
          %v2508 = vtanh.pop %v2476
          %v2509 = vtanh.pop %v2477
          %v2510 = vtanh.pop %v2478
          %v2511 = vtanh.pop %v2479
          %v2512 = vtanh.pop %v2480
          %v2513 = vtanh.pop %v2481
          %v2514 = vtanh.pop %v2482
          %v2515 = vtanh.pop %v2483
          %v2516 = vtanh.pop %v2484
          %v2517 = vtanh.pop %v2485
          %v2518 = vtanh.pop %v2486
          %v2519 = vtanh.pop %v2487
          %v2520 = vtanh.pop %v2488
          %v2521 = vtanh.pop %v2489
          %v2522 = vtanh.pop %v2490
          %v2523 = vtanh.pop %v2491
          %v2524 = vtanh.pop %v2492
          %v2525 = vtanh.pop %v2493
          %v2526 = vtanh.pop %v2494
          %v2527 = vtanh.pop %v2495
          %v2528 = vtanh.pop %v2496
          %v2529 = vtanh.pop %v2497
          %v2530 = vtanh.pop %v2498
          %v2531 = vtanh.pop %v2499
          %2532 = vst [vmem:[%s494] sm:$0xff] %v2500
          %2533 = vst [vmem:[%s494 + $0x8] sm:$0xff] %v2501
          %2534 = vst [vmem:[%s494 + $0x10] sm:$0xff] %v2502
          %2535 = vst [vmem:[%s494 + $0x18] sm:$0xff] %v2503
          %2536 = vst [vmem:[%s494 + $0x20] sm:$0xff] %v2504
          %2537 = vst [vmem:[%s494 + $0x28] sm:$0xff] %v2505
          %2538 = vst [vmem:[%s494 + $0x30] sm:$0xff] %v2506
          %2539 = vst [vmem:[%s494 + $0x38] sm:$0xff] %v2507
          %2540 = vst [vmem:[%s494 + $0x40] sm:$0xff] %v2508
          %2541 = vst [vmem:[%s494 + $0x48] sm:$0xff] %v2509
          %2542 = vst [vmem:[%s494 + $0x50] sm:$0xff] %v2510
          %2543 = vst [vmem:[%s494 + $0x58] sm:$0xff] %v2511
          %2544 = vst [vmem:[%s494 + $0x60] sm:$0xff] %v2512
          %2545 = vst [vmem:[%s494 + $0x68] sm:$0xff] %v2513
          %2546 = vst [vmem:[%s494 + $0x70] sm:$0xff] %v2514
          %2547 = vst [vmem:[%s494 + $0x78] sm:$0xff] %v2515
          %2548 = vst [vmem:[%s494 + $0x80] sm:$0xff] %v2516
          %2549 = vst [vmem:[%s494 + $0x88] sm:$0xff] %v2517
          %2550 = vst [vmem:[%s494 + $0x90] sm:$0xff] %v2518
          %2551 = vst [vmem:[%s494 + $0x98] sm:$0xff] %v2519
          %2552 = vst [vmem:[%s494 + $0xa0] sm:$0xff] %v2520
          %2553 = vst [vmem:[%s494 + $0xa8] sm:$0xff] %v2521
          %2554 = vst [vmem:[%s494 + $0xb0] sm:$0xff] %v2522
          %2555 = vst [vmem:[%s494 + $0xb8] sm:$0xff] %v2523
          %2556 = vst [vmem:[%s494 + $0xc0] sm:$0xff] %v2524
          %2557 = vst [vmem:[%s494 + $0xc8] sm:$0xff] %v2525
          %2558 = vst [vmem:[%s494 + $0xd0] sm:$0xff] %v2526
          %2559 = vst [vmem:[%s494 + $0xd8] sm:$0xff] %v2527
          %2560 = vst [vmem:[%s494 + $0xe0] sm:$0xff] %v2528
          %2561 = vst [vmem:[%s494 + $0xe8] sm:$0xff] %v2529
          %2562 = vst [vmem:[%s494 + $0xf0] sm:$0xff] %v2530
          %2563 = vst [vmem:[%s494 + $0xf8] sm:$0xff] %v2531
        $region66: #{_lambda_.13} parent=53 // pred_fallthru
          _
        %s2564 = smul.u32 32, %s18
        %p2565 = scmp.lt.s32.totalorder %s2564, 543
        %s2566 = scalar_select %p2565, %s2564, 543
        %s2567 = smul.addr %s2566, 8
        %s2568 = scalar_lea.vmem %s3, %s2567
        // Predicated region
        $region67: #{_lambda_.13} parent=53 // pred_check
          %p2569 = pneg %p119
        $region68: #{_lambda_.13} parent=53 // pred_check_branch
          %2571 = sbr.rel (%p2569) target = $region70
        $region69: #{_lambda_.13} parent=53 // pred_region
          %s2572 = smul.u32 32, %s18
        $region70: #{_lambda_.13} parent=53 // pred_fallthru
          _
      $region54: #{_lambda_.13} parent=5 // pred_fallthru
        _
      %p2573 = scmp.le.s32.totalorder 2, %s9
      // Predicated region
      $region71: #{_lambda_.13} parent=5 // pred_check
        %p2574 = pneg %p2573
      $region72: #{_lambda_.13} parent=5 // pred_check_branch
        %2576 = sbr.rel (%p2574) target = $region74
      $region73: #{_lambda_.13} parent=5 // pred_region
        %s2577 = ssub.s32 %s9, 2
        // Predicated region
        $region75: #{_lambda_.13} parent=73 // pred_check
          %p2578 = pneg %p125
        $region76: #{_lambda_.13} parent=73 // pred_check_branch
          %2580 = sbr.rel (%p2578) target = $region78
        $region77: #{_lambda_.13} parent=73 // pred_region
          %s2581 = smul.u32 32, %s20
          %p2582 = scmp.lt.s32.totalorder %s2581, 543
          %s2583 = scalar_select %p2582, %s2581, 543
          %s2584 = smul.addr %s2583, 8
          %s2585 = scalar_lea.vmem %s3, %s2584
        $region78: #{_lambda_.13} parent=73 // pred_fallthru
          _
      $region74: #{_lambda_.13} parent=5 // pred_fallthru
        _
    $region6: #{_lambda_.13} parent=1 // loop_footer
      %s13 = sadd.s32 1, %s9
    $region7: #{_lambda_.13} parent=1 // loop_footer_branch
      %8 = sbr.rel target = $region3
    $region8: #{_lambda_.13} parent=1 // loop_exit
      _

</llo_original>
